<compile_context>
chip_gen: v5e
topology: v5e:2x2
jax: 0.10.0
libtpu: 0.0.40
codegen_flags: <defaults>
</compile_context>

<pallas_src>
import functools

import jax
import jax.numpy as jnp
from jax import lax
from jax.experimental import pallas as pl
from jax.experimental.pallas import tpu as pltpu


def _ceil_to(x, m):
    return ((x + m - 1) // m) * m


# ---------------------------------------------------------------------------
# Pallas kernels
# ---------------------------------------------------------------------------
def _matmul_stats_kernel(a_ref, b_ref, y_ref, sum_ref, ssq_ref, acc_ref):
    """Tiled bf16 matmul, f32 accumulation.  On the last K step it stores the
    bf16 output tile and per-(M-tile) column sum / sum-of-squares partials
    (fused BatchNorm batch statistics)."""
    k = pl.program_id(2)

    @pl.when(k == 0)
    def _():
        acc_ref[...] = jnp.zeros_like(acc_ref)

    acc_ref[...] += jnp.dot(a_ref[...], b_ref[...],
                            preferred_element_type=jnp.float32)

    @pl.when(k == pl.num_programs(2) - 1)
    def _():
        acc = acc_ref[...]
        y_ref[...] = acc.astype(y_ref.dtype)
        s = jnp.sum(acc, axis=0)[None, None, :]
        q = jnp.sum(acc * acc, axis=0)[None, None, :]
        sum_ref[...] = jnp.broadcast_to(s, sum_ref.shape)
        ssq_ref[...] = jnp.broadcast_to(q, ssq_ref.shape)


def matmul_stats_pallas(a, b):
    """(M, K) @ (K, N) -> (y bf16 (M, N), col_sum (N,), col_sum_sq (N,))."""
    M, K = a.shape
    _, N = b.shape

    # Shape-aware tiling: use the full (unpadded) dim as the block whenever it
    # is small; pad to bounded tiles only when a dim is genuinely large.
    tm = M if M <= 512 else 512
    tn = N if N <= 128 else 128
    tk = K if K <= 2048 else 512
    Mp, Np, Kp = _ceil_to(M, tm), _ceil_to(N, tn), _ceil_to(K, tk)

    a = a.astype(jnp.bfloat16)
    b = b.astype(jnp.bfloat16)
    if (Mp, Kp) != (M, K):
        a = jnp.pad(a, ((0, Mp - M), (0, Kp - K)))
    if (Kp, Np) != (K, N):
        b = jnp.pad(b, ((0, Kp - K), (0, Np - N)))
    gm, gn, gk = Mp // tm, Np // tn, Kp // tk

    y, psum, pssq = pl.pallas_call(
        _matmul_stats_kernel,
        out_shape=(jax.ShapeDtypeStruct((Mp, Np), jnp.bfloat16),
                   jax.ShapeDtypeStruct((gm, 8, Np), jnp.float32),
                   jax.ShapeDtypeStruct((gm, 8, Np), jnp.float32)),
        grid_spec=pltpu.PrefetchScalarGridSpec(
            num_scalar_prefetch=0,
            grid=(gm, gn, gk),
            in_specs=[pl.BlockSpec((tm, tk), lambda i, j, k: (i, k)),
                      pl.BlockSpec((tk, tn), lambda i, j, k: (k, j))],
            out_specs=(pl.BlockSpec((tm, tn), lambda i, j, k: (i, j)),
                       pl.BlockSpec((1, 8, tn), lambda i, j, k: (i, 0, j)),
                       pl.BlockSpec((1, 8, tn), lambda i, j, k: (i, 0, j))),
            scratch_shapes=[pltpu.VMEM((tm, tn), jnp.float32)]),
        compiler_params=pltpu.CompilerParams(
            dimension_semantics=("parallel", "parallel", "arbitrary")),
    )(a, b)

    if (Mp, Np) != (M, N):
        y = y[:M, :N]
    col_sum = jnp.sum(psum[:, 0, :], axis=0)[:N]
    col_ssq = jnp.sum(pssq[:, 0, :], axis=0)[:N]
    return y, col_sum, col_ssq


def _apply_act(v, act):
    if act == "relu":
        return jnp.maximum(v, 0.0)
    if act == "tanh":
        return jnp.tanh(v)
    return v


def _affine_act_kernel(y_ref, s_ref, b_ref, o_ref, *, act):
    v = y_ref[...].astype(jnp.float32) * s_ref[...] + b_ref[...]
    o_ref[...] = _apply_act(v, act).astype(o_ref.dtype)


def _affine_act_res_kernel(y_ref, s_ref, b_ref, r_ref, o_ref, *, act):
    v = (y_ref[...].astype(jnp.float32) * s_ref[...] + b_ref[...]
         + r_ref[...].astype(jnp.float32))
    o_ref[...] = _apply_act(v, act).astype(o_ref.dtype)


def affine_act_pallas(y, scale, shift, residual, act):
    """out = act(y * scale + shift [+ residual]); per-channel scale/shift.
    bf16 in / bf16 out; dedicated no-residual kernel (no zeros DMA)."""
    M, C = y.shape
    tm = M if M <= 1024 else 1024
    Mp = _ceil_to(M, tm)
    if Mp != M:
        y = jnp.pad(y, ((0, Mp - M), (0, 0)))
        if residual is not None:
            residual = jnp.pad(residual, ((0, Mp - M), (0, 0)))
    s2 = scale.reshape(1, C).astype(jnp.float32)
    b2 = shift.reshape(1, C).astype(jnp.float32)

    row_spec = pl.BlockSpec((tm, C), lambda i: (i, 0))
    vec_spec = pl.BlockSpec((1, C), lambda i: (0, 0))
    if residual is None:
        kernel = functools.partial(_affine_act_kernel, act=act)
        in_specs = [row_spec, vec_spec, vec_spec]
        operands = (y, s2, b2)
    else:
        kernel = functools.partial(_affine_act_res_kernel, act=act)
        in_specs = [row_spec, vec_spec, vec_spec, row_spec]
        operands = (y, s2, b2, residual.astype(jnp.bfloat16))

    out = pl.pallas_call(
        kernel,
        out_shape=jax.ShapeDtypeStruct((Mp, C), jnp.bfloat16),
        grid=(Mp // tm,),
        in_specs=in_specs,
        out_specs=pl.BlockSpec((tm, C), lambda i: (i, 0)),
        compiler_params=pltpu.CompilerParams(dimension_semantics=("parallel",)),
    )(*operands)
    return out[:M] if Mp != M else out


# ---------------------------------------------------------------------------
# Layer helpers (glue in plain JAX, compute in Pallas)
# ---------------------------------------------------------------------------
def conv_im2col_matmul(x, w, stride, pad, pad_mode):
    """x: NHWC, w: PyTorch Conv2d layout (Cout, Cin, kh, kw).
    Returns (y (M, Cout) bf16, col_sum, col_ssq, (N, Ho, Wo, Cout))."""
    Cout, Cin, kh, kw = w.shape
    if pad > 0:
        mode = "reflect" if pad_mode == "reflect" else "constant"
        x = jnp.pad(x, ((0, 0), (pad, pad), (pad, pad), (0, 0)), mode=mode)
    x = x.astype(jnp.bfloat16)
    N, Hp, Wp, C = x.shape
    Ho = (Hp - kh) // stride + 1
    Wo = (Wp - kw) // stride + 1
    # TODO(synk): move this windowing into the matmul kernel (manual DMA /
    # element-offset blocks) to avoid materializing the im2col matrix at all.
    patches = []
    for ki in range(kh):
        for kj in range(kw):
            patches.append(x[:, ki:ki + stride * Ho:stride,
                             kj:kj + stride * Wo:stride, :])
    pat = jnp.stack(patches, axis=3).reshape(N * Ho * Wo, kh * kw * C)
    wm = jnp.transpose(w, (2, 3, 1, 0)).reshape(kh * kw * Cin, Cout)
    y, s, q = matmul_stats_pallas(pat, wm.astype(jnp.bfloat16))
    return y, s, q, (N, Ho, Wo, Cout)


def _bn_scale_shift(col_sum, col_ssq, count, gamma, beta, eps=1e-5):
    mean = col_sum / count
    var = jnp.maximum(col_ssq / count - mean * mean, 0.0)  # biased (BN training)
    scale = gamma * lax.rsqrt(var + eps)
    shift = beta - mean * scale
    return scale, shift


def conv_bn_act(x, w, gamma, beta, *, stride, pad, pad_mode, act, residual=None):
    y, s, q, (N, Ho, Wo, Cout) = conv_im2col_matmul(x, w, stride, pad, pad_mode)
    scale, shift = _bn_scale_shift(s, q, N * Ho * Wo, gamma, beta)
    res = residual.reshape(N * Ho * Wo, Cout) if residual is not None else None
    out = affine_act_pallas(y, scale, shift, res, act)
    return out.reshape(N, Ho, Wo, Cout)


def up_layer(x, wt, gamma, beta):
    """ConvTranspose2d(k=3, s=2, p=1, op=1) + BN + ReLU via a 4-phase
    (output-pixel parity) decomposition.  wt: (Cin, Cout, 3, 3)."""
    N, H, W, _ = x.shape
    Cout = wt.shape[1]
    w = jnp.transpose(wt, (1, 0, 2, 3))                     # (Cout, Cin, 3, 3)
    xz = jnp.pad(x, ((0, 0), (0, 1), (0, 1), (0, 0)))       # zero halo row/col
    # y[2a,2b]     = x[a,b] W11
    # y[2a,2b+1]   = x[a,b] W12 + x[a,b+1] W10
    # y[2a+1,2b]   = x[a,b] W21 + x[a+1,b] W01
    # y[2a+1,2b+1] = x[a,b] W22 + x[a,b+1] W20 + x[a+1,b] W02 + x[a+1,b+1] W00
    phases = [
        (xz[:, :H, :W, :], w[:, :, 1:2, 1:2]),      # (even h, even w)
        (xz[:, :H, :, :],  w[:, :, 1:2, 2::-2]),    # (even h, odd  w)
        (xz[:, :, :W, :],  w[:, :, 2::-2, 1:2]),    # (odd  h, even w)
        (xz,               w[:, :, 2::-2, 2::-2]),  # (odd  h, odd  w)
    ]
    ys, s_tot, q_tot = [], 0.0, 0.0
    for xin, wph in phases:
        y, s, q, _ = conv_im2col_matmul(xin, wph, stride=1, pad=0, pad_mode="zero")
        ys.append(y)
        s_tot = s_tot + s
        q_tot = q_tot + q
    scale, shift = _bn_scale_shift(s_tot, q_tot, 4 * N * H * W, gamma, beta)
    outs = [affine_act_pallas(y, scale, shift, None, "relu").reshape(N, H, W, Cout)
            for y in ys]
    up = jnp.zeros((N, 2 * H, 2 * W, Cout), outs[0].dtype)
    up = up.at[:, 0::2, 0::2, :].set(outs[0])
    up = up.at[:, 0::2, 1::2, :].set(outs[1])
    up = up.at[:, 1::2, 0::2, :].set(outs[2])
    up = up.at[:, 1::2, 1::2, :].set(outs[3])
    return up


def out_layer(x, w, bias):
    """ReflectionPad(3) + Conv2d(k=7, bias) + Tanh (no norm)."""
    y, _, _, (N, Ho, Wo, Cout) = conv_im2col_matmul(x, w, stride=1, pad=3,
                                                    pad_mode="reflect")
    scale = jnp.ones((Cout,), jnp.float32)
    out = affine_act_pallas(y, scale, bias.astype(jnp.float32), None, "tanh")
    return out.reshape(N, Ho, Wo, Cout)


# ---------------------------------------------------------------------------
# ResnetGenerator parameters + forward
# ---------------------------------------------------------------------------
def init_params(key, input_nc, output_nc, ngf, n_blocks):
    keys = iter(jax.random.split(key, 8 + 2 * n_blocks))

    def conv_w(cout, cin, k):
        return 0.02 * jax.random.normal(next(keys), (cout, cin, k, k), jnp.float32)

    def ones(c):
        return jnp.ones((c,), jnp.float32)

    def zeros(c):
        return jnp.zeros((c,), jnp.float32)

    p = {}
    p["inc_w"] = conv_w(ngf, input_nc, 7)
    p["inc_g"], p["inc_b"] = ones(ngf), zeros(ngf)
    p["d1_w"] = conv_w(2 * ngf, ngf, 3)
    p["d1_g"], p["d1_b"] = ones(2 * ngf), zeros(2 * ngf)
    p["d2_w"] = conv_w(4 * ngf, 2 * ngf, 3)
    p["d2_g"], p["d2_b"] = ones(4 * ngf), zeros(4 * ngf)
    p["blocks"] = []
    for _ in range(n_blocks):
        p["blocks"].append({
            "w1": conv_w(4 * ngf, 4 * ngf, 3), "g1": ones(4 * ngf), "b1": zeros(4 * ngf),
            "w2": conv_w(4 * ngf, 4 * ngf, 3), "g2": ones(4 * ngf), "b2": zeros(4 * ngf),
        })
    # ConvTranspose2d weights in PyTorch layout (in_ch, out_ch, kh, kw)
    p["u1_w"] = 0.02 * jax.random.normal(next(keys), (4 * ngf, 2 * ngf, 3, 3), jnp.float32)
    p["u1_g"], p["u1_b"] = ones(2 * ngf), zeros(2 * ngf)
    p["u2_w"] = 0.02 * jax.random.normal(next(keys), (2 * ngf, ngf, 3, 3), jnp.float32)
    p["u2_g"], p["u2_b"] = ones(ngf), zeros(ngf)
    p["out_w"] = conv_w(output_nc, ngf, 7)
    p["out_bias"] = 0.02 * jax.random.normal(next(keys), (output_nc,), jnp.float32)
    return p


def resnet_generator_forward(params, x_nchw):
    x = jnp.transpose(x_nchw, (0, 2, 3, 1))              # NCHW -> NHWC
    # Inconv: ReflectionPad(3) + Conv7 + BN + ReLU
    x = conv_bn_act(x, params["inc_w"], params["inc_g"], params["inc_b"],
                    stride=1, pad=3, pad_mode="reflect", act="relu")
    # Down1 / Down2: Conv3 s2 p1 + BN + ReLU
    x = conv_bn_act(x, params["d1_w"], params["d1_g"], params["d1_b"],
                    stride=2, pad=1, pad_mode="zero", act="relu")
    x = conv_bn_act(x, params["d2_w"], params["d2_g"], params["d2_b"],
                    stride=2, pad=1, pad_mode="zero", act="relu")
    # ResBlocks (matches reference: ReLU applied AFTER the residual add):
    #   x = relu(x + BN(Conv(ReLU(BN(Conv(reflect_pad(x)))))))
    for blk in params["blocks"]:
        h = conv_bn_act(x, blk["w1"], blk["g1"], blk["b1"],
                        stride=1, pad=1, pad_mode="reflect", act="relu")
        x = conv_bn_act(h, blk["w2"], blk["g2"], blk["b2"],
                        stride=1, pad=1, pad_mode="reflect", act="relu",
                        residual=x)
    # Up1 / Up2: ConvTranspose3 s2 p1 op1 + BN + ReLU (4-phase decomposition)
    x = up_layer(x, params["u1_w"], params["u1_g"], params["u1_b"])
    x = up_layer(x, params["u2_w"], params["u2_g"], params["u2_b"])
    # Outconv: ReflectionPad(3) + Conv7(bias) + Tanh
    y = out_layer(x, params["out_w"], params["out_bias"])
    return jnp.transpose(y, (0, 3, 1, 2)).astype(jnp.float32)   # NHWC -> NCHW


if __name__ == "__main__":
    input_nc, output_nc, ngf, n_blocks = 3, 3, 8, 3
    batch, spatial = 2, 16

    key = jax.random.PRNGKey(0)
    kp, kx = jax.random.split(key)
    params = init_params(kp, input_nc, output_nc, ngf, n_blocks)
    x = jax.random.normal(kx, (batch, input_nc, spatial, spatial), jnp.float32)

    fwd = jax.jit(resnet_generator_forward)
    y = fwd(params, x)
    jax.block_until_ready(y)

    assert y.shape == (batch, output_nc, spatial, spatial), y.shape
    assert bool(jnp.all(jnp.isfinite(y)))
    assert bool(jnp.all(jnp.abs(y) <= 1.0 + 1e-6))        # tanh output range
    print("KERNEL_OK")
</pallas_src>

<mosaic_0001>
module attributes {stable_mosaic.version = 11 : i64} {
  func.func @_matmul_stats_kernel(%arg0: i32, %arg1: i32, %arg2: i32, %arg3: memref<512x147xbf16, #tpu.memory_space<vmem>>, %arg4: memref<147x8xbf16, #tpu.memory_space<vmem>>, %arg5: memref<512x8xbf16, #tpu.memory_space<vmem>>, %arg6: memref<1x8x8xf32, #tpu.memory_space<vmem>>, %arg7: memref<1x8x8xf32, #tpu.memory_space<vmem>>, %arg8: memref<512x8xf32, #tpu.memory_space<vmem>>) attributes {dimension_semantics = [#tpu.dimension_semantics<parallel>, #tpu.dimension_semantics<parallel>, #tpu.dimension_semantics<arbitrary>], iteration_bounds = array<i64: 1, 1, 1>, scalar_prefetch = 0 : i64, scratch_operands = 1 : i64, tpu.core_type = #tpu.core_type<tc>, window_params = [{transform_indices = @transform_0, window_bounds = array<i64: 512, 147>}, {transform_indices = @transform_1, window_bounds = array<i64: 147, 8>}, {transform_indices = @transform_2, window_bounds = array<i64: 512, 8>}, {transform_indices = @transform_3, window_bounds = array<i64: 1, 8, 8>}, {transform_indices = @transform_4, window_bounds = array<i64: 1, 8, 8>}]} {
    %c0_i32 = arith.constant 0 : i32
    %0 = arith.cmpi eq, %arg2, %c0_i32 : i32
    %1 = arith.extui %0 : i1 to i32
    %c0_i32_0 = arith.constant 0 : i32
    %2 = arith.cmpi ne, %1, %c0_i32_0 : i32
    scf.if %2 {
      %cst_10 = arith.constant 0.000000e+00 : f32
      %12 = vector.broadcast %cst_10 : f32 to vector<512x8xf32>
      %c0_11 = arith.constant 0 : index
      %c0_12 = arith.constant 0 : index
      %13 = vector.load %arg8[%c0_11, %c0_12] : memref<512x8xf32, #tpu.memory_space<vmem>>, vector<512x8xf32>
      tpu.vector_store %arg8[%c0_11, %c0_12], %12 {strides = array<i32>} : memref<512x8xf32, #tpu.memory_space<vmem>>, vector<512x8xf32>,
    } else {
    }
    %c0 = arith.constant 0 : index
    %c0_1 = arith.constant 0 : index
    %3 = vector.load %arg8[%c0, %c0_1] : memref<512x8xf32, #tpu.memory_space<vmem>>, vector<512x8xf32>
    %c0_2 = arith.constant 0 : index
    %c0_3 = arith.constant 0 : index
    %4 = vector.load %arg3[%c0_2, %c0_3] : memref<512x147xbf16, #tpu.memory_space<vmem>>, vector<512x147xbf16>
    %c0_4 = arith.constant 0 : index
    %c0_5 = arith.constant 0 : index
    %5 = vector.load %arg4[%c0_4, %c0_5] : memref<147x8xbf16, #tpu.memory_space<vmem>>, vector<147x8xbf16>
    %cst = arith.constant dense<0.000000e+00> : vector<512x8xf32>
    %6 = tpu.matmul %4, %5, %cst {dimension_numbers = #tpu.dot_dimension_numbers<[1], [0], [0], [1], [0, 0, 1, 1], [], []>} : vector<512x147xbf16>, vector<147x8xbf16>, vector<512x8xf32> -> vector<512x8xf32>
    %7 = arith.addf %3, %6 : vector<512x8xf32>
    %c0_6 = arith.constant 0 : index
    %c0_7 = arith.constant 0 : index
    %8 = vector.load %arg8[%c0_6, %c0_7] : memref<512x8xf32, #tpu.memory_space<vmem>>, vector<512x8xf32>
    tpu.vector_store %arg8[%c0_6, %c0_7], %7 {strides = array<i32>} : memref<512x8xf32, #tpu.memory_space<vmem>>, vector<512x8xf32>,
    %c0_i32_8 = arith.constant 0 : i32
    %9 = arith.cmpi eq, %arg2, %c0_i32_8 : i32
    %10 = arith.extui %9 : i1 to i32
    %c0_i32_9 = arith.constant 0 : i32
    %11 = arith.cmpi ne, %10, %c0_i32_9 : i32
    scf.if %11 {
      %c0_10 = arith.constant 0 : index
      %c0_11 = arith.constant 0 : index
      %12 = vector.load %arg8[%c0_10, %c0_11] : memref<512x8xf32, #tpu.memory_space<vmem>>, vector<512x8xf32>
      %13 = arith.truncf %12 : vector<512x8xf32> to vector<512x8xbf16>
      %c0_12 = arith.constant 0 : index
      %c0_13 = arith.constant 0 : index
      %14 = vector.load %arg5[%c0_12, %c0_13] : memref<512x8xbf16, #tpu.memory_space<vmem>>, vector<512x8xbf16>
      tpu.vector_store %arg5[%c0_12, %c0_13], %13 {strides = array<i32>} : memref<512x8xbf16, #tpu.memory_space<vmem>>, vector<512x8xbf16>,
      %cst_14 = arith.constant dense<0.000000e+00> : vector<8xf32>
      %15 = vector.multi_reduction <add>, %12, %cst_14 [0] : vector<512x8xf32> to vector<8xf32>
      %16 = vector.shape_cast %15 : vector<8xf32> to vector<1x1x8xf32>
      %17 = arith.mulf %12, %12 : vector<512x8xf32>
      %cst_15 = arith.constant dense<0.000000e+00> : vector<8xf32>
      %18 = vector.multi_reduction <add>, %17, %cst_15 [0] : vector<512x8xf32> to vector<8xf32>
      %19 = vector.shape_cast %18 : vector<8xf32> to vector<1x1x8xf32>
      %20 = vector.shape_cast %16 : vector<1x1x8xf32> to vector<1x1x8xf32>
      %21 = vector.broadcast %20 : vector<1x1x8xf32> to vector<1x8x8xf32>
      %c0_16 = arith.constant 0 : index
      %c0_17 = arith.constant 0 : index
      %c0_18 = arith.constant 0 : index
      %22 = vector.load %arg6[%c0_16, %c0_17, %c0_18] : memref<1x8x8xf32, #tpu.memory_space<vmem>>, vector<1x8x8xf32>
      tpu.vector_store %arg6[%c0_16, %c0_17, %c0_18], %21 {strides = array<i32>} : memref<1x8x8xf32, #tpu.memory_space<vmem>>, vector<1x8x8xf32>,
      %23 = vector.shape_cast %19 : vector<1x1x8xf32> to vector<1x1x8xf32>
      %24 = vector.broadcast %23 : vector<1x1x8xf32> to vector<1x8x8xf32>
      %c0_19 = arith.constant 0 : index
      %c0_20 = arith.constant 0 : index
      %c0_21 = arith.constant 0 : index
      %25 = vector.load %arg7[%c0_19, %c0_20, %c0_21] : memref<1x8x8xf32, #tpu.memory_space<vmem>>, vector<1x8x8xf32>
      tpu.vector_store %arg7[%c0_19, %c0_20, %c0_21], %24 {strides = array<i32>} : memref<1x8x8xf32, #tpu.memory_space<vmem>>, vector<1x8x8xf32>,
    } else {
    }
    return
  }
  func.func @transform_0(%arg0: i32, %arg1: i32, %arg2: i32) -> (i32, i32) {
    %c0_i32 = arith.constant 0 : i32
    return %arg0, %arg2 : i32, i32
  }
  func.func @transform_1(%arg0: i32, %arg1: i32, %arg2: i32) -> (i32, i32) {
    %c0_i32 = arith.constant 0 : i32
    return %arg2, %arg1 : i32, i32
  }
  func.func @transform_2(%arg0: i32, %arg1: i32, %arg2: i32) -> (i32, i32) {
    %c0_i32 = arith.constant 0 : i32
    return %arg0, %arg1 : i32, i32
  }
  func.func @transform_3(%arg0: i32, %arg1: i32, %arg2: i32) -> (i32, i32, i32) {
    %c0_i32 = arith.constant 0 : i32
    %c0_i32_0 = arith.constant 0 : i32
    return %arg0, %c0_i32, %arg1 : i32, i32, i32
  }
  func.func @transform_4(%arg0: i32, %arg1: i32, %arg2: i32) -> (i32, i32, i32) {
    %c0_i32 = arith.constant 0 : i32
    %c0_i32_0 = arith.constant 0 : i32
    return %arg0, %c0_i32, %arg1 : i32, i32, i32
  }
}

module attributes {stable_mosaic.version = 11 : i64} {
  func.func @_affine_act_kernel(%arg0: i32, %arg1: memref<512x8xbf16, #tpu.memory_space<vmem>>, %arg2: memref<1x8xf32, #tpu.memory_space<vmem>>, %arg3: memref<1x8xf32, #tpu.memory_space<vmem>>, %arg4: memref<512x8xbf16, #tpu.memory_space<vmem>>) attributes {dimension_semantics = [#tpu.dimension_semantics<parallel>], iteration_bounds = array<i64: 1>, scalar_prefetch = 0 : i64, scratch_operands = 0 : i64, tpu.core_type = #tpu.core_type<tc>, window_params = [{transform_indices = @transform_0, window_bounds = array<i64: 512, 8>}, {pipeline_mode = #tpu.pipeline_mode<synchronous>, transform_indices = @transform_1, window_bounds = array<i64: 1, 8>}, {pipeline_mode = #tpu.pipeline_mode<synchronous>, transform_indices = @transform_2, window_bounds = array<i64: 1, 8>}, {transform_indices = @transform_3, window_bounds = array<i64: 512, 8>}]} {
    %c0 = arith.constant 0 : index
    %c0_0 = arith.constant 0 : index
    %0 = vector.load %arg1[%c0, %c0_0] : memref<512x8xbf16, #tpu.memory_space<vmem>>, vector<512x8xbf16>
    %1 = arith.extf %0 : vector<512x8xbf16> to vector<512x8xf32>
    %c0_1 = arith.constant 0 : index
    %c0_2 = arith.constant 0 : index
    %2 = vector.load %arg2[%c0_1, %c0_2] : memref<1x8xf32, #tpu.memory_space<vmem>>, vector<1x8xf32>
    %3 = vector.broadcast %2 : vector<1x8xf32> to vector<512x8xf32>
    %4 = arith.mulf %1, %3 : vector<512x8xf32>
    %c0_3 = arith.constant 0 : index
    %c0_4 = arith.constant 0 : index
    %5 = vector.load %arg3[%c0_3, %c0_4] : memref<1x8xf32, #tpu.memory_space<vmem>>, vector<1x8xf32>
    %6 = vector.broadcast %5 : vector<1x8xf32> to vector<512x8xf32>
    %7 = arith.addf %4, %6 : vector<512x8xf32>
    %cst = arith.constant 0.000000e+00 : f32
    %8 = vector.broadcast %cst : f32 to vector<512x8xf32>
    %9 = arith.maximumf %7, %8 : vector<512x8xf32>
    %10 = arith.truncf %9 : vector<512x8xf32> to vector<512x8xbf16>
    %c0_5 = arith.constant 0 : index
    %c0_6 = arith.constant 0 : index
    %11 = vector.load %arg4[%c0_5, %c0_6] : memref<512x8xbf16, #tpu.memory_space<vmem>>, vector<512x8xbf16>
    tpu.vector_store %arg4[%c0_5, %c0_6], %10 {strides = array<i32>} : memref<512x8xbf16, #tpu.memory_space<vmem>>, vector<512x8xbf16>,
    return
  }
  func.func @transform_0(%arg0: i32) -> (i32, i32) {
    %c0_i32 = arith.constant 0 : i32
    %c0_i32_0 = arith.constant 0 : i32
    return %arg0, %c0_i32 : i32, i32
  }
  func.func @transform_1(%arg0: i32) -> (i32, i32) {
    %c0_i32 = arith.constant 0 : i32
    %c0_i32_0 = arith.constant 0 : i32
    %c0_i32_1 = arith.constant 0 : i32
    return %c0_i32, %c0_i32_0 : i32, i32
  }
  func.func @transform_2(%arg0: i32) -> (i32, i32) {
    %c0_i32 = arith.constant 0 : i32
    %c0_i32_0 = arith.constant 0 : i32
    %c0_i32_1 = arith.constant 0 : i32
    return %c0_i32, %c0_i32_0 : i32, i32
  }
  func.func @transform_3(%arg0: i32) -> (i32, i32) {
    %c0_i32 = arith.constant 0 : i32
    %c0_i32_0 = arith.constant 0 : i32
    return %arg0, %c0_i32 : i32, i32
  }
}

module attributes {stable_mosaic.version = 11 : i64} {
  func.func @_matmul_stats_kernel(%arg0: i32, %arg1: i32, %arg2: i32, %arg3: memref<128x72xbf16, #tpu.memory_space<vmem>>, %arg4: memref<72x16xbf16, #tpu.memory_space<vmem>>, %arg5: memref<128x16xbf16, #tpu.memory_space<vmem>>, %arg6: memref<1x8x16xf32, #tpu.memory_space<vmem>>, %arg7: memref<1x8x16xf32, #tpu.memory_space<vmem>>, %arg8: memref<128x16xf32, #tpu.memory_space<vmem>>) attributes {dimension_semantics = [#tpu.dimension_semantics<parallel>, #tpu.dimension_semantics<parallel>, #tpu.dimension_semantics<arbitrary>], iteration_bounds = array<i64: 1, 1, 1>, scalar_prefetch = 0 : i64, scratch_operands = 1 : i64, tpu.core_type = #tpu.core_type<tc>, window_params = [{transform_indices = @transform_0, window_bounds = array<i64: 128, 72>}, {transform_indices = @transform_1, window_bounds = array<i64: 72, 16>}, {transform_indices = @transform_2, window_bounds = array<i64: 128, 16>}, {transform_indices = @transform_3, window_bounds = array<i64: 1, 8, 16>}, {transform_indices = @transform_4, window_bounds = array<i64: 1, 8, 16>}]} {
    %c0_i32 = arith.constant 0 : i32
    %0 = arith.cmpi eq, %arg2, %c0_i32 : i32
    %1 = arith.extui %0 : i1 to i32
    %c0_i32_0 = arith.constant 0 : i32
    %2 = arith.cmpi ne, %1, %c0_i32_0 : i32
    scf.if %2 {
      %cst_10 = arith.constant 0.000000e+00 : f32
      %12 = vector.broadcast %cst_10 : f32 to vector<128x16xf32>
      %c0_11 = arith.constant 0 : index
      %c0_12 = arith.constant 0 : index
      %13 = vector.load %arg8[%c0_11, %c0_12] : memref<128x16xf32, #tpu.memory_space<vmem>>, vector<128x16xf32>
      tpu.vector_store %arg8[%c0_11, %c0_12], %12 {strides = array<i32>} : memref<128x16xf32, #tpu.memory_space<vmem>>, vector<128x16xf32>,
    } else {
    }
    %c0 = arith.constant 0 : index
    %c0_1 = arith.constant 0 : index
    %3 = vector.load %arg8[%c0, %c0_1] : memref<128x16xf32, #tpu.memory_space<vmem>>, vector<128x16xf32>
    %c0_2 = arith.constant 0 : index
    %c0_3 = arith.constant 0 : index
    %4 = vector.load %arg3[%c0_2, %c0_3] : memref<128x72xbf16, #tpu.memory_space<vmem>>, vector<128x72xbf16>
    %c0_4 = arith.constant 0 : index
    %c0_5 = arith.constant 0 : index
    %5 = vector.load %arg4[%c0_4, %c0_5] : memref<72x16xbf16, #tpu.memory_space<vmem>>, vector<72x16xbf16>
    %cst = arith.constant dense<0.000000e+00> : vector<128x16xf32>
    %6 = tpu.matmul %4, %5, %cst {dimension_numbers = #tpu.dot_dimension_numbers<[1], [0], [0], [1], [0, 0, 1, 1], [], []>} : vector<128x72xbf16>, vector<72x16xbf16>, vector<128x16xf32> -> vector<128x16xf32>
    %7 = arith.addf %3, %6 : vector<128x16xf32>
    %c0_6 = arith.constant 0 : index
    %c0_7 = arith.constant 0 : index
    %8 = vector.load %arg8[%c0_6, %c0_7] : memref<128x16xf32, #tpu.memory_space<vmem>>, vector<128x16xf32>
    tpu.vector_store %arg8[%c0_6, %c0_7], %7 {strides = array<i32>} : memref<128x16xf32, #tpu.memory_space<vmem>>, vector<128x16xf32>,
    %c0_i32_8 = arith.constant 0 : i32
    %9 = arith.cmpi eq, %arg2, %c0_i32_8 : i32
    %10 = arith.extui %9 : i1 to i32
    %c0_i32_9 = arith.constant 0 : i32
    %11 = arith.cmpi ne, %10, %c0_i32_9 : i32
    scf.if %11 {
      %c0_10 = arith.constant 0 : index
      %c0_11 = arith.constant 0 : index
      %12 = vector.load %arg8[%c0_10, %c0_11] : memref<128x16xf32, #tpu.memory_space<vmem>>, vector<128x16xf32>
      %13 = arith.truncf %12 : vector<128x16xf32> to vector<128x16xbf16>
      %c0_12 = arith.constant 0 : index
      %c0_13 = arith.constant 0 : index
      %14 = vector.load %arg5[%c0_12, %c0_13] : memref<128x16xbf16, #tpu.memory_space<vmem>>, vector<128x16xbf16>
      tpu.vector_store %arg5[%c0_12, %c0_13], %13 {strides = array<i32>} : memref<128x16xbf16, #tpu.memory_space<vmem>>, vector<128x16xbf16>,
      %cst_14 = arith.constant dense<0.000000e+00> : vector<16xf32>
      %15 = vector.multi_reduction <add>, %12, %cst_14 [0] : vector<128x16xf32> to vector<16xf32>
      %16 = vector.shape_cast %15 : vector<16xf32> to vector<1x1x16xf32>
      %17 = arith.mulf %12, %12 : vector<128x16xf32>
      %cst_15 = arith.constant dense<0.000000e+00> : vector<16xf32>
      %18 = vector.multi_reduction <add>, %17, %cst_15 [0] : vector<128x16xf32> to vector<16xf32>
      %19 = vector.shape_cast %18 : vector<16xf32> to vector<1x1x16xf32>
      %20 = vector.shape_cast %16 : vector<1x1x16xf32> to vector<1x1x16xf32>
      %21 = vector.broadcast %20 : vector<1x1x16xf32> to vector<1x8x16xf32>
      %c0_16 = arith.constant 0 : index
      %c0_17 = arith.constant 0 : index
      %c0_18 = arith.constant 0 : index
      %22 = vector.load %arg6[%c0_16, %c0_17, %c0_18] : memref<1x8x16xf32, #tpu.memory_space<vmem>>, vector<1x8x16xf32>
      tpu.vector_store %arg6[%c0_16, %c0_17, %c0_18], %21 {strides = array<i32>} : memref<1x8x16xf32, #tpu.memory_space<vmem>>, vector<1x8x16xf32>,
      %23 = vector.shape_cast %19 : vector<1x1x16xf32> to vector<1x1x16xf32>
      %24 = vector.broadcast %23 : vector<1x1x16xf32> to vector<1x8x16xf32>
      %c0_19 = arith.constant 0 : index
      %c0_20 = arith.constant 0 : index
      %c0_21 = arith.constant 0 : index
      %25 = vector.load %arg7[%c0_19, %c0_20, %c0_21] : memref<1x8x16xf32, #tpu.memory_space<vmem>>, vector<1x8x16xf32>
      tpu.vector_store %arg7[%c0_19, %c0_20, %c0_21], %24 {strides = array<i32>} : memref<1x8x16xf32, #tpu.memory_space<vmem>>, vector<1x8x16xf32>,
    } else {
    }
    return
  }
  func.func @transform_0(%arg0: i32, %arg1: i32, %arg2: i32) -> (i32, i32) {
    %c0_i32 = arith.constant 0 : i32
    return %arg0, %arg2 : i32, i32
  }
  func.func @transform_1(%arg0: i32, %arg1: i32, %arg2: i32) -> (i32, i32) {
    %c0_i32 = arith.constant 0 : i32
    return %arg2, %arg1 : i32, i32
  }
  func.func @transform_2(%arg0: i32, %arg1: i32, %arg2: i32) -> (i32, i32) {
    %c0_i32 = arith.constant 0 : i32
    return %arg0, %arg1 : i32, i32
  }
  func.func @transform_3(%arg0: i32, %arg1: i32, %arg2: i32) -> (i32, i32, i32) {
    %c0_i32 = arith.constant 0 : i32
    %c0_i32_0 = arith.constant 0 : i32
    return %arg0, %c0_i32, %arg1 : i32, i32, i32
  }
  func.func @transform_4(%arg0: i32, %arg1: i32, %arg2: i32) -> (i32, i32, i32) {
    %c0_i32 = arith.constant 0 : i32
    %c0_i32_0 = arith.constant 0 : i32
    return %arg0, %c0_i32, %arg1 : i32, i32, i32
  }
}

module attributes {stable_mosaic.version = 11 : i64} {
  func.func @_affine_act_kernel(%arg0: i32, %arg1: memref<128x16xbf16, #tpu.memory_space<vmem>>, %arg2: memref<1x16xf32, #tpu.memory_space<vmem>>, %arg3: memref<1x16xf32, #tpu.memory_space<vmem>>, %arg4: memref<128x16xbf16, #tpu.memory_space<vmem>>) attributes {dimension_semantics = [#tpu.dimension_semantics<parallel>], iteration_bounds = array<i64: 1>, scalar_prefetch = 0 : i64, scratch_operands = 0 : i64, tpu.core_type = #tpu.core_type<tc>, window_params = [{transform_indices = @transform_0, window_bounds = array<i64: 128, 16>}, {pipeline_mode = #tpu.pipeline_mode<synchronous>, transform_indices = @transform_1, window_bounds = array<i64: 1, 16>}, {pipeline_mode = #tpu.pipeline_mode<synchronous>, transform_indices = @transform_2, window_bounds = array<i64: 1, 16>}, {transform_indices = @transform_3, window_bounds = array<i64: 128, 16>}]} {
    %c0 = arith.constant 0 : index
    %c0_0 = arith.constant 0 : index
    %0 = vector.load %arg1[%c0, %c0_0] : memref<128x16xbf16, #tpu.memory_space<vmem>>, vector<128x16xbf16>
    %1 = arith.extf %0 : vector<128x16xbf16> to vector<128x16xf32>
    %c0_1 = arith.constant 0 : index
    %c0_2 = arith.constant 0 : index
    %2 = vector.load %arg2[%c0_1, %c0_2] : memref<1x16xf32, #tpu.memory_space<vmem>>, vector<1x16xf32>
    %3 = vector.broadcast %2 : vector<1x16xf32> to vector<128x16xf32>
    %4 = arith.mulf %1, %3 : vector<128x16xf32>
    %c0_3 = arith.constant 0 : index
    %c0_4 = arith.constant 0 : index
    %5 = vector.load %arg3[%c0_3, %c0_4] : memref<1x16xf32, #tpu.memory_space<vmem>>, vector<1x16xf32>
    %6 = vector.broadcast %5 : vector<1x16xf32> to vector<128x16xf32>
    %7 = arith.addf %4, %6 : vector<128x16xf32>
    %cst = arith.constant 0.000000e+00 : f32
    %8 = vector.broadcast %cst : f32 to vector<128x16xf32>
    %9 = arith.maximumf %7, %8 : vector<128x16xf32>
    %10 = arith.truncf %9 : vector<128x16xf32> to vector<128x16xbf16>
    %c0_5 = arith.constant 0 : index
    %c0_6 = arith.constant 0 : index
    %11 = vector.load %arg4[%c0_5, %c0_6] : memref<128x16xbf16, #tpu.memory_space<vmem>>, vector<128x16xbf16>
    tpu.vector_store %arg4[%c0_5, %c0_6], %10 {strides = array<i32>} : memref<128x16xbf16, #tpu.memory_space<vmem>>, vector<128x16xbf16>,
    return
  }
  func.func @transform_0(%arg0: i32) -> (i32, i32) {
    %c0_i32 = arith.constant 0 : i32
    %c0_i32_0 = arith.constant 0 : i32
    return %arg0, %c0_i32 : i32, i32
  }
  func.func @transform_1(%arg0: i32) -> (i32, i32) {
    %c0_i32 = arith.constant 0 : i32
    %c0_i32_0 = arith.constant 0 : i32
    %c0_i32_1 = arith.constant 0 : i32
    return %c0_i32, %c0_i32_0 : i32, i32
  }
  func.func @transform_2(%arg0: i32) -> (i32, i32) {
    %c0_i32 = arith.constant 0 : i32
    %c0_i32_0 = arith.constant 0 : i32
    %c0_i32_1 = arith.constant 0 : i32
    return %c0_i32, %c0_i32_0 : i32, i32
  }
  func.func @transform_3(%arg0: i32) -> (i32, i32) {
    %c0_i32 = arith.constant 0 : i32
    %c0_i32_0 = arith.constant 0 : i32
    return %arg0, %c0_i32 : i32, i32
  }
}

module attributes {stable_mosaic.version = 11 : i64} {
  func.func @_matmul_stats_kernel(%arg0: i32, %arg1: i32, %arg2: i32, %arg3: memref<32x144xbf16, #tpu.memory_space<vmem>>, %arg4: memref<144x32xbf16, #tpu.memory_space<vmem>>, %arg5: memref<32x32xbf16, #tpu.memory_space<vmem>>, %arg6: memref<1x8x32xf32, #tpu.memory_space<vmem>>, %arg7: memref<1x8x32xf32, #tpu.memory_space<vmem>>, %arg8: memref<32x32xf32, #tpu.memory_space<vmem>>) attributes {dimension_semantics = [#tpu.dimension_semantics<parallel>, #tpu.dimension_semantics<parallel>, #tpu.dimension_semantics<arbitrary>], iteration_bounds = array<i64: 1, 1, 1>, scalar_prefetch = 0 : i64, scratch_operands = 1 : i64, tpu.core_type = #tpu.core_type<tc>, window_params = [{transform_indices = @transform_0, window_bounds = array<i64: 32, 144>}, {transform_indices = @transform_1, window_bounds = array<i64: 144, 32>}, {transform_indices = @transform_2, window_bounds = array<i64: 32, 32>}, {transform_indices = @transform_3, window_bounds = array<i64: 1, 8, 32>}, {transform_indices = @transform_4, window_bounds = array<i64: 1, 8, 32>}]} {
    %c0_i32 = arith.constant 0 : i32
    %0 = arith.cmpi eq, %arg2, %c0_i32 : i32
    %1 = arith.extui %0 : i1 to i32
    %c0_i32_0 = arith.constant 0 : i32
    %2 = arith.cmpi ne, %1, %c0_i32_0 : i32
    scf.if %2 {
      %cst_10 = arith.constant 0.000000e+00 : f32
      %12 = vector.broadcast %cst_10 : f32 to vector<32x32xf32>
      %c0_11 = arith.constant 0 : index
      %c0_12 = arith.constant 0 : index
      %13 = vector.load %arg8[%c0_11, %c0_12] : memref<32x32xf32, #tpu.memory_space<vmem>>, vector<32x32xf32>
      tpu.vector_store %arg8[%c0_11, %c0_12], %12 {strides = array<i32>} : memref<32x32xf32, #tpu.memory_space<vmem>>, vector<32x32xf32>,
    } else {
    }
    %c0 = arith.constant 0 : index
    %c0_1 = arith.constant 0 : index
    %3 = vector.load %arg8[%c0, %c0_1] : memref<32x32xf32, #tpu.memory_space<vmem>>, vector<32x32xf32>
    %c0_2 = arith.constant 0 : index
    %c0_3 = arith.constant 0 : index
    %4 = vector.load %arg3[%c0_2, %c0_3] : memref<32x144xbf16, #tpu.memory_space<vmem>>, vector<32x144xbf16>
    %c0_4 = arith.constant 0 : index
    %c0_5 = arith.constant 0 : index
    %5 = vector.load %arg4[%c0_4, %c0_5] : memref<144x32xbf16, #tpu.memory_space<vmem>>, vector<144x32xbf16>
    %cst = arith.constant dense<0.000000e+00> : vector<32x32xf32>
    %6 = tpu.matmul %4, %5, %cst {dimension_numbers = #tpu.dot_dimension_numbers<[1], [0], [0], [1], [0, 0, 1, 1], [], []>} : vector<32x144xbf16>, vector<144x32xbf16>, vector<32x32xf32> -> vector<32x32xf32>
    %7 = arith.addf %3, %6 : vector<32x32xf32>
    %c0_6 = arith.constant 0 : index
    %c0_7 = arith.constant 0 : index
    %8 = vector.load %arg8[%c0_6, %c0_7] : memref<32x32xf32, #tpu.memory_space<vmem>>, vector<32x32xf32>
    tpu.vector_store %arg8[%c0_6, %c0_7], %7 {strides = array<i32>} : memref<32x32xf32, #tpu.memory_space<vmem>>, vector<32x32xf32>,
    %c0_i32_8 = arith.constant 0 : i32
    %9 = arith.cmpi eq, %arg2, %c0_i32_8 : i32
    %10 = arith.extui %9 : i1 to i32
    %c0_i32_9 = arith.constant 0 : i32
    %11 = arith.cmpi ne, %10, %c0_i32_9 : i32
    scf.if %11 {
      %c0_10 = arith.constant 0 : index
      %c0_11 = arith.constant 0 : index
      %12 = vector.load %arg8[%c0_10, %c0_11] : memref<32x32xf32, #tpu.memory_space<vmem>>, vector<32x32xf32>
      %13 = arith.truncf %12 : vector<32x32xf32> to vector<32x32xbf16>
      %c0_12 = arith.constant 0 : index
      %c0_13 = arith.constant 0 : index
      %14 = vector.load %arg5[%c0_12, %c0_13] : memref<32x32xbf16, #tpu.memory_space<vmem>>, vector<32x32xbf16>
      tpu.vector_store %arg5[%c0_12, %c0_13], %13 {strides = array<i32>} : memref<32x32xbf16, #tpu.memory_space<vmem>>, vector<32x32xbf16>,
      %cst_14 = arith.constant dense<0.000000e+00> : vector<32xf32>
      %15 = vector.multi_reduction <add>, %12, %cst_14 [0] : vector<32x32xf32> to vector<32xf32>
      %16 = vector.shape_cast %15 : vector<32xf32> to vector<1x1x32xf32>
      %17 = arith.mulf %12, %12 : vector<32x32xf32>
      %cst_15 = arith.constant dense<0.000000e+00> : vector<32xf32>
      %18 = vector.multi_reduction <add>, %17, %cst_15 [0] : vector<32x32xf32> to vector<32xf32>
      %19 = vector.shape_cast %18 : vector<32xf32> to vector<1x1x32xf32>
      %20 = vector.shape_cast %16 : vector<1x1x32xf32> to vector<1x1x32xf32>
      %21 = vector.broadcast %20 : vector<1x1x32xf32> to vector<1x8x32xf32>
      %c0_16 = arith.constant 0 : index
      %c0_17 = arith.constant 0 : index
      %c0_18 = arith.constant 0 : index
      %22 = vector.load %arg6[%c0_16, %c0_17, %c0_18] : memref<1x8x32xf32, #tpu.memory_space<vmem>>, vector<1x8x32xf32>
      tpu.vector_store %arg6[%c0_16, %c0_17, %c0_18], %21 {strides = array<i32>} : memref<1x8x32xf32, #tpu.memory_space<vmem>>, vector<1x8x32xf32>,
      %23 = vector.shape_cast %19 : vector<1x1x32xf32> to vector<1x1x32xf32>
      %24 = vector.broadcast %23 : vector<1x1x32xf32> to vector<1x8x32xf32>
      %c0_19 = arith.constant 0 : index
      %c0_20 = arith.constant 0 : index
      %c0_21 = arith.constant 0 : index
      %25 = vector.load %arg7[%c0_19, %c0_20, %c0_21] : memref<1x8x32xf32, #tpu.memory_space<vmem>>, vector<1x8x32xf32>
      tpu.vector_store %arg7[%c0_19, %c0_20, %c0_21], %24 {strides = array<i32>} : memref<1x8x32xf32, #tpu.memory_space<vmem>>, vector<1x8x32xf32>,
    } else {
    }
    return
  }
  func.func @transform_0(%arg0: i32, %arg1: i32, %arg2: i32) -> (i32, i32) {
    %c0_i32 = arith.constant 0 : i32
    return %arg0, %arg2 : i32, i32
  }
  func.func @transform_1(%arg0: i32, %arg1: i32, %arg2: i32) -> (i32, i32) {
    %c0_i32 = arith.constant 0 : i32
    return %arg2, %arg1 : i32, i32
  }
  func.func @transform_2(%arg0: i32, %arg1: i32, %arg2: i32) -> (i32, i32) {
    %c0_i32 = arith.constant 0 : i32
    return %arg0, %arg1 : i32, i32
  }
  func.func @transform_3(%arg0: i32, %arg1: i32, %arg2: i32) -> (i32, i32, i32) {
    %c0_i32 = arith.constant 0 : i32
    %c0_i32_0 = arith.constant 0 : i32
    return %arg0, %c0_i32, %arg1 : i32, i32, i32
  }
  func.func @transform_4(%arg0: i32, %arg1: i32, %arg2: i32) -> (i32, i32, i32) {
    %c0_i32 = arith.constant 0 : i32
    %c0_i32_0 = arith.constant 0 : i32
    return %arg0, %c0_i32, %arg1 : i32, i32, i32
  }
}

module attributes {stable_mosaic.version = 11 : i64} {
  func.func @_affine_act_kernel(%arg0: i32, %arg1: memref<32x32xbf16, #tpu.memory_space<vmem>>, %arg2: memref<1x32xf32, #tpu.memory_space<vmem>>, %arg3: memref<1x32xf32, #tpu.memory_space<vmem>>, %arg4: memref<32x32xbf16, #tpu.memory_space<vmem>>) attributes {dimension_semantics = [#tpu.dimension_semantics<parallel>], iteration_bounds = array<i64: 1>, scalar_prefetch = 0 : i64, scratch_operands = 0 : i64, tpu.core_type = #tpu.core_type<tc>, window_params = [{transform_indices = @transform_0, window_bounds = array<i64: 32, 32>}, {pipeline_mode = #tpu.pipeline_mode<synchronous>, transform_indices = @transform_1, window_bounds = array<i64: 1, 32>}, {pipeline_mode = #tpu.pipeline_mode<synchronous>, transform_indices = @transform_2, window_bounds = array<i64: 1, 32>}, {transform_indices = @transform_3, window_bounds = array<i64: 32, 32>}]} {
    %c0 = arith.constant 0 : index
    %c0_0 = arith.constant 0 : index
    %0 = vector.load %arg1[%c0, %c0_0] : memref<32x32xbf16, #tpu.memory_space<vmem>>, vector<32x32xbf16>
    %1 = arith.extf %0 : vector<32x32xbf16> to vector<32x32xf32>
    %c0_1 = arith.constant 0 : index
    %c0_2 = arith.constant 0 : index
    %2 = vector.load %arg2[%c0_1, %c0_2] : memref<1x32xf32, #tpu.memory_space<vmem>>, vector<1x32xf32>
    %3 = vector.broadcast %2 : vector<1x32xf32> to vector<32x32xf32>
    %4 = arith.mulf %1, %3 : vector<32x32xf32>
    %c0_3 = arith.constant 0 : index
    %c0_4 = arith.constant 0 : index
    %5 = vector.load %arg3[%c0_3, %c0_4] : memref<1x32xf32, #tpu.memory_space<vmem>>, vector<1x32xf32>
    %6 = vector.broadcast %5 : vector<1x32xf32> to vector<32x32xf32>
    %7 = arith.addf %4, %6 : vector<32x32xf32>
    %cst = arith.constant 0.000000e+00 : f32
    %8 = vector.broadcast %cst : f32 to vector<32x32xf32>
    %9 = arith.maximumf %7, %8 : vector<32x32xf32>
    %10 = arith.truncf %9 : vector<32x32xf32> to vector<32x32xbf16>
    %c0_5 = arith.constant 0 : index
    %c0_6 = arith.constant 0 : index
    %11 = vector.load %arg4[%c0_5, %c0_6] : memref<32x32xbf16, #tpu.memory_space<vmem>>, vector<32x32xbf16>
    tpu.vector_store %arg4[%c0_5, %c0_6], %10 {strides = array<i32>} : memref<32x32xbf16, #tpu.memory_space<vmem>>, vector<32x32xbf16>,
    return
  }
  func.func @transform_0(%arg0: i32) -> (i32, i32) {
    %c0_i32 = arith.constant 0 : i32
    %c0_i32_0 = arith.constant 0 : i32
    return %arg0, %c0_i32 : i32, i32
  }
  func.func @transform_1(%arg0: i32) -> (i32, i32) {
    %c0_i32 = arith.constant 0 : i32
    %c0_i32_0 = arith.constant 0 : i32
    %c0_i32_1 = arith.constant 0 : i32
    return %c0_i32, %c0_i32_0 : i32, i32
  }
  func.func @transform_2(%arg0: i32) -> (i32, i32) {
    %c0_i32 = arith.constant 0 : i32
    %c0_i32_0 = arith.constant 0 : i32
    %c0_i32_1 = arith.constant 0 : i32
    return %c0_i32, %c0_i32_0 : i32, i32
  }
  func.func @transform_3(%arg0: i32) -> (i32, i32) {
    %c0_i32 = arith.constant 0 : i32
    %c0_i32_0 = arith.constant 0 : i32
    return %arg0, %c0_i32 : i32, i32
  }
}

module attributes {stable_mosaic.version = 11 : i64} {
  func.func @_affine_act_res_kernel(%arg0: i32, %arg1: memref<32x32xbf16, #tpu.memory_space<vmem>>, %arg2: memref<1x32xf32, #tpu.memory_space<vmem>>, %arg3: memref<1x32xf32, #tpu.memory_space<vmem>>, %arg4: memref<32x32xbf16, #tpu.memory_space<vmem>>, %arg5: memref<32x32xbf16, #tpu.memory_space<vmem>>) attributes {dimension_semantics = [#tpu.dimension_semantics<parallel>], iteration_bounds = array<i64: 1>, scalar_prefetch = 0 : i64, scratch_operands = 0 : i64, tpu.core_type = #tpu.core_type<tc>, window_params = [{transform_indices = @transform_0, window_bounds = array<i64: 32, 32>}, {pipeline_mode = #tpu.pipeline_mode<synchronous>, transform_indices = @transform_1, window_bounds = array<i64: 1, 32>}, {pipeline_mode = #tpu.pipeline_mode<synchronous>, transform_indices = @transform_2, window_bounds = array<i64: 1, 32>}, {transform_indices = @transform_3, window_bounds = array<i64: 32, 32>}, {transform_indices = @transform_4, window_bounds = array<i64: 32, 32>}]} {
    %c0 = arith.constant 0 : index
    %c0_0 = arith.constant 0 : index
    %0 = vector.load %arg1[%c0, %c0_0] : memref<32x32xbf16, #tpu.memory_space<vmem>>, vector<32x32xbf16>
    %1 = arith.extf %0 : vector<32x32xbf16> to vector<32x32xf32>
    %c0_1 = arith.constant 0 : index
    %c0_2 = arith.constant 0 : index
    %2 = vector.load %arg2[%c0_1, %c0_2] : memref<1x32xf32, #tpu.memory_space<vmem>>, vector<1x32xf32>
    %3 = vector.broadcast %2 : vector<1x32xf32> to vector<32x32xf32>
    %4 = arith.mulf %1, %3 : vector<32x32xf32>
    %c0_3 = arith.constant 0 : index
    %c0_4 = arith.constant 0 : index
    %5 = vector.load %arg3[%c0_3, %c0_4] : memref<1x32xf32, #tpu.memory_space<vmem>>, vector<1x32xf32>
    %6 = vector.broadcast %5 : vector<1x32xf32> to vector<32x32xf32>
    %7 = arith.addf %4, %6 : vector<32x32xf32>
    %c0_5 = arith.constant 0 : index
    %c0_6 = arith.constant 0 : index
    %8 = vector.load %arg4[%c0_5, %c0_6] : memref<32x32xbf16, #tpu.memory_space<vmem>>, vector<32x32xbf16>
    %9 = arith.extf %8 : vector<32x32xbf16> to vector<32x32xf32>
    %10 = arith.addf %7, %9 : vector<32x32xf32>
    %cst = arith.constant 0.000000e+00 : f32
    %11 = vector.broadcast %cst : f32 to vector<32x32xf32>
    %12 = arith.maximumf %10, %11 : vector<32x32xf32>
    %13 = arith.truncf %12 : vector<32x32xf32> to vector<32x32xbf16>
    %c0_7 = arith.constant 0 : index
    %c0_8 = arith.constant 0 : index
    %14 = vector.load %arg5[%c0_7, %c0_8] : memref<32x32xbf16, #tpu.memory_space<vmem>>, vector<32x32xbf16>
    tpu.vector_store %arg5[%c0_7, %c0_8], %13 {strides = array<i32>} : memref<32x32xbf16, #tpu.memory_space<vmem>>, vector<32x32xbf16>,
    return
  }
  func.func @transform_0(%arg0: i32) -> (i32, i32) {
    %c0_i32 = arith.constant 0 : i32
    %c0_i32_0 = arith.constant 0 : i32
    return %arg0, %c0_i32 : i32, i32
  }
  func.func @transform_1(%arg0: i32) -> (i32, i32) {
    %c0_i32 = arith.constant 0 : i32
    %c0_i32_0 = arith.constant 0 : i32
    %c0_i32_1 = arith.constant 0 : i32
    return %c0_i32, %c0_i32_0 : i32, i32
  }
  func.func @transform_2(%arg0: i32) -> (i32, i32) {
    %c0_i32 = arith.constant 0 : i32
    %c0_i32_0 = arith.constant 0 : i32
    %c0_i32_1 = arith.constant 0 : i32
    return %c0_i32, %c0_i32_0 : i32, i32
  }
  func.func @transform_3(%arg0: i32) -> (i32, i32) {
    %c0_i32 = arith.constant 0 : i32
    %c0_i32_0 = arith.constant 0 : i32
    return %arg0, %c0_i32 : i32, i32
  }
  func.func @transform_4(%arg0: i32) -> (i32, i32) {
    %c0_i32 = arith.constant 0 : i32
    %c0_i32_0 = arith.constant 0 : i32
    return %arg0, %c0_i32 : i32, i32
  }
}

module attributes {stable_mosaic.version = 11 : i64} {
  func.func @_matmul_stats_kernel(%arg0: i32, %arg1: i32, %arg2: i32, %arg3: memref<32x288xbf16, #tpu.memory_space<vmem>>, %arg4: memref<288x32xbf16, #tpu.memory_space<vmem>>, %arg5: memref<32x32xbf16, #tpu.memory_space<vmem>>, %arg6: memref<1x8x32xf32, #tpu.memory_space<vmem>>, %arg7: memref<1x8x32xf32, #tpu.memory_space<vmem>>, %arg8: memref<32x32xf32, #tpu.memory_space<vmem>>) attributes {dimension_semantics = [#tpu.dimension_semantics<parallel>, #tpu.dimension_semantics<parallel>, #tpu.dimension_semantics<arbitrary>], iteration_bounds = array<i64: 1, 1, 1>, scalar_prefetch = 0 : i64, scratch_operands = 1 : i64, tpu.core_type = #tpu.core_type<tc>, window_params = [{transform_indices = @transform_0, window_bounds = array<i64: 32, 288>}, {transform_indices = @transform_1, window_bounds = array<i64: 288, 32>}, {transform_indices = @transform_2, window_bounds = array<i64: 32, 32>}, {transform_indices = @transform_3, window_bounds = array<i64: 1, 8, 32>}, {transform_indices = @transform_4, window_bounds = array<i64: 1, 8, 32>}]} {
    %c0_i32 = arith.constant 0 : i32
    %0 = arith.cmpi eq, %arg2, %c0_i32 : i32
    %1 = arith.extui %0 : i1 to i32
    %c0_i32_0 = arith.constant 0 : i32
    %2 = arith.cmpi ne, %1, %c0_i32_0 : i32
    scf.if %2 {
      %cst_10 = arith.constant 0.000000e+00 : f32
      %12 = vector.broadcast %cst_10 : f32 to vector<32x32xf32>
      %c0_11 = arith.constant 0 : index
      %c0_12 = arith.constant 0 : index
      %13 = vector.load %arg8[%c0_11, %c0_12] : memref<32x32xf32, #tpu.memory_space<vmem>>, vector<32x32xf32>
      tpu.vector_store %arg8[%c0_11, %c0_12], %12 {strides = array<i32>} : memref<32x32xf32, #tpu.memory_space<vmem>>, vector<32x32xf32>,
    } else {
    }
    %c0 = arith.constant 0 : index
    %c0_1 = arith.constant 0 : index
    %3 = vector.load %arg8[%c0, %c0_1] : memref<32x32xf32, #tpu.memory_space<vmem>>, vector<32x32xf32>
    %c0_2 = arith.constant 0 : index
    %c0_3 = arith.constant 0 : index
    %4 = vector.load %arg3[%c0_2, %c0_3] : memref<32x288xbf16, #tpu.memory_space<vmem>>, vector<32x288xbf16>
    %c0_4 = arith.constant 0 : index
    %c0_5 = arith.constant 0 : index
    %5 = vector.load %arg4[%c0_4, %c0_5] : memref<288x32xbf16, #tpu.memory_space<vmem>>, vector<288x32xbf16>
    %cst = arith.constant dense<0.000000e+00> : vector<32x32xf32>
    %6 = tpu.matmul %4, %5, %cst {dimension_numbers = #tpu.dot_dimension_numbers<[1], [0], [0], [1], [0, 0, 1, 1], [], []>} : vector<32x288xbf16>, vector<288x32xbf16>, vector<32x32xf32> -> vector<32x32xf32>
    %7 = arith.addf %3, %6 : vector<32x32xf32>
    %c0_6 = arith.constant 0 : index
    %c0_7 = arith.constant 0 : index
    %8 = vector.load %arg8[%c0_6, %c0_7] : memref<32x32xf32, #tpu.memory_space<vmem>>, vector<32x32xf32>
    tpu.vector_store %arg8[%c0_6, %c0_7], %7 {strides = array<i32>} : memref<32x32xf32, #tpu.memory_space<vmem>>, vector<32x32xf32>,
    %c0_i32_8 = arith.constant 0 : i32
    %9 = arith.cmpi eq, %arg2, %c0_i32_8 : i32
    %10 = arith.extui %9 : i1 to i32
    %c0_i32_9 = arith.constant 0 : i32
    %11 = arith.cmpi ne, %10, %c0_i32_9 : i32
    scf.if %11 {
      %c0_10 = arith.constant 0 : index
      %c0_11 = arith.constant 0 : index
      %12 = vector.load %arg8[%c0_10, %c0_11] : memref<32x32xf32, #tpu.memory_space<vmem>>, vector<32x32xf32>
      %13 = arith.truncf %12 : vector<32x32xf32> to vector<32x32xbf16>
      %c0_12 = arith.constant 0 : index
      %c0_13 = arith.constant 0 : index
      %14 = vector.load %arg5[%c0_12, %c0_13] : memref<32x32xbf16, #tpu.memory_space<vmem>>, vector<32x32xbf16>
      tpu.vector_store %arg5[%c0_12, %c0_13], %13 {strides = array<i32>} : memref<32x32xbf16, #tpu.memory_space<vmem>>, vector<32x32xbf16>,
      %cst_14 = arith.constant dense<0.000000e+00> : vector<32xf32>
      %15 = vector.multi_reduction <add>, %12, %cst_14 [0] : vector<32x32xf32> to vector<32xf32>
      %16 = vector.shape_cast %15 : vector<32xf32> to vector<1x1x32xf32>
      %17 = arith.mulf %12, %12 : vector<32x32xf32>
      %cst_15 = arith.constant dense<0.000000e+00> : vector<32xf32>
      %18 = vector.multi_reduction <add>, %17, %cst_15 [0] : vector<32x32xf32> to vector<32xf32>
      %19 = vector.shape_cast %18 : vector<32xf32> to vector<1x1x32xf32>
      %20 = vector.shape_cast %16 : vector<1x1x32xf32> to vector<1x1x32xf32>
      %21 = vector.broadcast %20 : vector<1x1x32xf32> to vector<1x8x32xf32>
      %c0_16 = arith.constant 0 : index
      %c0_17 = arith.constant 0 : index
      %c0_18 = arith.constant 0 : index
      %22 = vector.load %arg6[%c0_16, %c0_17, %c0_18] : memref<1x8x32xf32, #tpu.memory_space<vmem>>, vector<1x8x32xf32>
      tpu.vector_store %arg6[%c0_16, %c0_17, %c0_18], %21 {strides = array<i32>} : memref<1x8x32xf32, #tpu.memory_space<vmem>>, vector<1x8x32xf32>,
      %23 = vector.shape_cast %19 : vector<1x1x32xf32> to vector<1x1x32xf32>
      %24 = vector.broadcast %23 : vector<1x1x32xf32> to vector<1x8x32xf32>
      %c0_19 = arith.constant 0 : index
      %c0_20 = arith.constant 0 : index
      %c0_21 = arith.constant 0 : index
      %25 = vector.load %arg7[%c0_19, %c0_20, %c0_21] : memref<1x8x32xf32, #tpu.memory_space<vmem>>, vector<1x8x32xf32>
      tpu.vector_store %arg7[%c0_19, %c0_20, %c0_21], %24 {strides = array<i32>} : memref<1x8x32xf32, #tpu.memory_space<vmem>>, vector<1x8x32xf32>,
    } else {
    }
    return
  }
  func.func @transform_0(%arg0: i32, %arg1: i32, %arg2: i32) -> (i32, i32) {
    %c0_i32 = arith.constant 0 : i32
    return %arg0, %arg2 : i32, i32
  }
  func.func @transform_1(%arg0: i32, %arg1: i32, %arg2: i32) -> (i32, i32) {
    %c0_i32 = arith.constant 0 : i32
    return %arg2, %arg1 : i32, i32
  }
  func.func @transform_2(%arg0: i32, %arg1: i32, %arg2: i32) -> (i32, i32) {
    %c0_i32 = arith.constant 0 : i32
    return %arg0, %arg1 : i32, i32
  }
  func.func @transform_3(%arg0: i32, %arg1: i32, %arg2: i32) -> (i32, i32, i32) {
    %c0_i32 = arith.constant 0 : i32
    %c0_i32_0 = arith.constant 0 : i32
    return %arg0, %c0_i32, %arg1 : i32, i32, i32
  }
  func.func @transform_4(%arg0: i32, %arg1: i32, %arg2: i32) -> (i32, i32, i32) {
    %c0_i32 = arith.constant 0 : i32
    %c0_i32_0 = arith.constant 0 : i32
    return %arg0, %c0_i32, %arg1 : i32, i32, i32
  }
}

module attributes {stable_mosaic.version = 11 : i64} {
  func.func @_matmul_stats_kernel(%arg0: i32, %arg1: i32, %arg2: i32, %arg3: memref<32x64xbf16, #tpu.memory_space<vmem>>, %arg4: memref<64x16xbf16, #tpu.memory_space<vmem>>, %arg5: memref<32x16xbf16, #tpu.memory_space<vmem>>, %arg6: memref<1x8x16xf32, #tpu.memory_space<vmem>>, %arg7: memref<1x8x16xf32, #tpu.memory_space<vmem>>, %arg8: memref<32x16xf32, #tpu.memory_space<vmem>>) attributes {dimension_semantics = [#tpu.dimension_semantics<parallel>, #tpu.dimension_semantics<parallel>, #tpu.dimension_semantics<arbitrary>], iteration_bounds = array<i64: 1, 1, 1>, scalar_prefetch = 0 : i64, scratch_operands = 1 : i64, tpu.core_type = #tpu.core_type<tc>, window_params = [{transform_indices = @transform_0, window_bounds = array<i64: 32, 64>}, {transform_indices = @transform_1, window_bounds = array<i64: 64, 16>}, {transform_indices = @transform_2, window_bounds = array<i64: 32, 16>}, {transform_indices = @transform_3, window_bounds = array<i64: 1, 8, 16>}, {transform_indices = @transform_4, window_bounds = array<i64: 1, 8, 16>}]} {
    %c0_i32 = arith.constant 0 : i32
    %0 = arith.cmpi eq, %arg2, %c0_i32 : i32
    %1 = arith.extui %0 : i1 to i32
    %c0_i32_0 = arith.constant 0 : i32
    %2 = arith.cmpi ne, %1, %c0_i32_0 : i32
    scf.if %2 {
      %cst_10 = arith.constant 0.000000e+00 : f32
      %12 = vector.broadcast %cst_10 : f32 to vector<32x16xf32>
      %c0_11 = arith.constant 0 : index
      %c0_12 = arith.constant 0 : index
      %13 = vector.load %arg8[%c0_11, %c0_12] : memref<32x16xf32, #tpu.memory_space<vmem>>, vector<32x16xf32>
      tpu.vector_store %arg8[%c0_11, %c0_12], %12 {strides = array<i32>} : memref<32x16xf32, #tpu.memory_space<vmem>>, vector<32x16xf32>,
    } else {
    }
    %c0 = arith.constant 0 : index
    %c0_1 = arith.constant 0 : index
    %3 = vector.load %arg8[%c0, %c0_1] : memref<32x16xf32, #tpu.memory_space<vmem>>, vector<32x16xf32>
    %c0_2 = arith.constant 0 : index
    %c0_3 = arith.constant 0 : index
    %4 = vector.load %arg3[%c0_2, %c0_3] : memref<32x64xbf16, #tpu.memory_space<vmem>>, vector<32x64xbf16>
    %c0_4 = arith.constant 0 : index
    %c0_5 = arith.constant 0 : index
    %5 = vector.load %arg4[%c0_4, %c0_5] : memref<64x16xbf16, #tpu.memory_space<vmem>>, vector<64x16xbf16>
    %cst = arith.constant dense<0.000000e+00> : vector<32x16xf32>
    %6 = tpu.matmul %4, %5, %cst {dimension_numbers = #tpu.dot_dimension_numbers<[1], [0], [0], [1], [0, 0, 1, 1], [], []>} : vector<32x64xbf16>, vector<64x16xbf16>, vector<32x16xf32> -> vector<32x16xf32>
    %7 = arith.addf %3, %6 : vector<32x16xf32>
    %c0_6 = arith.constant 0 : index
    %c0_7 = arith.constant 0 : index
    %8 = vector.load %arg8[%c0_6, %c0_7] : memref<32x16xf32, #tpu.memory_space<vmem>>, vector<32x16xf32>
    tpu.vector_store %arg8[%c0_6, %c0_7], %7 {strides = array<i32>} : memref<32x16xf32, #tpu.memory_space<vmem>>, vector<32x16xf32>,
    %c0_i32_8 = arith.constant 0 : i32
    %9 = arith.cmpi eq, %arg2, %c0_i32_8 : i32
    %10 = arith.extui %9 : i1 to i32
    %c0_i32_9 = arith.constant 0 : i32
    %11 = arith.cmpi ne, %10, %c0_i32_9 : i32
    scf.if %11 {
      %c0_10 = arith.constant 0 : index
      %c0_11 = arith.constant 0 : index
      %12 = vector.load %arg8[%c0_10, %c0_11] : memref<32x16xf32, #tpu.memory_space<vmem>>, vector<32x16xf32>
      %13 = arith.truncf %12 : vector<32x16xf32> to vector<32x16xbf16>
      %c0_12 = arith.constant 0 : index
      %c0_13 = arith.constant 0 : index
      %14 = vector.load %arg5[%c0_12, %c0_13] : memref<32x16xbf16, #tpu.memory_space<vmem>>, vector<32x16xbf16>
      tpu.vector_store %arg5[%c0_12, %c0_13], %13 {strides = array<i32>} : memref<32x16xbf16, #tpu.memory_space<vmem>>, vector<32x16xbf16>,
      %cst_14 = arith.constant dense<0.000000e+00> : vector<16xf32>
      %15 = vector.multi_reduction <add>, %12, %cst_14 [0] : vector<32x16xf32> to vector<16xf32>
      %16 = vector.shape_cast %15 : vector<16xf32> to vector<1x1x16xf32>
      %17 = arith.mulf %12, %12 : vector<32x16xf32>
      %cst_15 = arith.constant dense<0.000000e+00> : vector<16xf32>
      %18 = vector.multi_reduction <add>, %17, %cst_15 [0] : vector<32x16xf32> to vector<16xf32>
      %19 = vector.shape_cast %18 : vector<16xf32> to vector<1x1x16xf32>
      %20 = vector.shape_cast %16 : vector<1x1x16xf32> to vector<1x1x16xf32>
      %21 = vector.broadcast %20 : vector<1x1x16xf32> to vector<1x8x16xf32>
      %c0_16 = arith.constant 0 : index
      %c0_17 = arith.constant 0 : index
      %c0_18 = arith.constant 0 : index
      %22 = vector.load %arg6[%c0_16, %c0_17, %c0_18] : memref<1x8x16xf32, #tpu.memory_space<vmem>>, vector<1x8x16xf32>
      tpu.vector_store %arg6[%c0_16, %c0_17, %c0_18], %21 {strides = array<i32>} : memref<1x8x16xf32, #tpu.memory_space<vmem>>, vector<1x8x16xf32>,
      %23 = vector.shape_cast %19 : vector<1x1x16xf32> to vector<1x1x16xf32>
      %24 = vector.broadcast %23 : vector<1x1x16xf32> to vector<1x8x16xf32>
      %c0_19 = arith.constant 0 : index
      %c0_20 = arith.constant 0 : index
      %c0_21 = arith.constant 0 : index
      %25 = vector.load %arg7[%c0_19, %c0_20, %c0_21] : memref<1x8x16xf32, #tpu.memory_space<vmem>>, vector<1x8x16xf32>
      tpu.vector_store %arg7[%c0_19, %c0_20, %c0_21], %24 {strides = array<i32>} : memref<1x8x16xf32, #tpu.memory_space<vmem>>, vector<1x8x16xf32>,
    } else {
    }
    return
  }
  func.func @transform_0(%arg0: i32, %arg1: i32, %arg2: i32) -> (i32, i32) {
    %c0_i32 = arith.constant 0 : i32
    return %arg0, %arg2 : i32, i32
  }
  func.func @transform_1(%arg0: i32, %arg1: i32, %arg2: i32) -> (i32, i32) {
    %c0_i32 = arith.constant 0 : i32
    return %arg2, %arg1 : i32, i32
  }
  func.func @transform_2(%arg0: i32, %arg1: i32, %arg2: i32) -> (i32, i32) {
    %c0_i32 = arith.constant 0 : i32
    return %arg0, %arg1 : i32, i32
  }
  func.func @transform_3(%arg0: i32, %arg1: i32, %arg2: i32) -> (i32, i32, i32) {
    %c0_i32 = arith.constant 0 : i32
    %c0_i32_0 = arith.constant 0 : i32
    return %arg0, %c0_i32, %arg1 : i32, i32, i32
  }
  func.func @transform_4(%arg0: i32, %arg1: i32, %arg2: i32) -> (i32, i32, i32) {
    %c0_i32 = arith.constant 0 : i32
    %c0_i32_0 = arith.constant 0 : i32
    return %arg0, %c0_i32, %arg1 : i32, i32, i32
  }
}

module attributes {stable_mosaic.version = 11 : i64} {
  func.func @_matmul_stats_kernel(%arg0: i32, %arg1: i32, %arg2: i32, %arg3: memref<32x128xbf16, #tpu.memory_space<vmem>>, %arg4: memref<128x16xbf16, #tpu.memory_space<vmem>>, %arg5: memref<32x16xbf16, #tpu.memory_space<vmem>>, %arg6: memref<1x8x16xf32, #tpu.memory_space<vmem>>, %arg7: memref<1x8x16xf32, #tpu.memory_space<vmem>>, %arg8: memref<32x16xf32, #tpu.memory_space<vmem>>) attributes {dimension_semantics = [#tpu.dimension_semantics<parallel>, #tpu.dimension_semantics<parallel>, #tpu.dimension_semantics<arbitrary>], iteration_bounds = array<i64: 1, 1, 1>, scalar_prefetch = 0 : i64, scratch_operands = 1 : i64, tpu.core_type = #tpu.core_type<tc>, window_params = [{transform_indices = @transform_0, window_bounds = array<i64: 32, 128>}, {transform_indices = @transform_1, window_bounds = array<i64: 128, 16>}, {transform_indices = @transform_2, window_bounds = array<i64: 32, 16>}, {transform_indices = @transform_3, window_bounds = array<i64: 1, 8, 16>}, {transform_indices = @transform_4, window_bounds = array<i64: 1, 8, 16>}]} {
    %c0_i32 = arith.constant 0 : i32
    %0 = arith.cmpi eq, %arg2, %c0_i32 : i32
    %1 = arith.extui %0 : i1 to i32
    %c0_i32_0 = arith.constant 0 : i32
    %2 = arith.cmpi ne, %1, %c0_i32_0 : i32
    scf.if %2 {
      %cst_10 = arith.constant 0.000000e+00 : f32
      %12 = vector.broadcast %cst_10 : f32 to vector<32x16xf32>
      %c0_11 = arith.constant 0 : index
      %c0_12 = arith.constant 0 : index
      %13 = vector.load %arg8[%c0_11, %c0_12] : memref<32x16xf32, #tpu.memory_space<vmem>>, vector<32x16xf32>
      tpu.vector_store %arg8[%c0_11, %c0_12], %12 {strides = array<i32>} : memref<32x16xf32, #tpu.memory_space<vmem>>, vector<32x16xf32>,
    } else {
    }
    %c0 = arith.constant 0 : index
    %c0_1 = arith.constant 0 : index
    %3 = vector.load %arg8[%c0, %c0_1] : memref<32x16xf32, #tpu.memory_space<vmem>>, vector<32x16xf32>
    %c0_2 = arith.constant 0 : index
    %c0_3 = arith.constant 0 : index
    %4 = vector.load %arg3[%c0_2, %c0_3] : memref<32x128xbf16, #tpu.memory_space<vmem>>, vector<32x128xbf16>
    %c0_4 = arith.constant 0 : index
    %c0_5 = arith.constant 0 : index
    %5 = vector.load %arg4[%c0_4, %c0_5] : memref<128x16xbf16, #tpu.memory_space<vmem>>, vector<128x16xbf16>
    %cst = arith.constant dense<0.000000e+00> : vector<32x16xf32>
    %6 = tpu.matmul %4, %5, %cst {dimension_numbers = #tpu.dot_dimension_numbers<[1], [0], [0], [1], [0, 0, 1, 1], [], []>} : vector<32x128xbf16>, vector<128x16xbf16>, vector<32x16xf32> -> vector<32x16xf32>
    %7 = arith.addf %3, %6 : vector<32x16xf32>
    %c0_6 = arith.constant 0 : index
    %c0_7 = arith.constant 0 : index
    %8 = vector.load %arg8[%c0_6, %c0_7] : memref<32x16xf32, #tpu.memory_space<vmem>>, vector<32x16xf32>
    tpu.vector_store %arg8[%c0_6, %c0_7], %7 {strides = array<i32>} : memref<32x16xf32, #tpu.memory_space<vmem>>, vector<32x16xf32>,
    %c0_i32_8 = arith.constant 0 : i32
    %9 = arith.cmpi eq, %arg2, %c0_i32_8 : i32
    %10 = arith.extui %9 : i1 to i32
    %c0_i32_9 = arith.constant 0 : i32
    %11 = arith.cmpi ne, %10, %c0_i32_9 : i32
    scf.if %11 {
      %c0_10 = arith.constant 0 : index
      %c0_11 = arith.constant 0 : index
      %12 = vector.load %arg8[%c0_10, %c0_11] : memref<32x16xf32, #tpu.memory_space<vmem>>, vector<32x16xf32>
      %13 = arith.truncf %12 : vector<32x16xf32> to vector<32x16xbf16>
      %c0_12 = arith.constant 0 : index
      %c0_13 = arith.constant 0 : index
      %14 = vector.load %arg5[%c0_12, %c0_13] : memref<32x16xbf16, #tpu.memory_space<vmem>>, vector<32x16xbf16>
      tpu.vector_store %arg5[%c0_12, %c0_13], %13 {strides = array<i32>} : memref<32x16xbf16, #tpu.memory_space<vmem>>, vector<32x16xbf16>,
      %cst_14 = arith.constant dense<0.000000e+00> : vector<16xf32>
      %15 = vector.multi_reduction <add>, %12, %cst_14 [0] : vector<32x16xf32> to vector<16xf32>
      %16 = vector.shape_cast %15 : vector<16xf32> to vector<1x1x16xf32>
      %17 = arith.mulf %12, %12 : vector<32x16xf32>
      %cst_15 = arith.constant dense<0.000000e+00> : vector<16xf32>
      %18 = vector.multi_reduction <add>, %17, %cst_15 [0] : vector<32x16xf32> to vector<16xf32>
      %19 = vector.shape_cast %18 : vector<16xf32> to vector<1x1x16xf32>
      %20 = vector.shape_cast %16 : vector<1x1x16xf32> to vector<1x1x16xf32>
      %21 = vector.broadcast %20 : vector<1x1x16xf32> to vector<1x8x16xf32>
      %c0_16 = arith.constant 0 : index
      %c0_17 = arith.constant 0 : index
      %c0_18 = arith.constant 0 : index
      %22 = vector.load %arg6[%c0_16, %c0_17, %c0_18] : memref<1x8x16xf32, #tpu.memory_space<vmem>>, vector<1x8x16xf32>
      tpu.vector_store %arg6[%c0_16, %c0_17, %c0_18], %21 {strides = array<i32>} : memref<1x8x16xf32, #tpu.memory_space<vmem>>, vector<1x8x16xf32>,
      %23 = vector.shape_cast %19 : vector<1x1x16xf32> to vector<1x1x16xf32>
      %24 = vector.broadcast %23 : vector<1x1x16xf32> to vector<1x8x16xf32>
      %c0_19 = arith.constant 0 : index
      %c0_20 = arith.constant 0 : index
      %c0_21 = arith.constant 0 : index
      %25 = vector.load %arg7[%c0_19, %c0_20, %c0_21] : memref<1x8x16xf32, #tpu.memory_space<vmem>>, vector<1x8x16xf32>
      tpu.vector_store %arg7[%c0_19, %c0_20, %c0_21], %24 {strides = array<i32>} : memref<1x8x16xf32, #tpu.memory_space<vmem>>, vector<1x8x16xf32>,
    } else {
    }
    return
  }
  func.func @transform_0(%arg0: i32, %arg1: i32, %arg2: i32) -> (i32, i32) {
    %c0_i32 = arith.constant 0 : i32
    return %arg0, %arg2 : i32, i32
  }
  func.func @transform_1(%arg0: i32, %arg1: i32, %arg2: i32) -> (i32, i32) {
    %c0_i32 = arith.constant 0 : i32
    return %arg2, %arg1 : i32, i32
  }
  func.func @transform_2(%arg0: i32, %arg1: i32, %arg2: i32) -> (i32, i32) {
    %c0_i32 = arith.constant 0 : i32
    return %arg0, %arg1 : i32, i32
  }
  func.func @transform_3(%arg0: i32, %arg1: i32, %arg2: i32) -> (i32, i32, i32) {
    %c0_i32 = arith.constant 0 : i32
    %c0_i32_0 = arith.constant 0 : i32
    return %arg0, %c0_i32, %arg1 : i32, i32, i32
  }
  func.func @transform_4(%arg0: i32, %arg1: i32, %arg2: i32) -> (i32, i32, i32) {
    %c0_i32 = arith.constant 0 : i32
    %c0_i32_0 = arith.constant 0 : i32
    return %arg0, %c0_i32, %arg1 : i32, i32, i32
  }
}

module attributes {stable_mosaic.version = 11 : i64} {
  func.func @_matmul_stats_kernel(%arg0: i32, %arg1: i32, %arg2: i32, %arg3: memref<32x32xbf16, #tpu.memory_space<vmem>>, %arg4: memref<32x16xbf16, #tpu.memory_space<vmem>>, %arg5: memref<32x16xbf16, #tpu.memory_space<vmem>>, %arg6: memref<1x8x16xf32, #tpu.memory_space<vmem>>, %arg7: memref<1x8x16xf32, #tpu.memory_space<vmem>>, %arg8: memref<32x16xf32, #tpu.memory_space<vmem>>) attributes {dimension_semantics = [#tpu.dimension_semantics<parallel>, #tpu.dimension_semantics<parallel>, #tpu.dimension_semantics<arbitrary>], iteration_bounds = array<i64: 1, 1, 1>, scalar_prefetch = 0 : i64, scratch_operands = 1 : i64, tpu.core_type = #tpu.core_type<tc>, window_params = [{transform_indices = @transform_0, window_bounds = array<i64: 32, 32>}, {transform_indices = @transform_1, window_bounds = array<i64: 32, 16>}, {transform_indices = @transform_2, window_bounds = array<i64: 32, 16>}, {transform_indices = @transform_3, window_bounds = array<i64: 1, 8, 16>}, {transform_indices = @transform_4, window_bounds = array<i64: 1, 8, 16>}]} {
    %c0_i32 = arith.constant 0 : i32
    %0 = arith.cmpi eq, %arg2, %c0_i32 : i32
    %1 = arith.extui %0 : i1 to i32
    %c0_i32_0 = arith.constant 0 : i32
    %2 = arith.cmpi ne, %1, %c0_i32_0 : i32
    scf.if %2 {
      %cst_10 = arith.constant 0.000000e+00 : f32
      %12 = vector.broadcast %cst_10 : f32 to vector<32x16xf32>
      %c0_11 = arith.constant 0 : index
      %c0_12 = arith.constant 0 : index
      %13 = vector.load %arg8[%c0_11, %c0_12] : memref<32x16xf32, #tpu.memory_space<vmem>>, vector<32x16xf32>
      tpu.vector_store %arg8[%c0_11, %c0_12], %12 {strides = array<i32>} : memref<32x16xf32, #tpu.memory_space<vmem>>, vector<32x16xf32>,
    } else {
    }
    %c0 = arith.constant 0 : index
    %c0_1 = arith.constant 0 : index
    %3 = vector.load %arg8[%c0, %c0_1] : memref<32x16xf32, #tpu.memory_space<vmem>>, vector<32x16xf32>
    %c0_2 = arith.constant 0 : index
    %c0_3 = arith.constant 0 : index
    %4 = vector.load %arg3[%c0_2, %c0_3] : memref<32x32xbf16, #tpu.memory_space<vmem>>, vector<32x32xbf16>
    %c0_4 = arith.constant 0 : index
    %c0_5 = arith.constant 0 : index
    %5 = vector.load %arg4[%c0_4, %c0_5] : memref<32x16xbf16, #tpu.memory_space<vmem>>, vector<32x16xbf16>
    %cst = arith.constant dense<0.000000e+00> : vector<32x16xf32>
    %6 = tpu.matmul %4, %5, %cst {dimension_numbers = #tpu.dot_dimension_numbers<[1], [0], [0], [1], [0, 0, 1, 1], [], []>} : vector<32x32xbf16>, vector<32x16xbf16>, vector<32x16xf32> -> vector<32x16xf32>
    %7 = arith.addf %3, %6 : vector<32x16xf32>
    %c0_6 = arith.constant 0 : index
    %c0_7 = arith.constant 0 : index
    %8 = vector.load %arg8[%c0_6, %c0_7] : memref<32x16xf32, #tpu.memory_space<vmem>>, vector<32x16xf32>
    tpu.vector_store %arg8[%c0_6, %c0_7], %7 {strides = array<i32>} : memref<32x16xf32, #tpu.memory_space<vmem>>, vector<32x16xf32>,
    %c0_i32_8 = arith.constant 0 : i32
    %9 = arith.cmpi eq, %arg2, %c0_i32_8 : i32
    %10 = arith.extui %9 : i1 to i32
    %c0_i32_9 = arith.constant 0 : i32
    %11 = arith.cmpi ne, %10, %c0_i32_9 : i32
    scf.if %11 {
      %c0_10 = arith.constant 0 : index
      %c0_11 = arith.constant 0 : index
      %12 = vector.load %arg8[%c0_10, %c0_11] : memref<32x16xf32, #tpu.memory_space<vmem>>, vector<32x16xf32>
      %13 = arith.truncf %12 : vector<32x16xf32> to vector<32x16xbf16>
      %c0_12 = arith.constant 0 : index
      %c0_13 = arith.constant 0 : index
      %14 = vector.load %arg5[%c0_12, %c0_13] : memref<32x16xbf16, #tpu.memory_space<vmem>>, vector<32x16xbf16>
      tpu.vector_store %arg5[%c0_12, %c0_13], %13 {strides = array<i32>} : memref<32x16xbf16, #tpu.memory_space<vmem>>, vector<32x16xbf16>,
      %cst_14 = arith.constant dense<0.000000e+00> : vector<16xf32>
      %15 = vector.multi_reduction <add>, %12, %cst_14 [0] : vector<32x16xf32> to vector<16xf32>
      %16 = vector.shape_cast %15 : vector<16xf32> to vector<1x1x16xf32>
      %17 = arith.mulf %12, %12 : vector<32x16xf32>
      %cst_15 = arith.constant dense<0.000000e+00> : vector<16xf32>
      %18 = vector.multi_reduction <add>, %17, %cst_15 [0] : vector<32x16xf32> to vector<16xf32>
      %19 = vector.shape_cast %18 : vector<16xf32> to vector<1x1x16xf32>
      %20 = vector.shape_cast %16 : vector<1x1x16xf32> to vector<1x1x16xf32>
      %21 = vector.broadcast %20 : vector<1x1x16xf32> to vector<1x8x16xf32>
      %c0_16 = arith.constant 0 : index
      %c0_17 = arith.constant 0 : index
      %c0_18 = arith.constant 0 : index
      %22 = vector.load %arg6[%c0_16, %c0_17, %c0_18] : memref<1x8x16xf32, #tpu.memory_space<vmem>>, vector<1x8x16xf32>
      tpu.vector_store %arg6[%c0_16, %c0_17, %c0_18], %21 {strides = array<i32>} : memref<1x8x16xf32, #tpu.memory_space<vmem>>, vector<1x8x16xf32>,
      %23 = vector.shape_cast %19 : vector<1x1x16xf32> to vector<1x1x16xf32>
      %24 = vector.broadcast %23 : vector<1x1x16xf32> to vector<1x8x16xf32>
      %c0_19 = arith.constant 0 : index
      %c0_20 = arith.constant 0 : index
      %c0_21 = arith.constant 0 : index
      %25 = vector.load %arg7[%c0_19, %c0_20, %c0_21] : memref<1x8x16xf32, #tpu.memory_space<vmem>>, vector<1x8x16xf32>
      tpu.vector_store %arg7[%c0_19, %c0_20, %c0_21], %24 {strides = array<i32>} : memref<1x8x16xf32, #tpu.memory_space<vmem>>, vector<1x8x16xf32>,
    } else {
    }
    return
  }
  func.func @transform_0(%arg0: i32, %arg1: i32, %arg2: i32) -> (i32, i32) {
    %c0_i32 = arith.constant 0 : i32
    return %arg0, %arg2 : i32, i32
  }
  func.func @transform_1(%arg0: i32, %arg1: i32, %arg2: i32) -> (i32, i32) {
    %c0_i32 = arith.constant 0 : i32
    return %arg2, %arg1 : i32, i32
  }
  func.func @transform_2(%arg0: i32, %arg1: i32, %arg2: i32) -> (i32, i32) {
    %c0_i32 = arith.constant 0 : i32
    return %arg0, %arg1 : i32, i32
  }
  func.func @transform_3(%arg0: i32, %arg1: i32, %arg2: i32) -> (i32, i32, i32) {
    %c0_i32 = arith.constant 0 : i32
    %c0_i32_0 = arith.constant 0 : i32
    return %arg0, %c0_i32, %arg1 : i32, i32, i32
  }
  func.func @transform_4(%arg0: i32, %arg1: i32, %arg2: i32) -> (i32, i32, i32) {
    %c0_i32 = arith.constant 0 : i32
    %c0_i32_0 = arith.constant 0 : i32
    return %arg0, %c0_i32, %arg1 : i32, i32, i32
  }
}

module attributes {stable_mosaic.version = 11 : i64} {
  func.func @_affine_act_kernel(%arg0: i32, %arg1: memref<32x16xbf16, #tpu.memory_space<vmem>>, %arg2: memref<1x16xf32, #tpu.memory_space<vmem>>, %arg3: memref<1x16xf32, #tpu.memory_space<vmem>>, %arg4: memref<32x16xbf16, #tpu.memory_space<vmem>>) attributes {dimension_semantics = [#tpu.dimension_semantics<parallel>], iteration_bounds = array<i64: 1>, scalar_prefetch = 0 : i64, scratch_operands = 0 : i64, tpu.core_type = #tpu.core_type<tc>, window_params = [{transform_indices = @transform_0, window_bounds = array<i64: 32, 16>}, {pipeline_mode = #tpu.pipeline_mode<synchronous>, transform_indices = @transform_1, window_bounds = array<i64: 1, 16>}, {pipeline_mode = #tpu.pipeline_mode<synchronous>, transform_indices = @transform_2, window_bounds = array<i64: 1, 16>}, {transform_indices = @transform_3, window_bounds = array<i64: 32, 16>}]} {
    %c0 = arith.constant 0 : index
    %c0_0 = arith.constant 0 : index
    %0 = vector.load %arg1[%c0, %c0_0] : memref<32x16xbf16, #tpu.memory_space<vmem>>, vector<32x16xbf16>
    %1 = arith.extf %0 : vector<32x16xbf16> to vector<32x16xf32>
    %c0_1 = arith.constant 0 : index
    %c0_2 = arith.constant 0 : index
    %2 = vector.load %arg2[%c0_1, %c0_2] : memref<1x16xf32, #tpu.memory_space<vmem>>, vector<1x16xf32>
    %3 = vector.broadcast %2 : vector<1x16xf32> to vector<32x16xf32>
    %4 = arith.mulf %1, %3 : vector<32x16xf32>
    %c0_3 = arith.constant 0 : index
    %c0_4 = arith.constant 0 : index
    %5 = vector.load %arg3[%c0_3, %c0_4] : memref<1x16xf32, #tpu.memory_space<vmem>>, vector<1x16xf32>
    %6 = vector.broadcast %5 : vector<1x16xf32> to vector<32x16xf32>
    %7 = arith.addf %4, %6 : vector<32x16xf32>
    %cst = arith.constant 0.000000e+00 : f32
    %8 = vector.broadcast %cst : f32 to vector<32x16xf32>
    %9 = arith.maximumf %7, %8 : vector<32x16xf32>
    %10 = arith.truncf %9 : vector<32x16xf32> to vector<32x16xbf16>
    %c0_5 = arith.constant 0 : index
    %c0_6 = arith.constant 0 : index
    %11 = vector.load %arg4[%c0_5, %c0_6] : memref<32x16xbf16, #tpu.memory_space<vmem>>, vector<32x16xbf16>
    tpu.vector_store %arg4[%c0_5, %c0_6], %10 {strides = array<i32>} : memref<32x16xbf16, #tpu.memory_space<vmem>>, vector<32x16xbf16>,
    return
  }
  func.func @transform_0(%arg0: i32) -> (i32, i32) {
    %c0_i32 = arith.constant 0 : i32
    %c0_i32_0 = arith.constant 0 : i32
    return %arg0, %c0_i32 : i32, i32
  }
  func.func @transform_1(%arg0: i32) -> (i32, i32) {
    %c0_i32 = arith.constant 0 : i32
    %c0_i32_0 = arith.constant 0 : i32
    %c0_i32_1 = arith.constant 0 : i32
    return %c0_i32, %c0_i32_0 : i32, i32
  }
  func.func @transform_2(%arg0: i32) -> (i32, i32) {
    %c0_i32 = arith.constant 0 : i32
    %c0_i32_0 = arith.constant 0 : i32
    %c0_i32_1 = arith.constant 0 : i32
    return %c0_i32, %c0_i32_0 : i32, i32
  }
  func.func @transform_3(%arg0: i32) -> (i32, i32) {
    %c0_i32 = arith.constant 0 : i32
    %c0_i32_0 = arith.constant 0 : i32
    return %arg0, %c0_i32 : i32, i32
  }
}

module attributes {stable_mosaic.version = 11 : i64} {
  func.func @_matmul_stats_kernel(%arg0: i32, %arg1: i32, %arg2: i32, %arg3: memref<128x32xbf16, #tpu.memory_space<vmem>>, %arg4: memref<32x8xbf16, #tpu.memory_space<vmem>>, %arg5: memref<128x8xbf16, #tpu.memory_space<vmem>>, %arg6: memref<1x8x8xf32, #tpu.memory_space<vmem>>, %arg7: memref<1x8x8xf32, #tpu.memory_space<vmem>>, %arg8: memref<128x8xf32, #tpu.memory_space<vmem>>) attributes {dimension_semantics = [#tpu.dimension_semantics<parallel>, #tpu.dimension_semantics<parallel>, #tpu.dimension_semantics<arbitrary>], iteration_bounds = array<i64: 1, 1, 1>, scalar_prefetch = 0 : i64, scratch_operands = 1 : i64, tpu.core_type = #tpu.core_type<tc>, window_params = [{transform_indices = @transform_0, window_bounds = array<i64: 128, 32>}, {transform_indices = @transform_1, window_bounds = array<i64: 32, 8>}, {transform_indices = @transform_2, window_bounds = array<i64: 128, 8>}, {transform_indices = @transform_3, window_bounds = array<i64: 1, 8, 8>}, {transform_indices = @transform_4, window_bounds = array<i64: 1, 8, 8>}]} {
    %c0_i32 = arith.constant 0 : i32
    %0 = arith.cmpi eq, %arg2, %c0_i32 : i32
    %1 = arith.extui %0 : i1 to i32
    %c0_i32_0 = arith.constant 0 : i32
    %2 = arith.cmpi ne, %1, %c0_i32_0 : i32
    scf.if %2 {
      %cst_10 = arith.constant 0.000000e+00 : f32
      %12 = vector.broadcast %cst_10 : f32 to vector<128x8xf32>
      %c0_11 = arith.constant 0 : index
      %c0_12 = arith.constant 0 : index
      %13 = vector.load %arg8[%c0_11, %c0_12] : memref<128x8xf32, #tpu.memory_space<vmem>>, vector<128x8xf32>
      tpu.vector_store %arg8[%c0_11, %c0_12], %12 {strides = array<i32>} : memref<128x8xf32, #tpu.memory_space<vmem>>, vector<128x8xf32>,
    } else {
    }
    %c0 = arith.constant 0 : index
    %c0_1 = arith.constant 0 : index
    %3 = vector.load %arg8[%c0, %c0_1] : memref<128x8xf32, #tpu.memory_space<vmem>>, vector<128x8xf32>
    %c0_2 = arith.constant 0 : index
    %c0_3 = arith.constant 0 : index
    %4 = vector.load %arg3[%c0_2, %c0_3] : memref<128x32xbf16, #tpu.memory_space<vmem>>, vector<128x32xbf16>
    %c0_4 = arith.constant 0 : index
    %c0_5 = arith.constant 0 : index
    %5 = vector.load %arg4[%c0_4, %c0_5] : memref<32x8xbf16, #tpu.memory_space<vmem>>, vector<32x8xbf16>
    %cst = arith.constant dense<0.000000e+00> : vector<128x8xf32>
    %6 = tpu.matmul %4, %5, %cst {dimension_numbers = #tpu.dot_dimension_numbers<[1], [0], [0], [1], [0, 0, 1, 1], [], []>} : vector<128x32xbf16>, vector<32x8xbf16>, vector<128x8xf32> -> vector<128x8xf32>
    %7 = arith.addf %3, %6 : vector<128x8xf32>
    %c0_6 = arith.constant 0 : index
    %c0_7 = arith.constant 0 : index
    %8 = vector.load %arg8[%c0_6, %c0_7] : memref<128x8xf32, #tpu.memory_space<vmem>>, vector<128x8xf32>
    tpu.vector_store %arg8[%c0_6, %c0_7], %7 {strides = array<i32>} : memref<128x8xf32, #tpu.memory_space<vmem>>, vector<128x8xf32>,
    %c0_i32_8 = arith.constant 0 : i32
    %9 = arith.cmpi eq, %arg2, %c0_i32_8 : i32
    %10 = arith.extui %9 : i1 to i32
    %c0_i32_9 = arith.constant 0 : i32
    %11 = arith.cmpi ne, %10, %c0_i32_9 : i32
    scf.if %11 {
      %c0_10 = arith.constant 0 : index
      %c0_11 = arith.constant 0 : index
      %12 = vector.load %arg8[%c0_10, %c0_11] : memref<128x8xf32, #tpu.memory_space<vmem>>, vector<128x8xf32>
      %13 = arith.truncf %12 : vector<128x8xf32> to vector<128x8xbf16>
      %c0_12 = arith.constant 0 : index
      %c0_13 = arith.constant 0 : index
      %14 = vector.load %arg5[%c0_12, %c0_13] : memref<128x8xbf16, #tpu.memory_space<vmem>>, vector<128x8xbf16>
      tpu.vector_store %arg5[%c0_12, %c0_13], %13 {strides = array<i32>} : memref<128x8xbf16, #tpu.memory_space<vmem>>, vector<128x8xbf16>,
      %cst_14 = arith.constant dense<0.000000e+00> : vector<8xf32>
      %15 = vector.multi_reduction <add>, %12, %cst_14 [0] : vector<128x8xf32> to vector<8xf32>
      %16 = vector.shape_cast %15 : vector<8xf32> to vector<1x1x8xf32>
      %17 = arith.mulf %12, %12 : vector<128x8xf32>
      %cst_15 = arith.constant dense<0.000000e+00> : vector<8xf32>
      %18 = vector.multi_reduction <add>, %17, %cst_15 [0] : vector<128x8xf32> to vector<8xf32>
      %19 = vector.shape_cast %18 : vector<8xf32> to vector<1x1x8xf32>
      %20 = vector.shape_cast %16 : vector<1x1x8xf32> to vector<1x1x8xf32>
      %21 = vector.broadcast %20 : vector<1x1x8xf32> to vector<1x8x8xf32>
      %c0_16 = arith.constant 0 : index
      %c0_17 = arith.constant 0 : index
      %c0_18 = arith.constant 0 : index
      %22 = vector.load %arg6[%c0_16, %c0_17, %c0_18] : memref<1x8x8xf32, #tpu.memory_space<vmem>>, vector<1x8x8xf32>
      tpu.vector_store %arg6[%c0_16, %c0_17, %c0_18], %21 {strides = array<i32>} : memref<1x8x8xf32, #tpu.memory_space<vmem>>, vector<1x8x8xf32>,
      %23 = vector.shape_cast %19 : vector<1x1x8xf32> to vector<1x1x8xf32>
      %24 = vector.broadcast %23 : vector<1x1x8xf32> to vector<1x8x8xf32>
      %c0_19 = arith.constant 0 : index
      %c0_20 = arith.constant 0 : index
      %c0_21 = arith.constant 0 : index
      %25 = vector.load %arg7[%c0_19, %c0_20, %c0_21] : memref<1x8x8xf32, #tpu.memory_space<vmem>>, vector<1x8x8xf32>
      tpu.vector_store %arg7[%c0_19, %c0_20, %c0_21], %24 {strides = array<i32>} : memref<1x8x8xf32, #tpu.memory_space<vmem>>, vector<1x8x8xf32>,
    } else {
    }
    return
  }
  func.func @transform_0(%arg0: i32, %arg1: i32, %arg2: i32) -> (i32, i32) {
    %c0_i32 = arith.constant 0 : i32
    return %arg0, %arg2 : i32, i32
  }
  func.func @transform_1(%arg0: i32, %arg1: i32, %arg2: i32) -> (i32, i32) {
    %c0_i32 = arith.constant 0 : i32
    return %arg2, %arg1 : i32, i32
  }
  func.func @transform_2(%arg0: i32, %arg1: i32, %arg2: i32) -> (i32, i32) {
    %c0_i32 = arith.constant 0 : i32
    return %arg0, %arg1 : i32, i32
  }
  func.func @transform_3(%arg0: i32, %arg1: i32, %arg2: i32) -> (i32, i32, i32) {
    %c0_i32 = arith.constant 0 : i32
    %c0_i32_0 = arith.constant 0 : i32
    return %arg0, %c0_i32, %arg1 : i32, i32, i32
  }
  func.func @transform_4(%arg0: i32, %arg1: i32, %arg2: i32) -> (i32, i32, i32) {
    %c0_i32 = arith.constant 0 : i32
    %c0_i32_0 = arith.constant 0 : i32
    return %arg0, %c0_i32, %arg1 : i32, i32, i32
  }
}

module attributes {stable_mosaic.version = 11 : i64} {
  func.func @_matmul_stats_kernel(%arg0: i32, %arg1: i32, %arg2: i32, %arg3: memref<128x64xbf16, #tpu.memory_space<vmem>>, %arg4: memref<64x8xbf16, #tpu.memory_space<vmem>>, %arg5: memref<128x8xbf16, #tpu.memory_space<vmem>>, %arg6: memref<1x8x8xf32, #tpu.memory_space<vmem>>, %arg7: memref<1x8x8xf32, #tpu.memory_space<vmem>>, %arg8: memref<128x8xf32, #tpu.memory_space<vmem>>) attributes {dimension_semantics = [#tpu.dimension_semantics<parallel>, #tpu.dimension_semantics<parallel>, #tpu.dimension_semantics<arbitrary>], iteration_bounds = array<i64: 1, 1, 1>, scalar_prefetch = 0 : i64, scratch_operands = 1 : i64, tpu.core_type = #tpu.core_type<tc>, window_params = [{transform_indices = @transform_0, window_bounds = array<i64: 128, 64>}, {transform_indices = @transform_1, window_bounds = array<i64: 64, 8>}, {transform_indices = @transform_2, window_bounds = array<i64: 128, 8>}, {transform_indices = @transform_3, window_bounds = array<i64: 1, 8, 8>}, {transform_indices = @transform_4, window_bounds = array<i64: 1, 8, 8>}]} {
    %c0_i32 = arith.constant 0 : i32
    %0 = arith.cmpi eq, %arg2, %c0_i32 : i32
    %1 = arith.extui %0 : i1 to i32
    %c0_i32_0 = arith.constant 0 : i32
    %2 = arith.cmpi ne, %1, %c0_i32_0 : i32
    scf.if %2 {
      %cst_10 = arith.constant 0.000000e+00 : f32
      %12 = vector.broadcast %cst_10 : f32 to vector<128x8xf32>
      %c0_11 = arith.constant 0 : index
      %c0_12 = arith.constant 0 : index
      %13 = vector.load %arg8[%c0_11, %c0_12] : memref<128x8xf32, #tpu.memory_space<vmem>>, vector<128x8xf32>
      tpu.vector_store %arg8[%c0_11, %c0_12], %12 {strides = array<i32>} : memref<128x8xf32, #tpu.memory_space<vmem>>, vector<128x8xf32>,
    } else {
    }
    %c0 = arith.constant 0 : index
    %c0_1 = arith.constant 0 : index
    %3 = vector.load %arg8[%c0, %c0_1] : memref<128x8xf32, #tpu.memory_space<vmem>>, vector<128x8xf32>
    %c0_2 = arith.constant 0 : index
    %c0_3 = arith.constant 0 : index
    %4 = vector.load %arg3[%c0_2, %c0_3] : memref<128x64xbf16, #tpu.memory_space<vmem>>, vector<128x64xbf16>
    %c0_4 = arith.constant 0 : index
    %c0_5 = arith.constant 0 : index
    %5 = vector.load %arg4[%c0_4, %c0_5] : memref<64x8xbf16, #tpu.memory_space<vmem>>, vector<64x8xbf16>
    %cst = arith.constant dense<0.000000e+00> : vector<128x8xf32>
    %6 = tpu.matmul %4, %5, %cst {dimension_numbers = #tpu.dot_dimension_numbers<[1], [0], [0], [1], [0, 0, 1, 1], [], []>} : vector<128x64xbf16>, vector<64x8xbf16>, vector<128x8xf32> -> vector<128x8xf32>
    %7 = arith.addf %3, %6 : vector<128x8xf32>
    %c0_6 = arith.constant 0 : index
    %c0_7 = arith.constant 0 : index
    %8 = vector.load %arg8[%c0_6, %c0_7] : memref<128x8xf32, #tpu.memory_space<vmem>>, vector<128x8xf32>
    tpu.vector_store %arg8[%c0_6, %c0_7], %7 {strides = array<i32>} : memref<128x8xf32, #tpu.memory_space<vmem>>, vector<128x8xf32>,
    %c0_i32_8 = arith.constant 0 : i32
    %9 = arith.cmpi eq, %arg2, %c0_i32_8 : i32
    %10 = arith.extui %9 : i1 to i32
    %c0_i32_9 = arith.constant 0 : i32
    %11 = arith.cmpi ne, %10, %c0_i32_9 : i32
    scf.if %11 {
      %c0_10 = arith.constant 0 : index
      %c0_11 = arith.constant 0 : index
      %12 = vector.load %arg8[%c0_10, %c0_11] : memref<128x8xf32, #tpu.memory_space<vmem>>, vector<128x8xf32>
      %13 = arith.truncf %12 : vector<128x8xf32> to vector<128x8xbf16>
      %c0_12 = arith.constant 0 : index
      %c0_13 = arith.constant 0 : index
      %14 = vector.load %arg5[%c0_12, %c0_13] : memref<128x8xbf16, #tpu.memory_space<vmem>>, vector<128x8xbf16>
      tpu.vector_store %arg5[%c0_12, %c0_13], %13 {strides = array<i32>} : memref<128x8xbf16, #tpu.memory_space<vmem>>, vector<128x8xbf16>,
      %cst_14 = arith.constant dense<0.000000e+00> : vector<8xf32>
      %15 = vector.multi_reduction <add>, %12, %cst_14 [0] : vector<128x8xf32> to vector<8xf32>
      %16 = vector.shape_cast %15 : vector<8xf32> to vector<1x1x8xf32>
      %17 = arith.mulf %12, %12 : vector<128x8xf32>
      %cst_15 = arith.constant dense<0.000000e+00> : vector<8xf32>
      %18 = vector.multi_reduction <add>, %17, %cst_15 [0] : vector<128x8xf32> to vector<8xf32>
      %19 = vector.shape_cast %18 : vector<8xf32> to vector<1x1x8xf32>
      %20 = vector.shape_cast %16 : vector<1x1x8xf32> to vector<1x1x8xf32>
      %21 = vector.broadcast %20 : vector<1x1x8xf32> to vector<1x8x8xf32>
      %c0_16 = arith.constant 0 : index
      %c0_17 = arith.constant 0 : index
      %c0_18 = arith.constant 0 : index
      %22 = vector.load %arg6[%c0_16, %c0_17, %c0_18] : memref<1x8x8xf32, #tpu.memory_space<vmem>>, vector<1x8x8xf32>
      tpu.vector_store %arg6[%c0_16, %c0_17, %c0_18], %21 {strides = array<i32>} : memref<1x8x8xf32, #tpu.memory_space<vmem>>, vector<1x8x8xf32>,
      %23 = vector.shape_cast %19 : vector<1x1x8xf32> to vector<1x1x8xf32>
      %24 = vector.broadcast %23 : vector<1x1x8xf32> to vector<1x8x8xf32>
      %c0_19 = arith.constant 0 : index
      %c0_20 = arith.constant 0 : index
      %c0_21 = arith.constant 0 : index
      %25 = vector.load %arg7[%c0_19, %c0_20, %c0_21] : memref<1x8x8xf32, #tpu.memory_space<vmem>>, vector<1x8x8xf32>
      tpu.vector_store %arg7[%c0_19, %c0_20, %c0_21], %24 {strides = array<i32>} : memref<1x8x8xf32, #tpu.memory_space<vmem>>, vector<1x8x8xf32>,
    } else {
    }
    return
  }
  func.func @transform_0(%arg0: i32, %arg1: i32, %arg2: i32) -> (i32, i32) {
    %c0_i32 = arith.constant 0 : i32
    return %arg0, %arg2 : i32, i32
  }
  func.func @transform_1(%arg0: i32, %arg1: i32, %arg2: i32) -> (i32, i32) {
    %c0_i32 = arith.constant 0 : i32
    return %arg2, %arg1 : i32, i32
  }
  func.func @transform_2(%arg0: i32, %arg1: i32, %arg2: i32) -> (i32, i32) {
    %c0_i32 = arith.constant 0 : i32
    return %arg0, %arg1 : i32, i32
  }
  func.func @transform_3(%arg0: i32, %arg1: i32, %arg2: i32) -> (i32, i32, i32) {
    %c0_i32 = arith.constant 0 : i32
    %c0_i32_0 = arith.constant 0 : i32
    return %arg0, %c0_i32, %arg1 : i32, i32, i32
  }
  func.func @transform_4(%arg0: i32, %arg1: i32, %arg2: i32) -> (i32, i32, i32) {
    %c0_i32 = arith.constant 0 : i32
    %c0_i32_0 = arith.constant 0 : i32
    return %arg0, %c0_i32, %arg1 : i32, i32, i32
  }
}

module attributes {stable_mosaic.version = 11 : i64} {
  func.func @_matmul_stats_kernel(%arg0: i32, %arg1: i32, %arg2: i32, %arg3: memref<128x16xbf16, #tpu.memory_space<vmem>>, %arg4: memref<16x8xbf16, #tpu.memory_space<vmem>>, %arg5: memref<128x8xbf16, #tpu.memory_space<vmem>>, %arg6: memref<1x8x8xf32, #tpu.memory_space<vmem>>, %arg7: memref<1x8x8xf32, #tpu.memory_space<vmem>>, %arg8: memref<128x8xf32, #tpu.memory_space<vmem>>) attributes {dimension_semantics = [#tpu.dimension_semantics<parallel>, #tpu.dimension_semantics<parallel>, #tpu.dimension_semantics<arbitrary>], iteration_bounds = array<i64: 1, 1, 1>, scalar_prefetch = 0 : i64, scratch_operands = 1 : i64, tpu.core_type = #tpu.core_type<tc>, window_params = [{transform_indices = @transform_0, window_bounds = array<i64: 128, 16>}, {transform_indices = @transform_1, window_bounds = array<i64: 16, 8>}, {transform_indices = @transform_2, window_bounds = array<i64: 128, 8>}, {transform_indices = @transform_3, window_bounds = array<i64: 1, 8, 8>}, {transform_indices = @transform_4, window_bounds = array<i64: 1, 8, 8>}]} {
    %c0_i32 = arith.constant 0 : i32
    %0 = arith.cmpi eq, %arg2, %c0_i32 : i32
    %1 = arith.extui %0 : i1 to i32
    %c0_i32_0 = arith.constant 0 : i32
    %2 = arith.cmpi ne, %1, %c0_i32_0 : i32
    scf.if %2 {
      %cst_10 = arith.constant 0.000000e+00 : f32
      %12 = vector.broadcast %cst_10 : f32 to vector<128x8xf32>
      %c0_11 = arith.constant 0 : index
      %c0_12 = arith.constant 0 : index
      %13 = vector.load %arg8[%c0_11, %c0_12] : memref<128x8xf32, #tpu.memory_space<vmem>>, vector<128x8xf32>
      tpu.vector_store %arg8[%c0_11, %c0_12], %12 {strides = array<i32>} : memref<128x8xf32, #tpu.memory_space<vmem>>, vector<128x8xf32>,
    } else {
    }
    %c0 = arith.constant 0 : index
    %c0_1 = arith.constant 0 : index
    %3 = vector.load %arg8[%c0, %c0_1] : memref<128x8xf32, #tpu.memory_space<vmem>>, vector<128x8xf32>
    %c0_2 = arith.constant 0 : index
    %c0_3 = arith.constant 0 : index
    %4 = vector.load %arg3[%c0_2, %c0_3] : memref<128x16xbf16, #tpu.memory_space<vmem>>, vector<128x16xbf16>
    %c0_4 = arith.constant 0 : index
    %c0_5 = arith.constant 0 : index
    %5 = vector.load %arg4[%c0_4, %c0_5] : memref<16x8xbf16, #tpu.memory_space<vmem>>, vector<16x8xbf16>
    %cst = arith.constant dense<0.000000e+00> : vector<128x8xf32>
    %6 = tpu.matmul %4, %5, %cst {dimension_numbers = #tpu.dot_dimension_numbers<[1], [0], [0], [1], [0, 0, 1, 1], [], []>} : vector<128x16xbf16>, vector<16x8xbf16>, vector<128x8xf32> -> vector<128x8xf32>
    %7 = arith.addf %3, %6 : vector<128x8xf32>
    %c0_6 = arith.constant 0 : index
    %c0_7 = arith.constant 0 : index
    %8 = vector.load %arg8[%c0_6, %c0_7] : memref<128x8xf32, #tpu.memory_space<vmem>>, vector<128x8xf32>
    tpu.vector_store %arg8[%c0_6, %c0_7], %7 {strides = array<i32>} : memref<128x8xf32, #tpu.memory_space<vmem>>, vector<128x8xf32>,
    %c0_i32_8 = arith.constant 0 : i32
    %9 = arith.cmpi eq, %arg2, %c0_i32_8 : i32
    %10 = arith.extui %9 : i1 to i32
    %c0_i32_9 = arith.constant 0 : i32
    %11 = arith.cmpi ne, %10, %c0_i32_9 : i32
    scf.if %11 {
      %c0_10 = arith.constant 0 : index
      %c0_11 = arith.constant 0 : index
      %12 = vector.load %arg8[%c0_10, %c0_11] : memref<128x8xf32, #tpu.memory_space<vmem>>, vector<128x8xf32>
      %13 = arith.truncf %12 : vector<128x8xf32> to vector<128x8xbf16>
      %c0_12 = arith.constant 0 : index
      %c0_13 = arith.constant 0 : index
      %14 = vector.load %arg5[%c0_12, %c0_13] : memref<128x8xbf16, #tpu.memory_space<vmem>>, vector<128x8xbf16>
      tpu.vector_store %arg5[%c0_12, %c0_13], %13 {strides = array<i32>} : memref<128x8xbf16, #tpu.memory_space<vmem>>, vector<128x8xbf16>,
      %cst_14 = arith.constant dense<0.000000e+00> : vector<8xf32>
      %15 = vector.multi_reduction <add>, %12, %cst_14 [0] : vector<128x8xf32> to vector<8xf32>
      %16 = vector.shape_cast %15 : vector<8xf32> to vector<1x1x8xf32>
      %17 = arith.mulf %12, %12 : vector<128x8xf32>
      %cst_15 = arith.constant dense<0.000000e+00> : vector<8xf32>
      %18 = vector.multi_reduction <add>, %17, %cst_15 [0] : vector<128x8xf32> to vector<8xf32>
      %19 = vector.shape_cast %18 : vector<8xf32> to vector<1x1x8xf32>
      %20 = vector.shape_cast %16 : vector<1x1x8xf32> to vector<1x1x8xf32>
      %21 = vector.broadcast %20 : vector<1x1x8xf32> to vector<1x8x8xf32>
      %c0_16 = arith.constant 0 : index
      %c0_17 = arith.constant 0 : index
      %c0_18 = arith.constant 0 : index
      %22 = vector.load %arg6[%c0_16, %c0_17, %c0_18] : memref<1x8x8xf32, #tpu.memory_space<vmem>>, vector<1x8x8xf32>
      tpu.vector_store %arg6[%c0_16, %c0_17, %c0_18], %21 {strides = array<i32>} : memref<1x8x8xf32, #tpu.memory_space<vmem>>, vector<1x8x8xf32>,
      %23 = vector.shape_cast %19 : vector<1x1x8xf32> to vector<1x1x8xf32>
      %24 = vector.broadcast %23 : vector<1x1x8xf32> to vector<1x8x8xf32>
      %c0_19 = arith.constant 0 : index
      %c0_20 = arith.constant 0 : index
      %c0_21 = arith.constant 0 : index
      %25 = vector.load %arg7[%c0_19, %c0_20, %c0_21] : memref<1x8x8xf32, #tpu.memory_space<vmem>>, vector<1x8x8xf32>
      tpu.vector_store %arg7[%c0_19, %c0_20, %c0_21], %24 {strides = array<i32>} : memref<1x8x8xf32, #tpu.memory_space<vmem>>, vector<1x8x8xf32>,
    } else {
    }
    return
  }
  func.func @transform_0(%arg0: i32, %arg1: i32, %arg2: i32) -> (i32, i32) {
    %c0_i32 = arith.constant 0 : i32
    return %arg0, %arg2 : i32, i32
  }
  func.func @transform_1(%arg0: i32, %arg1: i32, %arg2: i32) -> (i32, i32) {
    %c0_i32 = arith.constant 0 : i32
    return %arg2, %arg1 : i32, i32
  }
  func.func @transform_2(%arg0: i32, %arg1: i32, %arg2: i32) -> (i32, i32) {
    %c0_i32 = arith.constant 0 : i32
    return %arg0, %arg1 : i32, i32
  }
  func.func @transform_3(%arg0: i32, %arg1: i32, %arg2: i32) -> (i32, i32, i32) {
    %c0_i32 = arith.constant 0 : i32
    %c0_i32_0 = arith.constant 0 : i32
    return %arg0, %c0_i32, %arg1 : i32, i32, i32
  }
  func.func @transform_4(%arg0: i32, %arg1: i32, %arg2: i32) -> (i32, i32, i32) {
    %c0_i32 = arith.constant 0 : i32
    %c0_i32_0 = arith.constant 0 : i32
    return %arg0, %c0_i32, %arg1 : i32, i32, i32
  }
}

module attributes {stable_mosaic.version = 11 : i64} {
  func.func @_affine_act_kernel(%arg0: i32, %arg1: memref<128x8xbf16, #tpu.memory_space<vmem>>, %arg2: memref<1x8xf32, #tpu.memory_space<vmem>>, %arg3: memref<1x8xf32, #tpu.memory_space<vmem>>, %arg4: memref<128x8xbf16, #tpu.memory_space<vmem>>) attributes {dimension_semantics = [#tpu.dimension_semantics<parallel>], iteration_bounds = array<i64: 1>, scalar_prefetch = 0 : i64, scratch_operands = 0 : i64, tpu.core_type = #tpu.core_type<tc>, window_params = [{transform_indices = @transform_0, window_bounds = array<i64: 128, 8>}, {pipeline_mode = #tpu.pipeline_mode<synchronous>, transform_indices = @transform_1, window_bounds = array<i64: 1, 8>}, {pipeline_mode = #tpu.pipeline_mode<synchronous>, transform_indices = @transform_2, window_bounds = array<i64: 1, 8>}, {transform_indices = @transform_3, window_bounds = array<i64: 128, 8>}]} {
    %c0 = arith.constant 0 : index
    %c0_0 = arith.constant 0 : index
    %0 = vector.load %arg1[%c0, %c0_0] : memref<128x8xbf16, #tpu.memory_space<vmem>>, vector<128x8xbf16>
    %1 = arith.extf %0 : vector<128x8xbf16> to vector<128x8xf32>
    %c0_1 = arith.constant 0 : index
    %c0_2 = arith.constant 0 : index
    %2 = vector.load %arg2[%c0_1, %c0_2] : memref<1x8xf32, #tpu.memory_space<vmem>>, vector<1x8xf32>
    %3 = vector.broadcast %2 : vector<1x8xf32> to vector<128x8xf32>
    %4 = arith.mulf %1, %3 : vector<128x8xf32>
    %c0_3 = arith.constant 0 : index
    %c0_4 = arith.constant 0 : index
    %5 = vector.load %arg3[%c0_3, %c0_4] : memref<1x8xf32, #tpu.memory_space<vmem>>, vector<1x8xf32>
    %6 = vector.broadcast %5 : vector<1x8xf32> to vector<128x8xf32>
    %7 = arith.addf %4, %6 : vector<128x8xf32>
    %cst = arith.constant 0.000000e+00 : f32
    %8 = vector.broadcast %cst : f32 to vector<128x8xf32>
    %9 = arith.maximumf %7, %8 : vector<128x8xf32>
    %10 = arith.truncf %9 : vector<128x8xf32> to vector<128x8xbf16>
    %c0_5 = arith.constant 0 : index
    %c0_6 = arith.constant 0 : index
    %11 = vector.load %arg4[%c0_5, %c0_6] : memref<128x8xbf16, #tpu.memory_space<vmem>>, vector<128x8xbf16>
    tpu.vector_store %arg4[%c0_5, %c0_6], %10 {strides = array<i32>} : memref<128x8xbf16, #tpu.memory_space<vmem>>, vector<128x8xbf16>,
    return
  }
  func.func @transform_0(%arg0: i32) -> (i32, i32) {
    %c0_i32 = arith.constant 0 : i32
    %c0_i32_0 = arith.constant 0 : i32
    return %arg0, %c0_i32 : i32, i32
  }
  func.func @transform_1(%arg0: i32) -> (i32, i32) {
    %c0_i32 = arith.constant 0 : i32
    %c0_i32_0 = arith.constant 0 : i32
    %c0_i32_1 = arith.constant 0 : i32
    return %c0_i32, %c0_i32_0 : i32, i32
  }
  func.func @transform_2(%arg0: i32) -> (i32, i32) {
    %c0_i32 = arith.constant 0 : i32
    %c0_i32_0 = arith.constant 0 : i32
    %c0_i32_1 = arith.constant 0 : i32
    return %c0_i32, %c0_i32_0 : i32, i32
  }
  func.func @transform_3(%arg0: i32) -> (i32, i32) {
    %c0_i32 = arith.constant 0 : i32
    %c0_i32_0 = arith.constant 0 : i32
    return %arg0, %c0_i32 : i32, i32
  }
}

module attributes {stable_mosaic.version = 11 : i64} {
  func.func @_matmul_stats_kernel(%arg0: i32, %arg1: i32, %arg2: i32, %arg3: memref<512x392xbf16, #tpu.memory_space<vmem>>, %arg4: memref<392x3xbf16, #tpu.memory_space<vmem>>, %arg5: memref<512x3xbf16, #tpu.memory_space<vmem>>, %arg6: memref<1x8x3xf32, #tpu.memory_space<vmem>>, %arg7: memref<1x8x3xf32, #tpu.memory_space<vmem>>, %arg8: memref<512x3xf32, #tpu.memory_space<vmem>>) attributes {dimension_semantics = [#tpu.dimension_semantics<parallel>, #tpu.dimension_semantics<parallel>, #tpu.dimension_semantics<arbitrary>], iteration_bounds = array<i64: 1, 1, 1>, scalar_prefetch = 0 : i64, scratch_operands = 1 : i64, tpu.core_type = #tpu.core_type<tc>, window_params = [{transform_indices = @transform_0, window_bounds = array<i64: 512, 392>}, {transform_indices = @transform_1, window_bounds = array<i64: 392, 3>}, {transform_indices = @transform_2, window_bounds = array<i64: 512, 3>}, {transform_indices = @transform_3, window_bounds = array<i64: 1, 8, 3>}, {transform_indices = @transform_4, window_bounds = array<i64: 1, 8, 3>}]} {
    %c0_i32 = arith.constant 0 : i32
    %0 = arith.cmpi eq, %arg2, %c0_i32 : i32
    %1 = arith.extui %0 : i1 to i32
    %c0_i32_0 = arith.constant 0 : i32
    %2 = arith.cmpi ne, %1, %c0_i32_0 : i32
    scf.if %2 {
      %cst_10 = arith.constant 0.000000e+00 : f32
      %12 = vector.broadcast %cst_10 : f32 to vector<512x3xf32>
      %c0_11 = arith.constant 0 : index
      %c0_12 = arith.constant 0 : index
      %13 = vector.load %arg8[%c0_11, %c0_12] : memref<512x3xf32, #tpu.memory_space<vmem>>, vector<512x3xf32>
      tpu.vector_store %arg8[%c0_11, %c0_12], %12 {strides = array<i32>} : memref<512x3xf32, #tpu.memory_space<vmem>>, vector<512x3xf32>,
    } else {
    }
    %c0 = arith.constant 0 : index
    %c0_1 = arith.constant 0 : index
    %3 = vector.load %arg8[%c0, %c0_1] : memref<512x3xf32, #tpu.memory_space<vmem>>, vector<512x3xf32>
    %c0_2 = arith.constant 0 : index
    %c0_3 = arith.constant 0 : index
    %4 = vector.load %arg3[%c0_2, %c0_3] : memref<512x392xbf16, #tpu.memory_space<vmem>>, vector<512x392xbf16>
    %c0_4 = arith.constant 0 : index
    %c0_5 = arith.constant 0 : index
    %5 = vector.load %arg4[%c0_4, %c0_5] : memref<392x3xbf16, #tpu.memory_space<vmem>>, vector<392x3xbf16>
    %cst = arith.constant dense<0.000000e+00> : vector<512x3xf32>
    %6 = tpu.matmul %4, %5, %cst {dimension_numbers = #tpu.dot_dimension_numbers<[1], [0], [0], [1], [0, 0, 1, 1], [], []>} : vector<512x392xbf16>, vector<392x3xbf16>, vector<512x3xf32> -> vector<512x3xf32>
    %7 = arith.addf %3, %6 : vector<512x3xf32>
    %c0_6 = arith.constant 0 : index
    %c0_7 = arith.constant 0 : index
    %8 = vector.load %arg8[%c0_6, %c0_7] : memref<512x3xf32, #tpu.memory_space<vmem>>, vector<512x3xf32>
    tpu.vector_store %arg8[%c0_6, %c0_7], %7 {strides = array<i32>} : memref<512x3xf32, #tpu.memory_space<vmem>>, vector<512x3xf32>,
    %c0_i32_8 = arith.constant 0 : i32
    %9 = arith.cmpi eq, %arg2, %c0_i32_8 : i32
    %10 = arith.extui %9 : i1 to i32
    %c0_i32_9 = arith.constant 0 : i32
    %11 = arith.cmpi ne, %10, %c0_i32_9 : i32
    scf.if %11 {
      %c0_10 = arith.constant 0 : index
      %c0_11 = arith.constant 0 : index
      %12 = vector.load %arg8[%c0_10, %c0_11] : memref<512x3xf32, #tpu.memory_space<vmem>>, vector<512x3xf32>
      %13 = arith.truncf %12 : vector<512x3xf32> to vector<512x3xbf16>
      %c0_12 = arith.constant 0 : index
      %c0_13 = arith.constant 0 : index
      %14 = vector.load %arg5[%c0_12, %c0_13] : memref<512x3xbf16, #tpu.memory_space<vmem>>, vector<512x3xbf16>
      tpu.vector_store %arg5[%c0_12, %c0_13], %13 {strides = array<i32>} : memref<512x3xbf16, #tpu.memory_space<vmem>>, vector<512x3xbf16>,
      %cst_14 = arith.constant dense<0.000000e+00> : vector<3xf32>
      %15 = vector.multi_reduction <add>, %12, %cst_14 [0] : vector<512x3xf32> to vector<3xf32>
      %16 = vector.shape_cast %15 : vector<3xf32> to vector<1x1x3xf32>
      %17 = arith.mulf %12, %12 : vector<512x3xf32>
      %cst_15 = arith.constant dense<0.000000e+00> : vector<3xf32>
      %18 = vector.multi_reduction <add>, %17, %cst_15 [0] : vector<512x3xf32> to vector<3xf32>
      %19 = vector.shape_cast %18 : vector<3xf32> to vector<1x1x3xf32>
      %20 = vector.shape_cast %16 : vector<1x1x3xf32> to vector<1x1x3xf32>
      %21 = vector.broadcast %20 : vector<1x1x3xf32> to vector<1x8x3xf32>
      %c0_16 = arith.constant 0 : index
      %c0_17 = arith.constant 0 : index
      %c0_18 = arith.constant 0 : index
      %22 = vector.load %arg6[%c0_16, %c0_17, %c0_18] : memref<1x8x3xf32, #tpu.memory_space<vmem>>, vector<1x8x3xf32>
      tpu.vector_store %arg6[%c0_16, %c0_17, %c0_18], %21 {strides = array<i32>} : memref<1x8x3xf32, #tpu.memory_space<vmem>>, vector<1x8x3xf32>,
      %23 = vector.shape_cast %19 : vector<1x1x3xf32> to vector<1x1x3xf32>
      %24 = vector.broadcast %23 : vector<1x1x3xf32> to vector<1x8x3xf32>
      %c0_19 = arith.constant 0 : index
      %c0_20 = arith.constant 0 : index
      %c0_21 = arith.constant 0 : index
      %25 = vector.load %arg7[%c0_19, %c0_20, %c0_21] : memref<1x8x3xf32, #tpu.memory_space<vmem>>, vector<1x8x3xf32>
      tpu.vector_store %arg7[%c0_19, %c0_20, %c0_21], %24 {strides = array<i32>} : memref<1x8x3xf32, #tpu.memory_space<vmem>>, vector<1x8x3xf32>,
    } else {
    }
    return
  }
  func.func @transform_0(%arg0: i32, %arg1: i32, %arg2: i32) -> (i32, i32) {
    %c0_i32 = arith.constant 0 : i32
    return %arg0, %arg2 : i32, i32
  }
  func.func @transform_1(%arg0: i32, %arg1: i32, %arg2: i32) -> (i32, i32) {
    %c0_i32 = arith.constant 0 : i32
    return %arg2, %arg1 : i32, i32
  }
  func.func @transform_2(%arg0: i32, %arg1: i32, %arg2: i32) -> (i32, i32) {
    %c0_i32 = arith.constant 0 : i32
    return %arg0, %arg1 : i32, i32
  }
  func.func @transform_3(%arg0: i32, %arg1: i32, %arg2: i32) -> (i32, i32, i32) {
    %c0_i32 = arith.constant 0 : i32
    %c0_i32_0 = arith.constant 0 : i32
    return %arg0, %c0_i32, %arg1 : i32, i32, i32
  }
  func.func @transform_4(%arg0: i32, %arg1: i32, %arg2: i32) -> (i32, i32, i32) {
    %c0_i32 = arith.constant 0 : i32
    %c0_i32_0 = arith.constant 0 : i32
    return %arg0, %c0_i32, %arg1 : i32, i32, i32
  }
}

module attributes {stable_mosaic.version = 11 : i64} {
  func.func @_affine_act_kernel(%arg0: i32, %arg1: memref<512x3xbf16, #tpu.memory_space<vmem>>, %arg2: memref<1x3xf32, #tpu.memory_space<vmem>>, %arg3: memref<1x3xf32, #tpu.memory_space<vmem>>, %arg4: memref<512x3xbf16, #tpu.memory_space<vmem>>) attributes {dimension_semantics = [#tpu.dimension_semantics<parallel>], iteration_bounds = array<i64: 1>, scalar_prefetch = 0 : i64, scratch_operands = 0 : i64, tpu.core_type = #tpu.core_type<tc>, window_params = [{transform_indices = @transform_0, window_bounds = array<i64: 512, 3>}, {pipeline_mode = #tpu.pipeline_mode<synchronous>, transform_indices = @transform_1, window_bounds = array<i64: 1, 3>}, {pipeline_mode = #tpu.pipeline_mode<synchronous>, transform_indices = @transform_2, window_bounds = array<i64: 1, 3>}, {transform_indices = @transform_3, window_bounds = array<i64: 512, 3>}]} {
    %c0 = arith.constant 0 : index
    %c0_0 = arith.constant 0 : index
    %0 = vector.load %arg1[%c0, %c0_0] : memref<512x3xbf16, #tpu.memory_space<vmem>>, vector<512x3xbf16>
    %1 = arith.extf %0 : vector<512x3xbf16> to vector<512x3xf32>
    %c0_1 = arith.constant 0 : index
    %c0_2 = arith.constant 0 : index
    %2 = vector.load %arg2[%c0_1, %c0_2] : memref<1x3xf32, #tpu.memory_space<vmem>>, vector<1x3xf32>
    %3 = vector.broadcast %2 : vector<1x3xf32> to vector<512x3xf32>
    %4 = arith.mulf %1, %3 : vector<512x3xf32>
    %c0_3 = arith.constant 0 : index
    %c0_4 = arith.constant 0 : index
    %5 = vector.load %arg3[%c0_3, %c0_4] : memref<1x3xf32, #tpu.memory_space<vmem>>, vector<1x3xf32>
    %6 = vector.broadcast %5 : vector<1x3xf32> to vector<512x3xf32>
    %7 = arith.addf %4, %6 : vector<512x3xf32>
    %8 = math.tanh %7 : vector<512x3xf32>
    %9 = arith.truncf %8 : vector<512x3xf32> to vector<512x3xbf16>
    %c0_5 = arith.constant 0 : index
    %c0_6 = arith.constant 0 : index
    %10 = vector.load %arg4[%c0_5, %c0_6] : memref<512x3xbf16, #tpu.memory_space<vmem>>, vector<512x3xbf16>
    tpu.vector_store %arg4[%c0_5, %c0_6], %9 {strides = array<i32>} : memref<512x3xbf16, #tpu.memory_space<vmem>>, vector<512x3xbf16>,
    return
  }
  func.func @transform_0(%arg0: i32) -> (i32, i32) {
    %c0_i32 = arith.constant 0 : i32
    %c0_i32_0 = arith.constant 0 : i32
    return %arg0, %c0_i32 : i32, i32
  }
  func.func @transform_1(%arg0: i32) -> (i32, i32) {
    %c0_i32 = arith.constant 0 : i32
    %c0_i32_0 = arith.constant 0 : i32
    %c0_i32_1 = arith.constant 0 : i32
    return %c0_i32, %c0_i32_0 : i32, i32
  }
  func.func @transform_2(%arg0: i32) -> (i32, i32) {
    %c0_i32 = arith.constant 0 : i32
    %c0_i32_0 = arith.constant 0 : i32
    %c0_i32_1 = arith.constant 0 : i32
    return %c0_i32, %c0_i32_0 : i32, i32
  }
  func.func @transform_3(%arg0: i32) -> (i32, i32) {
    %c0_i32 = arith.constant 0 : i32
    %c0_i32_0 = arith.constant 0 : i32
    return %arg0, %c0_i32 : i32, i32
  }
}

</mosaic_0001>

<llo_original>
// kernel: resnet_generator_forward.37
$region0: #{resnet_generator_forward.37}
  #allocation0 [shape = 'u32[]', space=smem, size = 0x4, offset = 0x4, fixed_abs, tag = 'smem constant byte address 0x4 - core index']
  #allocation1 [shape = 'u32[72,128]{1,0:T(1,128)}', space=vmem, size = 0x9000, scoped, tag = 'internal scratch']
  %s0 = inlined_call_operand.vmem [shape: bf16[512,8], index: 0, kind: input, shape index: {}]
  %s1 = inlined_call_operand.vmem [shape: f32[1,8], index: 1, kind: input, shape index: {}]
  %s2 = inlined_call_operand.vmem [shape: f32[1,8], index: 2, kind: input, shape index: {}]
  %s3 = inlined_call_operand.vmem [shape: bf16[512,8], index: 3, kind: output, shape index: {}]
  %s4 = sld [smem:[#allocation0]]
  $region22: #{resnet_generator_forward.37} parent=0
    _
  %s6 = ssub.s32 1, %s4
  %s7 = scalar_select 0, %s6, %s4
  // Predicated region
  $region2: #{resnet_generator_forward.37} parent=0 // pred_check
    _
  $region3: #{resnet_generator_forward.37} parent=0 // pred_check_branch
    %9 = sbr.rel (0) target = $region5
  $region4: #{resnet_generator_forward.37} parent=0 // pred_region
    _
  $region5: #{resnet_generator_forward.37} parent=0 // pred_fallthru
    _
  // Predicated region
  $region6: #{resnet_generator_forward.37} parent=0 // pred_check
    _
  $region7: #{resnet_generator_forward.37} parent=0 // pred_check_branch
    %11 = sbr.rel (0) target = $region9
  $region8: #{resnet_generator_forward.37} parent=0 // pred_region
    _
  $region9: #{resnet_generator_forward.37} parent=0 // pred_fallthru
    _
  // Predicated region
  $region10: #{resnet_generator_forward.37} parent=0 // pred_check
    _
  $region11: #{resnet_generator_forward.37} parent=0 // pred_check_branch
    %13 = sbr.rel (0) target = $region13
  $region12: #{resnet_generator_forward.37} parent=0 // pred_region
    _
  $region13: #{resnet_generator_forward.37} parent=0 // pred_fallthru
    _
  %v14 = vld [vmem:[%s0] sm:$0xf]
  %v15 = vld [vmem:[%s0 + $0x4] sm:$0xf]
  %v16 = vld [vmem:[%s0 + $0x8] sm:$0xf]
  %v17 = vld [vmem:[%s0 + $0xc] sm:$0xf]
  %v18 = vld [vmem:[%s0 + $0x10] sm:$0xf]
  %v19 = vld [vmem:[%s0 + $0x14] sm:$0xf]
  %v20 = vld [vmem:[%s0 + $0x18] sm:$0xf]
  %v21 = vld [vmem:[%s0 + $0x1c] sm:$0xf]
  %v22 = vld [vmem:[%s0 + $0x20] sm:$0xf]
  %v23 = vld [vmem:[%s0 + $0x24] sm:$0xf]
  %v24 = vld [vmem:[%s0 + $0x28] sm:$0xf]
  %v25 = vld [vmem:[%s0 + $0x2c] sm:$0xf]
  %v26 = vld [vmem:[%s0 + $0x30] sm:$0xf]
  %v27 = vld [vmem:[%s0 + $0x34] sm:$0xf]
  %v28 = vld [vmem:[%s0 + $0x38] sm:$0xf]
  %v29 = vld [vmem:[%s0 + $0x3c] sm:$0xf]
  %v30 = vld [vmem:[%s0 + $0x40] sm:$0xf]
  %v31 = vld [vmem:[%s0 + $0x44] sm:$0xf]
  %v32 = vld [vmem:[%s0 + $0x48] sm:$0xf]
  %v33 = vld [vmem:[%s0 + $0x4c] sm:$0xf]
  %v34 = vld [vmem:[%s0 + $0x50] sm:$0xf]
  %v35 = vld [vmem:[%s0 + $0x54] sm:$0xf]
  %v36 = vld [vmem:[%s0 + $0x58] sm:$0xf]
  %v37 = vld [vmem:[%s0 + $0x5c] sm:$0xf]
  %v38 = vld [vmem:[%s0 + $0x60] sm:$0xf]
  %v39 = vld [vmem:[%s0 + $0x64] sm:$0xf]
  %v40 = vld [vmem:[%s0 + $0x68] sm:$0xf]
  %v41 = vld [vmem:[%s0 + $0x6c] sm:$0xf]
  %v42 = vld [vmem:[%s0 + $0x70] sm:$0xf]
  %v43 = vld [vmem:[%s0 + $0x74] sm:$0xf]
  %v44 = vld [vmem:[%s0 + $0x78] sm:$0xf]
  %v45 = vld [vmem:[%s0 + $0x7c] sm:$0xf]
  %v46 = vld [vmem:[%s0 + $0x80] sm:$0xf]
  %v47 = vld [vmem:[%s0 + $0x84] sm:$0xf]
  %v48 = vld [vmem:[%s0 + $0x88] sm:$0xf]
  %v49 = vld [vmem:[%s0 + $0x8c] sm:$0xf]
  %v50 = vld [vmem:[%s0 + $0x90] sm:$0xf]
  %v51 = vld [vmem:[%s0 + $0x94] sm:$0xf]
  %v52 = vld [vmem:[%s0 + $0x98] sm:$0xf]
  %v53 = vld [vmem:[%s0 + $0x9c] sm:$0xf]
  %v54 = vld [vmem:[%s0 + $0xa0] sm:$0xf]
  %v55 = vld [vmem:[%s0 + $0xa4] sm:$0xf]
  %v56 = vld [vmem:[%s0 + $0xa8] sm:$0xf]
  %v57 = vld [vmem:[%s0 + $0xac] sm:$0xf]
  %v58 = vld [vmem:[%s0 + $0xb0] sm:$0xf]
  %v59 = vld [vmem:[%s0 + $0xb4] sm:$0xf]
  %v60 = vld [vmem:[%s0 + $0xb8] sm:$0xf]
  %v61 = vld [vmem:[%s0 + $0xbc] sm:$0xf]
  %v62 = vld [vmem:[%s0 + $0xc0] sm:$0xf]
  %v63 = vld [vmem:[%s0 + $0xc4] sm:$0xf]
  %v64 = vld [vmem:[%s0 + $0xc8] sm:$0xf]
  %v65 = vld [vmem:[%s0 + $0xcc] sm:$0xf]
  %v66 = vld [vmem:[%s0 + $0xd0] sm:$0xf]
  %v67 = vld [vmem:[%s0 + $0xd4] sm:$0xf]
  %v68 = vld [vmem:[%s0 + $0xd8] sm:$0xf]
  %v69 = vld [vmem:[%s0 + $0xdc] sm:$0xf]
  %v70 = vld [vmem:[%s0 + $0xe0] sm:$0xf]
  %v71 = vld [vmem:[%s0 + $0xe4] sm:$0xf]
  %v72 = vld [vmem:[%s0 + $0xe8] sm:$0xf]
  %v73 = vld [vmem:[%s0 + $0xec] sm:$0xf]
  %v74 = vld [vmem:[%s0 + $0xf0] sm:$0xf]
  %v75 = vld [vmem:[%s0 + $0xf4] sm:$0xf]
  %v76 = vld [vmem:[%s0 + $0xf8] sm:$0xf]
  %v77 = vld [vmem:[%s0 + $0xfc] sm:$0xf]
  %v78 = vunpack.c.l.bf16 %v14
  %v79 = vunpack.c.l.bf16 %v15
  %v80 = vunpack.c.l.bf16 %v16
  %v81 = vunpack.c.l.bf16 %v17
  %v82 = vunpack.c.l.bf16 %v18
  %v83 = vunpack.c.l.bf16 %v19
  %v84 = vunpack.c.l.bf16 %v20
  %v85 = vunpack.c.l.bf16 %v21
  %v86 = vunpack.c.l.bf16 %v22
  %v87 = vunpack.c.l.bf16 %v23
  %v88 = vunpack.c.l.bf16 %v24
  %v89 = vunpack.c.l.bf16 %v25
  %v90 = vunpack.c.l.bf16 %v26
  %v91 = vunpack.c.l.bf16 %v27
  %v92 = vunpack.c.l.bf16 %v28
  %v93 = vunpack.c.l.bf16 %v29
  %v94 = vunpack.c.l.bf16 %v30
  %v95 = vunpack.c.l.bf16 %v31
  %v96 = vunpack.c.l.bf16 %v32
  %v97 = vunpack.c.l.bf16 %v33
  %v98 = vunpack.c.l.bf16 %v34
  %v99 = vunpack.c.l.bf16 %v35
  %v100 = vunpack.c.l.bf16 %v36
  %v101 = vunpack.c.l.bf16 %v37
  %v102 = vunpack.c.l.bf16 %v38
  %v103 = vunpack.c.l.bf16 %v39
  %v104 = vunpack.c.l.bf16 %v40
  %v105 = vunpack.c.l.bf16 %v41
  %v106 = vunpack.c.l.bf16 %v42
  %v107 = vunpack.c.l.bf16 %v43
  %v108 = vunpack.c.l.bf16 %v44
  %v109 = vunpack.c.l.bf16 %v45
  %v110 = vunpack.c.l.bf16 %v46
  %v111 = vunpack.c.l.bf16 %v47
  %v112 = vunpack.c.l.bf16 %v48
  %v113 = vunpack.c.l.bf16 %v49
  %v114 = vunpack.c.l.bf16 %v50
  %v115 = vunpack.c.l.bf16 %v51
  %v116 = vunpack.c.l.bf16 %v52
  %v117 = vunpack.c.l.bf16 %v53
  %v118 = vunpack.c.l.bf16 %v54
  %v119 = vunpack.c.l.bf16 %v55
  %v120 = vunpack.c.l.bf16 %v56
  %v121 = vunpack.c.l.bf16 %v57
  %v122 = vunpack.c.l.bf16 %v58
  %v123 = vunpack.c.l.bf16 %v59
  %v124 = vunpack.c.l.bf16 %v60
  %v125 = vunpack.c.l.bf16 %v61
  %v126 = vunpack.c.l.bf16 %v62
  %v127 = vunpack.c.l.bf16 %v63
  %v128 = vunpack.c.l.bf16 %v64
  %v129 = vunpack.c.l.bf16 %v65
  %v130 = vunpack.c.l.bf16 %v66
  %v131 = vunpack.c.l.bf16 %v67
  %v132 = vunpack.c.l.bf16 %v68
  %v133 = vunpack.c.l.bf16 %v69
  %v134 = vunpack.c.l.bf16 %v70
  %v135 = vunpack.c.l.bf16 %v71
  %v136 = vunpack.c.l.bf16 %v72
  %v137 = vunpack.c.l.bf16 %v73
  %v138 = vunpack.c.l.bf16 %v74
  %v139 = vunpack.c.l.bf16 %v75
  %v140 = vunpack.c.l.bf16 %v76
  %v141 = vunpack.c.l.bf16 %v77
  %v142 = vld [vmem:[%s1] sm:$0x1]
  %v144 = vperm.slane %v142, 0
  %v146 = vmul.f32 %v78, %v144
  %v147 = vmul.f32 %v79, %v144
  %v148 = vmul.f32 %v80, %v144
  %v149 = vmul.f32 %v81, %v144
  %v150 = vmul.f32 %v82, %v144
  %v151 = vmul.f32 %v83, %v144
  %v152 = vmul.f32 %v84, %v144
  %v153 = vmul.f32 %v85, %v144
  %v154 = vmul.f32 %v86, %v144
  %v155 = vmul.f32 %v87, %v144
  %v156 = vmul.f32 %v88, %v144
  %v157 = vmul.f32 %v89, %v144
  %v158 = vmul.f32 %v90, %v144
  %v159 = vmul.f32 %v91, %v144
  %v160 = vmul.f32 %v92, %v144
  %v161 = vmul.f32 %v93, %v144
  %v162 = vmul.f32 %v94, %v144
  %v163 = vmul.f32 %v95, %v144
  %v164 = vmul.f32 %v96, %v144
  %v165 = vmul.f32 %v97, %v144
  %v166 = vmul.f32 %v98, %v144
  %v167 = vmul.f32 %v99, %v144
  %v168 = vmul.f32 %v100, %v144
  %v169 = vmul.f32 %v101, %v144
  %v170 = vmul.f32 %v102, %v144
  %v171 = vmul.f32 %v103, %v144
  %v172 = vmul.f32 %v104, %v144
  %v173 = vmul.f32 %v105, %v144
  %v174 = vmul.f32 %v106, %v144
  %v175 = vmul.f32 %v107, %v144
  %v176 = vmul.f32 %v108, %v144
  %v177 = vmul.f32 %v109, %v144
  %v178 = vmul.f32 %v110, %v144
  %v179 = vmul.f32 %v111, %v144
  %v180 = vmul.f32 %v112, %v144
  %v181 = vmul.f32 %v113, %v144
  %v182 = vmul.f32 %v114, %v144
  %v183 = vmul.f32 %v115, %v144
  %v184 = vmul.f32 %v116, %v144
  %v185 = vmul.f32 %v117, %v144
  %v186 = vmul.f32 %v118, %v144
  %v187 = vmul.f32 %v119, %v144
  %v188 = vmul.f32 %v120, %v144
  %v189 = vmul.f32 %v121, %v144
  %v190 = vmul.f32 %v122, %v144
  %v191 = vmul.f32 %v123, %v144
  %v192 = vmul.f32 %v124, %v144
  %v193 = vmul.f32 %v125, %v144
  %v194 = vmul.f32 %v126, %v144
  %v195 = vmul.f32 %v127, %v144
  %v196 = vmul.f32 %v128, %v144
  %v197 = vmul.f32 %v129, %v144
  %v198 = vmul.f32 %v130, %v144
  %v199 = vmul.f32 %v131, %v144
  %v200 = vmul.f32 %v132, %v144
  %v201 = vmul.f32 %v133, %v144
  %v202 = vmul.f32 %v134, %v144
  %v203 = vmul.f32 %v135, %v144
  %v204 = vmul.f32 %v136, %v144
  %v205 = vmul.f32 %v137, %v144
  %v206 = vmul.f32 %v138, %v144
  %v207 = vmul.f32 %v139, %v144
  %v208 = vmul.f32 %v140, %v144
  %v209 = vmul.f32 %v141, %v144
  %v210 = vld [vmem:[%s2] sm:$0x1]
  %v212 = vperm.slane %v210, 0
  %v214 = vadd.f32 %v146, %v212
  %v215 = vadd.f32 %v147, %v212
  %v216 = vadd.f32 %v148, %v212
  %v217 = vadd.f32 %v149, %v212
  %v218 = vadd.f32 %v150, %v212
  %v219 = vadd.f32 %v151, %v212
  %v220 = vadd.f32 %v152, %v212
  %v221 = vadd.f32 %v153, %v212
  %v222 = vadd.f32 %v154, %v212
  %v223 = vadd.f32 %v155, %v212
  %v224 = vadd.f32 %v156, %v212
  %v225 = vadd.f32 %v157, %v212
  %v226 = vadd.f32 %v158, %v212
  %v227 = vadd.f32 %v159, %v212
  %v228 = vadd.f32 %v160, %v212
  %v229 = vadd.f32 %v161, %v212
  %v230 = vadd.f32 %v162, %v212
  %v231 = vadd.f32 %v163, %v212
  %v232 = vadd.f32 %v164, %v212
  %v233 = vadd.f32 %v165, %v212
  %v234 = vadd.f32 %v166, %v212
  %v235 = vadd.f32 %v167, %v212
  %v236 = vadd.f32 %v168, %v212
  %v237 = vadd.f32 %v169, %v212
  %v238 = vadd.f32 %v170, %v212
  %v239 = vadd.f32 %v171, %v212
  %v240 = vadd.f32 %v172, %v212
  %v241 = vadd.f32 %v173, %v212
  %v242 = vadd.f32 %v174, %v212
  %v243 = vadd.f32 %v175, %v212
  %v244 = vadd.f32 %v176, %v212
  %v245 = vadd.f32 %v177, %v212
  %v246 = vadd.f32 %v178, %v212
  %v247 = vadd.f32 %v179, %v212
  %v248 = vadd.f32 %v180, %v212
  %v249 = vadd.f32 %v181, %v212
  %v250 = vadd.f32 %v182, %v212
  %v251 = vadd.f32 %v183, %v212
  %v252 = vadd.f32 %v184, %v212
  %v253 = vadd.f32 %v185, %v212
  %v254 = vadd.f32 %v186, %v212
  %v255 = vadd.f32 %v187, %v212
  %v256 = vadd.f32 %v188, %v212
  %v257 = vadd.f32 %v189, %v212
  %v258 = vadd.f32 %v190, %v212
  %v259 = vadd.f32 %v191, %v212
  %v260 = vadd.f32 %v192, %v212
  %v261 = vadd.f32 %v193, %v212
  %v262 = vadd.f32 %v194, %v212
  %v263 = vadd.f32 %v195, %v212
  %v264 = vadd.f32 %v196, %v212
  %v265 = vadd.f32 %v197, %v212
  %v266 = vadd.f32 %v198, %v212
  %v267 = vadd.f32 %v199, %v212
  %v268 = vadd.f32 %v200, %v212
  %v269 = vadd.f32 %v201, %v212
  %v270 = vadd.f32 %v202, %v212
  %v271 = vadd.f32 %v203, %v212
  %v272 = vadd.f32 %v204, %v212
  %v273 = vadd.f32 %v205, %v212
  %v274 = vadd.f32 %v206, %v212
  %v275 = vadd.f32 %v207, %v212
  %v276 = vadd.f32 %v208, %v212
  %v277 = vadd.f32 %v209, %v212
  %v278 = vmax.f32 %v214, 0.0
  %v279 = vmax.f32 %v215, 0.0
  %v280 = vmax.f32 %v216, 0.0
  %v281 = vmax.f32 %v217, 0.0
  %v282 = vmax.f32 %v218, 0.0
  %v283 = vmax.f32 %v219, 0.0
  %v284 = vmax.f32 %v220, 0.0
  %v285 = vmax.f32 %v221, 0.0
  %v286 = vmax.f32 %v222, 0.0
  %v287 = vmax.f32 %v223, 0.0
  %v288 = vmax.f32 %v224, 0.0
  %v289 = vmax.f32 %v225, 0.0
  %v290 = vmax.f32 %v226, 0.0
  %v291 = vmax.f32 %v227, 0.0
  %v292 = vmax.f32 %v228, 0.0
  %v293 = vmax.f32 %v229, 0.0
  %v294 = vmax.f32 %v230, 0.0
  %v295 = vmax.f32 %v231, 0.0
  %v296 = vmax.f32 %v232, 0.0
  %v297 = vmax.f32 %v233, 0.0
  %v298 = vmax.f32 %v234, 0.0
  %v299 = vmax.f32 %v235, 0.0
  %v300 = vmax.f32 %v236, 0.0
  %v301 = vmax.f32 %v237, 0.0
  %v302 = vmax.f32 %v238, 0.0
  %v303 = vmax.f32 %v239, 0.0
  %v304 = vmax.f32 %v240, 0.0
  %v305 = vmax.f32 %v241, 0.0
  %v306 = vmax.f32 %v242, 0.0
  %v307 = vmax.f32 %v243, 0.0
  %v308 = vmax.f32 %v244, 0.0
  %v309 = vmax.f32 %v245, 0.0
  %v310 = vmax.f32 %v246, 0.0
  %v311 = vmax.f32 %v247, 0.0
  %v312 = vmax.f32 %v248, 0.0
  %v313 = vmax.f32 %v249, 0.0
  %v314 = vmax.f32 %v250, 0.0
  %v315 = vmax.f32 %v251, 0.0
  %v316 = vmax.f32 %v252, 0.0
  %v317 = vmax.f32 %v253, 0.0
  %v318 = vmax.f32 %v254, 0.0
  %v319 = vmax.f32 %v255, 0.0
  %v320 = vmax.f32 %v256, 0.0
  %v321 = vmax.f32 %v257, 0.0
  %v322 = vmax.f32 %v258, 0.0
  %v323 = vmax.f32 %v259, 0.0
  %v324 = vmax.f32 %v260, 0.0
  %v325 = vmax.f32 %v261, 0.0
  %v326 = vmax.f32 %v262, 0.0
  %v327 = vmax.f32 %v263, 0.0
  %v328 = vmax.f32 %v264, 0.0
  %v329 = vmax.f32 %v265, 0.0
  %v330 = vmax.f32 %v266, 0.0
  %v331 = vmax.f32 %v267, 0.0
  %v332 = vmax.f32 %v268, 0.0
  %v333 = vmax.f32 %v269, 0.0
  %v334 = vmax.f32 %v270, 0.0
  %v335 = vmax.f32 %v271, 0.0
  %v336 = vmax.f32 %v272, 0.0
  %v337 = vmax.f32 %v273, 0.0
  %v338 = vmax.f32 %v274, 0.0
  %v339 = vmax.f32 %v275, 0.0
  %v340 = vmax.f32 %v276, 0.0
  %v341 = vmax.f32 %v277, 0.0
  %v342 = vpack.c.bf16 %v278, %v278
  %v343 = vpack.c.bf16 %v279, %v279
  %v344 = vpack.c.bf16 %v280, %v280
  %v345 = vpack.c.bf16 %v281, %v281
  %v346 = vpack.c.bf16 %v282, %v282
  %v347 = vpack.c.bf16 %v283, %v283
  %v348 = vpack.c.bf16 %v284, %v284
  %v349 = vpack.c.bf16 %v285, %v285
  %v350 = vpack.c.bf16 %v286, %v286
  %v351 = vpack.c.bf16 %v287, %v287
  %v352 = vpack.c.bf16 %v288, %v288
  %v353 = vpack.c.bf16 %v289, %v289
  %v354 = vpack.c.bf16 %v290, %v290
  %v355 = vpack.c.bf16 %v291, %v291
  %v356 = vpack.c.bf16 %v292, %v292
  %v357 = vpack.c.bf16 %v293, %v293
  %v358 = vpack.c.bf16 %v294, %v294
  %v359 = vpack.c.bf16 %v295, %v295
  %v360 = vpack.c.bf16 %v296, %v296
  %v361 = vpack.c.bf16 %v297, %v297
  %v362 = vpack.c.bf16 %v298, %v298
  %v363 = vpack.c.bf16 %v299, %v299
  %v364 = vpack.c.bf16 %v300, %v300
  %v365 = vpack.c.bf16 %v301, %v301
  %v366 = vpack.c.bf16 %v302, %v302
  %v367 = vpack.c.bf16 %v303, %v303
  %v368 = vpack.c.bf16 %v304, %v304
  %v369 = vpack.c.bf16 %v305, %v305
  %v370 = vpack.c.bf16 %v306, %v306
  %v371 = vpack.c.bf16 %v307, %v307
  %v372 = vpack.c.bf16 %v308, %v308
  %v373 = vpack.c.bf16 %v309, %v309
  %v374 = vpack.c.bf16 %v310, %v310
  %v375 = vpack.c.bf16 %v311, %v311
  %v376 = vpack.c.bf16 %v312, %v312
  %v377 = vpack.c.bf16 %v313, %v313
  %v378 = vpack.c.bf16 %v314, %v314
  %v379 = vpack.c.bf16 %v315, %v315
  %v380 = vpack.c.bf16 %v316, %v316
  %v381 = vpack.c.bf16 %v317, %v317
  %v382 = vpack.c.bf16 %v318, %v318
  %v383 = vpack.c.bf16 %v319, %v319
  %v384 = vpack.c.bf16 %v320, %v320
  %v385 = vpack.c.bf16 %v321, %v321
  %v386 = vpack.c.bf16 %v322, %v322
  %v387 = vpack.c.bf16 %v323, %v323
  %v388 = vpack.c.bf16 %v324, %v324
  %v389 = vpack.c.bf16 %v325, %v325
  %v390 = vpack.c.bf16 %v326, %v326
  %v391 = vpack.c.bf16 %v327, %v327
  %v392 = vpack.c.bf16 %v328, %v328
  %v393 = vpack.c.bf16 %v329, %v329
  %v394 = vpack.c.bf16 %v330, %v330
  %v395 = vpack.c.bf16 %v331, %v331
  %v396 = vpack.c.bf16 %v332, %v332
  %v397 = vpack.c.bf16 %v333, %v333
  %v398 = vpack.c.bf16 %v334, %v334
  %v399 = vpack.c.bf16 %v335, %v335
  %v400 = vpack.c.bf16 %v336, %v336
  %v401 = vpack.c.bf16 %v337, %v337
  %v402 = vpack.c.bf16 %v338, %v338
  %v403 = vpack.c.bf16 %v339, %v339
  %v404 = vpack.c.bf16 %v340, %v340
  %v405 = vpack.c.bf16 %v341, %v341
  %vm406 = vcmask 60416
  %407 = vst.msk [vmem:[%s3] sm:$0xf] %vm406, %v342
  %408 = vst.msk [vmem:[%s3 + $0x4] sm:$0xf] %vm406, %v343
  %409 = vst.msk [vmem:[%s3 + $0x8] sm:$0xf] %vm406, %v344
  %410 = vst.msk [vmem:[%s3 + $0xc] sm:$0xf] %vm406, %v345
  %411 = vst.msk [vmem:[%s3 + $0x10] sm:$0xf] %vm406, %v346
  %412 = vst.msk [vmem:[%s3 + $0x14] sm:$0xf] %vm406, %v347
  %413 = vst.msk [vmem:[%s3 + $0x18] sm:$0xf] %vm406, %v348
  %414 = vst.msk [vmem:[%s3 + $0x1c] sm:$0xf] %vm406, %v349
  %415 = vst.msk [vmem:[%s3 + $0x20] sm:$0xf] %vm406, %v350
  %416 = vst.msk [vmem:[%s3 + $0x24] sm:$0xf] %vm406, %v351
  %417 = vst.msk [vmem:[%s3 + $0x28] sm:$0xf] %vm406, %v352
  %418 = vst.msk [vmem:[%s3 + $0x2c] sm:$0xf] %vm406, %v353
  %419 = vst.msk [vmem:[%s3 + $0x30] sm:$0xf] %vm406, %v354
  %420 = vst.msk [vmem:[%s3 + $0x34] sm:$0xf] %vm406, %v355
  %421 = vst.msk [vmem:[%s3 + $0x38] sm:$0xf] %vm406, %v356
  %422 = vst.msk [vmem:[%s3 + $0x3c] sm:$0xf] %vm406, %v357
  %423 = vst.msk [vmem:[%s3 + $0x40] sm:$0xf] %vm406, %v358
  %424 = vst.msk [vmem:[%s3 + $0x44] sm:$0xf] %vm406, %v359
  %425 = vst.msk [vmem:[%s3 + $0x48] sm:$0xf] %vm406, %v360
  %426 = vst.msk [vmem:[%s3 + $0x4c] sm:$0xf] %vm406, %v361
  %427 = vst.msk [vmem:[%s3 + $0x50] sm:$0xf] %vm406, %v362
  %428 = vst.msk [vmem:[%s3 + $0x54] sm:$0xf] %vm406, %v363
  %429 = vst.msk [vmem:[%s3 + $0x58] sm:$0xf] %vm406, %v364
  %430 = vst.msk [vmem:[%s3 + $0x5c] sm:$0xf] %vm406, %v365
  %431 = vst.msk [vmem:[%s3 + $0x60] sm:$0xf] %vm406, %v366
  %432 = vst.msk [vmem:[%s3 + $0x64] sm:$0xf] %vm406, %v367
  %433 = vst.msk [vmem:[%s3 + $0x68] sm:$0xf] %vm406, %v368
  %434 = vst.msk [vmem:[%s3 + $0x6c] sm:$0xf] %vm406, %v369
  %435 = vst.msk [vmem:[%s3 + $0x70] sm:$0xf] %vm406, %v370
  %436 = vst.msk [vmem:[%s3 + $0x74] sm:$0xf] %vm406, %v371
  %437 = vst.msk [vmem:[%s3 + $0x78] sm:$0xf] %vm406, %v372
  %438 = vst.msk [vmem:[%s3 + $0x7c] sm:$0xf] %vm406, %v373
  %439 = vst.msk [vmem:[%s3 + $0x80] sm:$0xf] %vm406, %v374
  %440 = vst.msk [vmem:[%s3 + $0x84] sm:$0xf] %vm406, %v375
  %441 = vst.msk [vmem:[%s3 + $0x88] sm:$0xf] %vm406, %v376
  %442 = vst.msk [vmem:[%s3 + $0x8c] sm:$0xf] %vm406, %v377
  %443 = vst.msk [vmem:[%s3 + $0x90] sm:$0xf] %vm406, %v378
  %444 = vst.msk [vmem:[%s3 + $0x94] sm:$0xf] %vm406, %v379
  %445 = vst.msk [vmem:[%s3 + $0x98] sm:$0xf] %vm406, %v380
  %446 = vst.msk [vmem:[%s3 + $0x9c] sm:$0xf] %vm406, %v381
  %447 = vst.msk [vmem:[%s3 + $0xa0] sm:$0xf] %vm406, %v382
  %448 = vst.msk [vmem:[%s3 + $0xa4] sm:$0xf] %vm406, %v383
  %449 = vst.msk [vmem:[%s3 + $0xa8] sm:$0xf] %vm406, %v384
  %450 = vst.msk [vmem:[%s3 + $0xac] sm:$0xf] %vm406, %v385
  %451 = vst.msk [vmem:[%s3 + $0xb0] sm:$0xf] %vm406, %v386
  %452 = vst.msk [vmem:[%s3 + $0xb4] sm:$0xf] %vm406, %v387
  %453 = vst.msk [vmem:[%s3 + $0xb8] sm:$0xf] %vm406, %v388
  %454 = vst.msk [vmem:[%s3 + $0xbc] sm:$0xf] %vm406, %v389
  %455 = vst.msk [vmem:[%s3 + $0xc0] sm:$0xf] %vm406, %v390
  %456 = vst.msk [vmem:[%s3 + $0xc4] sm:$0xf] %vm406, %v391
  %457 = vst.msk [vmem:[%s3 + $0xc8] sm:$0xf] %vm406, %v392
  %458 = vst.msk [vmem:[%s3 + $0xcc] sm:$0xf] %vm406, %v393
  %459 = vst.msk [vmem:[%s3 + $0xd0] sm:$0xf] %vm406, %v394
  %460 = vst.msk [vmem:[%s3 + $0xd4] sm:$0xf] %vm406, %v395
  %461 = vst.msk [vmem:[%s3 + $0xd8] sm:$0xf] %vm406, %v396
  %462 = vst.msk [vmem:[%s3 + $0xdc] sm:$0xf] %vm406, %v397
  %463 = vst.msk [vmem:[%s3 + $0xe0] sm:$0xf] %vm406, %v398
  %464 = vst.msk [vmem:[%s3 + $0xe4] sm:$0xf] %vm406, %v399
  %465 = vst.msk [vmem:[%s3 + $0xe8] sm:$0xf] %vm406, %v400
  %466 = vst.msk [vmem:[%s3 + $0xec] sm:$0xf] %vm406, %v401
  %467 = vst.msk [vmem:[%s3 + $0xf0] sm:$0xf] %vm406, %v402
  %468 = vst.msk [vmem:[%s3 + $0xf4] sm:$0xf] %vm406, %v403
  %469 = vst.msk [vmem:[%s3 + $0xf8] sm:$0xf] %vm406, %v404
  %470 = vst.msk [vmem:[%s3 + $0xfc] sm:$0xf] %vm406, %v405
  // Predicated region
  $region14: #{resnet_generator_forward.37} parent=0 // pred_check
    _
  $region15: #{resnet_generator_forward.37} parent=0 // pred_check_branch
    %472 = sbr.rel (0) target = $region17
  $region16: #{resnet_generator_forward.37} parent=0 // pred_region
    _
  $region17: #{resnet_generator_forward.37} parent=0 // pred_fallthru
    _
  // Predicated region
  $region18: #{resnet_generator_forward.37} parent=0 // pred_check
    _
  $region19: #{resnet_generator_forward.37} parent=0 // pred_check_branch
    %474 = sbr.rel (0) target = $region21
  $region20: #{resnet_generator_forward.37} parent=0 // pred_region
    _
  $region21: #{resnet_generator_forward.37} parent=0 // pred_fallthru
    _

// kernel: resnet_generator_forward.36
$region0: #{resnet_generator_forward.36}
  #allocation0 [shape = 'u32[]', space=smem, size = 0x4, offset = 0x4, fixed_abs, tag = 'smem constant byte address 0x4 - core index']
  #allocation1 [shape = 'u32[72,128]{1,0:T(1,128)}', space=vmem, size = 0x9000, scoped, tag = 'internal scratch']
  #allocation2 [shape = 'f32[512,8]{1,0:T(8,128)}', space=vmem, size = 0x40000, scoped, tag = 'scratch operand']
  %s0 = inlined_call_operand.vmem [shape: bf16[512,147], index: 0, kind: input, shape index: {}]
  %s1 = inlined_call_operand.vmem [shape: bf16[147,8], index: 1, kind: input, shape index: {}]
  %s2 = inlined_call_operand.vmem [shape: bf16[512,8], index: 2, kind: output, shape index: {0}]
  %s3 = inlined_call_operand.vmem [shape: f32[1,8,8], index: 3, kind: output, shape index: {1}]
  %s4 = inlined_call_operand.vmem [shape: f32[1,8,8], index: 4, kind: output, shape index: {2}]
  %5 = xla_tuple %s2, %s3, %s4
  %s6 = sld [smem:[#allocation0]]
  $region42: #{resnet_generator_forward.36} parent=0
    _
  %s8 = ssub.s32 1, %s6
  %s9 = scalar_select 0, %s8, %s6
  // Predicated region
  $region2: #{resnet_generator_forward.36} parent=0 // pred_check
    _
  $region3: #{resnet_generator_forward.36} parent=0 // pred_check_branch
    %11 = sbr.rel (0) target = $region5
  $region4: #{resnet_generator_forward.36} parent=0 // pred_region
    _
  $region5: #{resnet_generator_forward.36} parent=0 // pred_fallthru
    _
  // Predicated region
  $region6: #{resnet_generator_forward.36} parent=0 // pred_check
    _
  $region7: #{resnet_generator_forward.36} parent=0 // pred_check_branch
    %13 = sbr.rel (0) target = $region9
  $region8: #{resnet_generator_forward.36} parent=0 // pred_region
    _
  $region9: #{resnet_generator_forward.36} parent=0 // pred_fallthru
    _
  %p15 = scmp.eq.s32.totalorder 0, 0
  // Predicated region
  $region10: #{resnet_generator_forward.36} parent=0 // pred_check
    %p16 = pneg %p15
  $region11: #{resnet_generator_forward.36} parent=0 // pred_check_branch
    %18 = sbr.rel (%p16) target = $region13
  $region12: #{resnet_generator_forward.36} parent=0 // pred_region
    %vm19 = vcmask 64512
    %20 = vst.msk [vmem:[#allocation2] sm:$0xff] %vm19, 0.0
    %21 = vst.msk [vmem:[#allocation2 + $0x8] sm:$0xff] %vm19, 0.0
    %22 = vst.msk [vmem:[#allocation2 + $0x10] sm:$0xff] %vm19, 0.0
    %23 = vst.msk [vmem:[#allocation2 + $0x18] sm:$0xff] %vm19, 0.0
    %24 = vst.msk [vmem:[#allocation2 + $0x20] sm:$0xff] %vm19, 0.0
    %25 = vst.msk [vmem:[#allocation2 + $0x28] sm:$0xff] %vm19, 0.0
    %26 = vst.msk [vmem:[#allocation2 + $0x30] sm:$0xff] %vm19, 0.0
    %27 = vst.msk [vmem:[#allocation2 + $0x38] sm:$0xff] %vm19, 0.0
    %28 = vst.msk [vmem:[#allocation2 + $0x40] sm:$0xff] %vm19, 0.0
    %29 = vst.msk [vmem:[#allocation2 + $0x48] sm:$0xff] %vm19, 0.0
    %30 = vst.msk [vmem:[#allocation2 + $0x50] sm:$0xff] %vm19, 0.0
    %31 = vst.msk [vmem:[#allocation2 + $0x58] sm:$0xff] %vm19, 0.0
    %32 = vst.msk [vmem:[#allocation2 + $0x60] sm:$0xff] %vm19, 0.0
    %33 = vst.msk [vmem:[#allocation2 + $0x68] sm:$0xff] %vm19, 0.0
    %34 = vst.msk [vmem:[#allocation2 + $0x70] sm:$0xff] %vm19, 0.0
    %35 = vst.msk [vmem:[#allocation2 + $0x78] sm:$0xff] %vm19, 0.0
    %36 = vst.msk [vmem:[#allocation2 + $0x80] sm:$0xff] %vm19, 0.0
    %37 = vst.msk [vmem:[#allocation2 + $0x88] sm:$0xff] %vm19, 0.0
    %38 = vst.msk [vmem:[#allocation2 + $0x90] sm:$0xff] %vm19, 0.0
    %39 = vst.msk [vmem:[#allocation2 + $0x98] sm:$0xff] %vm19, 0.0
    %40 = vst.msk [vmem:[#allocation2 + $0xa0] sm:$0xff] %vm19, 0.0
    %41 = vst.msk [vmem:[#allocation2 + $0xa8] sm:$0xff] %vm19, 0.0
    %42 = vst.msk [vmem:[#allocation2 + $0xb0] sm:$0xff] %vm19, 0.0
    %43 = vst.msk [vmem:[#allocation2 + $0xb8] sm:$0xff] %vm19, 0.0
    %44 = vst.msk [vmem:[#allocation2 + $0xc0] sm:$0xff] %vm19, 0.0
    %45 = vst.msk [vmem:[#allocation2 + $0xc8] sm:$0xff] %vm19, 0.0
    %46 = vst.msk [vmem:[#allocation2 + $0xd0] sm:$0xff] %vm19, 0.0
    %47 = vst.msk [vmem:[#allocation2 + $0xd8] sm:$0xff] %vm19, 0.0
    %48 = vst.msk [vmem:[#allocation2 + $0xe0] sm:$0xff] %vm19, 0.0
    %49 = vst.msk [vmem:[#allocation2 + $0xe8] sm:$0xff] %vm19, 0.0
    %50 = vst.msk [vmem:[#allocation2 + $0xf0] sm:$0xff] %vm19, 0.0
    %51 = vst.msk [vmem:[#allocation2 + $0xf8] sm:$0xff] %vm19, 0.0
    %52 = vst.msk [vmem:[#allocation2 + $0x100] sm:$0xff] %vm19, 0.0
    %53 = vst.msk [vmem:[#allocation2 + $0x108] sm:$0xff] %vm19, 0.0
    %54 = vst.msk [vmem:[#allocation2 + $0x110] sm:$0xff] %vm19, 0.0
    %55 = vst.msk [vmem:[#allocation2 + $0x118] sm:$0xff] %vm19, 0.0
    %56 = vst.msk [vmem:[#allocation2 + $0x120] sm:$0xff] %vm19, 0.0
    %57 = vst.msk [vmem:[#allocation2 + $0x128] sm:$0xff] %vm19, 0.0
    %58 = vst.msk [vmem:[#allocation2 + $0x130] sm:$0xff] %vm19, 0.0
    %59 = vst.msk [vmem:[#allocation2 + $0x138] sm:$0xff] %vm19, 0.0
    %60 = vst.msk [vmem:[#allocation2 + $0x140] sm:$0xff] %vm19, 0.0
    %61 = vst.msk [vmem:[#allocation2 + $0x148] sm:$0xff] %vm19, 0.0
    %62 = vst.msk [vmem:[#allocation2 + $0x150] sm:$0xff] %vm19, 0.0
    %63 = vst.msk [vmem:[#allocation2 + $0x158] sm:$0xff] %vm19, 0.0
    %64 = vst.msk [vmem:[#allocation2 + $0x160] sm:$0xff] %vm19, 0.0
    %65 = vst.msk [vmem:[#allocation2 + $0x168] sm:$0xff] %vm19, 0.0
    %66 = vst.msk [vmem:[#allocation2 + $0x170] sm:$0xff] %vm19, 0.0
    %67 = vst.msk [vmem:[#allocation2 + $0x178] sm:$0xff] %vm19, 0.0
    %68 = vst.msk [vmem:[#allocation2 + $0x180] sm:$0xff] %vm19, 0.0
    %69 = vst.msk [vmem:[#allocation2 + $0x188] sm:$0xff] %vm19, 0.0
    %70 = vst.msk [vmem:[#allocation2 + $0x190] sm:$0xff] %vm19, 0.0
    %71 = vst.msk [vmem:[#allocation2 + $0x198] sm:$0xff] %vm19, 0.0
    %72 = vst.msk [vmem:[#allocation2 + $0x1a0] sm:$0xff] %vm19, 0.0
    %73 = vst.msk [vmem:[#allocation2 + $0x1a8] sm:$0xff] %vm19, 0.0
    %74 = vst.msk [vmem:[#allocation2 + $0x1b0] sm:$0xff] %vm19, 0.0
    %75 = vst.msk [vmem:[#allocation2 + $0x1b8] sm:$0xff] %vm19, 0.0
    %76 = vst.msk [vmem:[#allocation2 + $0x1c0] sm:$0xff] %vm19, 0.0
    %77 = vst.msk [vmem:[#allocation2 + $0x1c8] sm:$0xff] %vm19, 0.0
    %78 = vst.msk [vmem:[#allocation2 + $0x1d0] sm:$0xff] %vm19, 0.0
    %79 = vst.msk [vmem:[#allocation2 + $0x1d8] sm:$0xff] %vm19, 0.0
    %80 = vst.msk [vmem:[#allocation2 + $0x1e0] sm:$0xff] %vm19, 0.0
    %81 = vst.msk [vmem:[#allocation2 + $0x1e8] sm:$0xff] %vm19, 0.0
    %82 = vst.msk [vmem:[#allocation2 + $0x1f0] sm:$0xff] %vm19, 0.0
    %83 = vst.msk [vmem:[#allocation2 + $0x1f8] sm:$0xff] %vm19, 0.0
  $region13: #{resnet_generator_forward.36} parent=0 // pred_fallthru
    _
  %v84 = vld [vmem:[#allocation2] sm:$0xff]
  %v85 = vld [vmem:[#allocation2 + $0x8] sm:$0xff]
  %v86 = vld [vmem:[#allocation2 + $0x10] sm:$0xff]
  %v87 = vld [vmem:[#allocation2 + $0x18] sm:$0xff]
  %v88 = vld [vmem:[#allocation2 + $0x20] sm:$0xff]
  %v89 = vld [vmem:[#allocation2 + $0x28] sm:$0xff]
  %v90 = vld [vmem:[#allocation2 + $0x30] sm:$0xff]
  %v91 = vld [vmem:[#allocation2 + $0x38] sm:$0xff]
  %v92 = vld [vmem:[#allocation2 + $0x40] sm:$0xff]
  %v93 = vld [vmem:[#allocation2 + $0x48] sm:$0xff]
  %v94 = vld [vmem:[#allocation2 + $0x50] sm:$0xff]
  %v95 = vld [vmem:[#allocation2 + $0x58] sm:$0xff]
  %v96 = vld [vmem:[#allocation2 + $0x60] sm:$0xff]
  %v97 = vld [vmem:[#allocation2 + $0x68] sm:$0xff]
  %v98 = vld [vmem:[#allocation2 + $0x70] sm:$0xff]
  %v99 = vld [vmem:[#allocation2 + $0x78] sm:$0xff]
  %v100 = vld [vmem:[#allocation2 + $0x80] sm:$0xff]
  %v101 = vld [vmem:[#allocation2 + $0x88] sm:$0xff]
  %v102 = vld [vmem:[#allocation2 + $0x90] sm:$0xff]
  %v103 = vld [vmem:[#allocation2 + $0x98] sm:$0xff]
  %v104 = vld [vmem:[#allocation2 + $0xa0] sm:$0xff]
  %v105 = vld [vmem:[#allocation2 + $0xa8] sm:$0xff]
  %v106 = vld [vmem:[#allocation2 + $0xb0] sm:$0xff]
  %v107 = vld [vmem:[#allocation2 + $0xb8] sm:$0xff]
  %v108 = vld [vmem:[#allocation2 + $0xc0] sm:$0xff]
  %v109 = vld [vmem:[#allocation2 + $0xc8] sm:$0xff]
  %v110 = vld [vmem:[#allocation2 + $0xd0] sm:$0xff]
  %v111 = vld [vmem:[#allocation2 + $0xd8] sm:$0xff]
  %v112 = vld [vmem:[#allocation2 + $0xe0] sm:$0xff]
  %v113 = vld [vmem:[#allocation2 + $0xe8] sm:$0xff]
  %v114 = vld [vmem:[#allocation2 + $0xf0] sm:$0xff]
  %v115 = vld [vmem:[#allocation2 + $0xf8] sm:$0xff]
  %v116 = vld [vmem:[#allocation2 + $0x100] sm:$0xff]
  %v117 = vld [vmem:[#allocation2 + $0x108] sm:$0xff]
  %v118 = vld [vmem:[#allocation2 + $0x110] sm:$0xff]
  %v119 = vld [vmem:[#allocation2 + $0x118] sm:$0xff]
  %v120 = vld [vmem:[#allocation2 + $0x120] sm:$0xff]
  %v121 = vld [vmem:[#allocation2 + $0x128] sm:$0xff]
  %v122 = vld [vmem:[#allocation2 + $0x130] sm:$0xff]
  %v123 = vld [vmem:[#allocation2 + $0x138] sm:$0xff]
  %v124 = vld [vmem:[#allocation2 + $0x140] sm:$0xff]
  %v125 = vld [vmem:[#allocation2 + $0x148] sm:$0xff]
  %v126 = vld [vmem:[#allocation2 + $0x150] sm:$0xff]
  %v127 = vld [vmem:[#allocation2 + $0x158] sm:$0xff]
  %v128 = vld [vmem:[#allocation2 + $0x160] sm:$0xff]
  %v129 = vld [vmem:[#allocation2 + $0x168] sm:$0xff]
  %v130 = vld [vmem:[#allocation2 + $0x170] sm:$0xff]
  %v131 = vld [vmem:[#allocation2 + $0x178] sm:$0xff]
  %v132 = vld [vmem:[#allocation2 + $0x180] sm:$0xff]
  %v133 = vld [vmem:[#allocation2 + $0x188] sm:$0xff]
  %v134 = vld [vmem:[#allocation2 + $0x190] sm:$0xff]
  %v135 = vld [vmem:[#allocation2 + $0x198] sm:$0xff]
  %v136 = vld [vmem:[#allocation2 + $0x1a0] sm:$0xff]
  %v137 = vld [vmem:[#allocation2 + $0x1a8] sm:$0xff]
  %v138 = vld [vmem:[#allocation2 + $0x1b0] sm:$0xff]
  %v139 = vld [vmem:[#allocation2 + $0x1b8] sm:$0xff]
  %v140 = vld [vmem:[#allocation2 + $0x1c0] sm:$0xff]
  %v141 = vld [vmem:[#allocation2 + $0x1c8] sm:$0xff]
  %v142 = vld [vmem:[#allocation2 + $0x1d0] sm:$0xff]
  %v143 = vld [vmem:[#allocation2 + $0x1d8] sm:$0xff]
  %v144 = vld [vmem:[#allocation2 + $0x1e0] sm:$0xff]
  %v145 = vld [vmem:[#allocation2 + $0x1e8] sm:$0xff]
  %v146 = vld [vmem:[#allocation2 + $0x1f0] sm:$0xff]
  %v147 = vld [vmem:[#allocation2 + $0x1f8] sm:$0xff]
  %v148 = vld [vmem:[%s0] sm:$0xff]
  %v149 = vld [vmem:[%s0 + $0x8] sm:$0xff]
  %v150 = vld [vmem:[%s0 + $0x10] sm:$0xff]
  %v151 = vld [vmem:[%s0 + $0x18] sm:$0xff]
  %v152 = vld [vmem:[%s0 + $0x20] sm:$0xff]
  %v153 = vld [vmem:[%s0 + $0x28] sm:$0xff]
  %v154 = vld [vmem:[%s0 + $0x30] sm:$0xff]
  %v155 = vld [vmem:[%s0 + $0x38] sm:$0xff]
  %v156 = vld [vmem:[%s0 + $0x40] sm:$0xff]
  %v157 = vld [vmem:[%s0 + $0x48] sm:$0xff]
  %v158 = vld [vmem:[%s0 + $0x50] sm:$0xff]
  %v159 = vld [vmem:[%s0 + $0x58] sm:$0xff]
  %v160 = vld [vmem:[%s0 + $0x60] sm:$0xff]
  %v161 = vld [vmem:[%s0 + $0x68] sm:$0xff]
  %v162 = vld [vmem:[%s0 + $0x70] sm:$0xff]
  %v163 = vld [vmem:[%s0 + $0x78] sm:$0xff]
  %v164 = vld [vmem:[%s0 + $0x80] sm:$0xff]
  %v165 = vld [vmem:[%s0 + $0x88] sm:$0xff]
  %v166 = vld [vmem:[%s0 + $0x90] sm:$0xff]
  %v167 = vld [vmem:[%s0 + $0x98] sm:$0xff]
  %v168 = vld [vmem:[%s0 + $0xa0] sm:$0xff]
  %v169 = vld [vmem:[%s0 + $0xa8] sm:$0xff]
  %v170 = vld [vmem:[%s0 + $0xb0] sm:$0xff]
  %v171 = vld [vmem:[%s0 + $0xb8] sm:$0xff]
  %v172 = vld [vmem:[%s0 + $0xc0] sm:$0xff]
  %v173 = vld [vmem:[%s0 + $0xc8] sm:$0xff]
  %v174 = vld [vmem:[%s0 + $0xd0] sm:$0xff]
  %v175 = vld [vmem:[%s0 + $0xd8] sm:$0xff]
  %v176 = vld [vmem:[%s0 + $0xe0] sm:$0xff]
  %v177 = vld [vmem:[%s0 + $0xe8] sm:$0xff]
  %v178 = vld [vmem:[%s0 + $0xf0] sm:$0xff]
  %v179 = vld [vmem:[%s0 + $0xf8] sm:$0xff]
  %v180 = vld [vmem:[%s0 + $0x100] sm:$0xff]
  %v181 = vld [vmem:[%s0 + $0x108] sm:$0xff]
  %v182 = vld [vmem:[%s0 + $0x110] sm:$0xff]
  %v183 = vld [vmem:[%s0 + $0x118] sm:$0xff]
  %v184 = vld [vmem:[%s0 + $0x120] sm:$0xff]
  %v185 = vld [vmem:[%s0 + $0x128] sm:$0xff]
  %v186 = vld [vmem:[%s0 + $0x130] sm:$0xff]
  %v187 = vld [vmem:[%s0 + $0x138] sm:$0xff]
  %v188 = vld [vmem:[%s0 + $0x140] sm:$0xff]
  %v189 = vld [vmem:[%s0 + $0x148] sm:$0xff]
  %v190 = vld [vmem:[%s0 + $0x150] sm:$0xff]
  %v191 = vld [vmem:[%s0 + $0x158] sm:$0xff]
  %v192 = vld [vmem:[%s0 + $0x160] sm:$0xff]
  %v193 = vld [vmem:[%s0 + $0x168] sm:$0xff]
  %v194 = vld [vmem:[%s0 + $0x170] sm:$0xff]
  %v195 = vld [vmem:[%s0 + $0x178] sm:$0xff]
  %v196 = vld [vmem:[%s0 + $0x180] sm:$0xff]
  %v197 = vld [vmem:[%s0 + $0x188] sm:$0xff]
  %v198 = vld [vmem:[%s0 + $0x190] sm:$0xff]
  %v199 = vld [vmem:[%s0 + $0x198] sm:$0xff]
  %v200 = vld [vmem:[%s0 + $0x1a0] sm:$0xff]
  %v201 = vld [vmem:[%s0 + $0x1a8] sm:$0xff]
  %v202 = vld [vmem:[%s0 + $0x1b0] sm:$0xff]
  %v203 = vld [vmem:[%s0 + $0x1b8] sm:$0xff]
  %v204 = vld [vmem:[%s0 + $0x1c0] sm:$0xff]
  %v205 = vld [vmem:[%s0 + $0x1c8] sm:$0xff]
  %v206 = vld [vmem:[%s0 + $0x1d0] sm:$0xff]
  %v207 = vld [vmem:[%s0 + $0x1d8] sm:$0xff]
  %v208 = vld [vmem:[%s0 + $0x1e0] sm:$0xff]
  %v209 = vld [vmem:[%s0 + $0x1e8] sm:$0xff]
  %v210 = vld [vmem:[%s0 + $0x1f0] sm:$0xff]
  %v211 = vld [vmem:[%s0 + $0x1f8] sm:$0xff]
  %v212 = vld [vmem:[%s1] sm:$0xf]
  %v213 = vld [vmem:[%s1 + $0x4] sm:$0xf]
  %v214 = vld [vmem:[%s1 + $0x8] sm:$0xf]
  %v215 = vld [vmem:[%s1 + $0xc] sm:$0xf]
  %v216 = vld [vmem:[%s1 + $0x10] sm:$0xf]
  %v217 = vld [vmem:[%s1 + $0x14] sm:$0xf]
  %v218 = vld [vmem:[%s1 + $0x18] sm:$0xf]
  %v219 = vld [vmem:[%s1 + $0x1c] sm:$0xf]
  %v220 = vld [vmem:[%s1 + $0x20] sm:$0xf]
  %v221 = vld [vmem:[%s1 + $0x24] sm:$0xf]
  %v222 = vld [vmem:[%s1 + $0x28] sm:$0xf]
  %v223 = vld [vmem:[%s1 + $0x2c] sm:$0xf]
  %v224 = vld [vmem:[%s1 + $0x30] sm:$0xf]
  %v225 = vld [vmem:[%s1 + $0x34] sm:$0xf]
  %v226 = vld [vmem:[%s1 + $0x38] sm:$0xf]
  %v227 = vld [vmem:[%s1 + $0x3c] sm:$0xf]
  %v228 = vld [vmem:[%s1 + $0x40] sm:$0xf]
  %v229 = vld [vmem:[%s1 + $0x44] sm:$0xf]
  %v230 = vld [vmem:[%s1 + $0x48] sm:$0x3]
  %v295 = vunpack.c.l.b16 %v148
  %v296 = vunpack.c.h.b16 %v148
  %v297 = vunpack.c.l.b16 %v149
  %v298 = vunpack.c.h.b16 %v149
  %v299 = vunpack.c.l.b16 %v150
  %v300 = vunpack.c.h.b16 %v150
  %v301 = vunpack.c.l.b16 %v151
  %v302 = vunpack.c.h.b16 %v151
  %v303 = vunpack.c.l.b16 %v152
  %v304 = vunpack.c.h.b16 %v152
  %v305 = vunpack.c.l.b16 %v153
  %v306 = vunpack.c.h.b16 %v153
  %v307 = vunpack.c.l.b16 %v154
  %v308 = vunpack.c.h.b16 %v154
  %v309 = vunpack.c.l.b16 %v155
  %v310 = vunpack.c.h.b16 %v155
  %v311 = vunpack.c.l.b16 %v156
  %v312 = vunpack.c.h.b16 %v156
  %v313 = vunpack.c.l.b16 %v157
  %v314 = vunpack.c.h.b16 %v157
  %v315 = vunpack.c.l.b16 %v158
  %v316 = vunpack.c.h.b16 %v158
  %v317 = vunpack.c.l.b16 %v159
  %v318 = vunpack.c.h.b16 %v159
  %v319 = vunpack.c.l.b16 %v160
  %v320 = vunpack.c.h.b16 %v160
  %v321 = vunpack.c.l.b16 %v161
  %v322 = vunpack.c.h.b16 %v161
  %v323 = vunpack.c.l.b16 %v162
  %v324 = vunpack.c.h.b16 %v162
  %v325 = vunpack.c.l.b16 %v163
  %v326 = vunpack.c.h.b16 %v163
  %v327 = vunpack.c.l.b16 %v164
  %v328 = vunpack.c.h.b16 %v164
  %v329 = vunpack.c.l.b16 %v165
  %v330 = vunpack.c.h.b16 %v165
  %v331 = vunpack.c.l.b16 %v166
  %v332 = vunpack.c.h.b16 %v166
  %v333 = vunpack.c.l.b16 %v167
  %v334 = vunpack.c.h.b16 %v167
  %v335 = vunpack.c.l.b16 %v168
  %v336 = vunpack.c.h.b16 %v168
  %v337 = vunpack.c.l.b16 %v169
  %v338 = vunpack.c.h.b16 %v169
  %v339 = vunpack.c.l.b16 %v170
  %v340 = vunpack.c.h.b16 %v170
  %v341 = vunpack.c.l.b16 %v171
  %v342 = vunpack.c.h.b16 %v171
  %v343 = vunpack.c.l.b16 %v172
  %v344 = vunpack.c.h.b16 %v172
  %v345 = vunpack.c.l.b16 %v173
  %v346 = vunpack.c.h.b16 %v173
  %v347 = vunpack.c.l.b16 %v174
  %v348 = vunpack.c.h.b16 %v174
  %v349 = vunpack.c.l.b16 %v175
  %v350 = vunpack.c.h.b16 %v175
  %v351 = vunpack.c.l.b16 %v176
  %v352 = vunpack.c.h.b16 %v176
  %v353 = vunpack.c.l.b16 %v177
  %v354 = vunpack.c.h.b16 %v177
  %v355 = vunpack.c.l.b16 %v178
  %v356 = vunpack.c.h.b16 %v178
  %v357 = vunpack.c.l.b16 %v179
  %v358 = vunpack.c.h.b16 %v179
  %v359 = vunpack.c.l.b16 %v180
  %v360 = vunpack.c.h.b16 %v180
  %v361 = vunpack.c.l.b16 %v181
  %v362 = vunpack.c.h.b16 %v181
  %v363 = vunpack.c.l.b16 %v182
  %v364 = vunpack.c.h.b16 %v182
  %v365 = vunpack.c.l.b16 %v183
  %v366 = vunpack.c.h.b16 %v183
  %v367 = vunpack.c.l.b16 %v184
  %v368 = vunpack.c.h.b16 %v184
  %v369 = vunpack.c.l.b16 %v185
  %v370 = vunpack.c.h.b16 %v185
  %v371 = vunpack.c.l.b16 %v186
  %v372 = vunpack.c.h.b16 %v186
  %v373 = vunpack.c.l.b16 %v187
  %v374 = vunpack.c.h.b16 %v187
  %v375 = vunpack.c.l.b16 %v188
  %v376 = vunpack.c.h.b16 %v188
  %v377 = vunpack.c.l.b16 %v189
  %v378 = vunpack.c.h.b16 %v189
  %v379 = vunpack.c.l.b16 %v190
  %v380 = vunpack.c.h.b16 %v190
  %v381 = vunpack.c.l.b16 %v191
  %v382 = vunpack.c.h.b16 %v191
  %v383 = vunpack.c.l.b16 %v192
  %v384 = vunpack.c.h.b16 %v192
  %v385 = vunpack.c.l.b16 %v193
  %v386 = vunpack.c.h.b16 %v193
  %v387 = vunpack.c.l.b16 %v194
  %v388 = vunpack.c.h.b16 %v194
  %v389 = vunpack.c.l.b16 %v195
  %v390 = vunpack.c.h.b16 %v195
  %v391 = vunpack.c.l.b16 %v196
  %v392 = vunpack.c.h.b16 %v196
  %v393 = vunpack.c.l.b16 %v197
  %v394 = vunpack.c.h.b16 %v197
  %v395 = vunpack.c.l.b16 %v198
  %v396 = vunpack.c.h.b16 %v198
  %v397 = vunpack.c.l.b16 %v199
  %v398 = vunpack.c.h.b16 %v199
  %v399 = vunpack.c.l.b16 %v200
  %v400 = vunpack.c.h.b16 %v200
  %v401 = vunpack.c.l.b16 %v201
  %v402 = vunpack.c.h.b16 %v201
  %v403 = vunpack.c.l.b16 %v202
  %v404 = vunpack.c.h.b16 %v202
  %v405 = vunpack.c.l.b16 %v203
  %v406 = vunpack.c.h.b16 %v203
  %v407 = vunpack.c.l.b16 %v204
  %v408 = vunpack.c.h.b16 %v204
  %v409 = vunpack.c.l.b16 %v205
  %v410 = vunpack.c.h.b16 %v205
  %v411 = vunpack.c.l.b16 %v206
  %v412 = vunpack.c.h.b16 %v206
  %v413 = vunpack.c.l.b16 %v207
  %v414 = vunpack.c.h.b16 %v207
  %v415 = vunpack.c.l.b16 %v208
  %v416 = vunpack.c.h.b16 %v208
  %v417 = vunpack.c.l.b16 %v209
  %v418 = vunpack.c.h.b16 %v209
  %v419 = vunpack.c.l.b16 %v210
  %v420 = vunpack.c.h.b16 %v210
  %v421 = vunpack.c.l.b16 %v211
  %v422 = vunpack.c.h.b16 %v211
  %v423 = vpack.c.b16 %v297, %v295
  %v424 = vpack.c.b16 %v298, %v296
  %v425 = vpack.c.b16 %v301, %v299
  %v426 = vpack.c.b16 %v302, %v300
  %v427 = vpack.c.b16 %v305, %v303
  %v428 = vpack.c.b16 %v306, %v304
  %v429 = vpack.c.b16 %v309, %v307
  %v430 = vpack.c.b16 %v310, %v308
  %v431 = vpack.c.b16 %v313, %v311
  %v432 = vpack.c.b16 %v314, %v312
  %v433 = vpack.c.b16 %v317, %v315
  %v434 = vpack.c.b16 %v318, %v316
  %v435 = vpack.c.b16 %v321, %v319
  %v436 = vpack.c.b16 %v322, %v320
  %v437 = vpack.c.b16 %v325, %v323
  %v438 = vpack.c.b16 %v326, %v324
  %v439 = vpack.c.b16 %v329, %v327
  %v440 = vpack.c.b16 %v330, %v328
  %v441 = vpack.c.b16 %v333, %v331
  %v442 = vpack.c.b16 %v334, %v332
  %v443 = vpack.c.b16 %v337, %v335
  %v444 = vpack.c.b16 %v338, %v336
  %v445 = vpack.c.b16 %v341, %v339
  %v446 = vpack.c.b16 %v342, %v340
  %v447 = vpack.c.b16 %v345, %v343
  %v448 = vpack.c.b16 %v346, %v344
  %v449 = vpack.c.b16 %v349, %v347
  %v450 = vpack.c.b16 %v350, %v348
  %v451 = vpack.c.b16 %v353, %v351
  %v452 = vpack.c.b16 %v354, %v352
  %v453 = vpack.c.b16 %v357, %v355
  %v454 = vpack.c.b16 %v358, %v356
  %v455 = vpack.c.b16 %v361, %v359
  %v456 = vpack.c.b16 %v362, %v360
  %v457 = vpack.c.b16 %v365, %v363
  %v458 = vpack.c.b16 %v366, %v364
  %v459 = vpack.c.b16 %v369, %v367
  %v460 = vpack.c.b16 %v370, %v368
  %v461 = vpack.c.b16 %v373, %v371
  %v462 = vpack.c.b16 %v374, %v372
  %v463 = vpack.c.b16 %v377, %v375
  %v464 = vpack.c.b16 %v378, %v376
  %v465 = vpack.c.b16 %v381, %v379
  %v466 = vpack.c.b16 %v382, %v380
  %v467 = vpack.c.b16 %v385, %v383
  %v468 = vpack.c.b16 %v386, %v384
  %v469 = vpack.c.b16 %v389, %v387
  %v470 = vpack.c.b16 %v390, %v388
  %v471 = vpack.c.b16 %v393, %v391
  %v472 = vpack.c.b16 %v394, %v392
  %v473 = vpack.c.b16 %v397, %v395
  %v474 = vpack.c.b16 %v398, %v396
  %v475 = vpack.c.b16 %v401, %v399
  %v476 = vpack.c.b16 %v402, %v400
  %v477 = vpack.c.b16 %v405, %v403
  %v478 = vpack.c.b16 %v406, %v404
  %v479 = vpack.c.b16 %v409, %v407
  %v480 = vpack.c.b16 %v410, %v408
  %v481 = vpack.c.b16 %v413, %v411
  %v482 = vpack.c.b16 %v414, %v412
  %v483 = vpack.c.b16 %v417, %v415
  %v484 = vpack.c.b16 %v418, %v416
  %v485 = vpack.c.b16 %v421, %v419
  %v486 = vpack.c.b16 %v422, %v420
  %v538 = vunpack.c.l.b16 %v212
  %v539 = vunpack.c.l.b16 %v213
  %v540 = vunpack.c.l.b16 %v214
  %v541 = vunpack.c.l.b16 %v215
  %v542 = vunpack.c.l.b16 %v216
  %v543 = vunpack.c.l.b16 %v217
  %v544 = vunpack.c.l.b16 %v218
  %v545 = vunpack.c.l.b16 %v219
  %v546 = vunpack.c.l.b16 %v220
  %v547 = vunpack.c.l.b16 %v221
  %v548 = vunpack.c.l.b16 %v222
  %v549 = vunpack.c.l.b16 %v223
  %v550 = vunpack.c.l.b16 %v224
  %v551 = vunpack.c.l.b16 %v225
  %v552 = vunpack.c.l.b16 %v226
  %v553 = vunpack.c.l.b16 %v227
  %v554 = vunpack.c.l.b16 %v228
  %v555 = vunpack.c.l.b16 %v229
  %v556 = vunpack.c.l.b16 %v230
  %v557 = vpack.c.b16 %v539, %v538
  %v558 = vpack.c.b16 %v541, %v540
  %v559 = vpack.c.b16 %v543, %v542
  %v560 = vpack.c.b16 %v545, %v544
  %v561 = vpack.c.b16 %v547, %v546
  %v562 = vpack.c.b16 %v549, %v548
  %v563 = vpack.c.b16 %v551, %v550
  %v564 = vpack.c.b16 %v553, %v552
  %v565 = vpack.c.b16 %v555, %v554
  %v566 = vpack.c.b16 %v556, %v556
  %vm576 = vcmask 154624
  %v578 = vsel %vm576, %v424, 0
  %v581 = vsel %vm576, %v426, 0
  %v584 = vsel %vm576, %v428, 0
  %v587 = vsel %vm576, %v430, 0
  %v590 = vsel %vm576, %v432, 0
  %v593 = vsel %vm576, %v434, 0
  %v596 = vsel %vm576, %v436, 0
  %v599 = vsel %vm576, %v438, 0
  %v602 = vsel %vm576, %v440, 0
  %v605 = vsel %vm576, %v442, 0
  %v608 = vsel %vm576, %v444, 0
  %v611 = vsel %vm576, %v446, 0
  %v614 = vsel %vm576, %v448, 0
  %v617 = vsel %vm576, %v450, 0
  %v620 = vsel %vm576, %v452, 0
  %v623 = vsel %vm576, %v454, 0
  %v626 = vsel %vm576, %v456, 0
  %v629 = vsel %vm576, %v458, 0
  %v632 = vsel %vm576, %v460, 0
  %v635 = vsel %vm576, %v462, 0
  %v638 = vsel %vm576, %v464, 0
  %v641 = vsel %vm576, %v466, 0
  %v644 = vsel %vm576, %v468, 0
  %v647 = vsel %vm576, %v470, 0
  %v650 = vsel %vm576, %v472, 0
  %v653 = vsel %vm576, %v474, 0
  %v656 = vsel %vm576, %v476, 0
  %v659 = vsel %vm576, %v478, 0
  %v662 = vsel %vm576, %v480, 0
  %v665 = vsel %vm576, %v482, 0
  %v668 = vsel %vm576, %v484, 0
  %v671 = vsel %vm576, %v486, 0
  %vm673 = vcmask 1040384
  %vm674 = vcmask 1041408
  %v675 = vsel %vm673, 4294967295, 65535
  %v676 = vsel %vm674, %v675, 0
  %v678 = vand.u32 %v566, %v676
  %680 = vmatpush.bf16.msra.mxu0 %v564
  %681 = vmatpush.bf16.msra.mxu0 %v563
  %682 = vmatpush.bf16.msra.mxu0 %v562
  %683 = vmatpush.bf16.msra.mxu0 %v561
  %684 = vmatpush.bf16.msra.mxu0 %v560
  %685 = vmatpush.bf16.msra.mxu0 %v559
  %686 = vmatpush.bf16.msra.mxu0 %v558
  %687 = vmatpush.bf16.msra.mxu0 %v557
  %688 = vmatmul.bf16.gmra.mxu0 %v423
  %v689 = vpop.f32.mrf.mxu0
  %v690 = vadd.f32 0.0, %v689
  %v691 = vpop.f32.mrf.mxu0
  %v692 = vadd.f32 0.0, %v691
  %693 = vmatmul.bf16.gmra.mxu0 %v425
  %v694 = vpop.f32.mrf.mxu0
  %v695 = vadd.f32 0.0, %v694
  %v696 = vpop.f32.mrf.mxu0
  %v697 = vadd.f32 0.0, %v696
  %698 = vmatmul.bf16.gmra.mxu0 %v427
  %v699 = vpop.f32.mrf.mxu0
  %v700 = vadd.f32 0.0, %v699
  %v701 = vpop.f32.mrf.mxu0
  %v702 = vadd.f32 0.0, %v701
  %703 = vmatmul.bf16.gmra.mxu0 %v429
  %v704 = vpop.f32.mrf.mxu0
  %v705 = vadd.f32 0.0, %v704
  %v706 = vpop.f32.mrf.mxu0
  %v707 = vadd.f32 0.0, %v706
  %708 = vmatmul.bf16.gmra.mxu0 %v431
  %v709 = vpop.f32.mrf.mxu0
  %v710 = vadd.f32 0.0, %v709
  %v711 = vpop.f32.mrf.mxu0
  %v712 = vadd.f32 0.0, %v711
  %713 = vmatmul.bf16.gmra.mxu0 %v433
  %v714 = vpop.f32.mrf.mxu0
  %v715 = vadd.f32 0.0, %v714
  %v716 = vpop.f32.mrf.mxu0
  %v717 = vadd.f32 0.0, %v716
  %718 = vmatmul.bf16.gmra.mxu0 %v435
  %v719 = vpop.f32.mrf.mxu0
  %v720 = vadd.f32 0.0, %v719
  %v721 = vpop.f32.mrf.mxu0
  %v722 = vadd.f32 0.0, %v721
  %723 = vmatmul.bf16.gmra.mxu0 %v437
  %v724 = vpop.f32.mrf.mxu0
  %v725 = vadd.f32 0.0, %v724
  %v726 = vpop.f32.mrf.mxu0
  %v727 = vadd.f32 0.0, %v726
  %728 = vmatmul.bf16.gmra.mxu0 %v439
  %v729 = vpop.f32.mrf.mxu0
  %v730 = vadd.f32 0.0, %v729
  %v731 = vpop.f32.mrf.mxu0
  %v732 = vadd.f32 0.0, %v731
  %733 = vmatmul.bf16.gmra.mxu0 %v441
  %v734 = vpop.f32.mrf.mxu0
  %v735 = vadd.f32 0.0, %v734
  %v736 = vpop.f32.mrf.mxu0
  %v737 = vadd.f32 0.0, %v736
  %738 = vmatmul.bf16.gmra.mxu0 %v443
  %v739 = vpop.f32.mrf.mxu0
  %v740 = vadd.f32 0.0, %v739
  %v741 = vpop.f32.mrf.mxu0
  %v742 = vadd.f32 0.0, %v741
  %743 = vmatmul.bf16.gmra.mxu0 %v445
  %v744 = vpop.f32.mrf.mxu0
  %v745 = vadd.f32 0.0, %v744
  %v746 = vpop.f32.mrf.mxu0
  %v747 = vadd.f32 0.0, %v746
  %748 = vmatmul.bf16.gmra.mxu0 %v447
  %v749 = vpop.f32.mrf.mxu0
  %v750 = vadd.f32 0.0, %v749
  %v751 = vpop.f32.mrf.mxu0
  %v752 = vadd.f32 0.0, %v751
  %753 = vmatmul.bf16.gmra.mxu0 %v449
  %v754 = vpop.f32.mrf.mxu0
  %v755 = vadd.f32 0.0, %v754
  %v756 = vpop.f32.mrf.mxu0
  %v757 = vadd.f32 0.0, %v756
  %758 = vmatmul.bf16.gmra.mxu0 %v451
  %v759 = vpop.f32.mrf.mxu0
  %v760 = vadd.f32 0.0, %v759
  %v761 = vpop.f32.mrf.mxu0
  %v762 = vadd.f32 0.0, %v761
  %763 = vmatmul.bf16.gmra.mxu0 %v453
  %v764 = vpop.f32.mrf.mxu0
  %v765 = vadd.f32 0.0, %v764
  %v766 = vpop.f32.mrf.mxu0
  %v767 = vadd.f32 0.0, %v766
  %768 = vmatmul.bf16.gmra.mxu0 %v455
  %v769 = vpop.f32.mrf.mxu0
  %v770 = vadd.f32 0.0, %v769
  %v771 = vpop.f32.mrf.mxu0
  %v772 = vadd.f32 0.0, %v771
  %773 = vmatmul.bf16.gmra.mxu0 %v457
  %v774 = vpop.f32.mrf.mxu0
  %v775 = vadd.f32 0.0, %v774
  %v776 = vpop.f32.mrf.mxu0
  %v777 = vadd.f32 0.0, %v776
  %778 = vmatmul.bf16.gmra.mxu0 %v459
  %v779 = vpop.f32.mrf.mxu0
  %v780 = vadd.f32 0.0, %v779
  %v781 = vpop.f32.mrf.mxu0
  %v782 = vadd.f32 0.0, %v781
  %783 = vmatmul.bf16.gmra.mxu0 %v461
  %v784 = vpop.f32.mrf.mxu0
  %v785 = vadd.f32 0.0, %v784
  %v786 = vpop.f32.mrf.mxu0
  %v787 = vadd.f32 0.0, %v786
  %788 = vmatmul.bf16.gmra.mxu0 %v463
  %v789 = vpop.f32.mrf.mxu0
  %v790 = vadd.f32 0.0, %v789
  %v791 = vpop.f32.mrf.mxu0
  %v792 = vadd.f32 0.0, %v791
  %793 = vmatmul.bf16.gmra.mxu0 %v465
  %v794 = vpop.f32.mrf.mxu0
  %v795 = vadd.f32 0.0, %v794
  %v796 = vpop.f32.mrf.mxu0
  %v797 = vadd.f32 0.0, %v796
  %798 = vmatmul.bf16.gmra.mxu0 %v467
  %v799 = vpop.f32.mrf.mxu0
  %v800 = vadd.f32 0.0, %v799
  %v801 = vpop.f32.mrf.mxu0
  %v802 = vadd.f32 0.0, %v801
  %803 = vmatmul.bf16.gmra.mxu0 %v469
  %v804 = vpop.f32.mrf.mxu0
  %v805 = vadd.f32 0.0, %v804
  %v806 = vpop.f32.mrf.mxu0
  %v807 = vadd.f32 0.0, %v806
  %808 = vmatmul.bf16.gmra.mxu0 %v471
  %v809 = vpop.f32.mrf.mxu0
  %v810 = vadd.f32 0.0, %v809
  %v811 = vpop.f32.mrf.mxu0
  %v812 = vadd.f32 0.0, %v811
  %813 = vmatmul.bf16.gmra.mxu0 %v473
  %v814 = vpop.f32.mrf.mxu0
  %v815 = vadd.f32 0.0, %v814
  %v816 = vpop.f32.mrf.mxu0
  %v817 = vadd.f32 0.0, %v816
  %818 = vmatmul.bf16.gmra.mxu0 %v475
  %v819 = vpop.f32.mrf.mxu0
  %v820 = vadd.f32 0.0, %v819
  %v821 = vpop.f32.mrf.mxu0
  %v822 = vadd.f32 0.0, %v821
  %823 = vmatmul.bf16.gmra.mxu0 %v477
  %v824 = vpop.f32.mrf.mxu0
  %v825 = vadd.f32 0.0, %v824
  %v826 = vpop.f32.mrf.mxu0
  %v827 = vadd.f32 0.0, %v826
  %828 = vmatmul.bf16.gmra.mxu0 %v479
  %v829 = vpop.f32.mrf.mxu0
  %v830 = vadd.f32 0.0, %v829
  %v831 = vpop.f32.mrf.mxu0
  %v832 = vadd.f32 0.0, %v831
  %833 = vmatmul.bf16.gmra.mxu0 %v481
  %v834 = vpop.f32.mrf.mxu0
  %v835 = vadd.f32 0.0, %v834
  %v836 = vpop.f32.mrf.mxu0
  %v837 = vadd.f32 0.0, %v836
  %838 = vmatmul.bf16.gmra.mxu0 %v483
  %v839 = vpop.f32.mrf.mxu0
  %v840 = vadd.f32 0.0, %v839
  %v841 = vpop.f32.mrf.mxu0
  %v842 = vadd.f32 0.0, %v841
  %843 = vmatmul.bf16.gmra.mxu0 %v485
  %v844 = vpop.f32.mrf.mxu0
  %v845 = vadd.f32 0.0, %v844
  %v846 = vpop.f32.mrf.mxu0
  %v847 = vadd.f32 0.0, %v846
  %848 = vdwg.mxu0
  %849 = vmatpush.bf16.msra.mxu0 0
  %850 = vmatpush.bf16.msra.mxu0 0
  %851 = vmatpush.bf16.msra.mxu0 0
  %852 = vmatpush.bf16.msra.mxu0 0
  %853 = vmatpush.bf16.msra.mxu0 0
  %854 = vmatpush.bf16.msra.mxu0 0
  %855 = vmatpush.bf16.msra.mxu0 %v678
  %856 = vmatpush.bf16.msra.mxu0 %v565
  %857 = vmatmul.bf16.gmra.mxu0 %v578
  %v858 = vpop.f32.mrf.mxu0
  %v859 = vadd.f32 %v690, %v858
  %v860 = vpop.f32.mrf.mxu0
  %v861 = vadd.f32 %v692, %v860
  %862 = vmatmul.bf16.gmra.mxu0 %v581
  %v863 = vpop.f32.mrf.mxu0
  %v864 = vadd.f32 %v695, %v863
  %v865 = vpop.f32.mrf.mxu0
  %v866 = vadd.f32 %v697, %v865
  %867 = vmatmul.bf16.gmra.mxu0 %v584
  %v868 = vpop.f32.mrf.mxu0
  %v869 = vadd.f32 %v700, %v868
  %v870 = vpop.f32.mrf.mxu0
  %v871 = vadd.f32 %v702, %v870
  %872 = vmatmul.bf16.gmra.mxu0 %v587
  %v873 = vpop.f32.mrf.mxu0
  %v874 = vadd.f32 %v705, %v873
  %v875 = vpop.f32.mrf.mxu0
  %v876 = vadd.f32 %v707, %v875
  %877 = vmatmul.bf16.gmra.mxu0 %v590
  %v878 = vpop.f32.mrf.mxu0
  %v879 = vadd.f32 %v710, %v878
  %v880 = vpop.f32.mrf.mxu0
  %v881 = vadd.f32 %v712, %v880
  %882 = vmatmul.bf16.gmra.mxu0 %v593
  %v883 = vpop.f32.mrf.mxu0
  %v884 = vadd.f32 %v715, %v883
  %v885 = vpop.f32.mrf.mxu0
  %v886 = vadd.f32 %v717, %v885
  %887 = vmatmul.bf16.gmra.mxu0 %v596
  %v888 = vpop.f32.mrf.mxu0
  %v889 = vadd.f32 %v720, %v888
  %v890 = vpop.f32.mrf.mxu0
  %v891 = vadd.f32 %v722, %v890
  %892 = vmatmul.bf16.gmra.mxu0 %v599
  %v893 = vpop.f32.mrf.mxu0
  %v894 = vadd.f32 %v725, %v893
  %v895 = vpop.f32.mrf.mxu0
  %v896 = vadd.f32 %v727, %v895
  %897 = vmatmul.bf16.gmra.mxu0 %v602
  %v898 = vpop.f32.mrf.mxu0
  %v899 = vadd.f32 %v730, %v898
  %v900 = vpop.f32.mrf.mxu0
  %v901 = vadd.f32 %v732, %v900
  %902 = vmatmul.bf16.gmra.mxu0 %v605
  %v903 = vpop.f32.mrf.mxu0
  %v904 = vadd.f32 %v735, %v903
  %v905 = vpop.f32.mrf.mxu0
  %v906 = vadd.f32 %v737, %v905
  %907 = vmatmul.bf16.gmra.mxu0 %v608
  %v908 = vpop.f32.mrf.mxu0
  %v909 = vadd.f32 %v740, %v908
  %v910 = vpop.f32.mrf.mxu0
  %v911 = vadd.f32 %v742, %v910
  %912 = vmatmul.bf16.gmra.mxu0 %v611
  %v913 = vpop.f32.mrf.mxu0
  %v914 = vadd.f32 %v745, %v913
  %v915 = vpop.f32.mrf.mxu0
  %v916 = vadd.f32 %v747, %v915
  %917 = vmatmul.bf16.gmra.mxu0 %v614
  %v918 = vpop.f32.mrf.mxu0
  %v919 = vadd.f32 %v750, %v918
  %v920 = vpop.f32.mrf.mxu0
  %v921 = vadd.f32 %v752, %v920
  %922 = vmatmul.bf16.gmra.mxu0 %v617
  %v923 = vpop.f32.mrf.mxu0
  %v924 = vadd.f32 %v755, %v923
  %v925 = vpop.f32.mrf.mxu0
  %v926 = vadd.f32 %v757, %v925
  %927 = vmatmul.bf16.gmra.mxu0 %v620
  %v928 = vpop.f32.mrf.mxu0
  %v929 = vadd.f32 %v760, %v928
  %v930 = vpop.f32.mrf.mxu0
  %v931 = vadd.f32 %v762, %v930
  %932 = vmatmul.bf16.gmra.mxu0 %v623
  %v933 = vpop.f32.mrf.mxu0
  %v934 = vadd.f32 %v765, %v933
  %v935 = vpop.f32.mrf.mxu0
  %v936 = vadd.f32 %v767, %v935
  %937 = vmatmul.bf16.gmra.mxu0 %v626
  %v938 = vpop.f32.mrf.mxu0
  %v939 = vadd.f32 %v770, %v938
  %v940 = vpop.f32.mrf.mxu0
  %v941 = vadd.f32 %v772, %v940
  %942 = vmatmul.bf16.gmra.mxu0 %v629
  %v943 = vpop.f32.mrf.mxu0
  %v944 = vadd.f32 %v775, %v943
  %v945 = vpop.f32.mrf.mxu0
  %v946 = vadd.f32 %v777, %v945
  %947 = vmatmul.bf16.gmra.mxu0 %v632
  %v948 = vpop.f32.mrf.mxu0
  %v949 = vadd.f32 %v780, %v948
  %v950 = vpop.f32.mrf.mxu0
  %v951 = vadd.f32 %v782, %v950
  %952 = vmatmul.bf16.gmra.mxu0 %v635
  %v953 = vpop.f32.mrf.mxu0
  %v954 = vadd.f32 %v785, %v953
  %v955 = vpop.f32.mrf.mxu0
  %v956 = vadd.f32 %v787, %v955
  %957 = vmatmul.bf16.gmra.mxu0 %v638
  %v958 = vpop.f32.mrf.mxu0
  %v959 = vadd.f32 %v790, %v958
  %v960 = vpop.f32.mrf.mxu0
  %v961 = vadd.f32 %v792, %v960
  %962 = vmatmul.bf16.gmra.mxu0 %v641
  %v963 = vpop.f32.mrf.mxu0
  %v964 = vadd.f32 %v795, %v963
  %v965 = vpop.f32.mrf.mxu0
  %v966 = vadd.f32 %v797, %v965
  %967 = vmatmul.bf16.gmra.mxu0 %v644
  %v968 = vpop.f32.mrf.mxu0
  %v969 = vadd.f32 %v800, %v968
  %v970 = vpop.f32.mrf.mxu0
  %v971 = vadd.f32 %v802, %v970
  %972 = vmatmul.bf16.gmra.mxu0 %v647
  %v973 = vpop.f32.mrf.mxu0
  %v974 = vadd.f32 %v805, %v973
  %v975 = vpop.f32.mrf.mxu0
  %v976 = vadd.f32 %v807, %v975
  %977 = vmatmul.bf16.gmra.mxu0 %v650
  %v978 = vpop.f32.mrf.mxu0
  %v979 = vadd.f32 %v810, %v978
  %v980 = vpop.f32.mrf.mxu0
  %v981 = vadd.f32 %v812, %v980
  %982 = vmatmul.bf16.gmra.mxu0 %v653
  %v983 = vpop.f32.mrf.mxu0
  %v984 = vadd.f32 %v815, %v983
  %v985 = vpop.f32.mrf.mxu0
  %v986 = vadd.f32 %v817, %v985
  %987 = vmatmul.bf16.gmra.mxu0 %v656
  %v988 = vpop.f32.mrf.mxu0
  %v989 = vadd.f32 %v820, %v988
  %v990 = vpop.f32.mrf.mxu0
  %v991 = vadd.f32 %v822, %v990
  %992 = vmatmul.bf16.gmra.mxu0 %v659
  %v993 = vpop.f32.mrf.mxu0
  %v994 = vadd.f32 %v825, %v993
  %v995 = vpop.f32.mrf.mxu0
  %v996 = vadd.f32 %v827, %v995
  %997 = vmatmul.bf16.gmra.mxu0 %v662
  %v998 = vpop.f32.mrf.mxu0
  %v999 = vadd.f32 %v830, %v998
  %v1000 = vpop.f32.mrf.mxu0
  %v1001 = vadd.f32 %v832, %v1000
  %1002 = vmatmul.bf16.gmra.mxu0 %v665
  %v1003 = vpop.f32.mrf.mxu0
  %v1004 = vadd.f32 %v835, %v1003
  %v1005 = vpop.f32.mrf.mxu0
  %v1006 = vadd.f32 %v837, %v1005
  %1007 = vmatmul.bf16.gmra.mxu0 %v668
  %v1008 = vpop.f32.mrf.mxu0
  %v1009 = vadd.f32 %v840, %v1008
  %v1010 = vpop.f32.mrf.mxu0
  %v1011 = vadd.f32 %v842, %v1010
  %1012 = vmatmul.bf16.gmra.mxu0 %v671
  %v1013 = vpop.f32.mrf.mxu0
  %v1014 = vadd.f32 %v845, %v1013
  %v1015 = vpop.f32.mrf.mxu0
  %v1016 = vadd.f32 %v847, %v1015
  %1017 = vdwg.mxu0
  %v1018 = vadd.f32 %v84, %v859
  %v1019 = vadd.f32 %v85, %v861
  %v1020 = vadd.f32 %v86, %v864
  %v1021 = vadd.f32 %v87, %v866
  %v1022 = vadd.f32 %v88, %v869
  %v1023 = vadd.f32 %v89, %v871
  %v1024 = vadd.f32 %v90, %v874
  %v1025 = vadd.f32 %v91, %v876
  %v1026 = vadd.f32 %v92, %v879
  %v1027 = vadd.f32 %v93, %v881
  %v1028 = vadd.f32 %v94, %v884
  %v1029 = vadd.f32 %v95, %v886
  %v1030 = vadd.f32 %v96, %v889
  %v1031 = vadd.f32 %v97, %v891
  %v1032 = vadd.f32 %v98, %v894
  %v1033 = vadd.f32 %v99, %v896
  %v1034 = vadd.f32 %v100, %v899
  %v1035 = vadd.f32 %v101, %v901
  %v1036 = vadd.f32 %v102, %v904
  %v1037 = vadd.f32 %v103, %v906
  %v1038 = vadd.f32 %v104, %v909
  %v1039 = vadd.f32 %v105, %v911
  %v1040 = vadd.f32 %v106, %v914
  %v1041 = vadd.f32 %v107, %v916
  %v1042 = vadd.f32 %v108, %v919
  %v1043 = vadd.f32 %v109, %v921
  %v1044 = vadd.f32 %v110, %v924
  %v1045 = vadd.f32 %v111, %v926
  %v1046 = vadd.f32 %v112, %v929
  %v1047 = vadd.f32 %v113, %v931
  %v1048 = vadd.f32 %v114, %v934
  %v1049 = vadd.f32 %v115, %v936
  %v1050 = vadd.f32 %v116, %v939
  %v1051 = vadd.f32 %v117, %v941
  %v1052 = vadd.f32 %v118, %v944
  %v1053 = vadd.f32 %v119, %v946
  %v1054 = vadd.f32 %v120, %v949
  %v1055 = vadd.f32 %v121, %v951
  %v1056 = vadd.f32 %v122, %v954
  %v1057 = vadd.f32 %v123, %v956
  %v1058 = vadd.f32 %v124, %v959
  %v1059 = vadd.f32 %v125, %v961
  %v1060 = vadd.f32 %v126, %v964
  %v1061 = vadd.f32 %v127, %v966
  %v1062 = vadd.f32 %v128, %v969
  %v1063 = vadd.f32 %v129, %v971
  %v1064 = vadd.f32 %v130, %v974
  %v1065 = vadd.f32 %v131, %v976
  %v1066 = vadd.f32 %v132, %v979
  %v1067 = vadd.f32 %v133, %v981
  %v1068 = vadd.f32 %v134, %v984
  %v1069 = vadd.f32 %v135, %v986
  %v1070 = vadd.f32 %v136, %v989
  %v1071 = vadd.f32 %v137, %v991
  %v1072 = vadd.f32 %v138, %v994
  %v1073 = vadd.f32 %v139, %v996
  %v1074 = vadd.f32 %v140, %v999
  %v1075 = vadd.f32 %v141, %v1001
  %v1076 = vadd.f32 %v142, %v1004
  %v1077 = vadd.f32 %v143, %v1006
  %v1078 = vadd.f32 %v144, %v1009
  %v1079 = vadd.f32 %v145, %v1011
  %v1080 = vadd.f32 %v146, %v1014
  %v1081 = vadd.f32 %v147, %v1016
  %vm1082 = vcmask 64512
  %1083 = vst.msk [vmem:[#allocation2] sm:$0xff] %vm1082, %v1018
  %1084 = vst.msk [vmem:[#allocation2 + $0x8] sm:$0xff] %vm1082, %v1019
  %1085 = vst.msk [vmem:[#allocation2 + $0x10] sm:$0xff] %vm1082, %v1020
  %1086 = vst.msk [vmem:[#allocation2 + $0x18] sm:$0xff] %vm1082, %v1021
  %1087 = vst.msk [vmem:[#allocation2 + $0x20] sm:$0xff] %vm1082, %v1022
  %1088 = vst.msk [vmem:[#allocation2 + $0x28] sm:$0xff] %vm1082, %v1023
  %1089 = vst.msk [vmem:[#allocation2 + $0x30] sm:$0xff] %vm1082, %v1024
  %1090 = vst.msk [vmem:[#allocation2 + $0x38] sm:$0xff] %vm1082, %v1025
  %1091 = vst.msk [vmem:[#allocation2 + $0x40] sm:$0xff] %vm1082, %v1026
  %1092 = vst.msk [vmem:[#allocation2 + $0x48] sm:$0xff] %vm1082, %v1027
  %1093 = vst.msk [vmem:[#allocation2 + $0x50] sm:$0xff] %vm1082, %v1028
  %1094 = vst.msk [vmem:[#allocation2 + $0x58] sm:$0xff] %vm1082, %v1029
  %1095 = vst.msk [vmem:[#allocation2 + $0x60] sm:$0xff] %vm1082, %v1030
  %1096 = vst.msk [vmem:[#allocation2 + $0x68] sm:$0xff] %vm1082, %v1031
  %1097 = vst.msk [vmem:[#allocation2 + $0x70] sm:$0xff] %vm1082, %v1032
  %1098 = vst.msk [vmem:[#allocation2 + $0x78] sm:$0xff] %vm1082, %v1033
  %1099 = vst.msk [vmem:[#allocation2 + $0x80] sm:$0xff] %vm1082, %v1034
  %1100 = vst.msk [vmem:[#allocation2 + $0x88] sm:$0xff] %vm1082, %v1035
  %1101 = vst.msk [vmem:[#allocation2 + $0x90] sm:$0xff] %vm1082, %v1036
  %1102 = vst.msk [vmem:[#allocation2 + $0x98] sm:$0xff] %vm1082, %v1037
  %1103 = vst.msk [vmem:[#allocation2 + $0xa0] sm:$0xff] %vm1082, %v1038
  %1104 = vst.msk [vmem:[#allocation2 + $0xa8] sm:$0xff] %vm1082, %v1039
  %1105 = vst.msk [vmem:[#allocation2 + $0xb0] sm:$0xff] %vm1082, %v1040
  %1106 = vst.msk [vmem:[#allocation2 + $0xb8] sm:$0xff] %vm1082, %v1041
  %1107 = vst.msk [vmem:[#allocation2 + $0xc0] sm:$0xff] %vm1082, %v1042
  %1108 = vst.msk [vmem:[#allocation2 + $0xc8] sm:$0xff] %vm1082, %v1043
  %1109 = vst.msk [vmem:[#allocation2 + $0xd0] sm:$0xff] %vm1082, %v1044
  %1110 = vst.msk [vmem:[#allocation2 + $0xd8] sm:$0xff] %vm1082, %v1045
  %1111 = vst.msk [vmem:[#allocation2 + $0xe0] sm:$0xff] %vm1082, %v1046
  %1112 = vst.msk [vmem:[#allocation2 + $0xe8] sm:$0xff] %vm1082, %v1047
  %1113 = vst.msk [vmem:[#allocation2 + $0xf0] sm:$0xff] %vm1082, %v1048
  %1114 = vst.msk [vmem:[#allocation2 + $0xf8] sm:$0xff] %vm1082, %v1049
  %1115 = vst.msk [vmem:[#allocation2 + $0x100] sm:$0xff] %vm1082, %v1050
  %1116 = vst.msk [vmem:[#allocation2 + $0x108] sm:$0xff] %vm1082, %v1051
  %1117 = vst.msk [vmem:[#allocation2 + $0x110] sm:$0xff] %vm1082, %v1052
  %1118 = vst.msk [vmem:[#allocation2 + $0x118] sm:$0xff] %vm1082, %v1053
  %1119 = vst.msk [vmem:[#allocation2 + $0x120] sm:$0xff] %vm1082, %v1054
  %1120 = vst.msk [vmem:[#allocation2 + $0x128] sm:$0xff] %vm1082, %v1055
  %1121 = vst.msk [vmem:[#allocation2 + $0x130] sm:$0xff] %vm1082, %v1056
  %1122 = vst.msk [vmem:[#allocation2 + $0x138] sm:$0xff] %vm1082, %v1057
  %1123 = vst.msk [vmem:[#allocation2 + $0x140] sm:$0xff] %vm1082, %v1058
  %1124 = vst.msk [vmem:[#allocation2 + $0x148] sm:$0xff] %vm1082, %v1059
  %1125 = vst.msk [vmem:[#allocation2 + $0x150] sm:$0xff] %vm1082, %v1060
  %1126 = vst.msk [vmem:[#allocation2 + $0x158] sm:$0xff] %vm1082, %v1061
  %1127 = vst.msk [vmem:[#allocation2 + $0x160] sm:$0xff] %vm1082, %v1062
  %1128 = vst.msk [vmem:[#allocation2 + $0x168] sm:$0xff] %vm1082, %v1063
  %1129 = vst.msk [vmem:[#allocation2 + $0x170] sm:$0xff] %vm1082, %v1064
  %1130 = vst.msk [vmem:[#allocation2 + $0x178] sm:$0xff] %vm1082, %v1065
  %1131 = vst.msk [vmem:[#allocation2 + $0x180] sm:$0xff] %vm1082, %v1066
  %1132 = vst.msk [vmem:[#allocation2 + $0x188] sm:$0xff] %vm1082, %v1067
  %1133 = vst.msk [vmem:[#allocation2 + $0x190] sm:$0xff] %vm1082, %v1068
  %1134 = vst.msk [vmem:[#allocation2 + $0x198] sm:$0xff] %vm1082, %v1069
  %1135 = vst.msk [vmem:[#allocation2 + $0x1a0] sm:$0xff] %vm1082, %v1070
  %1136 = vst.msk [vmem:[#allocation2 + $0x1a8] sm:$0xff] %vm1082, %v1071
  %1137 = vst.msk [vmem:[#allocation2 + $0x1b0] sm:$0xff] %vm1082, %v1072
  %1138 = vst.msk [vmem:[#allocation2 + $0x1b8] sm:$0xff] %vm1082, %v1073
  %1139 = vst.msk [vmem:[#allocation2 + $0x1c0] sm:$0xff] %vm1082, %v1074
  %1140 = vst.msk [vmem:[#allocation2 + $0x1c8] sm:$0xff] %vm1082, %v1075
  %1141 = vst.msk [vmem:[#allocation2 + $0x1d0] sm:$0xff] %vm1082, %v1076
  %1142 = vst.msk [vmem:[#allocation2 + $0x1d8] sm:$0xff] %vm1082, %v1077
  %1143 = vst.msk [vmem:[#allocation2 + $0x1e0] sm:$0xff] %vm1082, %v1078
  %1144 = vst.msk [vmem:[#allocation2 + $0x1e8] sm:$0xff] %vm1082, %v1079
  %1145 = vst.msk [vmem:[#allocation2 + $0x1f0] sm:$0xff] %vm1082, %v1080
  %1146 = vst.msk [vmem:[#allocation2 + $0x1f8] sm:$0xff] %vm1082, %v1081
  // Predicated region
  $region14: #{resnet_generator_forward.36} parent=0 // pred_check
    %p1147 = pneg %p15
  $region15: #{resnet_generator_forward.36} parent=0 // pred_check_branch
    %1149 = sbr.rel (%p1147) target = $region17
  $region16: #{resnet_generator_forward.36} parent=0 // pred_region
    %v1150 = vld [vmem:[#allocation2] sm:$0xff]
    %v1151 = vld [vmem:[#allocation2 + $0x8] sm:$0xff]
    %v1152 = vld [vmem:[#allocation2 + $0x10] sm:$0xff]
    %v1153 = vld [vmem:[#allocation2 + $0x18] sm:$0xff]
    %v1154 = vld [vmem:[#allocation2 + $0x20] sm:$0xff]
    %v1155 = vld [vmem:[#allocation2 + $0x28] sm:$0xff]
    %v1156 = vld [vmem:[#allocation2 + $0x30] sm:$0xff]
    %v1157 = vld [vmem:[#allocation2 + $0x38] sm:$0xff]
    %v1158 = vld [vmem:[#allocation2 + $0x40] sm:$0xff]
    %v1159 = vld [vmem:[#allocation2 + $0x48] sm:$0xff]
    %v1160 = vld [vmem:[#allocation2 + $0x50] sm:$0xff]
    %v1161 = vld [vmem:[#allocation2 + $0x58] sm:$0xff]
    %v1162 = vld [vmem:[#allocation2 + $0x60] sm:$0xff]
    %v1163 = vld [vmem:[#allocation2 + $0x68] sm:$0xff]
    %v1164 = vld [vmem:[#allocation2 + $0x70] sm:$0xff]
    %v1165 = vld [vmem:[#allocation2 + $0x78] sm:$0xff]
    %v1166 = vld [vmem:[#allocation2 + $0x80] sm:$0xff]
    %v1167 = vld [vmem:[#allocation2 + $0x88] sm:$0xff]
    %v1168 = vld [vmem:[#allocation2 + $0x90] sm:$0xff]
    %v1169 = vld [vmem:[#allocation2 + $0x98] sm:$0xff]
    %v1170 = vld [vmem:[#allocation2 + $0xa0] sm:$0xff]
    %v1171 = vld [vmem:[#allocation2 + $0xa8] sm:$0xff]
    %v1172 = vld [vmem:[#allocation2 + $0xb0] sm:$0xff]
    %v1173 = vld [vmem:[#allocation2 + $0xb8] sm:$0xff]
    %v1174 = vld [vmem:[#allocation2 + $0xc0] sm:$0xff]
    %v1175 = vld [vmem:[#allocation2 + $0xc8] sm:$0xff]
    %v1176 = vld [vmem:[#allocation2 + $0xd0] sm:$0xff]
    %v1177 = vld [vmem:[#allocation2 + $0xd8] sm:$0xff]
    %v1178 = vld [vmem:[#allocation2 + $0xe0] sm:$0xff]
    %v1179 = vld [vmem:[#allocation2 + $0xe8] sm:$0xff]
    %v1180 = vld [vmem:[#allocation2 + $0xf0] sm:$0xff]
    %v1181 = vld [vmem:[#allocation2 + $0xf8] sm:$0xff]
    %v1182 = vld [vmem:[#allocation2 + $0x100] sm:$0xff]
    %v1183 = vld [vmem:[#allocation2 + $0x108] sm:$0xff]
    %v1184 = vld [vmem:[#allocation2 + $0x110] sm:$0xff]
    %v1185 = vld [vmem:[#allocation2 + $0x118] sm:$0xff]
    %v1186 = vld [vmem:[#allocation2 + $0x120] sm:$0xff]
    %v1187 = vld [vmem:[#allocation2 + $0x128] sm:$0xff]
    %v1188 = vld [vmem:[#allocation2 + $0x130] sm:$0xff]
    %v1189 = vld [vmem:[#allocation2 + $0x138] sm:$0xff]
    %v1190 = vld [vmem:[#allocation2 + $0x140] sm:$0xff]
    %v1191 = vld [vmem:[#allocation2 + $0x148] sm:$0xff]
    %v1192 = vld [vmem:[#allocation2 + $0x150] sm:$0xff]
    %v1193 = vld [vmem:[#allocation2 + $0x158] sm:$0xff]
    %v1194 = vld [vmem:[#allocation2 + $0x160] sm:$0xff]
    %v1195 = vld [vmem:[#allocation2 + $0x168] sm:$0xff]
    %v1196 = vld [vmem:[#allocation2 + $0x170] sm:$0xff]
    %v1197 = vld [vmem:[#allocation2 + $0x178] sm:$0xff]
    %v1198 = vld [vmem:[#allocation2 + $0x180] sm:$0xff]
    %v1199 = vld [vmem:[#allocation2 + $0x188] sm:$0xff]
    %v1200 = vld [vmem:[#allocation2 + $0x190] sm:$0xff]
    %v1201 = vld [vmem:[#allocation2 + $0x198] sm:$0xff]
    %v1202 = vld [vmem:[#allocation2 + $0x1a0] sm:$0xff]
    %v1203 = vld [vmem:[#allocation2 + $0x1a8] sm:$0xff]
    %v1204 = vld [vmem:[#allocation2 + $0x1b0] sm:$0xff]
    %v1205 = vld [vmem:[#allocation2 + $0x1b8] sm:$0xff]
    %v1206 = vld [vmem:[#allocation2 + $0x1c0] sm:$0xff]
    %v1207 = vld [vmem:[#allocation2 + $0x1c8] sm:$0xff]
    %v1208 = vld [vmem:[#allocation2 + $0x1d0] sm:$0xff]
    %v1209 = vld [vmem:[#allocation2 + $0x1d8] sm:$0xff]
    %v1210 = vld [vmem:[#allocation2 + $0x1e0] sm:$0xff]
    %v1211 = vld [vmem:[#allocation2 + $0x1e8] sm:$0xff]
    %v1212 = vld [vmem:[#allocation2 + $0x1f0] sm:$0xff]
    %v1213 = vld [vmem:[#allocation2 + $0x1f8] sm:$0xff]
    %v1214 = vpack.c.bf16 %v1150, %v1150
    %v1215 = vpack.c.bf16 %v1151, %v1151
    %v1216 = vpack.c.bf16 %v1152, %v1152
    %v1217 = vpack.c.bf16 %v1153, %v1153
    %v1218 = vpack.c.bf16 %v1154, %v1154
    %v1219 = vpack.c.bf16 %v1155, %v1155
    %v1220 = vpack.c.bf16 %v1156, %v1156
    %v1221 = vpack.c.bf16 %v1157, %v1157
    %v1222 = vpack.c.bf16 %v1158, %v1158
    %v1223 = vpack.c.bf16 %v1159, %v1159
    %v1224 = vpack.c.bf16 %v1160, %v1160
    %v1225 = vpack.c.bf16 %v1161, %v1161
    %v1226 = vpack.c.bf16 %v1162, %v1162
    %v1227 = vpack.c.bf16 %v1163, %v1163
    %v1228 = vpack.c.bf16 %v1164, %v1164
    %v1229 = vpack.c.bf16 %v1165, %v1165
    %v1230 = vpack.c.bf16 %v1166, %v1166
    %v1231 = vpack.c.bf16 %v1167, %v1167
    %v1232 = vpack.c.bf16 %v1168, %v1168
    %v1233 = vpack.c.bf16 %v1169, %v1169
    %v1234 = vpack.c.bf16 %v1170, %v1170
    %v1235 = vpack.c.bf16 %v1171, %v1171
    %v1236 = vpack.c.bf16 %v1172, %v1172
    %v1237 = vpack.c.bf16 %v1173, %v1173
    %v1238 = vpack.c.bf16 %v1174, %v1174
    %v1239 = vpack.c.bf16 %v1175, %v1175
    %v1240 = vpack.c.bf16 %v1176, %v1176
    %v1241 = vpack.c.bf16 %v1177, %v1177
    %v1242 = vpack.c.bf16 %v1178, %v1178
    %v1243 = vpack.c.bf16 %v1179, %v1179
    %v1244 = vpack.c.bf16 %v1180, %v1180
    %v1245 = vpack.c.bf16 %v1181, %v1181
    %v1246 = vpack.c.bf16 %v1182, %v1182
    %v1247 = vpack.c.bf16 %v1183, %v1183
    %v1248 = vpack.c.bf16 %v1184, %v1184
    %v1249 = vpack.c.bf16 %v1185, %v1185
    %v1250 = vpack.c.bf16 %v1186, %v1186
    %v1251 = vpack.c.bf16 %v1187, %v1187
    %v1252 = vpack.c.bf16 %v1188, %v1188
    %v1253 = vpack.c.bf16 %v1189, %v1189
    %v1254 = vpack.c.bf16 %v1190, %v1190
    %v1255 = vpack.c.bf16 %v1191, %v1191
    %v1256 = vpack.c.bf16 %v1192, %v1192
    %v1257 = vpack.c.bf16 %v1193, %v1193
    %v1258 = vpack.c.bf16 %v1194, %v1194
    %v1259 = vpack.c.bf16 %v1195, %v1195
    %v1260 = vpack.c.bf16 %v1196, %v1196
    %v1261 = vpack.c.bf16 %v1197, %v1197
    %v1262 = vpack.c.bf16 %v1198, %v1198
    %v1263 = vpack.c.bf16 %v1199, %v1199
    %v1264 = vpack.c.bf16 %v1200, %v1200
    %v1265 = vpack.c.bf16 %v1201, %v1201
    %v1266 = vpack.c.bf16 %v1202, %v1202
    %v1267 = vpack.c.bf16 %v1203, %v1203
    %v1268 = vpack.c.bf16 %v1204, %v1204
    %v1269 = vpack.c.bf16 %v1205, %v1205
    %v1270 = vpack.c.bf16 %v1206, %v1206
    %v1271 = vpack.c.bf16 %v1207, %v1207
    %v1272 = vpack.c.bf16 %v1208, %v1208
    %v1273 = vpack.c.bf16 %v1209, %v1209
    %v1274 = vpack.c.bf16 %v1210, %v1210
    %v1275 = vpack.c.bf16 %v1211, %v1211
    %v1276 = vpack.c.bf16 %v1212, %v1212
    %v1277 = vpack.c.bf16 %v1213, %v1213
    %vm1278 = vcmask 60416
    %1279 = vst.msk [vmem:[%s2] sm:$0xf] %vm1278, %v1214
    %1280 = vst.msk [vmem:[%s2 + $0x4] sm:$0xf] %vm1278, %v1215
    %1281 = vst.msk [vmem:[%s2 + $0x8] sm:$0xf] %vm1278, %v1216
    %1282 = vst.msk [vmem:[%s2 + $0xc] sm:$0xf] %vm1278, %v1217
    %1283 = vst.msk [vmem:[%s2 + $0x10] sm:$0xf] %vm1278, %v1218
    %1284 = vst.msk [vmem:[%s2 + $0x14] sm:$0xf] %vm1278, %v1219
    %1285 = vst.msk [vmem:[%s2 + $0x18] sm:$0xf] %vm1278, %v1220
    %1286 = vst.msk [vmem:[%s2 + $0x1c] sm:$0xf] %vm1278, %v1221
    %1287 = vst.msk [vmem:[%s2 + $0x20] sm:$0xf] %vm1278, %v1222
    %1288 = vst.msk [vmem:[%s2 + $0x24] sm:$0xf] %vm1278, %v1223
    %1289 = vst.msk [vmem:[%s2 + $0x28] sm:$0xf] %vm1278, %v1224
    %1290 = vst.msk [vmem:[%s2 + $0x2c] sm:$0xf] %vm1278, %v1225
    %1291 = vst.msk [vmem:[%s2 + $0x30] sm:$0xf] %vm1278, %v1226
    %1292 = vst.msk [vmem:[%s2 + $0x34] sm:$0xf] %vm1278, %v1227
    %1293 = vst.msk [vmem:[%s2 + $0x38] sm:$0xf] %vm1278, %v1228
    %1294 = vst.msk [vmem:[%s2 + $0x3c] sm:$0xf] %vm1278, %v1229
    %1295 = vst.msk [vmem:[%s2 + $0x40] sm:$0xf] %vm1278, %v1230
    %1296 = vst.msk [vmem:[%s2 + $0x44] sm:$0xf] %vm1278, %v1231
    %1297 = vst.msk [vmem:[%s2 + $0x48] sm:$0xf] %vm1278, %v1232
    %1298 = vst.msk [vmem:[%s2 + $0x4c] sm:$0xf] %vm1278, %v1233
    %1299 = vst.msk [vmem:[%s2 + $0x50] sm:$0xf] %vm1278, %v1234
    %1300 = vst.msk [vmem:[%s2 + $0x54] sm:$0xf] %vm1278, %v1235
    %1301 = vst.msk [vmem:[%s2 + $0x58] sm:$0xf] %vm1278, %v1236
    %1302 = vst.msk [vmem:[%s2 + $0x5c] sm:$0xf] %vm1278, %v1237
    %1303 = vst.msk [vmem:[%s2 + $0x60] sm:$0xf] %vm1278, %v1238
    %1304 = vst.msk [vmem:[%s2 + $0x64] sm:$0xf] %vm1278, %v1239
    %1305 = vst.msk [vmem:[%s2 + $0x68] sm:$0xf] %vm1278, %v1240
    %1306 = vst.msk [vmem:[%s2 + $0x6c] sm:$0xf] %vm1278, %v1241
    %1307 = vst.msk [vmem:[%s2 + $0x70] sm:$0xf] %vm1278, %v1242
    %1308 = vst.msk [vmem:[%s2 + $0x74] sm:$0xf] %vm1278, %v1243
    %1309 = vst.msk [vmem:[%s2 + $0x78] sm:$0xf] %vm1278, %v1244
    %1310 = vst.msk [vmem:[%s2 + $0x7c] sm:$0xf] %vm1278, %v1245
    %1311 = vst.msk [vmem:[%s2 + $0x80] sm:$0xf] %vm1278, %v1246
    %1312 = vst.msk [vmem:[%s2 + $0x84] sm:$0xf] %vm1278, %v1247
    %1313 = vst.msk [vmem:[%s2 + $0x88] sm:$0xf] %vm1278, %v1248
    %1314 = vst.msk [vmem:[%s2 + $0x8c] sm:$0xf] %vm1278, %v1249
    %1315 = vst.msk [vmem:[%s2 + $0x90] sm:$0xf] %vm1278, %v1250
    %1316 = vst.msk [vmem:[%s2 + $0x94] sm:$0xf] %vm1278, %v1251
    %1317 = vst.msk [vmem:[%s2 + $0x98] sm:$0xf] %vm1278, %v1252
    %1318 = vst.msk [vmem:[%s2 + $0x9c] sm:$0xf] %vm1278, %v1253
    %1319 = vst.msk [vmem:[%s2 + $0xa0] sm:$0xf] %vm1278, %v1254
    %1320 = vst.msk [vmem:[%s2 + $0xa4] sm:$0xf] %vm1278, %v1255
    %1321 = vst.msk [vmem:[%s2 + $0xa8] sm:$0xf] %vm1278, %v1256
    %1322 = vst.msk [vmem:[%s2 + $0xac] sm:$0xf] %vm1278, %v1257
    %1323 = vst.msk [vmem:[%s2 + $0xb0] sm:$0xf] %vm1278, %v1258
    %1324 = vst.msk [vmem:[%s2 + $0xb4] sm:$0xf] %vm1278, %v1259
    %1325 = vst.msk [vmem:[%s2 + $0xb8] sm:$0xf] %vm1278, %v1260
    %1326 = vst.msk [vmem:[%s2 + $0xbc] sm:$0xf] %vm1278, %v1261
    %1327 = vst.msk [vmem:[%s2 + $0xc0] sm:$0xf] %vm1278, %v1262
    %1328 = vst.msk [vmem:[%s2 + $0xc4] sm:$0xf] %vm1278, %v1263
    %1329 = vst.msk [vmem:[%s2 + $0xc8] sm:$0xf] %vm1278, %v1264
    %1330 = vst.msk [vmem:[%s2 + $0xcc] sm:$0xf] %vm1278, %v1265
    %1331 = vst.msk [vmem:[%s2 + $0xd0] sm:$0xf] %vm1278, %v1266
    %1332 = vst.msk [vmem:[%s2 + $0xd4] sm:$0xf] %vm1278, %v1267
    %1333 = vst.msk [vmem:[%s2 + $0xd8] sm:$0xf] %vm1278, %v1268
    %1334 = vst.msk [vmem:[%s2 + $0xdc] sm:$0xf] %vm1278, %v1269
    %1335 = vst.msk [vmem:[%s2 + $0xe0] sm:$0xf] %vm1278, %v1270
    %1336 = vst.msk [vmem:[%s2 + $0xe4] sm:$0xf] %vm1278, %v1271
    %1337 = vst.msk [vmem:[%s2 + $0xe8] sm:$0xf] %vm1278, %v1272
    %1338 = vst.msk [vmem:[%s2 + $0xec] sm:$0xf] %vm1278, %v1273
    %1339 = vst.msk [vmem:[%s2 + $0xf0] sm:$0xf] %vm1278, %v1274
    %1340 = vst.msk [vmem:[%s2 + $0xf4] sm:$0xf] %vm1278, %v1275
    %1341 = vst.msk [vmem:[%s2 + $0xf8] sm:$0xf] %vm1278, %v1276
    %1342 = vst.msk [vmem:[%s2 + $0xfc] sm:$0xf] %vm1278, %v1277
    %v1343 = vsel %vm1082, %v1150, 0.0
    %v1344 = vsel %vm1082, %v1151, 0.0
    %v1345 = vadd.f32 %v1343, %v1344
    %v1346 = vsel %vm1082, %v1152, 0.0
    %v1347 = vadd.f32 %v1345, %v1346
    %v1348 = vsel %vm1082, %v1153, 0.0
    %v1349 = vadd.f32 %v1347, %v1348
    %v1350 = vsel %vm1082, %v1154, 0.0
    %v1351 = vadd.f32 %v1349, %v1350
    %v1352 = vsel %vm1082, %v1155, 0.0
    %v1353 = vadd.f32 %v1351, %v1352
    %v1354 = vsel %vm1082, %v1156, 0.0
    %v1355 = vadd.f32 %v1353, %v1354
    %v1356 = vsel %vm1082, %v1157, 0.0
    %v1357 = vadd.f32 %v1355, %v1356
    %v1358 = vsel %vm1082, %v1158, 0.0
    %v1359 = vadd.f32 %v1357, %v1358
    %v1360 = vsel %vm1082, %v1159, 0.0
    %v1361 = vadd.f32 %v1359, %v1360
    %v1362 = vsel %vm1082, %v1160, 0.0
    %v1363 = vadd.f32 %v1361, %v1362
    %v1364 = vsel %vm1082, %v1161, 0.0
    %v1365 = vadd.f32 %v1363, %v1364
    %v1366 = vsel %vm1082, %v1162, 0.0
    %v1367 = vadd.f32 %v1365, %v1366
    %v1368 = vsel %vm1082, %v1163, 0.0
    %v1369 = vadd.f32 %v1367, %v1368
    %v1370 = vsel %vm1082, %v1164, 0.0
    %v1371 = vadd.f32 %v1369, %v1370
    %v1372 = vsel %vm1082, %v1165, 0.0
    %v1373 = vadd.f32 %v1371, %v1372
    %v1374 = vsel %vm1082, %v1166, 0.0
    %v1375 = vadd.f32 %v1373, %v1374
    %v1376 = vsel %vm1082, %v1167, 0.0
    %v1377 = vadd.f32 %v1375, %v1376
    %v1378 = vsel %vm1082, %v1168, 0.0
    %v1379 = vadd.f32 %v1377, %v1378
    %v1380 = vsel %vm1082, %v1169, 0.0
    %v1381 = vadd.f32 %v1379, %v1380
    %v1382 = vsel %vm1082, %v1170, 0.0
    %v1383 = vadd.f32 %v1381, %v1382
    %v1384 = vsel %vm1082, %v1171, 0.0
    %v1385 = vadd.f32 %v1383, %v1384
    %v1386 = vsel %vm1082, %v1172, 0.0
    %v1387 = vadd.f32 %v1385, %v1386
    %v1388 = vsel %vm1082, %v1173, 0.0
    %v1389 = vadd.f32 %v1387, %v1388
    %v1390 = vsel %vm1082, %v1174, 0.0
    %v1391 = vadd.f32 %v1389, %v1390
    %v1392 = vsel %vm1082, %v1175, 0.0
    %v1393 = vadd.f32 %v1391, %v1392
    %v1394 = vsel %vm1082, %v1176, 0.0
    %v1395 = vadd.f32 %v1393, %v1394
    %v1396 = vsel %vm1082, %v1177, 0.0
    %v1397 = vadd.f32 %v1395, %v1396
    %v1398 = vsel %vm1082, %v1178, 0.0
    %v1399 = vadd.f32 %v1397, %v1398
    %v1400 = vsel %vm1082, %v1179, 0.0
    %v1401 = vadd.f32 %v1399, %v1400
    %v1402 = vsel %vm1082, %v1180, 0.0
    %v1403 = vadd.f32 %v1401, %v1402
    %v1404 = vsel %vm1082, %v1181, 0.0
    %v1405 = vadd.f32 %v1403, %v1404
    %v1406 = vsel %vm1082, %v1182, 0.0
    %v1407 = vadd.f32 %v1405, %v1406
    %v1408 = vsel %vm1082, %v1183, 0.0
    %v1409 = vadd.f32 %v1407, %v1408
    %v1410 = vsel %vm1082, %v1184, 0.0
    %v1411 = vadd.f32 %v1409, %v1410
    %v1412 = vsel %vm1082, %v1185, 0.0
    %v1413 = vadd.f32 %v1411, %v1412
    %v1414 = vsel %vm1082, %v1186, 0.0
    %v1415 = vadd.f32 %v1413, %v1414
    %v1416 = vsel %vm1082, %v1187, 0.0
    %v1417 = vadd.f32 %v1415, %v1416
    %v1418 = vsel %vm1082, %v1188, 0.0
    %v1419 = vadd.f32 %v1417, %v1418
    %v1420 = vsel %vm1082, %v1189, 0.0
    %v1421 = vadd.f32 %v1419, %v1420
    %v1422 = vsel %vm1082, %v1190, 0.0
    %v1423 = vadd.f32 %v1421, %v1422
    %v1424 = vsel %vm1082, %v1191, 0.0
    %v1425 = vadd.f32 %v1423, %v1424
    %v1426 = vsel %vm1082, %v1192, 0.0
    %v1427 = vadd.f32 %v1425, %v1426
    %v1428 = vsel %vm1082, %v1193, 0.0
    %v1429 = vadd.f32 %v1427, %v1428
    %v1430 = vsel %vm1082, %v1194, 0.0
    %v1431 = vadd.f32 %v1429, %v1430
    %v1432 = vsel %vm1082, %v1195, 0.0
    %v1433 = vadd.f32 %v1431, %v1432
    %v1434 = vsel %vm1082, %v1196, 0.0
    %v1435 = vadd.f32 %v1433, %v1434
    %v1436 = vsel %vm1082, %v1197, 0.0
    %v1437 = vadd.f32 %v1435, %v1436
    %v1438 = vsel %vm1082, %v1198, 0.0
    %v1439 = vadd.f32 %v1437, %v1438
    %v1440 = vsel %vm1082, %v1199, 0.0
    %v1441 = vadd.f32 %v1439, %v1440
    %v1442 = vsel %vm1082, %v1200, 0.0
    %v1443 = vadd.f32 %v1441, %v1442
    %v1444 = vsel %vm1082, %v1201, 0.0
    %v1445 = vadd.f32 %v1443, %v1444
    %v1446 = vsel %vm1082, %v1202, 0.0
    %v1447 = vadd.f32 %v1445, %v1446
    %v1448 = vsel %vm1082, %v1203, 0.0
    %v1449 = vadd.f32 %v1447, %v1448
    %v1450 = vsel %vm1082, %v1204, 0.0
    %v1451 = vadd.f32 %v1449, %v1450
    %v1452 = vsel %vm1082, %v1205, 0.0
    %v1453 = vadd.f32 %v1451, %v1452
    %v1454 = vsel %vm1082, %v1206, 0.0
    %v1455 = vadd.f32 %v1453, %v1454
    %v1456 = vsel %vm1082, %v1207, 0.0
    %v1457 = vadd.f32 %v1455, %v1456
    %v1458 = vsel %vm1082, %v1208, 0.0
    %v1459 = vadd.f32 %v1457, %v1458
    %v1460 = vsel %vm1082, %v1209, 0.0
    %v1461 = vadd.f32 %v1459, %v1460
    %v1462 = vsel %vm1082, %v1210, 0.0
    %v1463 = vadd.f32 %v1461, %v1462
    %v1464 = vsel %vm1082, %v1211, 0.0
    %v1465 = vadd.f32 %v1463, %v1464
    %v1466 = vsel %vm1082, %v1212, 0.0
    %v1467 = vadd.f32 %v1465, %v1466
    %v1468 = vsel %vm1082, %v1213, 0.0
    %v1469 = vadd.f32 %v1467, %v1468
    %v1470 = vrot.slane %v1469, 4
    %v1471 = vadd.f32 %v1469, %v1470
    %v1472 = vrot.slane %v1471, 2
    %v1473 = vadd.f32 %v1471, %v1472
    %v1474 = vrot.slane %v1473, 1
    %v1475 = vadd.f32 %v1473, %v1474
    %v1476 = vmul.f32 %v1150, %v1150
    %v1477 = vmul.f32 %v1151, %v1151
    %v1478 = vmul.f32 %v1152, %v1152
    %v1479 = vmul.f32 %v1153, %v1153
    %v1480 = vmul.f32 %v1154, %v1154
    %v1481 = vmul.f32 %v1155, %v1155
    %v1482 = vmul.f32 %v1156, %v1156
    %v1483 = vmul.f32 %v1157, %v1157
    %v1484 = vmul.f32 %v1158, %v1158
    %v1485 = vmul.f32 %v1159, %v1159
    %v1486 = vmul.f32 %v1160, %v1160
    %v1487 = vmul.f32 %v1161, %v1161
    %v1488 = vmul.f32 %v1162, %v1162
    %v1489 = vmul.f32 %v1163, %v1163
    %v1490 = vmul.f32 %v1164, %v1164
    %v1491 = vmul.f32 %v1165, %v1165
    %v1492 = vmul.f32 %v1166, %v1166
    %v1493 = vmul.f32 %v1167, %v1167
    %v1494 = vmul.f32 %v1168, %v1168
    %v1495 = vmul.f32 %v1169, %v1169
    %v1496 = vmul.f32 %v1170, %v1170
    %v1497 = vmul.f32 %v1171, %v1171
    %v1498 = vmul.f32 %v1172, %v1172
    %v1499 = vmul.f32 %v1173, %v1173
    %v1500 = vmul.f32 %v1174, %v1174
    %v1501 = vmul.f32 %v1175, %v1175
    %v1502 = vmul.f32 %v1176, %v1176
    %v1503 = vmul.f32 %v1177, %v1177
    %v1504 = vmul.f32 %v1178, %v1178
    %v1505 = vmul.f32 %v1179, %v1179
    %v1506 = vmul.f32 %v1180, %v1180
    %v1507 = vmul.f32 %v1181, %v1181
    %v1508 = vmul.f32 %v1182, %v1182
    %v1509 = vmul.f32 %v1183, %v1183
    %v1510 = vmul.f32 %v1184, %v1184
    %v1511 = vmul.f32 %v1185, %v1185
    %v1512 = vmul.f32 %v1186, %v1186
    %v1513 = vmul.f32 %v1187, %v1187
    %v1514 = vmul.f32 %v1188, %v1188
    %v1515 = vmul.f32 %v1189, %v1189
    %v1516 = vmul.f32 %v1190, %v1190
    %v1517 = vmul.f32 %v1191, %v1191
    %v1518 = vmul.f32 %v1192, %v1192
    %v1519 = vmul.f32 %v1193, %v1193
    %v1520 = vmul.f32 %v1194, %v1194
    %v1521 = vmul.f32 %v1195, %v1195
    %v1522 = vmul.f32 %v1196, %v1196
    %v1523 = vmul.f32 %v1197, %v1197
    %v1524 = vmul.f32 %v1198, %v1198
    %v1525 = vmul.f32 %v1199, %v1199
    %v1526 = vmul.f32 %v1200, %v1200
    %v1527 = vmul.f32 %v1201, %v1201
    %v1528 = vmul.f32 %v1202, %v1202
    %v1529 = vmul.f32 %v1203, %v1203
    %v1530 = vmul.f32 %v1204, %v1204
    %v1531 = vmul.f32 %v1205, %v1205
    %v1532 = vmul.f32 %v1206, %v1206
    %v1533 = vmul.f32 %v1207, %v1207
    %v1534 = vmul.f32 %v1208, %v1208
    %v1535 = vmul.f32 %v1209, %v1209
    %v1536 = vmul.f32 %v1210, %v1210
    %v1537 = vmul.f32 %v1211, %v1211
    %v1538 = vmul.f32 %v1212, %v1212
    %v1539 = vmul.f32 %v1213, %v1213
    %v1540 = vsel %vm1082, %v1476, 0.0
    %v1541 = vsel %vm1082, %v1477, 0.0
    %v1542 = vadd.f32 %v1540, %v1541
    %v1543 = vsel %vm1082, %v1478, 0.0
    %v1544 = vadd.f32 %v1542, %v1543
    %v1545 = vsel %vm1082, %v1479, 0.0
    %v1546 = vadd.f32 %v1544, %v1545
    %v1547 = vsel %vm1082, %v1480, 0.0
    %v1548 = vadd.f32 %v1546, %v1547
    %v1549 = vsel %vm1082, %v1481, 0.0
    %v1550 = vadd.f32 %v1548, %v1549
    %v1551 = vsel %vm1082, %v1482, 0.0
    %v1552 = vadd.f32 %v1550, %v1551
    %v1553 = vsel %vm1082, %v1483, 0.0
    %v1554 = vadd.f32 %v1552, %v1553
    %v1555 = vsel %vm1082, %v1484, 0.0
    %v1556 = vadd.f32 %v1554, %v1555
    %v1557 = vsel %vm1082, %v1485, 0.0
    %v1558 = vadd.f32 %v1556, %v1557
    %v1559 = vsel %vm1082, %v1486, 0.0
    %v1560 = vadd.f32 %v1558, %v1559
    %v1561 = vsel %vm1082, %v1487, 0.0
    %v1562 = vadd.f32 %v1560, %v1561
    %v1563 = vsel %vm1082, %v1488, 0.0
    %v1564 = vadd.f32 %v1562, %v1563
    %v1565 = vsel %vm1082, %v1489, 0.0
    %v1566 = vadd.f32 %v1564, %v1565
    %v1567 = vsel %vm1082, %v1490, 0.0
    %v1568 = vadd.f32 %v1566, %v1567
    %v1569 = vsel %vm1082, %v1491, 0.0
    %v1570 = vadd.f32 %v1568, %v1569
    %v1571 = vsel %vm1082, %v1492, 0.0
    %v1572 = vadd.f32 %v1570, %v1571
    %v1573 = vsel %vm1082, %v1493, 0.0
    %v1574 = vadd.f32 %v1572, %v1573
    %v1575 = vsel %vm1082, %v1494, 0.0
    %v1576 = vadd.f32 %v1574, %v1575
    %v1577 = vsel %vm1082, %v1495, 0.0
    %v1578 = vadd.f32 %v1576, %v1577
    %v1579 = vsel %vm1082, %v1496, 0.0
    %v1580 = vadd.f32 %v1578, %v1579
    %v1581 = vsel %vm1082, %v1497, 0.0
    %v1582 = vadd.f32 %v1580, %v1581
    %v1583 = vsel %vm1082, %v1498, 0.0
    %v1584 = vadd.f32 %v1582, %v1583
    %v1585 = vsel %vm1082, %v1499, 0.0
    %v1586 = vadd.f32 %v1584, %v1585
    %v1587 = vsel %vm1082, %v1500, 0.0
    %v1588 = vadd.f32 %v1586, %v1587
    %v1589 = vsel %vm1082, %v1501, 0.0
    %v1590 = vadd.f32 %v1588, %v1589
    %v1591 = vsel %vm1082, %v1502, 0.0
    %v1592 = vadd.f32 %v1590, %v1591
    %v1593 = vsel %vm1082, %v1503, 0.0
    %v1594 = vadd.f32 %v1592, %v1593
    %v1595 = vsel %vm1082, %v1504, 0.0
    %v1596 = vadd.f32 %v1594, %v1595
    %v1597 = vsel %vm1082, %v1505, 0.0
    %v1598 = vadd.f32 %v1596, %v1597
    %v1599 = vsel %vm1082, %v1506, 0.0
    %v1600 = vadd.f32 %v1598, %v1599
    %v1601 = vsel %vm1082, %v1507, 0.0
    %v1602 = vadd.f32 %v1600, %v1601
    %v1603 = vsel %vm1082, %v1508, 0.0
    %v1604 = vadd.f32 %v1602, %v1603
    %v1605 = vsel %vm1082, %v1509, 0.0
    %v1606 = vadd.f32 %v1604, %v1605
    %v1607 = vsel %vm1082, %v1510, 0.0
    %v1608 = vadd.f32 %v1606, %v1607
    %v1609 = vsel %vm1082, %v1511, 0.0
    %v1610 = vadd.f32 %v1608, %v1609
    %v1611 = vsel %vm1082, %v1512, 0.0
    %v1612 = vadd.f32 %v1610, %v1611
    %v1613 = vsel %vm1082, %v1513, 0.0
    %v1614 = vadd.f32 %v1612, %v1613
    %v1615 = vsel %vm1082, %v1514, 0.0
    %v1616 = vadd.f32 %v1614, %v1615
    %v1617 = vsel %vm1082, %v1515, 0.0
    %v1618 = vadd.f32 %v1616, %v1617
    %v1619 = vsel %vm1082, %v1516, 0.0
    %v1620 = vadd.f32 %v1618, %v1619
    %v1621 = vsel %vm1082, %v1517, 0.0
    %v1622 = vadd.f32 %v1620, %v1621
    %v1623 = vsel %vm1082, %v1518, 0.0
    %v1624 = vadd.f32 %v1622, %v1623
    %v1625 = vsel %vm1082, %v1519, 0.0
    %v1626 = vadd.f32 %v1624, %v1625
    %v1627 = vsel %vm1082, %v1520, 0.0
    %v1628 = vadd.f32 %v1626, %v1627
    %v1629 = vsel %vm1082, %v1521, 0.0
    %v1630 = vadd.f32 %v1628, %v1629
    %v1631 = vsel %vm1082, %v1522, 0.0
    %v1632 = vadd.f32 %v1630, %v1631
    %v1633 = vsel %vm1082, %v1523, 0.0
    %v1634 = vadd.f32 %v1632, %v1633
    %v1635 = vsel %vm1082, %v1524, 0.0
    %v1636 = vadd.f32 %v1634, %v1635
    %v1637 = vsel %vm1082, %v1525, 0.0
    %v1638 = vadd.f32 %v1636, %v1637
    %v1639 = vsel %vm1082, %v1526, 0.0
    %v1640 = vadd.f32 %v1638, %v1639
    %v1641 = vsel %vm1082, %v1527, 0.0
    %v1642 = vadd.f32 %v1640, %v1641
    %v1643 = vsel %vm1082, %v1528, 0.0
    %v1644 = vadd.f32 %v1642, %v1643
    %v1645 = vsel %vm1082, %v1529, 0.0
    %v1646 = vadd.f32 %v1644, %v1645
    %v1647 = vsel %vm1082, %v1530, 0.0
    %v1648 = vadd.f32 %v1646, %v1647
    %v1649 = vsel %vm1082, %v1531, 0.0
    %v1650 = vadd.f32 %v1648, %v1649
    %v1651 = vsel %vm1082, %v1532, 0.0
    %v1652 = vadd.f32 %v1650, %v1651
    %v1653 = vsel %vm1082, %v1533, 0.0
    %v1654 = vadd.f32 %v1652, %v1653
    %v1655 = vsel %vm1082, %v1534, 0.0
    %v1656 = vadd.f32 %v1654, %v1655
    %v1657 = vsel %vm1082, %v1535, 0.0
    %v1658 = vadd.f32 %v1656, %v1657
    %v1659 = vsel %vm1082, %v1536, 0.0
    %v1660 = vadd.f32 %v1658, %v1659
    %v1661 = vsel %vm1082, %v1537, 0.0
    %v1662 = vadd.f32 %v1660, %v1661
    %v1663 = vsel %vm1082, %v1538, 0.0
    %v1664 = vadd.f32 %v1662, %v1663
    %v1665 = vsel %vm1082, %v1539, 0.0
    %v1666 = vadd.f32 %v1664, %v1665
    %v1667 = vrot.slane %v1666, 4
    %v1668 = vadd.f32 %v1666, %v1667
    %v1669 = vrot.slane %v1668, 2
    %v1670 = vadd.f32 %v1668, %v1669
    %v1671 = vrot.slane %v1670, 1
    %v1672 = vadd.f32 %v1670, %v1671
    %1673 = vst.msk [vmem:[%s3] sm:$0xff] %vm1082, %v1475
    %1674 = vst.msk [vmem:[%s4] sm:$0xff] %vm1082, %v1672
  $region17: #{resnet_generator_forward.36} parent=0 // pred_fallthru
    _
  // Predicated region
  $region18: #{resnet_generator_forward.36} parent=0 // pred_check
    _
  $region19: #{resnet_generator_forward.36} parent=0 // pred_check_branch
    %1676 = sbr.rel (0) target = $region21
  $region20: #{resnet_generator_forward.36} parent=0 // pred_region
    _
  $region21: #{resnet_generator_forward.36} parent=0 // pred_fallthru
    _
  // Predicated region
  $region22: #{resnet_generator_forward.36} parent=0 // pred_check
    _
  $region23: #{resnet_generator_forward.36} parent=0 // pred_check_branch
    %1678 = sbr.rel (0) target = $region25
  $region24: #{resnet_generator_forward.36} parent=0 // pred_region
    _
  $region25: #{resnet_generator_forward.36} parent=0 // pred_fallthru
    _
  // Predicated region
  $region26: #{resnet_generator_forward.36} parent=0 // pred_check
    _
  $region27: #{resnet_generator_forward.36} parent=0 // pred_check_branch
    %1680 = sbr.rel (0) target = $region29
  $region28: #{resnet_generator_forward.36} parent=0 // pred_region
    _
  $region29: #{resnet_generator_forward.36} parent=0 // pred_fallthru
    _
  // Predicated region
  $region30: #{resnet_generator_forward.36} parent=0 // pred_check
    _
  $region31: #{resnet_generator_forward.36} parent=0 // pred_check_branch
    %1682 = sbr.rel (0) target = $region33
  $region32: #{resnet_generator_forward.36} parent=0 // pred_region
    _
  $region33: #{resnet_generator_forward.36} parent=0 // pred_fallthru
    _
  // Predicated region
  $region34: #{resnet_generator_forward.36} parent=0 // pred_check
    _
  $region35: #{resnet_generator_forward.36} parent=0 // pred_check_branch
    %1684 = sbr.rel (0) target = $region37
  $region36: #{resnet_generator_forward.36} parent=0 // pred_region
    _
  $region37: #{resnet_generator_forward.36} parent=0 // pred_fallthru
    _
  // Predicated region
  $region38: #{resnet_generator_forward.36} parent=0 // pred_check
    _
  $region39: #{resnet_generator_forward.36} parent=0 // pred_check_branch
    %1686 = sbr.rel (0) target = $region41
  $region40: #{resnet_generator_forward.36} parent=0 // pred_region
    _
  $region41: #{resnet_generator_forward.36} parent=0 // pred_fallthru
    _

// kernel: resnet_generator_forward.38
$region0: #{resnet_generator_forward.38}
  #allocation0 [shape = 'u32[]', space=smem, size = 0x4, offset = 0x4, fixed_abs, tag = 'smem constant byte address 0x4 - core index']
  #allocation1 [shape = 'u32[72,128]{1,0:T(1,128)}', space=vmem, size = 0x9000, scoped, tag = 'internal scratch']
  #allocation2 [shape = 'f32[128,16]{1,0:T(8,128)}', space=vmem, size = 0x10000, scoped, tag = 'scratch operand']
  %s0 = inlined_call_operand.vmem [shape: bf16[128,72], index: 0, kind: input, shape index: {}]
  %s1 = inlined_call_operand.vmem [shape: bf16[72,16], index: 1, kind: input, shape index: {}]
  %s2 = inlined_call_operand.vmem [shape: bf16[128,16], index: 2, kind: output, shape index: {0}]
  %s3 = inlined_call_operand.vmem [shape: f32[1,8,16], index: 3, kind: output, shape index: {1}]
  %s4 = inlined_call_operand.vmem [shape: f32[1,8,16], index: 4, kind: output, shape index: {2}]
  %5 = xla_tuple %s2, %s3, %s4
  %s6 = sld [smem:[#allocation0]]
  $region42: #{resnet_generator_forward.38} parent=0
    _
  %s8 = ssub.s32 1, %s6
  %s9 = scalar_select 0, %s8, %s6
  // Predicated region
  $region2: #{resnet_generator_forward.38} parent=0 // pred_check
    _
  $region3: #{resnet_generator_forward.38} parent=0 // pred_check_branch
    %11 = sbr.rel (0) target = $region5
  $region4: #{resnet_generator_forward.38} parent=0 // pred_region
    _
  $region5: #{resnet_generator_forward.38} parent=0 // pred_fallthru
    _
  // Predicated region
  $region6: #{resnet_generator_forward.38} parent=0 // pred_check
    _
  $region7: #{resnet_generator_forward.38} parent=0 // pred_check_branch
    %13 = sbr.rel (0) target = $region9
  $region8: #{resnet_generator_forward.38} parent=0 // pred_region
    _
  $region9: #{resnet_generator_forward.38} parent=0 // pred_fallthru
    _
  %p15 = scmp.eq.s32.totalorder 0, 0
  // Predicated region
  $region10: #{resnet_generator_forward.38} parent=0 // pred_check
    %p16 = pneg %p15
  $region11: #{resnet_generator_forward.38} parent=0 // pred_check_branch
    %18 = sbr.rel (%p16) target = $region13
  $region12: #{resnet_generator_forward.38} parent=0 // pred_region
    %vm19 = vcmask 130048
    %20 = vst.msk [vmem:[#allocation2] sm:$0xff] %vm19, 0.0
    %21 = vst.msk [vmem:[#allocation2 + $0x8] sm:$0xff] %vm19, 0.0
    %22 = vst.msk [vmem:[#allocation2 + $0x10] sm:$0xff] %vm19, 0.0
    %23 = vst.msk [vmem:[#allocation2 + $0x18] sm:$0xff] %vm19, 0.0
    %24 = vst.msk [vmem:[#allocation2 + $0x20] sm:$0xff] %vm19, 0.0
    %25 = vst.msk [vmem:[#allocation2 + $0x28] sm:$0xff] %vm19, 0.0
    %26 = vst.msk [vmem:[#allocation2 + $0x30] sm:$0xff] %vm19, 0.0
    %27 = vst.msk [vmem:[#allocation2 + $0x38] sm:$0xff] %vm19, 0.0
    %28 = vst.msk [vmem:[#allocation2 + $0x40] sm:$0xff] %vm19, 0.0
    %29 = vst.msk [vmem:[#allocation2 + $0x48] sm:$0xff] %vm19, 0.0
    %30 = vst.msk [vmem:[#allocation2 + $0x50] sm:$0xff] %vm19, 0.0
    %31 = vst.msk [vmem:[#allocation2 + $0x58] sm:$0xff] %vm19, 0.0
    %32 = vst.msk [vmem:[#allocation2 + $0x60] sm:$0xff] %vm19, 0.0
    %33 = vst.msk [vmem:[#allocation2 + $0x68] sm:$0xff] %vm19, 0.0
    %34 = vst.msk [vmem:[#allocation2 + $0x70] sm:$0xff] %vm19, 0.0
    %35 = vst.msk [vmem:[#allocation2 + $0x78] sm:$0xff] %vm19, 0.0
  $region13: #{resnet_generator_forward.38} parent=0 // pred_fallthru
    _
  %v36 = vld [vmem:[#allocation2] sm:$0xff]
  %v37 = vld [vmem:[#allocation2 + $0x8] sm:$0xff]
  %v38 = vld [vmem:[#allocation2 + $0x10] sm:$0xff]
  %v39 = vld [vmem:[#allocation2 + $0x18] sm:$0xff]
  %v40 = vld [vmem:[#allocation2 + $0x20] sm:$0xff]
  %v41 = vld [vmem:[#allocation2 + $0x28] sm:$0xff]
  %v42 = vld [vmem:[#allocation2 + $0x30] sm:$0xff]
  %v43 = vld [vmem:[#allocation2 + $0x38] sm:$0xff]
  %v44 = vld [vmem:[#allocation2 + $0x40] sm:$0xff]
  %v45 = vld [vmem:[#allocation2 + $0x48] sm:$0xff]
  %v46 = vld [vmem:[#allocation2 + $0x50] sm:$0xff]
  %v47 = vld [vmem:[#allocation2 + $0x58] sm:$0xff]
  %v48 = vld [vmem:[#allocation2 + $0x60] sm:$0xff]
  %v49 = vld [vmem:[#allocation2 + $0x68] sm:$0xff]
  %v50 = vld [vmem:[#allocation2 + $0x70] sm:$0xff]
  %v51 = vld [vmem:[#allocation2 + $0x78] sm:$0xff]
  %v52 = vld [vmem:[%s0] sm:$0xf]
  %v53 = vld [vmem:[%s0 + $0x4] sm:$0xf]
  %v54 = vld [vmem:[%s0 + $0x8] sm:$0xf]
  %v55 = vld [vmem:[%s0 + $0xc] sm:$0xf]
  %v56 = vld [vmem:[%s0 + $0x10] sm:$0xf]
  %v57 = vld [vmem:[%s0 + $0x14] sm:$0xf]
  %v58 = vld [vmem:[%s0 + $0x18] sm:$0xf]
  %v59 = vld [vmem:[%s0 + $0x1c] sm:$0xf]
  %v60 = vld [vmem:[%s0 + $0x20] sm:$0xf]
  %v61 = vld [vmem:[%s0 + $0x24] sm:$0xf]
  %v62 = vld [vmem:[%s0 + $0x28] sm:$0xf]
  %v63 = vld [vmem:[%s0 + $0x2c] sm:$0xf]
  %v64 = vld [vmem:[%s0 + $0x30] sm:$0xf]
  %v65 = vld [vmem:[%s0 + $0x34] sm:$0xf]
  %v66 = vld [vmem:[%s0 + $0x38] sm:$0xf]
  %v67 = vld [vmem:[%s0 + $0x3c] sm:$0xf]
  %v68 = vld [vmem:[%s1] sm:$0xf]
  %v69 = vld [vmem:[%s1 + $0x4] sm:$0xf]
  %v70 = vld [vmem:[%s1 + $0x8] sm:$0xf]
  %v71 = vld [vmem:[%s1 + $0xc] sm:$0xf]
  %v72 = vld [vmem:[%s1 + $0x10] sm:$0xf]
  %v73 = vld [vmem:[%s1 + $0x14] sm:$0xf]
  %v74 = vld [vmem:[%s1 + $0x18] sm:$0xf]
  %v75 = vld [vmem:[%s1 + $0x1c] sm:$0xf]
  %v76 = vld [vmem:[%s1 + $0x20] sm:$0xf]
  %v93 = vunpack.c.l.b16 %v52
  %v94 = vunpack.c.l.b16 %v53
  %v95 = vunpack.c.l.b16 %v54
  %v96 = vunpack.c.l.b16 %v55
  %v97 = vunpack.c.l.b16 %v56
  %v98 = vunpack.c.l.b16 %v57
  %v99 = vunpack.c.l.b16 %v58
  %v100 = vunpack.c.l.b16 %v59
  %v101 = vunpack.c.l.b16 %v60
  %v102 = vunpack.c.l.b16 %v61
  %v103 = vunpack.c.l.b16 %v62
  %v104 = vunpack.c.l.b16 %v63
  %v105 = vunpack.c.l.b16 %v64
  %v106 = vunpack.c.l.b16 %v65
  %v107 = vunpack.c.l.b16 %v66
  %v108 = vunpack.c.l.b16 %v67
  %v109 = vpack.c.b16 %v94, %v93
  %v110 = vpack.c.b16 %v96, %v95
  %v111 = vpack.c.b16 %v98, %v97
  %v112 = vpack.c.b16 %v100, %v99
  %v113 = vpack.c.b16 %v102, %v101
  %v114 = vpack.c.b16 %v104, %v103
  %v115 = vpack.c.b16 %v106, %v105
  %v116 = vpack.c.b16 %v108, %v107
  %v126 = vunpack.c.l.b16 %v68
  %v127 = vunpack.c.l.b16 %v69
  %v128 = vunpack.c.l.b16 %v70
  %v129 = vunpack.c.l.b16 %v71
  %v130 = vunpack.c.l.b16 %v72
  %v131 = vunpack.c.l.b16 %v73
  %v132 = vunpack.c.l.b16 %v74
  %v133 = vunpack.c.l.b16 %v75
  %v134 = vunpack.c.l.b16 %v76
  %v135 = vpack.c.b16 %v127, %v126
  %v136 = vpack.c.b16 %v129, %v128
  %v137 = vpack.c.b16 %v131, %v130
  %v138 = vpack.c.b16 %v133, %v132
  %v139 = vpack.c.b16 %v134, %v134
  %vm144 = vcmask 588800
  %v146 = vsel %vm144, %v109, 0
  %v149 = vsel %vm144, %v110, 0
  %v152 = vsel %vm144, %v111, 0
  %v155 = vsel %vm144, %v112, 0
  %v158 = vsel %vm144, %v113, 0
  %v161 = vsel %vm144, %v114, 0
  %v164 = vsel %vm144, %v115, 0
  %v167 = vsel %vm144, %v116, 0
  %vm169 = vcmask 1043456
  %v171 = vsel %vm169, %v139, 0
  %173 = vmatpush.bf16.msra.mxu0 0
  %174 = vmatpush.bf16.msra.mxu0 0
  %175 = vmatpush.bf16.msra.mxu0 0
  %176 = vmatpush.bf16.msra.mxu0 %v171
  %177 = vmatpush.bf16.msra.mxu0 %v138
  %178 = vmatpush.bf16.msra.mxu0 %v137
  %179 = vmatpush.bf16.msra.mxu0 %v136
  %180 = vmatpush.bf16.msra.mxu0 %v135
  %181 = vmatmul.bf16.gmra.mxu0 %v146
  %v182 = vpop.f32.mrf.mxu0
  %v183 = vadd.f32 0.0, %v182
  %v184 = vpop.f32.mrf.mxu0
  %v185 = vadd.f32 0.0, %v184
  %186 = vmatmul.bf16.gmra.mxu0 %v149
  %v187 = vpop.f32.mrf.mxu0
  %v188 = vadd.f32 0.0, %v187
  %v189 = vpop.f32.mrf.mxu0
  %v190 = vadd.f32 0.0, %v189
  %191 = vmatmul.bf16.gmra.mxu0 %v152
  %v192 = vpop.f32.mrf.mxu0
  %v193 = vadd.f32 0.0, %v192
  %v194 = vpop.f32.mrf.mxu0
  %v195 = vadd.f32 0.0, %v194
  %196 = vmatmul.bf16.gmra.mxu0 %v155
  %v197 = vpop.f32.mrf.mxu0
  %v198 = vadd.f32 0.0, %v197
  %v199 = vpop.f32.mrf.mxu0
  %v200 = vadd.f32 0.0, %v199
  %201 = vmatmul.bf16.gmra.mxu0 %v158
  %v202 = vpop.f32.mrf.mxu0
  %v203 = vadd.f32 0.0, %v202
  %v204 = vpop.f32.mrf.mxu0
  %v205 = vadd.f32 0.0, %v204
  %206 = vmatmul.bf16.gmra.mxu0 %v161
  %v207 = vpop.f32.mrf.mxu0
  %v208 = vadd.f32 0.0, %v207
  %v209 = vpop.f32.mrf.mxu0
  %v210 = vadd.f32 0.0, %v209
  %211 = vmatmul.bf16.gmra.mxu0 %v164
  %v212 = vpop.f32.mrf.mxu0
  %v213 = vadd.f32 0.0, %v212
  %v214 = vpop.f32.mrf.mxu0
  %v215 = vadd.f32 0.0, %v214
  %216 = vmatmul.bf16.gmra.mxu0 %v167
  %v217 = vpop.f32.mrf.mxu0
  %v218 = vadd.f32 0.0, %v217
  %v219 = vpop.f32.mrf.mxu0
  %v220 = vadd.f32 0.0, %v219
  %221 = vdwg.mxu0
  %v222 = vadd.f32 %v36, %v183
  %v223 = vadd.f32 %v37, %v185
  %v224 = vadd.f32 %v38, %v188
  %v225 = vadd.f32 %v39, %v190
  %v226 = vadd.f32 %v40, %v193
  %v227 = vadd.f32 %v41, %v195
  %v228 = vadd.f32 %v42, %v198
  %v229 = vadd.f32 %v43, %v200
  %v230 = vadd.f32 %v44, %v203
  %v231 = vadd.f32 %v45, %v205
  %v232 = vadd.f32 %v46, %v208
  %v233 = vadd.f32 %v47, %v210
  %v234 = vadd.f32 %v48, %v213
  %v235 = vadd.f32 %v49, %v215
  %v236 = vadd.f32 %v50, %v218
  %v237 = vadd.f32 %v51, %v220
  %vm238 = vcmask 130048
  %239 = vst.msk [vmem:[#allocation2] sm:$0xff] %vm238, %v222
  %240 = vst.msk [vmem:[#allocation2 + $0x8] sm:$0xff] %vm238, %v223
  %241 = vst.msk [vmem:[#allocation2 + $0x10] sm:$0xff] %vm238, %v224
  %242 = vst.msk [vmem:[#allocation2 + $0x18] sm:$0xff] %vm238, %v225
  %243 = vst.msk [vmem:[#allocation2 + $0x20] sm:$0xff] %vm238, %v226
  %244 = vst.msk [vmem:[#allocation2 + $0x28] sm:$0xff] %vm238, %v227
  %245 = vst.msk [vmem:[#allocation2 + $0x30] sm:$0xff] %vm238, %v228
  %246 = vst.msk [vmem:[#allocation2 + $0x38] sm:$0xff] %vm238, %v229
  %247 = vst.msk [vmem:[#allocation2 + $0x40] sm:$0xff] %vm238, %v230
  %248 = vst.msk [vmem:[#allocation2 + $0x48] sm:$0xff] %vm238, %v231
  %249 = vst.msk [vmem:[#allocation2 + $0x50] sm:$0xff] %vm238, %v232
  %250 = vst.msk [vmem:[#allocation2 + $0x58] sm:$0xff] %vm238, %v233
  %251 = vst.msk [vmem:[#allocation2 + $0x60] sm:$0xff] %vm238, %v234
  %252 = vst.msk [vmem:[#allocation2 + $0x68] sm:$0xff] %vm238, %v235
  %253 = vst.msk [vmem:[#allocation2 + $0x70] sm:$0xff] %vm238, %v236
  %254 = vst.msk [vmem:[#allocation2 + $0x78] sm:$0xff] %vm238, %v237
  // Predicated region
  $region14: #{resnet_generator_forward.38} parent=0 // pred_check
    %p255 = pneg %p15
  $region15: #{resnet_generator_forward.38} parent=0 // pred_check_branch
    %257 = sbr.rel (%p255) target = $region17
  $region16: #{resnet_generator_forward.38} parent=0 // pred_region
    %v258 = vld [vmem:[#allocation2] sm:$0xff]
    %v259 = vld [vmem:[#allocation2 + $0x8] sm:$0xff]
    %v260 = vld [vmem:[#allocation2 + $0x10] sm:$0xff]
    %v261 = vld [vmem:[#allocation2 + $0x18] sm:$0xff]
    %v262 = vld [vmem:[#allocation2 + $0x20] sm:$0xff]
    %v263 = vld [vmem:[#allocation2 + $0x28] sm:$0xff]
    %v264 = vld [vmem:[#allocation2 + $0x30] sm:$0xff]
    %v265 = vld [vmem:[#allocation2 + $0x38] sm:$0xff]
    %v266 = vld [vmem:[#allocation2 + $0x40] sm:$0xff]
    %v267 = vld [vmem:[#allocation2 + $0x48] sm:$0xff]
    %v268 = vld [vmem:[#allocation2 + $0x50] sm:$0xff]
    %v269 = vld [vmem:[#allocation2 + $0x58] sm:$0xff]
    %v270 = vld [vmem:[#allocation2 + $0x60] sm:$0xff]
    %v271 = vld [vmem:[#allocation2 + $0x68] sm:$0xff]
    %v272 = vld [vmem:[#allocation2 + $0x70] sm:$0xff]
    %v273 = vld [vmem:[#allocation2 + $0x78] sm:$0xff]
    %v274 = vpack.c.bf16 %v258, %v258
    %v275 = vpack.c.bf16 %v259, %v259
    %v276 = vpack.c.bf16 %v260, %v260
    %v277 = vpack.c.bf16 %v261, %v261
    %v278 = vpack.c.bf16 %v262, %v262
    %v279 = vpack.c.bf16 %v263, %v263
    %v280 = vpack.c.bf16 %v264, %v264
    %v281 = vpack.c.bf16 %v265, %v265
    %v282 = vpack.c.bf16 %v266, %v266
    %v283 = vpack.c.bf16 %v267, %v267
    %v284 = vpack.c.bf16 %v268, %v268
    %v285 = vpack.c.bf16 %v269, %v269
    %v286 = vpack.c.bf16 %v270, %v270
    %v287 = vpack.c.bf16 %v271, %v271
    %v288 = vpack.c.bf16 %v272, %v272
    %v289 = vpack.c.bf16 %v273, %v273
    %vm290 = vcmask 125952
    %291 = vst.msk [vmem:[%s2] sm:$0xf] %vm290, %v274
    %292 = vst.msk [vmem:[%s2 + $0x4] sm:$0xf] %vm290, %v275
    %293 = vst.msk [vmem:[%s2 + $0x8] sm:$0xf] %vm290, %v276
    %294 = vst.msk [vmem:[%s2 + $0xc] sm:$0xf] %vm290, %v277
    %295 = vst.msk [vmem:[%s2 + $0x10] sm:$0xf] %vm290, %v278
    %296 = vst.msk [vmem:[%s2 + $0x14] sm:$0xf] %vm290, %v279
    %297 = vst.msk [vmem:[%s2 + $0x18] sm:$0xf] %vm290, %v280
    %298 = vst.msk [vmem:[%s2 + $0x1c] sm:$0xf] %vm290, %v281
    %299 = vst.msk [vmem:[%s2 + $0x20] sm:$0xf] %vm290, %v282
    %300 = vst.msk [vmem:[%s2 + $0x24] sm:$0xf] %vm290, %v283
    %301 = vst.msk [vmem:[%s2 + $0x28] sm:$0xf] %vm290, %v284
    %302 = vst.msk [vmem:[%s2 + $0x2c] sm:$0xf] %vm290, %v285
    %303 = vst.msk [vmem:[%s2 + $0x30] sm:$0xf] %vm290, %v286
    %304 = vst.msk [vmem:[%s2 + $0x34] sm:$0xf] %vm290, %v287
    %305 = vst.msk [vmem:[%s2 + $0x38] sm:$0xf] %vm290, %v288
    %306 = vst.msk [vmem:[%s2 + $0x3c] sm:$0xf] %vm290, %v289
    %v307 = vsel %vm238, %v258, 0.0
    %v308 = vsel %vm238, %v259, 0.0
    %v309 = vadd.f32 %v307, %v308
    %v310 = vsel %vm238, %v260, 0.0
    %v311 = vadd.f32 %v309, %v310
    %v312 = vsel %vm238, %v261, 0.0
    %v313 = vadd.f32 %v311, %v312
    %v314 = vsel %vm238, %v262, 0.0
    %v315 = vadd.f32 %v313, %v314
    %v316 = vsel %vm238, %v263, 0.0
    %v317 = vadd.f32 %v315, %v316
    %v318 = vsel %vm238, %v264, 0.0
    %v319 = vadd.f32 %v317, %v318
    %v320 = vsel %vm238, %v265, 0.0
    %v321 = vadd.f32 %v319, %v320
    %v322 = vsel %vm238, %v266, 0.0
    %v323 = vadd.f32 %v321, %v322
    %v324 = vsel %vm238, %v267, 0.0
    %v325 = vadd.f32 %v323, %v324
    %v326 = vsel %vm238, %v268, 0.0
    %v327 = vadd.f32 %v325, %v326
    %v328 = vsel %vm238, %v269, 0.0
    %v329 = vadd.f32 %v327, %v328
    %v330 = vsel %vm238, %v270, 0.0
    %v331 = vadd.f32 %v329, %v330
    %v332 = vsel %vm238, %v271, 0.0
    %v333 = vadd.f32 %v331, %v332
    %v334 = vsel %vm238, %v272, 0.0
    %v335 = vadd.f32 %v333, %v334
    %v336 = vsel %vm238, %v273, 0.0
    %v337 = vadd.f32 %v335, %v336
    %v338 = vrot.slane %v337, 4
    %v339 = vadd.f32 %v337, %v338
    %v340 = vrot.slane %v339, 2
    %v341 = vadd.f32 %v339, %v340
    %v342 = vrot.slane %v341, 1
    %v343 = vadd.f32 %v341, %v342
    %v344 = vmul.f32 %v258, %v258
    %v345 = vmul.f32 %v259, %v259
    %v346 = vmul.f32 %v260, %v260
    %v347 = vmul.f32 %v261, %v261
    %v348 = vmul.f32 %v262, %v262
    %v349 = vmul.f32 %v263, %v263
    %v350 = vmul.f32 %v264, %v264
    %v351 = vmul.f32 %v265, %v265
    %v352 = vmul.f32 %v266, %v266
    %v353 = vmul.f32 %v267, %v267
    %v354 = vmul.f32 %v268, %v268
    %v355 = vmul.f32 %v269, %v269
    %v356 = vmul.f32 %v270, %v270
    %v357 = vmul.f32 %v271, %v271
    %v358 = vmul.f32 %v272, %v272
    %v359 = vmul.f32 %v273, %v273
    %v360 = vsel %vm238, %v344, 0.0
    %v361 = vsel %vm238, %v345, 0.0
    %v362 = vadd.f32 %v360, %v361
    %v363 = vsel %vm238, %v346, 0.0
    %v364 = vadd.f32 %v362, %v363
    %v365 = vsel %vm238, %v347, 0.0
    %v366 = vadd.f32 %v364, %v365
    %v367 = vsel %vm238, %v348, 0.0
    %v368 = vadd.f32 %v366, %v367
    %v369 = vsel %vm238, %v349, 0.0
    %v370 = vadd.f32 %v368, %v369
    %v371 = vsel %vm238, %v350, 0.0
    %v372 = vadd.f32 %v370, %v371
    %v373 = vsel %vm238, %v351, 0.0
    %v374 = vadd.f32 %v372, %v373
    %v375 = vsel %vm238, %v352, 0.0
    %v376 = vadd.f32 %v374, %v375
    %v377 = vsel %vm238, %v353, 0.0
    %v378 = vadd.f32 %v376, %v377
    %v379 = vsel %vm238, %v354, 0.0
    %v380 = vadd.f32 %v378, %v379
    %v381 = vsel %vm238, %v355, 0.0
    %v382 = vadd.f32 %v380, %v381
    %v383 = vsel %vm238, %v356, 0.0
    %v384 = vadd.f32 %v382, %v383
    %v385 = vsel %vm238, %v357, 0.0
    %v386 = vadd.f32 %v384, %v385
    %v387 = vsel %vm238, %v358, 0.0
    %v388 = vadd.f32 %v386, %v387
    %v389 = vsel %vm238, %v359, 0.0
    %v390 = vadd.f32 %v388, %v389
    %v391 = vrot.slane %v390, 4
    %v392 = vadd.f32 %v390, %v391
    %v393 = vrot.slane %v392, 2
    %v394 = vadd.f32 %v392, %v393
    %v395 = vrot.slane %v394, 1
    %v396 = vadd.f32 %v394, %v395
    %397 = vst.msk [vmem:[%s3] sm:$0xff] %vm238, %v343
    %398 = vst.msk [vmem:[%s4] sm:$0xff] %vm238, %v396
  $region17: #{resnet_generator_forward.38} parent=0 // pred_fallthru
    _
  // Predicated region
  $region18: #{resnet_generator_forward.38} parent=0 // pred_check
    _
  $region19: #{resnet_generator_forward.38} parent=0 // pred_check_branch
    %400 = sbr.rel (0) target = $region21
  $region20: #{resnet_generator_forward.38} parent=0 // pred_region
    _
  $region21: #{resnet_generator_forward.38} parent=0 // pred_fallthru
    _
  // Predicated region
  $region22: #{resnet_generator_forward.38} parent=0 // pred_check
    _
  $region23: #{resnet_generator_forward.38} parent=0 // pred_check_branch
    %402 = sbr.rel (0) target = $region25
  $region24: #{resnet_generator_forward.38} parent=0 // pred_region
    _
  $region25: #{resnet_generator_forward.38} parent=0 // pred_fallthru
    _
  // Predicated region
  $region26: #{resnet_generator_forward.38} parent=0 // pred_check
    _
  $region27: #{resnet_generator_forward.38} parent=0 // pred_check_branch
    %404 = sbr.rel (0) target = $region29
  $region28: #{resnet_generator_forward.38} parent=0 // pred_region
    _
  $region29: #{resnet_generator_forward.38} parent=0 // pred_fallthru
    _
  // Predicated region
  $region30: #{resnet_generator_forward.38} parent=0 // pred_check
    _
  $region31: #{resnet_generator_forward.38} parent=0 // pred_check_branch
    %406 = sbr.rel (0) target = $region33
  $region32: #{resnet_generator_forward.38} parent=0 // pred_region
    _
  $region33: #{resnet_generator_forward.38} parent=0 // pred_fallthru
    _
  // Predicated region
  $region34: #{resnet_generator_forward.38} parent=0 // pred_check
    _
  $region35: #{resnet_generator_forward.38} parent=0 // pred_check_branch
    %408 = sbr.rel (0) target = $region37
  $region36: #{resnet_generator_forward.38} parent=0 // pred_region
    _
  $region37: #{resnet_generator_forward.38} parent=0 // pred_fallthru
    _
  // Predicated region
  $region38: #{resnet_generator_forward.38} parent=0 // pred_check
    _
  $region39: #{resnet_generator_forward.38} parent=0 // pred_check_branch
    %410 = sbr.rel (0) target = $region41
  $region40: #{resnet_generator_forward.38} parent=0 // pred_region
    _
  $region41: #{resnet_generator_forward.38} parent=0 // pred_fallthru
    _

// kernel: resnet_generator_forward.39
$region0: #{resnet_generator_forward.39}
  #allocation0 [shape = 'u32[]', space=smem, size = 0x4, offset = 0x4, fixed_abs, tag = 'smem constant byte address 0x4 - core index']
  #allocation1 [shape = 'u32[72,128]{1,0:T(1,128)}', space=vmem, size = 0x9000, scoped, tag = 'internal scratch']
  %s0 = inlined_call_operand.vmem [shape: bf16[128,16], index: 0, kind: input, shape index: {}]
  %s1 = inlined_call_operand.vmem [shape: f32[1,16], index: 1, kind: input, shape index: {}]
  %s2 = inlined_call_operand.vmem [shape: f32[1,16], index: 2, kind: input, shape index: {}]
  %s3 = inlined_call_operand.vmem [shape: bf16[128,16], index: 3, kind: output, shape index: {}]
  %s4 = sld [smem:[#allocation0]]
  $region22: #{resnet_generator_forward.39} parent=0
    _
  %s6 = ssub.s32 1, %s4
  %s7 = scalar_select 0, %s6, %s4
  // Predicated region
  $region2: #{resnet_generator_forward.39} parent=0 // pred_check
    _
  $region3: #{resnet_generator_forward.39} parent=0 // pred_check_branch
    %9 = sbr.rel (0) target = $region5
  $region4: #{resnet_generator_forward.39} parent=0 // pred_region
    _
  $region5: #{resnet_generator_forward.39} parent=0 // pred_fallthru
    _
  // Predicated region
  $region6: #{resnet_generator_forward.39} parent=0 // pred_check
    _
  $region7: #{resnet_generator_forward.39} parent=0 // pred_check_branch
    %11 = sbr.rel (0) target = $region9
  $region8: #{resnet_generator_forward.39} parent=0 // pred_region
    _
  $region9: #{resnet_generator_forward.39} parent=0 // pred_fallthru
    _
  // Predicated region
  $region10: #{resnet_generator_forward.39} parent=0 // pred_check
    _
  $region11: #{resnet_generator_forward.39} parent=0 // pred_check_branch
    %13 = sbr.rel (0) target = $region13
  $region12: #{resnet_generator_forward.39} parent=0 // pred_region
    _
  $region13: #{resnet_generator_forward.39} parent=0 // pred_fallthru
    _
  %v14 = vld [vmem:[%s0] sm:$0xf]
  %v15 = vld [vmem:[%s0 + $0x4] sm:$0xf]
  %v16 = vld [vmem:[%s0 + $0x8] sm:$0xf]
  %v17 = vld [vmem:[%s0 + $0xc] sm:$0xf]
  %v18 = vld [vmem:[%s0 + $0x10] sm:$0xf]
  %v19 = vld [vmem:[%s0 + $0x14] sm:$0xf]
  %v20 = vld [vmem:[%s0 + $0x18] sm:$0xf]
  %v21 = vld [vmem:[%s0 + $0x1c] sm:$0xf]
  %v22 = vld [vmem:[%s0 + $0x20] sm:$0xf]
  %v23 = vld [vmem:[%s0 + $0x24] sm:$0xf]
  %v24 = vld [vmem:[%s0 + $0x28] sm:$0xf]
  %v25 = vld [vmem:[%s0 + $0x2c] sm:$0xf]
  %v26 = vld [vmem:[%s0 + $0x30] sm:$0xf]
  %v27 = vld [vmem:[%s0 + $0x34] sm:$0xf]
  %v28 = vld [vmem:[%s0 + $0x38] sm:$0xf]
  %v29 = vld [vmem:[%s0 + $0x3c] sm:$0xf]
  %v30 = vunpack.c.l.bf16 %v14
  %v31 = vunpack.c.l.bf16 %v15
  %v32 = vunpack.c.l.bf16 %v16
  %v33 = vunpack.c.l.bf16 %v17
  %v34 = vunpack.c.l.bf16 %v18
  %v35 = vunpack.c.l.bf16 %v19
  %v36 = vunpack.c.l.bf16 %v20
  %v37 = vunpack.c.l.bf16 %v21
  %v38 = vunpack.c.l.bf16 %v22
  %v39 = vunpack.c.l.bf16 %v23
  %v40 = vunpack.c.l.bf16 %v24
  %v41 = vunpack.c.l.bf16 %v25
  %v42 = vunpack.c.l.bf16 %v26
  %v43 = vunpack.c.l.bf16 %v27
  %v44 = vunpack.c.l.bf16 %v28
  %v45 = vunpack.c.l.bf16 %v29
  %v46 = vld [vmem:[%s1] sm:$0x1]
  %v48 = vperm.slane %v46, 0
  %v50 = vmul.f32 %v30, %v48
  %v51 = vmul.f32 %v31, %v48
  %v52 = vmul.f32 %v32, %v48
  %v53 = vmul.f32 %v33, %v48
  %v54 = vmul.f32 %v34, %v48
  %v55 = vmul.f32 %v35, %v48
  %v56 = vmul.f32 %v36, %v48
  %v57 = vmul.f32 %v37, %v48
  %v58 = vmul.f32 %v38, %v48
  %v59 = vmul.f32 %v39, %v48
  %v60 = vmul.f32 %v40, %v48
  %v61 = vmul.f32 %v41, %v48
  %v62 = vmul.f32 %v42, %v48
  %v63 = vmul.f32 %v43, %v48
  %v64 = vmul.f32 %v44, %v48
  %v65 = vmul.f32 %v45, %v48
  %v66 = vld [vmem:[%s2] sm:$0x1]
  %v68 = vperm.slane %v66, 0
  %v70 = vadd.f32 %v50, %v68
  %v71 = vadd.f32 %v51, %v68
  %v72 = vadd.f32 %v52, %v68
  %v73 = vadd.f32 %v53, %v68
  %v74 = vadd.f32 %v54, %v68
  %v75 = vadd.f32 %v55, %v68
  %v76 = vadd.f32 %v56, %v68
  %v77 = vadd.f32 %v57, %v68
  %v78 = vadd.f32 %v58, %v68
  %v79 = vadd.f32 %v59, %v68
  %v80 = vadd.f32 %v60, %v68
  %v81 = vadd.f32 %v61, %v68
  %v82 = vadd.f32 %v62, %v68
  %v83 = vadd.f32 %v63, %v68
  %v84 = vadd.f32 %v64, %v68
  %v85 = vadd.f32 %v65, %v68
  %v86 = vmax.f32 %v70, 0.0
  %v87 = vmax.f32 %v71, 0.0
  %v88 = vmax.f32 %v72, 0.0
  %v89 = vmax.f32 %v73, 0.0
  %v90 = vmax.f32 %v74, 0.0
  %v91 = vmax.f32 %v75, 0.0
  %v92 = vmax.f32 %v76, 0.0
  %v93 = vmax.f32 %v77, 0.0
  %v94 = vmax.f32 %v78, 0.0
  %v95 = vmax.f32 %v79, 0.0
  %v96 = vmax.f32 %v80, 0.0
  %v97 = vmax.f32 %v81, 0.0
  %v98 = vmax.f32 %v82, 0.0
  %v99 = vmax.f32 %v83, 0.0
  %v100 = vmax.f32 %v84, 0.0
  %v101 = vmax.f32 %v85, 0.0
  %v102 = vpack.c.bf16 %v86, %v86
  %v103 = vpack.c.bf16 %v87, %v87
  %v104 = vpack.c.bf16 %v88, %v88
  %v105 = vpack.c.bf16 %v89, %v89
  %v106 = vpack.c.bf16 %v90, %v90
  %v107 = vpack.c.bf16 %v91, %v91
  %v108 = vpack.c.bf16 %v92, %v92
  %v109 = vpack.c.bf16 %v93, %v93
  %v110 = vpack.c.bf16 %v94, %v94
  %v111 = vpack.c.bf16 %v95, %v95
  %v112 = vpack.c.bf16 %v96, %v96
  %v113 = vpack.c.bf16 %v97, %v97
  %v114 = vpack.c.bf16 %v98, %v98
  %v115 = vpack.c.bf16 %v99, %v99
  %v116 = vpack.c.bf16 %v100, %v100
  %v117 = vpack.c.bf16 %v101, %v101
  %vm118 = vcmask 125952
  %119 = vst.msk [vmem:[%s3] sm:$0xf] %vm118, %v102
  %120 = vst.msk [vmem:[%s3 + $0x4] sm:$0xf] %vm118, %v103
  %121 = vst.msk [vmem:[%s3 + $0x8] sm:$0xf] %vm118, %v104
  %122 = vst.msk [vmem:[%s3 + $0xc] sm:$0xf] %vm118, %v105
  %123 = vst.msk [vmem:[%s3 + $0x10] sm:$0xf] %vm118, %v106
  %124 = vst.msk [vmem:[%s3 + $0x14] sm:$0xf] %vm118, %v107
  %125 = vst.msk [vmem:[%s3 + $0x18] sm:$0xf] %vm118, %v108
  %126 = vst.msk [vmem:[%s3 + $0x1c] sm:$0xf] %vm118, %v109
  %127 = vst.msk [vmem:[%s3 + $0x20] sm:$0xf] %vm118, %v110
  %128 = vst.msk [vmem:[%s3 + $0x24] sm:$0xf] %vm118, %v111
  %129 = vst.msk [vmem:[%s3 + $0x28] sm:$0xf] %vm118, %v112
  %130 = vst.msk [vmem:[%s3 + $0x2c] sm:$0xf] %vm118, %v113
  %131 = vst.msk [vmem:[%s3 + $0x30] sm:$0xf] %vm118, %v114
  %132 = vst.msk [vmem:[%s3 + $0x34] sm:$0xf] %vm118, %v115
  %133 = vst.msk [vmem:[%s3 + $0x38] sm:$0xf] %vm118, %v116
  %134 = vst.msk [vmem:[%s3 + $0x3c] sm:$0xf] %vm118, %v117
  // Predicated region
  $region14: #{resnet_generator_forward.39} parent=0 // pred_check
    _
  $region15: #{resnet_generator_forward.39} parent=0 // pred_check_branch
    %136 = sbr.rel (0) target = $region17
  $region16: #{resnet_generator_forward.39} parent=0 // pred_region
    _
  $region17: #{resnet_generator_forward.39} parent=0 // pred_fallthru
    _
  // Predicated region
  $region18: #{resnet_generator_forward.39} parent=0 // pred_check
    _
  $region19: #{resnet_generator_forward.39} parent=0 // pred_check_branch
    %138 = sbr.rel (0) target = $region21
  $region20: #{resnet_generator_forward.39} parent=0 // pred_region
    _
  $region21: #{resnet_generator_forward.39} parent=0 // pred_fallthru
    _

// kernel: resnet_generator_forward.40
$region0: #{resnet_generator_forward.40}
  #allocation0 [shape = 'u32[]', space=smem, size = 0x4, offset = 0x4, fixed_abs, tag = 'smem constant byte address 0x4 - core index']
  #allocation1 [shape = 'u32[72,128]{1,0:T(1,128)}', space=vmem, size = 0x9000, scoped, tag = 'internal scratch']
  #allocation2 [shape = 'f32[32,32]{1,0:T(8,128)}', space=vmem, size = 0x4000, scoped, tag = 'scratch operand']
  %s0 = inlined_call_operand.vmem [shape: bf16[32,144], index: 0, kind: input, shape index: {}]
  %s1 = inlined_call_operand.vmem [shape: bf16[144,32], index: 1, kind: input, shape index: {}]
  %s2 = inlined_call_operand.vmem [shape: bf16[32,32], index: 2, kind: output, shape index: {0}]
  %s3 = inlined_call_operand.vmem [shape: f32[1,8,32], index: 3, kind: output, shape index: {1}]
  %s4 = inlined_call_operand.vmem [shape: f32[1,8,32], index: 4, kind: output, shape index: {2}]
  %5 = xla_tuple %s2, %s3, %s4
  %s6 = sld [smem:[#allocation0]]
  $region42: #{resnet_generator_forward.40} parent=0
    _
  %s8 = ssub.s32 1, %s6
  %s9 = scalar_select 0, %s8, %s6
  // Predicated region
  $region2: #{resnet_generator_forward.40} parent=0 // pred_check
    _
  $region3: #{resnet_generator_forward.40} parent=0 // pred_check_branch
    %11 = sbr.rel (0) target = $region5
  $region4: #{resnet_generator_forward.40} parent=0 // pred_region
    _
  $region5: #{resnet_generator_forward.40} parent=0 // pred_fallthru
    _
  // Predicated region
  $region6: #{resnet_generator_forward.40} parent=0 // pred_check
    _
  $region7: #{resnet_generator_forward.40} parent=0 // pred_check_branch
    %13 = sbr.rel (0) target = $region9
  $region8: #{resnet_generator_forward.40} parent=0 // pred_region
    _
  $region9: #{resnet_generator_forward.40} parent=0 // pred_fallthru
    _
  %p15 = scmp.eq.s32.totalorder 0, 0
  // Predicated region
  $region10: #{resnet_generator_forward.40} parent=0 // pred_check
    %p16 = pneg %p15
  $region11: #{resnet_generator_forward.40} parent=0 // pred_check_branch
    %18 = sbr.rel (%p16) target = $region13
  $region12: #{resnet_generator_forward.40} parent=0 // pred_region
    %vm19 = vcmask 261120
    %20 = vst.msk [vmem:[#allocation2] sm:$0xff] %vm19, 0.0
    %21 = vst.msk [vmem:[#allocation2 + $0x8] sm:$0xff] %vm19, 0.0
    %22 = vst.msk [vmem:[#allocation2 + $0x10] sm:$0xff] %vm19, 0.0
    %23 = vst.msk [vmem:[#allocation2 + $0x18] sm:$0xff] %vm19, 0.0
  $region13: #{resnet_generator_forward.40} parent=0 // pred_fallthru
    _
  %v24 = vld [vmem:[#allocation2] sm:$0xff]
  %v25 = vld [vmem:[#allocation2 + $0x8] sm:$0xff]
  %v26 = vld [vmem:[#allocation2 + $0x10] sm:$0xff]
  %v27 = vld [vmem:[#allocation2 + $0x18] sm:$0xff]
  %v28 = vld [vmem:[%s0] sm:$0xff]
  %v29 = vld [vmem:[%s0 + $0x8] sm:$0xff]
  %v30 = vld [vmem:[%s0 + $0x10] sm:$0xff]
  %v31 = vld [vmem:[%s0 + $0x18] sm:$0xff]
  %v32 = vld [vmem:[%s1] sm:$0xf]
  %v33 = vld [vmem:[%s1 + $0x4] sm:$0xf]
  %v34 = vld [vmem:[%s1 + $0x8] sm:$0xf]
  %v35 = vld [vmem:[%s1 + $0xc] sm:$0xf]
  %v36 = vld [vmem:[%s1 + $0x10] sm:$0xf]
  %v37 = vld [vmem:[%s1 + $0x14] sm:$0xf]
  %v38 = vld [vmem:[%s1 + $0x18] sm:$0xf]
  %v39 = vld [vmem:[%s1 + $0x1c] sm:$0xf]
  %v40 = vld [vmem:[%s1 + $0x20] sm:$0xf]
  %v41 = vld [vmem:[%s1 + $0x24] sm:$0xf]
  %v42 = vld [vmem:[%s1 + $0x28] sm:$0xf]
  %v43 = vld [vmem:[%s1 + $0x2c] sm:$0xf]
  %v44 = vld [vmem:[%s1 + $0x30] sm:$0xf]
  %v45 = vld [vmem:[%s1 + $0x34] sm:$0xf]
  %v46 = vld [vmem:[%s1 + $0x38] sm:$0xf]
  %v47 = vld [vmem:[%s1 + $0x3c] sm:$0xf]
  %v48 = vld [vmem:[%s1 + $0x40] sm:$0xf]
  %v49 = vld [vmem:[%s1 + $0x44] sm:$0xf]
  %v54 = vunpack.c.l.b16 %v28
  %v55 = vunpack.c.h.b16 %v28
  %v56 = vunpack.c.l.b16 %v29
  %v57 = vunpack.c.h.b16 %v29
  %v58 = vunpack.c.l.b16 %v30
  %v59 = vunpack.c.h.b16 %v30
  %v60 = vunpack.c.l.b16 %v31
  %v61 = vunpack.c.h.b16 %v31
  %v62 = vpack.c.b16 %v56, %v54
  %v63 = vpack.c.b16 %v57, %v55
  %v64 = vpack.c.b16 %v60, %v58
  %v65 = vpack.c.b16 %v61, %v59
  %v86 = vunpack.c.l.b16 %v32
  %v87 = vunpack.c.l.b16 %v33
  %v88 = vunpack.c.l.b16 %v34
  %v89 = vunpack.c.l.b16 %v35
  %v90 = vunpack.c.l.b16 %v36
  %v91 = vunpack.c.l.b16 %v37
  %v92 = vunpack.c.l.b16 %v38
  %v93 = vunpack.c.l.b16 %v39
  %v94 = vunpack.c.l.b16 %v40
  %v95 = vunpack.c.l.b16 %v41
  %v96 = vunpack.c.l.b16 %v42
  %v97 = vunpack.c.l.b16 %v43
  %v98 = vunpack.c.l.b16 %v44
  %v99 = vunpack.c.l.b16 %v45
  %v100 = vunpack.c.l.b16 %v46
  %v101 = vunpack.c.l.b16 %v47
  %v102 = vunpack.c.l.b16 %v48
  %v103 = vunpack.c.l.b16 %v49
  %v104 = vpack.c.b16 %v87, %v86
  %v105 = vpack.c.b16 %v89, %v88
  %v106 = vpack.c.b16 %v91, %v90
  %v107 = vpack.c.b16 %v93, %v92
  %v108 = vpack.c.b16 %v95, %v94
  %v109 = vpack.c.b16 %v97, %v96
  %v110 = vpack.c.b16 %v99, %v98
  %v111 = vpack.c.b16 %v101, %v100
  %v112 = vpack.c.b16 %v103, %v102
  %vm122 = vcmask 130048
  %v124 = vsel %vm122, %v63, 0
  %v127 = vsel %vm122, %v65, 0
  %129 = vmatpush.bf16.msra.mxu0 %v111
  %130 = vmatpush.bf16.msra.mxu0 %v110
  %131 = vmatpush.bf16.msra.mxu0 %v109
  %132 = vmatpush.bf16.msra.mxu0 %v108
  %133 = vmatpush.bf16.msra.mxu0 %v107
  %134 = vmatpush.bf16.msra.mxu0 %v106
  %135 = vmatpush.bf16.msra.mxu0 %v105
  %136 = vmatpush.bf16.msra.mxu0 %v104
  %137 = vmatmul.bf16.gmra.mxu0 %v62
  %v138 = vpop.f32.mrf.mxu0
  %v139 = vadd.f32 0.0, %v138
  %v140 = vpop.f32.mrf.mxu0
  %v141 = vadd.f32 0.0, %v140
  %142 = vmatmul.bf16.gmra.mxu0 %v64
  %v143 = vpop.f32.mrf.mxu0
  %v144 = vadd.f32 0.0, %v143
  %v145 = vpop.f32.mrf.mxu0
  %v146 = vadd.f32 0.0, %v145
  %147 = vdwg.mxu0
  %148 = vmatpush.bf16.msra.mxu0 0
  %149 = vmatpush.bf16.msra.mxu0 0
  %150 = vmatpush.bf16.msra.mxu0 0
  %151 = vmatpush.bf16.msra.mxu0 0
  %152 = vmatpush.bf16.msra.mxu0 0
  %153 = vmatpush.bf16.msra.mxu0 0
  %154 = vmatpush.bf16.msra.mxu0 0
  %155 = vmatpush.bf16.msra.mxu0 %v112
  %156 = vmatmul.bf16.gmra.mxu0 %v124
  %v157 = vpop.f32.mrf.mxu0
  %v158 = vadd.f32 %v139, %v157
  %v159 = vpop.f32.mrf.mxu0
  %v160 = vadd.f32 %v141, %v159
  %161 = vmatmul.bf16.gmra.mxu0 %v127
  %v162 = vpop.f32.mrf.mxu0
  %v163 = vadd.f32 %v144, %v162
  %v164 = vpop.f32.mrf.mxu0
  %v165 = vadd.f32 %v146, %v164
  %166 = vdwg.mxu0
  %v167 = vadd.f32 %v24, %v158
  %v168 = vadd.f32 %v25, %v160
  %v169 = vadd.f32 %v26, %v163
  %v170 = vadd.f32 %v27, %v165
  %vm171 = vcmask 261120
  %172 = vst.msk [vmem:[#allocation2] sm:$0xff] %vm171, %v167
  %173 = vst.msk [vmem:[#allocation2 + $0x8] sm:$0xff] %vm171, %v168
  %174 = vst.msk [vmem:[#allocation2 + $0x10] sm:$0xff] %vm171, %v169
  %175 = vst.msk [vmem:[#allocation2 + $0x18] sm:$0xff] %vm171, %v170
  // Predicated region
  $region14: #{resnet_generator_forward.40} parent=0 // pred_check
    %p176 = pneg %p15
  $region15: #{resnet_generator_forward.40} parent=0 // pred_check_branch
    %178 = sbr.rel (%p176) target = $region17
  $region16: #{resnet_generator_forward.40} parent=0 // pred_region
    %v179 = vld [vmem:[#allocation2] sm:$0xff]
    %v180 = vld [vmem:[#allocation2 + $0x8] sm:$0xff]
    %v181 = vld [vmem:[#allocation2 + $0x10] sm:$0xff]
    %v182 = vld [vmem:[#allocation2 + $0x18] sm:$0xff]
    %v183 = vpack.c.bf16 %v179, %v179
    %v184 = vpack.c.bf16 %v180, %v180
    %v185 = vpack.c.bf16 %v181, %v181
    %v186 = vpack.c.bf16 %v182, %v182
    %vm187 = vcmask 257024
    %188 = vst.msk [vmem:[%s2] sm:$0xf] %vm187, %v183
    %189 = vst.msk [vmem:[%s2 + $0x4] sm:$0xf] %vm187, %v184
    %190 = vst.msk [vmem:[%s2 + $0x8] sm:$0xf] %vm187, %v185
    %191 = vst.msk [vmem:[%s2 + $0xc] sm:$0xf] %vm187, %v186
    %v192 = vsel %vm171, %v179, 0.0
    %v193 = vsel %vm171, %v180, 0.0
    %v194 = vadd.f32 %v192, %v193
    %v195 = vsel %vm171, %v181, 0.0
    %v196 = vadd.f32 %v194, %v195
    %v197 = vsel %vm171, %v182, 0.0
    %v198 = vadd.f32 %v196, %v197
    %v199 = vrot.slane %v198, 4
    %v200 = vadd.f32 %v198, %v199
    %v201 = vrot.slane %v200, 2
    %v202 = vadd.f32 %v200, %v201
    %v203 = vrot.slane %v202, 1
    %v204 = vadd.f32 %v202, %v203
    %v205 = vmul.f32 %v179, %v179
    %v206 = vmul.f32 %v180, %v180
    %v207 = vmul.f32 %v181, %v181
    %v208 = vmul.f32 %v182, %v182
    %v209 = vsel %vm171, %v205, 0.0
    %v210 = vsel %vm171, %v206, 0.0
    %v211 = vadd.f32 %v209, %v210
    %v212 = vsel %vm171, %v207, 0.0
    %v213 = vadd.f32 %v211, %v212
    %v214 = vsel %vm171, %v208, 0.0
    %v215 = vadd.f32 %v213, %v214
    %v216 = vrot.slane %v215, 4
    %v217 = vadd.f32 %v215, %v216
    %v218 = vrot.slane %v217, 2
    %v219 = vadd.f32 %v217, %v218
    %v220 = vrot.slane %v219, 1
    %v221 = vadd.f32 %v219, %v220
    %222 = vst.msk [vmem:[%s3] sm:$0xff] %vm171, %v204
    %223 = vst.msk [vmem:[%s4] sm:$0xff] %vm171, %v221
  $region17: #{resnet_generator_forward.40} parent=0 // pred_fallthru
    _
  // Predicated region
  $region18: #{resnet_generator_forward.40} parent=0 // pred_check
    _
  $region19: #{resnet_generator_forward.40} parent=0 // pred_check_branch
    %225 = sbr.rel (0) target = $region21
  $region20: #{resnet_generator_forward.40} parent=0 // pred_region
    _
  $region21: #{resnet_generator_forward.40} parent=0 // pred_fallthru
    _
  // Predicated region
  $region22: #{resnet_generator_forward.40} parent=0 // pred_check
    _
  $region23: #{resnet_generator_forward.40} parent=0 // pred_check_branch
    %227 = sbr.rel (0) target = $region25
  $region24: #{resnet_generator_forward.40} parent=0 // pred_region
    _
  $region25: #{resnet_generator_forward.40} parent=0 // pred_fallthru
    _
  // Predicated region
  $region26: #{resnet_generator_forward.40} parent=0 // pred_check
    _
  $region27: #{resnet_generator_forward.40} parent=0 // pred_check_branch
    %229 = sbr.rel (0) target = $region29
  $region28: #{resnet_generator_forward.40} parent=0 // pred_region
    _
  $region29: #{resnet_generator_forward.40} parent=0 // pred_fallthru
    _
  // Predicated region
  $region30: #{resnet_generator_forward.40} parent=0 // pred_check
    _
  $region31: #{resnet_generator_forward.40} parent=0 // pred_check_branch
    %231 = sbr.rel (0) target = $region33
  $region32: #{resnet_generator_forward.40} parent=0 // pred_region
    _
  $region33: #{resnet_generator_forward.40} parent=0 // pred_fallthru
    _
  // Predicated region
  $region34: #{resnet_generator_forward.40} parent=0 // pred_check
    _
  $region35: #{resnet_generator_forward.40} parent=0 // pred_check_branch
    %233 = sbr.rel (0) target = $region37
  $region36: #{resnet_generator_forward.40} parent=0 // pred_region
    _
  $region37: #{resnet_generator_forward.40} parent=0 // pred_fallthru
    _
  // Predicated region
  $region38: #{resnet_generator_forward.40} parent=0 // pred_check
    _
  $region39: #{resnet_generator_forward.40} parent=0 // pred_check_branch
    %235 = sbr.rel (0) target = $region41
  $region40: #{resnet_generator_forward.40} parent=0 // pred_region
    _
  $region41: #{resnet_generator_forward.40} parent=0 // pred_fallthru
    _

// kernel: resnet_generator_forward.41
$region0: #{resnet_generator_forward.41}
  #allocation0 [shape = 'u32[]', space=smem, size = 0x4, offset = 0x4, fixed_abs, tag = 'smem constant byte address 0x4 - core index']
  #allocation1 [shape = 'u32[72,128]{1,0:T(1,128)}', space=vmem, size = 0x9000, scoped, tag = 'internal scratch']
  %s0 = inlined_call_operand.vmem [shape: bf16[32,32], index: 0, kind: input, shape index: {}]
  %s1 = inlined_call_operand.vmem [shape: f32[1,32], index: 1, kind: input, shape index: {}]
  %s2 = inlined_call_operand.vmem [shape: f32[1,32], index: 2, kind: input, shape index: {}]
  %s3 = inlined_call_operand.vmem [shape: bf16[32,32], index: 3, kind: output, shape index: {}]
  %s4 = sld [smem:[#allocation0]]
  $region22: #{resnet_generator_forward.41} parent=0
    _
  %s6 = ssub.s32 1, %s4
  %s7 = scalar_select 0, %s6, %s4
  // Predicated region
  $region2: #{resnet_generator_forward.41} parent=0 // pred_check
    _
  $region3: #{resnet_generator_forward.41} parent=0 // pred_check_branch
    %9 = sbr.rel (0) target = $region5
  $region4: #{resnet_generator_forward.41} parent=0 // pred_region
    _
  $region5: #{resnet_generator_forward.41} parent=0 // pred_fallthru
    _
  // Predicated region
  $region6: #{resnet_generator_forward.41} parent=0 // pred_check
    _
  $region7: #{resnet_generator_forward.41} parent=0 // pred_check_branch
    %11 = sbr.rel (0) target = $region9
  $region8: #{resnet_generator_forward.41} parent=0 // pred_region
    _
  $region9: #{resnet_generator_forward.41} parent=0 // pred_fallthru
    _
  // Predicated region
  $region10: #{resnet_generator_forward.41} parent=0 // pred_check
    _
  $region11: #{resnet_generator_forward.41} parent=0 // pred_check_branch
    %13 = sbr.rel (0) target = $region13
  $region12: #{resnet_generator_forward.41} parent=0 // pred_region
    _
  $region13: #{resnet_generator_forward.41} parent=0 // pred_fallthru
    _
  %v14 = vld [vmem:[%s0] sm:$0xf]
  %v15 = vld [vmem:[%s0 + $0x4] sm:$0xf]
  %v16 = vld [vmem:[%s0 + $0x8] sm:$0xf]
  %v17 = vld [vmem:[%s0 + $0xc] sm:$0xf]
  %v18 = vunpack.c.l.bf16 %v14
  %v19 = vunpack.c.l.bf16 %v15
  %v20 = vunpack.c.l.bf16 %v16
  %v21 = vunpack.c.l.bf16 %v17
  %v22 = vld [vmem:[%s1] sm:$0x1]
  %v24 = vperm.slane %v22, 0
  %v26 = vmul.f32 %v18, %v24
  %v27 = vmul.f32 %v19, %v24
  %v28 = vmul.f32 %v20, %v24
  %v29 = vmul.f32 %v21, %v24
  %v30 = vld [vmem:[%s2] sm:$0x1]
  %v32 = vperm.slane %v30, 0
  %v34 = vadd.f32 %v26, %v32
  %v35 = vadd.f32 %v27, %v32
  %v36 = vadd.f32 %v28, %v32
  %v37 = vadd.f32 %v29, %v32
  %v38 = vmax.f32 %v34, 0.0
  %v39 = vmax.f32 %v35, 0.0
  %v40 = vmax.f32 %v36, 0.0
  %v41 = vmax.f32 %v37, 0.0
  %v42 = vpack.c.bf16 %v38, %v38
  %v43 = vpack.c.bf16 %v39, %v39
  %v44 = vpack.c.bf16 %v40, %v40
  %v45 = vpack.c.bf16 %v41, %v41
  %vm46 = vcmask 257024
  %47 = vst.msk [vmem:[%s3] sm:$0xf] %vm46, %v42
  %48 = vst.msk [vmem:[%s3 + $0x4] sm:$0xf] %vm46, %v43
  %49 = vst.msk [vmem:[%s3 + $0x8] sm:$0xf] %vm46, %v44
  %50 = vst.msk [vmem:[%s3 + $0xc] sm:$0xf] %vm46, %v45
  // Predicated region
  $region14: #{resnet_generator_forward.41} parent=0 // pred_check
    _
  $region15: #{resnet_generator_forward.41} parent=0 // pred_check_branch
    %52 = sbr.rel (0) target = $region17
  $region16: #{resnet_generator_forward.41} parent=0 // pred_region
    _
  $region17: #{resnet_generator_forward.41} parent=0 // pred_fallthru
    _
  // Predicated region
  $region18: #{resnet_generator_forward.41} parent=0 // pred_check
    _
  $region19: #{resnet_generator_forward.41} parent=0 // pred_check_branch
    %54 = sbr.rel (0) target = $region21
  $region20: #{resnet_generator_forward.41} parent=0 // pred_region
    _
  $region21: #{resnet_generator_forward.41} parent=0 // pred_fallthru
    _

// kernel: resnet_generator_forward.45
$region0: #{resnet_generator_forward.45}
  #allocation0 [shape = 'u32[]', space=smem, size = 0x4, offset = 0x4, fixed_abs, tag = 'smem constant byte address 0x4 - core index']
  #allocation1 [shape = 'u32[72,128]{1,0:T(1,128)}', space=vmem, size = 0x9000, scoped, tag = 'internal scratch']
  %s0 = inlined_call_operand.vmem [shape: bf16[32,32], index: 0, kind: input, shape index: {}]
  %s1 = inlined_call_operand.vmem [shape: f32[1,32], index: 1, kind: input, shape index: {}]
  %s2 = inlined_call_operand.vmem [shape: f32[1,32], index: 2, kind: input, shape index: {}]
  %s3 = inlined_call_operand.vmem [shape: bf16[32,32], index: 3, kind: input, shape index: {}]
  %s4 = inlined_call_operand.vmem [shape: bf16[32,32], index: 4, kind: output, shape index: {}]
  %s5 = sld [smem:[#allocation0]]
  $region26: #{resnet_generator_forward.45} parent=0
    _
  %s7 = ssub.s32 1, %s5
  %s8 = scalar_select 0, %s7, %s5
  // Predicated region
  $region2: #{resnet_generator_forward.45} parent=0 // pred_check
    _
  $region3: #{resnet_generator_forward.45} parent=0 // pred_check_branch
    %10 = sbr.rel (0) target = $region5
  $region4: #{resnet_generator_forward.45} parent=0 // pred_region
    _
  $region5: #{resnet_generator_forward.45} parent=0 // pred_fallthru
    _
  // Predicated region
  $region6: #{resnet_generator_forward.45} parent=0 // pred_check
    _
  $region7: #{resnet_generator_forward.45} parent=0 // pred_check_branch
    %12 = sbr.rel (0) target = $region9
  $region8: #{resnet_generator_forward.45} parent=0 // pred_region
    _
  $region9: #{resnet_generator_forward.45} parent=0 // pred_fallthru
    _
  // Predicated region
  $region10: #{resnet_generator_forward.45} parent=0 // pred_check
    _
  $region11: #{resnet_generator_forward.45} parent=0 // pred_check_branch
    %14 = sbr.rel (0) target = $region13
  $region12: #{resnet_generator_forward.45} parent=0 // pred_region
    _
  $region13: #{resnet_generator_forward.45} parent=0 // pred_fallthru
    _
  // Predicated region
  $region14: #{resnet_generator_forward.45} parent=0 // pred_check
    _
  $region15: #{resnet_generator_forward.45} parent=0 // pred_check_branch
    %16 = sbr.rel (0) target = $region17
  $region16: #{resnet_generator_forward.45} parent=0 // pred_region
    _
  $region17: #{resnet_generator_forward.45} parent=0 // pred_fallthru
    _
  %v17 = vld [vmem:[%s0] sm:$0xf]
  %v18 = vld [vmem:[%s0 + $0x4] sm:$0xf]
  %v19 = vld [vmem:[%s0 + $0x8] sm:$0xf]
  %v20 = vld [vmem:[%s0 + $0xc] sm:$0xf]
  %v21 = vunpack.c.l.bf16 %v17
  %v22 = vunpack.c.l.bf16 %v18
  %v23 = vunpack.c.l.bf16 %v19
  %v24 = vunpack.c.l.bf16 %v20
  %v25 = vld [vmem:[%s1] sm:$0x1]
  %v27 = vperm.slane %v25, 0
  %v29 = vmul.f32 %v21, %v27
  %v30 = vmul.f32 %v22, %v27
  %v31 = vmul.f32 %v23, %v27
  %v32 = vmul.f32 %v24, %v27
  %v33 = vld [vmem:[%s2] sm:$0x1]
  %v35 = vperm.slane %v33, 0
  %v37 = vadd.f32 %v29, %v35
  %v38 = vadd.f32 %v30, %v35
  %v39 = vadd.f32 %v31, %v35
  %v40 = vadd.f32 %v32, %v35
  %v41 = vld [vmem:[%s3] sm:$0xf]
  %v42 = vld [vmem:[%s3 + $0x4] sm:$0xf]
  %v43 = vld [vmem:[%s3 + $0x8] sm:$0xf]
  %v44 = vld [vmem:[%s3 + $0xc] sm:$0xf]
  %v45 = vunpack.c.l.bf16 %v41
  %v46 = vunpack.c.l.bf16 %v42
  %v47 = vunpack.c.l.bf16 %v43
  %v48 = vunpack.c.l.bf16 %v44
  %v49 = vadd.f32 %v37, %v45
  %v50 = vadd.f32 %v38, %v46
  %v51 = vadd.f32 %v39, %v47
  %v52 = vadd.f32 %v40, %v48
  %v53 = vmax.f32 %v49, 0.0
  %v54 = vmax.f32 %v50, 0.0
  %v55 = vmax.f32 %v51, 0.0
  %v56 = vmax.f32 %v52, 0.0
  %v57 = vpack.c.bf16 %v53, %v53
  %v58 = vpack.c.bf16 %v54, %v54
  %v59 = vpack.c.bf16 %v55, %v55
  %v60 = vpack.c.bf16 %v56, %v56
  %vm61 = vcmask 257024
  %62 = vst.msk [vmem:[%s4] sm:$0xf] %vm61, %v57
  %63 = vst.msk [vmem:[%s4 + $0x4] sm:$0xf] %vm61, %v58
  %64 = vst.msk [vmem:[%s4 + $0x8] sm:$0xf] %vm61, %v59
  %65 = vst.msk [vmem:[%s4 + $0xc] sm:$0xf] %vm61, %v60
  // Predicated region
  $region18: #{resnet_generator_forward.45} parent=0 // pred_check
    _
  $region19: #{resnet_generator_forward.45} parent=0 // pred_check_branch
    %67 = sbr.rel (0) target = $region21
  $region20: #{resnet_generator_forward.45} parent=0 // pred_region
    _
  $region21: #{resnet_generator_forward.45} parent=0 // pred_fallthru
    _
  // Predicated region
  $region22: #{resnet_generator_forward.45} parent=0 // pred_check
    _
  $region23: #{resnet_generator_forward.45} parent=0 // pred_check_branch
    %69 = sbr.rel (0) target = $region25
  $region24: #{resnet_generator_forward.45} parent=0 // pred_region
    _
  $region25: #{resnet_generator_forward.45} parent=0 // pred_fallthru
    _

// kernel: resnet_generator_forward.42
$region0: #{resnet_generator_forward.42}
  #allocation0 [shape = 'u32[]', space=smem, size = 0x4, offset = 0x4, fixed_abs, tag = 'smem constant byte address 0x4 - core index']
  #allocation1 [shape = 'u32[72,128]{1,0:T(1,128)}', space=vmem, size = 0x9000, scoped, tag = 'internal scratch']
  #allocation2 [shape = 'f32[32,32]{1,0:T(8,128)}', space=vmem, size = 0x4000, scoped, tag = 'scratch operand']
  %s0 = inlined_call_operand.vmem [shape: bf16[32,288], index: 0, kind: input, shape index: {}]
  %s1 = inlined_call_operand.vmem [shape: bf16[288,32], index: 1, kind: input, shape index: {}]
  %s2 = inlined_call_operand.vmem [shape: bf16[32,32], index: 2, kind: output, shape index: {0}]
  %s3 = inlined_call_operand.vmem [shape: f32[1,8,32], index: 3, kind: output, shape index: {1}]
  %s4 = inlined_call_operand.vmem [shape: f32[1,8,32], index: 4, kind: output, shape index: {2}]
  %5 = xla_tuple %s2, %s3, %s4
  %s6 = sld [smem:[#allocation0]]
  $region42: #{resnet_generator_forward.42} parent=0
    _
  %s8 = ssub.s32 1, %s6
  %s9 = scalar_select 0, %s8, %s6
  // Predicated region
  $region2: #{resnet_generator_forward.42} parent=0 // pred_check
    _
  $region3: #{resnet_generator_forward.42} parent=0 // pred_check_branch
    %11 = sbr.rel (0) target = $region5
  $region4: #{resnet_generator_forward.42} parent=0 // pred_region
    _
  $region5: #{resnet_generator_forward.42} parent=0 // pred_fallthru
    _
  // Predicated region
  $region6: #{resnet_generator_forward.42} parent=0 // pred_check
    _
  $region7: #{resnet_generator_forward.42} parent=0 // pred_check_branch
    %13 = sbr.rel (0) target = $region9
  $region8: #{resnet_generator_forward.42} parent=0 // pred_region
    _
  $region9: #{resnet_generator_forward.42} parent=0 // pred_fallthru
    _
  %p15 = scmp.eq.s32.totalorder 0, 0
  // Predicated region
  $region10: #{resnet_generator_forward.42} parent=0 // pred_check
    %p16 = pneg %p15
  $region11: #{resnet_generator_forward.42} parent=0 // pred_check_branch
    %18 = sbr.rel (%p16) target = $region13
  $region12: #{resnet_generator_forward.42} parent=0 // pred_region
    %vm19 = vcmask 261120
    %20 = vst.msk [vmem:[#allocation2] sm:$0xff] %vm19, 0.0
    %21 = vst.msk [vmem:[#allocation2 + $0x8] sm:$0xff] %vm19, 0.0
    %22 = vst.msk [vmem:[#allocation2 + $0x10] sm:$0xff] %vm19, 0.0
    %23 = vst.msk [vmem:[#allocation2 + $0x18] sm:$0xff] %vm19, 0.0
  $region13: #{resnet_generator_forward.42} parent=0 // pred_fallthru
    _
  %v24 = vld [vmem:[#allocation2] sm:$0xff]
  %v25 = vld [vmem:[#allocation2 + $0x8] sm:$0xff]
  %v26 = vld [vmem:[#allocation2 + $0x10] sm:$0xff]
  %v27 = vld [vmem:[#allocation2 + $0x18] sm:$0xff]
  %v28 = vld [vmem:[%s0] sm:$0xff]
  %v29 = vld [vmem:[%s0 + $0x8] sm:$0xf]
  %v30 = vld [vmem:[%s0 + $0xc] sm:$0xff]
  %v31 = vld [vmem:[%s0 + $0x14] sm:$0xf]
  %v32 = vld [vmem:[%s0 + $0x18] sm:$0xff]
  %v33 = vld [vmem:[%s0 + $0x20] sm:$0xf]
  %v34 = vld [vmem:[%s0 + $0x24] sm:$0xff]
  %v35 = vld [vmem:[%s0 + $0x2c] sm:$0xf]
  %v36 = vld [vmem:[%s1] sm:$0xf]
  %v37 = vld [vmem:[%s1 + $0x4] sm:$0xf]
  %v38 = vld [vmem:[%s1 + $0x8] sm:$0xf]
  %v39 = vld [vmem:[%s1 + $0xc] sm:$0xf]
  %v40 = vld [vmem:[%s1 + $0x10] sm:$0xf]
  %v41 = vld [vmem:[%s1 + $0x14] sm:$0xf]
  %v42 = vld [vmem:[%s1 + $0x18] sm:$0xf]
  %v43 = vld [vmem:[%s1 + $0x1c] sm:$0xf]
  %v44 = vld [vmem:[%s1 + $0x20] sm:$0xf]
  %v45 = vld [vmem:[%s1 + $0x24] sm:$0xf]
  %v46 = vld [vmem:[%s1 + $0x28] sm:$0xf]
  %v47 = vld [vmem:[%s1 + $0x2c] sm:$0xf]
  %v48 = vld [vmem:[%s1 + $0x30] sm:$0xf]
  %v49 = vld [vmem:[%s1 + $0x34] sm:$0xf]
  %v50 = vld [vmem:[%s1 + $0x38] sm:$0xf]
  %v51 = vld [vmem:[%s1 + $0x3c] sm:$0xf]
  %v52 = vld [vmem:[%s1 + $0x40] sm:$0xf]
  %v53 = vld [vmem:[%s1 + $0x44] sm:$0xf]
  %v54 = vld [vmem:[%s1 + $0x48] sm:$0xf]
  %v55 = vld [vmem:[%s1 + $0x4c] sm:$0xf]
  %v56 = vld [vmem:[%s1 + $0x50] sm:$0xf]
  %v57 = vld [vmem:[%s1 + $0x54] sm:$0xf]
  %v58 = vld [vmem:[%s1 + $0x58] sm:$0xf]
  %v59 = vld [vmem:[%s1 + $0x5c] sm:$0xf]
  %v60 = vld [vmem:[%s1 + $0x60] sm:$0xf]
  %v61 = vld [vmem:[%s1 + $0x64] sm:$0xf]
  %v62 = vld [vmem:[%s1 + $0x68] sm:$0xf]
  %v63 = vld [vmem:[%s1 + $0x6c] sm:$0xf]
  %v64 = vld [vmem:[%s1 + $0x70] sm:$0xf]
  %v65 = vld [vmem:[%s1 + $0x74] sm:$0xf]
  %v66 = vld [vmem:[%s1 + $0x78] sm:$0xf]
  %v67 = vld [vmem:[%s1 + $0x7c] sm:$0xf]
  %v68 = vld [vmem:[%s1 + $0x80] sm:$0xf]
  %v69 = vld [vmem:[%s1 + $0x84] sm:$0xf]
  %v70 = vld [vmem:[%s1 + $0x88] sm:$0xf]
  %v71 = vld [vmem:[%s1 + $0x8c] sm:$0xf]
  %v80 = vunpack.c.l.b16 %v28
  %v81 = vunpack.c.h.b16 %v28
  %v82 = vunpack.c.l.b16 %v29
  %v83 = vunpack.c.l.b16 %v30
  %v84 = vunpack.c.h.b16 %v30
  %v85 = vunpack.c.l.b16 %v31
  %v86 = vunpack.c.l.b16 %v32
  %v87 = vunpack.c.h.b16 %v32
  %v88 = vunpack.c.l.b16 %v33
  %v89 = vunpack.c.l.b16 %v34
  %v90 = vunpack.c.h.b16 %v34
  %v91 = vunpack.c.l.b16 %v35
  %v92 = vpack.c.b16 %v83, %v80
  %v93 = vpack.c.b16 %v84, %v81
  %v94 = vpack.c.b16 %v85, %v82
  %v95 = vpack.c.b16 %v89, %v86
  %v96 = vpack.c.b16 %v90, %v87
  %v97 = vpack.c.b16 %v91, %v88
  %v138 = vunpack.c.l.b16 %v36
  %v139 = vunpack.c.l.b16 %v37
  %v140 = vunpack.c.l.b16 %v38
  %v141 = vunpack.c.l.b16 %v39
  %v142 = vunpack.c.l.b16 %v40
  %v143 = vunpack.c.l.b16 %v41
  %v144 = vunpack.c.l.b16 %v42
  %v145 = vunpack.c.l.b16 %v43
  %v146 = vunpack.c.l.b16 %v44
  %v147 = vunpack.c.l.b16 %v45
  %v148 = vunpack.c.l.b16 %v46
  %v149 = vunpack.c.l.b16 %v47
  %v150 = vunpack.c.l.b16 %v48
  %v151 = vunpack.c.l.b16 %v49
  %v152 = vunpack.c.l.b16 %v50
  %v153 = vunpack.c.l.b16 %v51
  %v154 = vunpack.c.l.b16 %v52
  %v155 = vunpack.c.l.b16 %v53
  %v156 = vunpack.c.l.b16 %v54
  %v157 = vunpack.c.l.b16 %v55
  %v158 = vunpack.c.l.b16 %v56
  %v159 = vunpack.c.l.b16 %v57
  %v160 = vunpack.c.l.b16 %v58
  %v161 = vunpack.c.l.b16 %v59
  %v162 = vunpack.c.l.b16 %v60
  %v163 = vunpack.c.l.b16 %v61
  %v164 = vunpack.c.l.b16 %v62
  %v165 = vunpack.c.l.b16 %v63
  %v166 = vunpack.c.l.b16 %v64
  %v167 = vunpack.c.l.b16 %v65
  %v168 = vunpack.c.l.b16 %v66
  %v169 = vunpack.c.l.b16 %v67
  %v170 = vunpack.c.l.b16 %v68
  %v171 = vunpack.c.l.b16 %v69
  %v172 = vunpack.c.l.b16 %v70
  %v173 = vunpack.c.l.b16 %v71
  %v174 = vpack.c.b16 %v139, %v138
  %v175 = vpack.c.b16 %v141, %v140
  %v176 = vpack.c.b16 %v143, %v142
  %v177 = vpack.c.b16 %v145, %v144
  %v178 = vpack.c.b16 %v147, %v146
  %v179 = vpack.c.b16 %v149, %v148
  %v180 = vpack.c.b16 %v151, %v150
  %v181 = vpack.c.b16 %v153, %v152
  %v182 = vpack.c.b16 %v155, %v154
  %v183 = vpack.c.b16 %v157, %v156
  %v184 = vpack.c.b16 %v159, %v158
  %v185 = vpack.c.b16 %v161, %v160
  %v186 = vpack.c.b16 %v163, %v162
  %v187 = vpack.c.b16 %v165, %v164
  %v188 = vpack.c.b16 %v167, %v166
  %v189 = vpack.c.b16 %v169, %v168
  %v190 = vpack.c.b16 %v171, %v170
  %v191 = vpack.c.b16 %v173, %v172
  %vm210 = vcmask 261120
  %v212 = vsel %vm210, %v94, 0
  %v215 = vsel %vm210, %v97, 0
  %217 = vmatpush.bf16.msra.mxu0 %v181
  %218 = vmatpush.bf16.msra.mxu0 %v180
  %219 = vmatpush.bf16.msra.mxu0 %v179
  %220 = vmatpush.bf16.msra.mxu0 %v178
  %221 = vmatpush.bf16.msra.mxu0 %v177
  %222 = vmatpush.bf16.msra.mxu0 %v176
  %223 = vmatpush.bf16.msra.mxu0 %v175
  %224 = vmatpush.bf16.msra.mxu0 %v174
  %225 = vmatmul.bf16.gmra.mxu0 %v92
  %v226 = vpop.f32.mrf.mxu0
  %v227 = vadd.f32 0.0, %v226
  %v228 = vpop.f32.mrf.mxu0
  %v229 = vadd.f32 0.0, %v228
  %230 = vmatmul.bf16.gmra.mxu0 %v95
  %v231 = vpop.f32.mrf.mxu0
  %v232 = vadd.f32 0.0, %v231
  %v233 = vpop.f32.mrf.mxu0
  %v234 = vadd.f32 0.0, %v233
  %235 = vdwg.mxu0
  %236 = vmatpush.bf16.msra.mxu0 %v189
  %237 = vmatpush.bf16.msra.mxu0 %v188
  %238 = vmatpush.bf16.msra.mxu0 %v187
  %239 = vmatpush.bf16.msra.mxu0 %v186
  %240 = vmatpush.bf16.msra.mxu0 %v185
  %241 = vmatpush.bf16.msra.mxu0 %v184
  %242 = vmatpush.bf16.msra.mxu0 %v183
  %243 = vmatpush.bf16.msra.mxu0 %v182
  %244 = vmatmul.bf16.gmra.mxu0 %v93
  %v245 = vpop.f32.mrf.mxu0
  %v246 = vadd.f32 %v227, %v245
  %v247 = vpop.f32.mrf.mxu0
  %v248 = vadd.f32 %v229, %v247
  %249 = vmatmul.bf16.gmra.mxu0 %v96
  %v250 = vpop.f32.mrf.mxu0
  %v251 = vadd.f32 %v232, %v250
  %v252 = vpop.f32.mrf.mxu0
  %v253 = vadd.f32 %v234, %v252
  %254 = vdwg.mxu0
  %255 = vmatpush.bf16.msra.mxu0 0
  %256 = vmatpush.bf16.msra.mxu0 0
  %257 = vmatpush.bf16.msra.mxu0 0
  %258 = vmatpush.bf16.msra.mxu0 0
  %259 = vmatpush.bf16.msra.mxu0 0
  %260 = vmatpush.bf16.msra.mxu0 0
  %261 = vmatpush.bf16.msra.mxu0 %v191
  %262 = vmatpush.bf16.msra.mxu0 %v190
  %263 = vmatmul.bf16.gmra.mxu0 %v212
  %v264 = vpop.f32.mrf.mxu0
  %v265 = vadd.f32 %v246, %v264
  %v266 = vpop.f32.mrf.mxu0
  %v267 = vadd.f32 %v248, %v266
  %268 = vmatmul.bf16.gmra.mxu0 %v215
  %v269 = vpop.f32.mrf.mxu0
  %v270 = vadd.f32 %v251, %v269
  %v271 = vpop.f32.mrf.mxu0
  %v272 = vadd.f32 %v253, %v271
  %273 = vdwg.mxu0
  %v274 = vadd.f32 %v24, %v265
  %v275 = vadd.f32 %v25, %v267
  %v276 = vadd.f32 %v26, %v270
  %v277 = vadd.f32 %v27, %v272
  %278 = vst.msk [vmem:[#allocation2] sm:$0xff] %vm210, %v274
  %279 = vst.msk [vmem:[#allocation2 + $0x8] sm:$0xff] %vm210, %v275
  %280 = vst.msk [vmem:[#allocation2 + $0x10] sm:$0xff] %vm210, %v276
  %281 = vst.msk [vmem:[#allocation2 + $0x18] sm:$0xff] %vm210, %v277
  // Predicated region
  $region14: #{resnet_generator_forward.42} parent=0 // pred_check
    %p282 = pneg %p15
  $region15: #{resnet_generator_forward.42} parent=0 // pred_check_branch
    %284 = sbr.rel (%p282) target = $region17
  $region16: #{resnet_generator_forward.42} parent=0 // pred_region
    %v285 = vld [vmem:[#allocation2] sm:$0xff]
    %v286 = vld [vmem:[#allocation2 + $0x8] sm:$0xff]
    %v287 = vld [vmem:[#allocation2 + $0x10] sm:$0xff]
    %v288 = vld [vmem:[#allocation2 + $0x18] sm:$0xff]
    %v289 = vpack.c.bf16 %v285, %v285
    %v290 = vpack.c.bf16 %v286, %v286
    %v291 = vpack.c.bf16 %v287, %v287
    %v292 = vpack.c.bf16 %v288, %v288
    %vm293 = vcmask 257024
    %294 = vst.msk [vmem:[%s2] sm:$0xf] %vm293, %v289
    %295 = vst.msk [vmem:[%s2 + $0x4] sm:$0xf] %vm293, %v290
    %296 = vst.msk [vmem:[%s2 + $0x8] sm:$0xf] %vm293, %v291
    %297 = vst.msk [vmem:[%s2 + $0xc] sm:$0xf] %vm293, %v292
    %v298 = vsel %vm210, %v285, 0.0
    %v299 = vsel %vm210, %v286, 0.0
    %v300 = vadd.f32 %v298, %v299
    %v301 = vsel %vm210, %v287, 0.0
    %v302 = vadd.f32 %v300, %v301
    %v303 = vsel %vm210, %v288, 0.0
    %v304 = vadd.f32 %v302, %v303
    %v305 = vrot.slane %v304, 4
    %v306 = vadd.f32 %v304, %v305
    %v307 = vrot.slane %v306, 2
    %v308 = vadd.f32 %v306, %v307
    %v309 = vrot.slane %v308, 1
    %v310 = vadd.f32 %v308, %v309
    %v311 = vmul.f32 %v285, %v285
    %v312 = vmul.f32 %v286, %v286
    %v313 = vmul.f32 %v287, %v287
    %v314 = vmul.f32 %v288, %v288
    %v315 = vsel %vm210, %v311, 0.0
    %v316 = vsel %vm210, %v312, 0.0
    %v317 = vadd.f32 %v315, %v316
    %v318 = vsel %vm210, %v313, 0.0
    %v319 = vadd.f32 %v317, %v318
    %v320 = vsel %vm210, %v314, 0.0
    %v321 = vadd.f32 %v319, %v320
    %v322 = vrot.slane %v321, 4
    %v323 = vadd.f32 %v321, %v322
    %v324 = vrot.slane %v323, 2
    %v325 = vadd.f32 %v323, %v324
    %v326 = vrot.slane %v325, 1
    %v327 = vadd.f32 %v325, %v326
    %328 = vst.msk [vmem:[%s3] sm:$0xff] %vm210, %v310
    %329 = vst.msk [vmem:[%s4] sm:$0xff] %vm210, %v327
  $region17: #{resnet_generator_forward.42} parent=0 // pred_fallthru
    _
  // Predicated region
  $region18: #{resnet_generator_forward.42} parent=0 // pred_check
    _
  $region19: #{resnet_generator_forward.42} parent=0 // pred_check_branch
    %331 = sbr.rel (0) target = $region21
  $region20: #{resnet_generator_forward.42} parent=0 // pred_region
    _
  $region21: #{resnet_generator_forward.42} parent=0 // pred_fallthru
    _
  // Predicated region
  $region22: #{resnet_generator_forward.42} parent=0 // pred_check
    _
  $region23: #{resnet_generator_forward.42} parent=0 // pred_check_branch
    %333 = sbr.rel (0) target = $region25
  $region24: #{resnet_generator_forward.42} parent=0 // pred_region
    _
  $region25: #{resnet_generator_forward.42} parent=0 // pred_fallthru
    _
  // Predicated region
  $region26: #{resnet_generator_forward.42} parent=0 // pred_check
    _
  $region27: #{resnet_generator_forward.42} parent=0 // pred_check_branch
    %335 = sbr.rel (0) target = $region29
  $region28: #{resnet_generator_forward.42} parent=0 // pred_region
    _
  $region29: #{resnet_generator_forward.42} parent=0 // pred_fallthru
    _
  // Predicated region
  $region30: #{resnet_generator_forward.42} parent=0 // pred_check
    _
  $region31: #{resnet_generator_forward.42} parent=0 // pred_check_branch
    %337 = sbr.rel (0) target = $region33
  $region32: #{resnet_generator_forward.42} parent=0 // pred_region
    _
  $region33: #{resnet_generator_forward.42} parent=0 // pred_fallthru
    _
  // Predicated region
  $region34: #{resnet_generator_forward.42} parent=0 // pred_check
    _
  $region35: #{resnet_generator_forward.42} parent=0 // pred_check_branch
    %339 = sbr.rel (0) target = $region37
  $region36: #{resnet_generator_forward.42} parent=0 // pred_region
    _
  $region37: #{resnet_generator_forward.42} parent=0 // pred_fallthru
    _
  // Predicated region
  $region38: #{resnet_generator_forward.42} parent=0 // pred_check
    _
  $region39: #{resnet_generator_forward.42} parent=0 // pred_check_branch
    %341 = sbr.rel (0) target = $region41
  $region40: #{resnet_generator_forward.42} parent=0 // pred_region
    _
  $region41: #{resnet_generator_forward.42} parent=0 // pred_fallthru
    _

// kernel: resnet_generator_forward.55
$region0: #{resnet_generator_forward.55}
  #allocation0 [shape = 'u32[]', space=smem, size = 0x4, offset = 0x4, fixed_abs, tag = 'smem constant byte address 0x4 - core index']
  #allocation1 [shape = 'u32[72,128]{1,0:T(1,128)}', space=vmem, size = 0x9000, scoped, tag = 'internal scratch']
  #allocation2 [shape = 'f32[32,16]{1,0:T(8,128)}', space=vmem, size = 0x4000, scoped, tag = 'scratch operand']
  %s0 = inlined_call_operand.vmem [shape: bf16[32,64], index: 0, kind: input, shape index: {}]
  %s1 = inlined_call_operand.vmem [shape: bf16[64,16], index: 1, kind: input, shape index: {}]
  %s2 = inlined_call_operand.vmem [shape: bf16[32,16], index: 2, kind: output, shape index: {0}]
  %s3 = inlined_call_operand.vmem [shape: f32[1,8,16], index: 3, kind: output, shape index: {1}]
  %s4 = inlined_call_operand.vmem [shape: f32[1,8,16], index: 4, kind: output, shape index: {2}]
  %5 = xla_tuple %s2, %s3, %s4
  %s6 = sld [smem:[#allocation0]]
  $region42: #{resnet_generator_forward.55} parent=0
    _
  %s8 = ssub.s32 1, %s6
  %s9 = scalar_select 0, %s8, %s6
  // Predicated region
  $region2: #{resnet_generator_forward.55} parent=0 // pred_check
    _
  $region3: #{resnet_generator_forward.55} parent=0 // pred_check_branch
    %11 = sbr.rel (0) target = $region5
  $region4: #{resnet_generator_forward.55} parent=0 // pred_region
    _
  $region5: #{resnet_generator_forward.55} parent=0 // pred_fallthru
    _
  // Predicated region
  $region6: #{resnet_generator_forward.55} parent=0 // pred_check
    _
  $region7: #{resnet_generator_forward.55} parent=0 // pred_check_branch
    %13 = sbr.rel (0) target = $region9
  $region8: #{resnet_generator_forward.55} parent=0 // pred_region
    _
  $region9: #{resnet_generator_forward.55} parent=0 // pred_fallthru
    _
  %p15 = scmp.eq.s32.totalorder 0, 0
  // Predicated region
  $region10: #{resnet_generator_forward.55} parent=0 // pred_check
    %p16 = pneg %p15
  $region11: #{resnet_generator_forward.55} parent=0 // pred_check_branch
    %18 = sbr.rel (%p16) target = $region13
  $region12: #{resnet_generator_forward.55} parent=0 // pred_region
    %vm19 = vcmask 130048
    %20 = vst.msk [vmem:[#allocation2] sm:$0xff] %vm19, 0.0
    %21 = vst.msk [vmem:[#allocation2 + $0x8] sm:$0xff] %vm19, 0.0
    %22 = vst.msk [vmem:[#allocation2 + $0x10] sm:$0xff] %vm19, 0.0
    %23 = vst.msk [vmem:[#allocation2 + $0x18] sm:$0xff] %vm19, 0.0
  $region13: #{resnet_generator_forward.55} parent=0 // pred_fallthru
    _
  %v24 = vld [vmem:[#allocation2] sm:$0xff]
  %v25 = vld [vmem:[#allocation2 + $0x8] sm:$0xff]
  %v26 = vld [vmem:[#allocation2 + $0x10] sm:$0xff]
  %v27 = vld [vmem:[#allocation2 + $0x18] sm:$0xff]
  %v28 = vld [vmem:[%s0] sm:$0xf]
  %v29 = vld [vmem:[%s0 + $0x4] sm:$0xf]
  %v30 = vld [vmem:[%s0 + $0x8] sm:$0xf]
  %v31 = vld [vmem:[%s0 + $0xc] sm:$0xf]
  %v32 = vld [vmem:[%s1] sm:$0xf]
  %v33 = vld [vmem:[%s1 + $0x4] sm:$0xf]
  %v34 = vld [vmem:[%s1 + $0x8] sm:$0xf]
  %v35 = vld [vmem:[%s1 + $0xc] sm:$0xf]
  %v36 = vld [vmem:[%s1 + $0x10] sm:$0xf]
  %v37 = vld [vmem:[%s1 + $0x14] sm:$0xf]
  %v38 = vld [vmem:[%s1 + $0x18] sm:$0xf]
  %v39 = vld [vmem:[%s1 + $0x1c] sm:$0xf]
  %v44 = vunpack.c.l.b16 %v28
  %v45 = vunpack.c.l.b16 %v29
  %v46 = vunpack.c.l.b16 %v30
  %v47 = vunpack.c.l.b16 %v31
  %v48 = vpack.c.b16 %v45, %v44
  %v49 = vpack.c.b16 %v47, %v46
  %v58 = vunpack.c.l.b16 %v32
  %v59 = vunpack.c.l.b16 %v33
  %v60 = vunpack.c.l.b16 %v34
  %v61 = vunpack.c.l.b16 %v35
  %v62 = vunpack.c.l.b16 %v36
  %v63 = vunpack.c.l.b16 %v37
  %v64 = vunpack.c.l.b16 %v38
  %v65 = vunpack.c.l.b16 %v39
  %v66 = vpack.c.b16 %v59, %v58
  %v67 = vpack.c.b16 %v61, %v60
  %v68 = vpack.c.b16 %v63, %v62
  %v69 = vpack.c.b16 %v65, %v64
  %vm74 = vcmask 523264
  %v76 = vsel %vm74, %v48, 0
  %v79 = vsel %vm74, %v49, 0
  %81 = vmatpush.bf16.msra.mxu0 0
  %82 = vmatpush.bf16.msra.mxu0 0
  %83 = vmatpush.bf16.msra.mxu0 0
  %84 = vmatpush.bf16.msra.mxu0 0
  %85 = vmatpush.bf16.msra.mxu0 %v69
  %86 = vmatpush.bf16.msra.mxu0 %v68
  %87 = vmatpush.bf16.msra.mxu0 %v67
  %88 = vmatpush.bf16.msra.mxu0 %v66
  %89 = vmatmul.bf16.gmra.mxu0 %v76
  %v90 = vpop.f32.mrf.mxu0
  %v91 = vadd.f32 0.0, %v90
  %v92 = vpop.f32.mrf.mxu0
  %v93 = vadd.f32 0.0, %v92
  %94 = vmatmul.bf16.gmra.mxu0 %v79
  %v95 = vpop.f32.mrf.mxu0
  %v96 = vadd.f32 0.0, %v95
  %v97 = vpop.f32.mrf.mxu0
  %v98 = vadd.f32 0.0, %v97
  %99 = vdwg.mxu0
  %v100 = vadd.f32 %v24, %v91
  %v101 = vadd.f32 %v25, %v93
  %v102 = vadd.f32 %v26, %v96
  %v103 = vadd.f32 %v27, %v98
  %vm104 = vcmask 130048
  %105 = vst.msk [vmem:[#allocation2] sm:$0xff] %vm104, %v100
  %106 = vst.msk [vmem:[#allocation2 + $0x8] sm:$0xff] %vm104, %v101
  %107 = vst.msk [vmem:[#allocation2 + $0x10] sm:$0xff] %vm104, %v102
  %108 = vst.msk [vmem:[#allocation2 + $0x18] sm:$0xff] %vm104, %v103
  // Predicated region
  $region14: #{resnet_generator_forward.55} parent=0 // pred_check
    %p109 = pneg %p15
  $region15: #{resnet_generator_forward.55} parent=0 // pred_check_branch
    %111 = sbr.rel (%p109) target = $region17
  $region16: #{resnet_generator_forward.55} parent=0 // pred_region
    %v112 = vld [vmem:[#allocation2] sm:$0xff]
    %v113 = vld [vmem:[#allocation2 + $0x8] sm:$0xff]
    %v114 = vld [vmem:[#allocation2 + $0x10] sm:$0xff]
    %v115 = vld [vmem:[#allocation2 + $0x18] sm:$0xff]
    %v116 = vpack.c.bf16 %v112, %v112
    %v117 = vpack.c.bf16 %v113, %v113
    %v118 = vpack.c.bf16 %v114, %v114
    %v119 = vpack.c.bf16 %v115, %v115
    %vm120 = vcmask 125952
    %121 = vst.msk [vmem:[%s2] sm:$0xf] %vm120, %v116
    %122 = vst.msk [vmem:[%s2 + $0x4] sm:$0xf] %vm120, %v117
    %123 = vst.msk [vmem:[%s2 + $0x8] sm:$0xf] %vm120, %v118
    %124 = vst.msk [vmem:[%s2 + $0xc] sm:$0xf] %vm120, %v119
    %v125 = vsel %vm104, %v112, 0.0
    %v126 = vsel %vm104, %v113, 0.0
    %v127 = vadd.f32 %v125, %v126
    %v128 = vsel %vm104, %v114, 0.0
    %v129 = vadd.f32 %v127, %v128
    %v130 = vsel %vm104, %v115, 0.0
    %v131 = vadd.f32 %v129, %v130
    %v132 = vrot.slane %v131, 4
    %v133 = vadd.f32 %v131, %v132
    %v134 = vrot.slane %v133, 2
    %v135 = vadd.f32 %v133, %v134
    %v136 = vrot.slane %v135, 1
    %v137 = vadd.f32 %v135, %v136
    %v138 = vmul.f32 %v112, %v112
    %v139 = vmul.f32 %v113, %v113
    %v140 = vmul.f32 %v114, %v114
    %v141 = vmul.f32 %v115, %v115
    %v142 = vsel %vm104, %v138, 0.0
    %v143 = vsel %vm104, %v139, 0.0
    %v144 = vadd.f32 %v142, %v143
    %v145 = vsel %vm104, %v140, 0.0
    %v146 = vadd.f32 %v144, %v145
    %v147 = vsel %vm104, %v141, 0.0
    %v148 = vadd.f32 %v146, %v147
    %v149 = vrot.slane %v148, 4
    %v150 = vadd.f32 %v148, %v149
    %v151 = vrot.slane %v150, 2
    %v152 = vadd.f32 %v150, %v151
    %v153 = vrot.slane %v152, 1
    %v154 = vadd.f32 %v152, %v153
    %155 = vst.msk [vmem:[%s3] sm:$0xff] %vm104, %v137
    %156 = vst.msk [vmem:[%s4] sm:$0xff] %vm104, %v154
  $region17: #{resnet_generator_forward.55} parent=0 // pred_fallthru
    _
  // Predicated region
  $region18: #{resnet_generator_forward.55} parent=0 // pred_check
    _
  $region19: #{resnet_generator_forward.55} parent=0 // pred_check_branch
    %158 = sbr.rel (0) target = $region21
  $region20: #{resnet_generator_forward.55} parent=0 // pred_region
    _
  $region21: #{resnet_generator_forward.55} parent=0 // pred_fallthru
    _
  // Predicated region
  $region22: #{resnet_generator_forward.55} parent=0 // pred_check
    _
  $region23: #{resnet_generator_forward.55} parent=0 // pred_check_branch
    %160 = sbr.rel (0) target = $region25
  $region24: #{resnet_generator_forward.55} parent=0 // pred_region
    _
  $region25: #{resnet_generator_forward.55} parent=0 // pred_fallthru
    _
  // Predicated region
  $region26: #{resnet_generator_forward.55} parent=0 // pred_check
    _
  $region27: #{resnet_generator_forward.55} parent=0 // pred_check_branch
    %162 = sbr.rel (0) target = $region29
  $region28: #{resnet_generator_forward.55} parent=0 // pred_region
    _
  $region29: #{resnet_generator_forward.55} parent=0 // pred_fallthru
    _
  // Predicated region
  $region30: #{resnet_generator_forward.55} parent=0 // pred_check
    _
  $region31: #{resnet_generator_forward.55} parent=0 // pred_check_branch
    %164 = sbr.rel (0) target = $region33
  $region32: #{resnet_generator_forward.55} parent=0 // pred_region
    _
  $region33: #{resnet_generator_forward.55} parent=0 // pred_fallthru
    _
  // Predicated region
  $region34: #{resnet_generator_forward.55} parent=0 // pred_check
    _
  $region35: #{resnet_generator_forward.55} parent=0 // pred_check_branch
    %166 = sbr.rel (0) target = $region37
  $region36: #{resnet_generator_forward.55} parent=0 // pred_region
    _
  $region37: #{resnet_generator_forward.55} parent=0 // pred_fallthru
    _
  // Predicated region
  $region38: #{resnet_generator_forward.55} parent=0 // pred_check
    _
  $region39: #{resnet_generator_forward.55} parent=0 // pred_check_branch
    %168 = sbr.rel (0) target = $region41
  $region40: #{resnet_generator_forward.55} parent=0 // pred_region
    _
  $region41: #{resnet_generator_forward.55} parent=0 // pred_fallthru
    _

// kernel: resnet_generator_forward.57
$region0: #{resnet_generator_forward.57}
  #allocation0 [shape = 'u32[]', space=smem, size = 0x4, offset = 0x4, fixed_abs, tag = 'smem constant byte address 0x4 - core index']
  #allocation1 [shape = 'u32[72,128]{1,0:T(1,128)}', space=vmem, size = 0x9000, scoped, tag = 'internal scratch']
  #allocation2 [shape = 'f32[32,16]{1,0:T(8,128)}', space=vmem, size = 0x4000, scoped, tag = 'scratch operand']
  %s0 = inlined_call_operand.vmem [shape: bf16[32,128], index: 0, kind: input, shape index: {}]
  %s1 = inlined_call_operand.vmem [shape: bf16[128,16], index: 1, kind: input, shape index: {}]
  %s2 = inlined_call_operand.vmem [shape: bf16[32,16], index: 2, kind: output, shape index: {0}]
  %s3 = inlined_call_operand.vmem [shape: f32[1,8,16], index: 3, kind: output, shape index: {1}]
  %s4 = inlined_call_operand.vmem [shape: f32[1,8,16], index: 4, kind: output, shape index: {2}]
  %5 = xla_tuple %s2, %s3, %s4
  %s6 = sld [smem:[#allocation0]]
  $region42: #{resnet_generator_forward.57} parent=0
    _
  %s8 = ssub.s32 1, %s6
  %s9 = scalar_select 0, %s8, %s6
  // Predicated region
  $region2: #{resnet_generator_forward.57} parent=0 // pred_check
    _
  $region3: #{resnet_generator_forward.57} parent=0 // pred_check_branch
    %11 = sbr.rel (0) target = $region5
  $region4: #{resnet_generator_forward.57} parent=0 // pred_region
    _
  $region5: #{resnet_generator_forward.57} parent=0 // pred_fallthru
    _
  // Predicated region
  $region6: #{resnet_generator_forward.57} parent=0 // pred_check
    _
  $region7: #{resnet_generator_forward.57} parent=0 // pred_check_branch
    %13 = sbr.rel (0) target = $region9
  $region8: #{resnet_generator_forward.57} parent=0 // pred_region
    _
  $region9: #{resnet_generator_forward.57} parent=0 // pred_fallthru
    _
  %p14 = scmp.eq.s32.totalorder 0, 0
  // Predicated region
  $region10: #{resnet_generator_forward.57} parent=0 // pred_check
    %p15 = pneg %p14
  $region11: #{resnet_generator_forward.57} parent=0 // pred_check_branch
    %17 = sbr.rel (%p15) target = $region13
  $region12: #{resnet_generator_forward.57} parent=0 // pred_region
    %vm18 = vcmask 130048
    %19 = vst.msk [vmem:[#allocation2] sm:$0xff] %vm18, 0.0
    %20 = vst.msk [vmem:[#allocation2 + $0x8] sm:$0xff] %vm18, 0.0
    %21 = vst.msk [vmem:[#allocation2 + $0x10] sm:$0xff] %vm18, 0.0
    %22 = vst.msk [vmem:[#allocation2 + $0x18] sm:$0xff] %vm18, 0.0
  $region13: #{resnet_generator_forward.57} parent=0 // pred_fallthru
    _
  %v23 = vld [vmem:[#allocation2] sm:$0xff]
  %v24 = vld [vmem:[#allocation2 + $0x8] sm:$0xff]
  %v25 = vld [vmem:[#allocation2 + $0x10] sm:$0xff]
  %v26 = vld [vmem:[#allocation2 + $0x18] sm:$0xff]
  %v27 = vld [vmem:[%s0] sm:$0xf]
  %v28 = vld [vmem:[%s0 + $0x4] sm:$0xf]
  %v29 = vld [vmem:[%s0 + $0x8] sm:$0xf]
  %v30 = vld [vmem:[%s0 + $0xc] sm:$0xf]
  %v31 = vld [vmem:[%s1] sm:$0xf]
  %v32 = vld [vmem:[%s1 + $0x4] sm:$0xf]
  %v33 = vld [vmem:[%s1 + $0x8] sm:$0xf]
  %v34 = vld [vmem:[%s1 + $0xc] sm:$0xf]
  %v35 = vld [vmem:[%s1 + $0x10] sm:$0xf]
  %v36 = vld [vmem:[%s1 + $0x14] sm:$0xf]
  %v37 = vld [vmem:[%s1 + $0x18] sm:$0xf]
  %v38 = vld [vmem:[%s1 + $0x1c] sm:$0xf]
  %v39 = vld [vmem:[%s1 + $0x20] sm:$0xf]
  %v40 = vld [vmem:[%s1 + $0x24] sm:$0xf]
  %v41 = vld [vmem:[%s1 + $0x28] sm:$0xf]
  %v42 = vld [vmem:[%s1 + $0x2c] sm:$0xf]
  %v43 = vld [vmem:[%s1 + $0x30] sm:$0xf]
  %v44 = vld [vmem:[%s1 + $0x34] sm:$0xf]
  %v45 = vld [vmem:[%s1 + $0x38] sm:$0xf]
  %v46 = vld [vmem:[%s1 + $0x3c] sm:$0xf]
  %v51 = vunpack.c.l.b16 %v27
  %v52 = vunpack.c.l.b16 %v28
  %v53 = vunpack.c.l.b16 %v29
  %v54 = vunpack.c.l.b16 %v30
  %v55 = vpack.c.b16 %v52, %v51
  %v56 = vpack.c.b16 %v54, %v53
  %v75 = vunpack.c.l.b16 %v31
  %v76 = vunpack.c.l.b16 %v32
  %v77 = vunpack.c.l.b16 %v33
  %v78 = vunpack.c.l.b16 %v34
  %v79 = vunpack.c.l.b16 %v35
  %v80 = vunpack.c.l.b16 %v36
  %v81 = vunpack.c.l.b16 %v37
  %v82 = vunpack.c.l.b16 %v38
  %v83 = vunpack.c.l.b16 %v39
  %v84 = vunpack.c.l.b16 %v40
  %v85 = vunpack.c.l.b16 %v41
  %v86 = vunpack.c.l.b16 %v42
  %v87 = vunpack.c.l.b16 %v43
  %v88 = vunpack.c.l.b16 %v44
  %v89 = vunpack.c.l.b16 %v45
  %v90 = vunpack.c.l.b16 %v46
  %v91 = vpack.c.b16 %v76, %v75
  %v92 = vpack.c.b16 %v78, %v77
  %v93 = vpack.c.b16 %v80, %v79
  %v94 = vpack.c.b16 %v82, %v81
  %v95 = vpack.c.b16 %v84, %v83
  %v96 = vpack.c.b16 %v86, %v85
  %v97 = vpack.c.b16 %v88, %v87
  %v98 = vpack.c.b16 %v90, %v89
  %107 = vmatpush.bf16.msra.mxu0 %v98
  %108 = vmatpush.bf16.msra.mxu0 %v97
  %109 = vmatpush.bf16.msra.mxu0 %v96
  %110 = vmatpush.bf16.msra.mxu0 %v95
  %111 = vmatpush.bf16.msra.mxu0 %v94
  %112 = vmatpush.bf16.msra.mxu0 %v93
  %113 = vmatpush.bf16.msra.mxu0 %v92
  %114 = vmatpush.bf16.msra.mxu0 %v91
  %115 = vmatmul.bf16.gmra.mxu0 %v55
  %v116 = vpop.f32.mrf.mxu0
  %v117 = vadd.f32 0.0, %v116
  %v118 = vpop.f32.mrf.mxu0
  %v119 = vadd.f32 0.0, %v118
  %120 = vmatmul.bf16.gmra.mxu0 %v56
  %v121 = vpop.f32.mrf.mxu0
  %v122 = vadd.f32 0.0, %v121
  %v123 = vpop.f32.mrf.mxu0
  %v124 = vadd.f32 0.0, %v123
  %125 = vdwg.mxu0
  %v126 = vadd.f32 %v23, %v117
  %v127 = vadd.f32 %v24, %v119
  %v128 = vadd.f32 %v25, %v122
  %v129 = vadd.f32 %v26, %v124
  %vm130 = vcmask 130048
  %131 = vst.msk [vmem:[#allocation2] sm:$0xff] %vm130, %v126
  %132 = vst.msk [vmem:[#allocation2 + $0x8] sm:$0xff] %vm130, %v127
  %133 = vst.msk [vmem:[#allocation2 + $0x10] sm:$0xff] %vm130, %v128
  %134 = vst.msk [vmem:[#allocation2 + $0x18] sm:$0xff] %vm130, %v129
  // Predicated region
  $region14: #{resnet_generator_forward.57} parent=0 // pred_check
    %p135 = pneg %p14
  $region15: #{resnet_generator_forward.57} parent=0 // pred_check_branch
    %137 = sbr.rel (%p135) target = $region17
  $region16: #{resnet_generator_forward.57} parent=0 // pred_region
    %v138 = vld [vmem:[#allocation2] sm:$0xff]
    %v139 = vld [vmem:[#allocation2 + $0x8] sm:$0xff]
    %v140 = vld [vmem:[#allocation2 + $0x10] sm:$0xff]
    %v141 = vld [vmem:[#allocation2 + $0x18] sm:$0xff]
    %v142 = vpack.c.bf16 %v138, %v138
    %v143 = vpack.c.bf16 %v139, %v139
    %v144 = vpack.c.bf16 %v140, %v140
    %v145 = vpack.c.bf16 %v141, %v141
    %vm146 = vcmask 125952
    %147 = vst.msk [vmem:[%s2] sm:$0xf] %vm146, %v142
    %148 = vst.msk [vmem:[%s2 + $0x4] sm:$0xf] %vm146, %v143
    %149 = vst.msk [vmem:[%s2 + $0x8] sm:$0xf] %vm146, %v144
    %150 = vst.msk [vmem:[%s2 + $0xc] sm:$0xf] %vm146, %v145
    %v151 = vsel %vm130, %v138, 0.0
    %v152 = vsel %vm130, %v139, 0.0
    %v153 = vadd.f32 %v151, %v152
    %v154 = vsel %vm130, %v140, 0.0
    %v155 = vadd.f32 %v153, %v154
    %v156 = vsel %vm130, %v141, 0.0
    %v157 = vadd.f32 %v155, %v156
    %v158 = vrot.slane %v157, 4
    %v159 = vadd.f32 %v157, %v158
    %v160 = vrot.slane %v159, 2
    %v161 = vadd.f32 %v159, %v160
    %v162 = vrot.slane %v161, 1
    %v163 = vadd.f32 %v161, %v162
    %v164 = vmul.f32 %v138, %v138
    %v165 = vmul.f32 %v139, %v139
    %v166 = vmul.f32 %v140, %v140
    %v167 = vmul.f32 %v141, %v141
    %v168 = vsel %vm130, %v164, 0.0
    %v169 = vsel %vm130, %v165, 0.0
    %v170 = vadd.f32 %v168, %v169
    %v171 = vsel %vm130, %v166, 0.0
    %v172 = vadd.f32 %v170, %v171
    %v173 = vsel %vm130, %v167, 0.0
    %v174 = vadd.f32 %v172, %v173
    %v175 = vrot.slane %v174, 4
    %v176 = vadd.f32 %v174, %v175
    %v177 = vrot.slane %v176, 2
    %v178 = vadd.f32 %v176, %v177
    %v179 = vrot.slane %v178, 1
    %v180 = vadd.f32 %v178, %v179
    %181 = vst.msk [vmem:[%s3] sm:$0xff] %vm130, %v163
    %182 = vst.msk [vmem:[%s4] sm:$0xff] %vm130, %v180
  $region17: #{resnet_generator_forward.57} parent=0 // pred_fallthru
    _
  // Predicated region
  $region18: #{resnet_generator_forward.57} parent=0 // pred_check
    _
  $region19: #{resnet_generator_forward.57} parent=0 // pred_check_branch
    %184 = sbr.rel (0) target = $region21
  $region20: #{resnet_generator_forward.57} parent=0 // pred_region
    _
  $region21: #{resnet_generator_forward.57} parent=0 // pred_fallthru
    _
  // Predicated region
  $region22: #{resnet_generator_forward.57} parent=0 // pred_check
    _
  $region23: #{resnet_generator_forward.57} parent=0 // pred_check_branch
    %186 = sbr.rel (0) target = $region25
  $region24: #{resnet_generator_forward.57} parent=0 // pred_region
    _
  $region25: #{resnet_generator_forward.57} parent=0 // pred_fallthru
    _
  // Predicated region
  $region26: #{resnet_generator_forward.57} parent=0 // pred_check
    _
  $region27: #{resnet_generator_forward.57} parent=0 // pred_check_branch
    %188 = sbr.rel (0) target = $region29
  $region28: #{resnet_generator_forward.57} parent=0 // pred_region
    _
  $region29: #{resnet_generator_forward.57} parent=0 // pred_fallthru
    _
  // Predicated region
  $region30: #{resnet_generator_forward.57} parent=0 // pred_check
    _
  $region31: #{resnet_generator_forward.57} parent=0 // pred_check_branch
    %190 = sbr.rel (0) target = $region33
  $region32: #{resnet_generator_forward.57} parent=0 // pred_region
    _
  $region33: #{resnet_generator_forward.57} parent=0 // pred_fallthru
    _
  // Predicated region
  $region34: #{resnet_generator_forward.57} parent=0 // pred_check
    _
  $region35: #{resnet_generator_forward.57} parent=0 // pred_check_branch
    %192 = sbr.rel (0) target = $region37
  $region36: #{resnet_generator_forward.57} parent=0 // pred_region
    _
  $region37: #{resnet_generator_forward.57} parent=0 // pred_fallthru
    _
  // Predicated region
  $region38: #{resnet_generator_forward.57} parent=0 // pred_check
    _
  $region39: #{resnet_generator_forward.57} parent=0 // pred_check_branch
    %194 = sbr.rel (0) target = $region41
  $region40: #{resnet_generator_forward.57} parent=0 // pred_region
    _
  $region41: #{resnet_generator_forward.57} parent=0 // pred_fallthru
    _

// kernel: resnet_generator_forward.61
$region0: #{resnet_generator_forward.61}
  #allocation0 [shape = 'u32[]', space=smem, size = 0x4, offset = 0x4, fixed_abs, tag = 'smem constant byte address 0x4 - core index']
  #allocation1 [shape = 'u32[72,128]{1,0:T(1,128)}', space=vmem, size = 0x9000, scoped, tag = 'internal scratch']
  %s0 = inlined_call_operand.vmem [shape: bf16[32,16], index: 0, kind: input, shape index: {}]
  %s1 = inlined_call_operand.vmem [shape: f32[1,16], index: 1, kind: input, shape index: {}]
  %s2 = inlined_call_operand.vmem [shape: f32[1,16], index: 2, kind: input, shape index: {}]
  %s3 = inlined_call_operand.vmem [shape: bf16[32,16], index: 3, kind: output, shape index: {}]
  %s4 = sld [smem:[#allocation0]]
  $region22: #{resnet_generator_forward.61} parent=0
    _
  %s6 = ssub.s32 1, %s4
  %s7 = scalar_select 0, %s6, %s4
  // Predicated region
  $region2: #{resnet_generator_forward.61} parent=0 // pred_check
    _
  $region3: #{resnet_generator_forward.61} parent=0 // pred_check_branch
    %9 = sbr.rel (0) target = $region5
  $region4: #{resnet_generator_forward.61} parent=0 // pred_region
    _
  $region5: #{resnet_generator_forward.61} parent=0 // pred_fallthru
    _
  // Predicated region
  $region6: #{resnet_generator_forward.61} parent=0 // pred_check
    _
  $region7: #{resnet_generator_forward.61} parent=0 // pred_check_branch
    %11 = sbr.rel (0) target = $region9
  $region8: #{resnet_generator_forward.61} parent=0 // pred_region
    _
  $region9: #{resnet_generator_forward.61} parent=0 // pred_fallthru
    _
  // Predicated region
  $region10: #{resnet_generator_forward.61} parent=0 // pred_check
    _
  $region11: #{resnet_generator_forward.61} parent=0 // pred_check_branch
    %13 = sbr.rel (0) target = $region13
  $region12: #{resnet_generator_forward.61} parent=0 // pred_region
    _
  $region13: #{resnet_generator_forward.61} parent=0 // pred_fallthru
    _
  %v14 = vld [vmem:[%s0] sm:$0xf]
  %v15 = vld [vmem:[%s0 + $0x4] sm:$0xf]
  %v16 = vld [vmem:[%s0 + $0x8] sm:$0xf]
  %v17 = vld [vmem:[%s0 + $0xc] sm:$0xf]
  %v18 = vunpack.c.l.bf16 %v14
  %v19 = vunpack.c.l.bf16 %v15
  %v20 = vunpack.c.l.bf16 %v16
  %v21 = vunpack.c.l.bf16 %v17
  %v22 = vld [vmem:[%s1] sm:$0x1]
  %v24 = vperm.slane %v22, 0
  %v26 = vmul.f32 %v18, %v24
  %v27 = vmul.f32 %v19, %v24
  %v28 = vmul.f32 %v20, %v24
  %v29 = vmul.f32 %v21, %v24
  %v30 = vld [vmem:[%s2] sm:$0x1]
  %v32 = vperm.slane %v30, 0
  %v34 = vadd.f32 %v26, %v32
  %v35 = vadd.f32 %v27, %v32
  %v36 = vadd.f32 %v28, %v32
  %v37 = vadd.f32 %v29, %v32
  %v38 = vmax.f32 %v34, 0.0
  %v39 = vmax.f32 %v35, 0.0
  %v40 = vmax.f32 %v36, 0.0
  %v41 = vmax.f32 %v37, 0.0
  %v42 = vpack.c.bf16 %v38, %v38
  %v43 = vpack.c.bf16 %v39, %v39
  %v44 = vpack.c.bf16 %v40, %v40
  %v45 = vpack.c.bf16 %v41, %v41
  %vm46 = vcmask 125952
  %47 = vst.msk [vmem:[%s3] sm:$0xf] %vm46, %v42
  %48 = vst.msk [vmem:[%s3 + $0x4] sm:$0xf] %vm46, %v43
  %49 = vst.msk [vmem:[%s3 + $0x8] sm:$0xf] %vm46, %v44
  %50 = vst.msk [vmem:[%s3 + $0xc] sm:$0xf] %vm46, %v45
  // Predicated region
  $region14: #{resnet_generator_forward.61} parent=0 // pred_check
    _
  $region15: #{resnet_generator_forward.61} parent=0 // pred_check_branch
    %52 = sbr.rel (0) target = $region17
  $region16: #{resnet_generator_forward.61} parent=0 // pred_region
    _
  $region17: #{resnet_generator_forward.61} parent=0 // pred_fallthru
    _
  // Predicated region
  $region18: #{resnet_generator_forward.61} parent=0 // pred_check
    _
  $region19: #{resnet_generator_forward.61} parent=0 // pred_check_branch
    %54 = sbr.rel (0) target = $region21
  $region20: #{resnet_generator_forward.61} parent=0 // pred_region
    _
  $region21: #{resnet_generator_forward.61} parent=0 // pred_fallthru
    _

// kernel: resnet_generator_forward.54
$region0: #{resnet_generator_forward.54}
  #allocation0 [shape = 'u32[]', space=smem, size = 0x4, offset = 0x4, fixed_abs, tag = 'smem constant byte address 0x4 - core index']
  #allocation1 [shape = 'u32[72,128]{1,0:T(1,128)}', space=vmem, size = 0x9000, scoped, tag = 'internal scratch']
  #allocation2 [shape = 'f32[32,16]{1,0:T(8,128)}', space=vmem, size = 0x4000, scoped, tag = 'scratch operand']
  %s0 = inlined_call_operand.vmem [shape: bf16[32,32], index: 0, kind: input, shape index: {}]
  %s1 = inlined_call_operand.vmem [shape: bf16[32,16], index: 1, kind: input, shape index: {}]
  %s2 = inlined_call_operand.vmem [shape: bf16[32,16], index: 2, kind: output, shape index: {0}]
  %s3 = inlined_call_operand.vmem [shape: f32[1,8,16], index: 3, kind: output, shape index: {1}]
  %s4 = inlined_call_operand.vmem [shape: f32[1,8,16], index: 4, kind: output, shape index: {2}]
  %5 = xla_tuple %s2, %s3, %s4
  %s6 = sld [smem:[#allocation0]]
  $region42: #{resnet_generator_forward.54} parent=0
    _
  %s8 = ssub.s32 1, %s6
  %s9 = scalar_select 0, %s8, %s6
  // Predicated region
  $region2: #{resnet_generator_forward.54} parent=0 // pred_check
    _
  $region3: #{resnet_generator_forward.54} parent=0 // pred_check_branch
    %11 = sbr.rel (0) target = $region5
  $region4: #{resnet_generator_forward.54} parent=0 // pred_region
    _
  $region5: #{resnet_generator_forward.54} parent=0 // pred_fallthru
    _
  // Predicated region
  $region6: #{resnet_generator_forward.54} parent=0 // pred_check
    _
  $region7: #{resnet_generator_forward.54} parent=0 // pred_check_branch
    %13 = sbr.rel (0) target = $region9
  $region8: #{resnet_generator_forward.54} parent=0 // pred_region
    _
  $region9: #{resnet_generator_forward.54} parent=0 // pred_fallthru
    _
  %p15 = scmp.eq.s32.totalorder 0, 0
  // Predicated region
  $region10: #{resnet_generator_forward.54} parent=0 // pred_check
    %p16 = pneg %p15
  $region11: #{resnet_generator_forward.54} parent=0 // pred_check_branch
    %18 = sbr.rel (%p16) target = $region13
  $region12: #{resnet_generator_forward.54} parent=0 // pred_region
    %vm19 = vcmask 130048
    %20 = vst.msk [vmem:[#allocation2] sm:$0xff] %vm19, 0.0
    %21 = vst.msk [vmem:[#allocation2 + $0x8] sm:$0xff] %vm19, 0.0
    %22 = vst.msk [vmem:[#allocation2 + $0x10] sm:$0xff] %vm19, 0.0
    %23 = vst.msk [vmem:[#allocation2 + $0x18] sm:$0xff] %vm19, 0.0
  $region13: #{resnet_generator_forward.54} parent=0 // pred_fallthru
    _
  %v24 = vld [vmem:[#allocation2] sm:$0xff]
  %v25 = vld [vmem:[#allocation2 + $0x8] sm:$0xff]
  %v26 = vld [vmem:[#allocation2 + $0x10] sm:$0xff]
  %v27 = vld [vmem:[#allocation2 + $0x18] sm:$0xff]
  %v28 = vld [vmem:[%s0] sm:$0xf]
  %v29 = vld [vmem:[%s0 + $0x4] sm:$0xf]
  %v30 = vld [vmem:[%s0 + $0x8] sm:$0xf]
  %v31 = vld [vmem:[%s0 + $0xc] sm:$0xf]
  %v32 = vld [vmem:[%s1] sm:$0xf]
  %v33 = vld [vmem:[%s1 + $0x4] sm:$0xf]
  %v34 = vld [vmem:[%s1 + $0x8] sm:$0xf]
  %v35 = vld [vmem:[%s1 + $0xc] sm:$0xf]
  %v40 = vunpack.c.l.b16 %v28
  %v41 = vunpack.c.l.b16 %v29
  %v42 = vunpack.c.l.b16 %v30
  %v43 = vunpack.c.l.b16 %v31
  %v44 = vpack.c.b16 %v41, %v40
  %v45 = vpack.c.b16 %v43, %v42
  %v50 = vunpack.c.l.b16 %v32
  %v51 = vunpack.c.l.b16 %v33
  %v52 = vunpack.c.l.b16 %v34
  %v53 = vunpack.c.l.b16 %v35
  %v54 = vpack.c.b16 %v51, %v50
  %v55 = vpack.c.b16 %v53, %v52
  %vm58 = vcmask 261120
  %v60 = vsel %vm58, %v44, 0
  %v63 = vsel %vm58, %v45, 0
  %65 = vmatpush.bf16.msra.mxu0 0
  %66 = vmatpush.bf16.msra.mxu0 0
  %67 = vmatpush.bf16.msra.mxu0 0
  %68 = vmatpush.bf16.msra.mxu0 0
  %69 = vmatpush.bf16.msra.mxu0 0
  %70 = vmatpush.bf16.msra.mxu0 0
  %71 = vmatpush.bf16.msra.mxu0 %v55
  %72 = vmatpush.bf16.msra.mxu0 %v54
  %73 = vmatmul.bf16.gmra.mxu0 %v60
  %v74 = vpop.f32.mrf.mxu0
  %v75 = vadd.f32 0.0, %v74
  %v76 = vpop.f32.mrf.mxu0
  %v77 = vadd.f32 0.0, %v76
  %78 = vmatmul.bf16.gmra.mxu0 %v63
  %v79 = vpop.f32.mrf.mxu0
  %v80 = vadd.f32 0.0, %v79
  %v81 = vpop.f32.mrf.mxu0
  %v82 = vadd.f32 0.0, %v81
  %83 = vdwg.mxu0
  %v84 = vadd.f32 %v24, %v75
  %v85 = vadd.f32 %v25, %v77
  %v86 = vadd.f32 %v26, %v80
  %v87 = vadd.f32 %v27, %v82
  %vm88 = vcmask 130048
  %89 = vst.msk [vmem:[#allocation2] sm:$0xff] %vm88, %v84
  %90 = vst.msk [vmem:[#allocation2 + $0x8] sm:$0xff] %vm88, %v85
  %91 = vst.msk [vmem:[#allocation2 + $0x10] sm:$0xff] %vm88, %v86
  %92 = vst.msk [vmem:[#allocation2 + $0x18] sm:$0xff] %vm88, %v87
  // Predicated region
  $region14: #{resnet_generator_forward.54} parent=0 // pred_check
    %p93 = pneg %p15
  $region15: #{resnet_generator_forward.54} parent=0 // pred_check_branch
    %95 = sbr.rel (%p93) target = $region17
  $region16: #{resnet_generator_forward.54} parent=0 // pred_region
    %v96 = vld [vmem:[#allocation2] sm:$0xff]
    %v97 = vld [vmem:[#allocation2 + $0x8] sm:$0xff]
    %v98 = vld [vmem:[#allocation2 + $0x10] sm:$0xff]
    %v99 = vld [vmem:[#allocation2 + $0x18] sm:$0xff]
    %v100 = vpack.c.bf16 %v96, %v96
    %v101 = vpack.c.bf16 %v97, %v97
    %v102 = vpack.c.bf16 %v98, %v98
    %v103 = vpack.c.bf16 %v99, %v99
    %vm104 = vcmask 125952
    %105 = vst.msk [vmem:[%s2] sm:$0xf] %vm104, %v100
    %106 = vst.msk [vmem:[%s2 + $0x4] sm:$0xf] %vm104, %v101
    %107 = vst.msk [vmem:[%s2 + $0x8] sm:$0xf] %vm104, %v102
    %108 = vst.msk [vmem:[%s2 + $0xc] sm:$0xf] %vm104, %v103
    %v109 = vsel %vm88, %v96, 0.0
    %v110 = vsel %vm88, %v97, 0.0
    %v111 = vadd.f32 %v109, %v110
    %v112 = vsel %vm88, %v98, 0.0
    %v113 = vadd.f32 %v111, %v112
    %v114 = vsel %vm88, %v99, 0.0
    %v115 = vadd.f32 %v113, %v114
    %v116 = vrot.slane %v115, 4
    %v117 = vadd.f32 %v115, %v116
    %v118 = vrot.slane %v117, 2
    %v119 = vadd.f32 %v117, %v118
    %v120 = vrot.slane %v119, 1
    %v121 = vadd.f32 %v119, %v120
    %v122 = vmul.f32 %v96, %v96
    %v123 = vmul.f32 %v97, %v97
    %v124 = vmul.f32 %v98, %v98
    %v125 = vmul.f32 %v99, %v99
    %v126 = vsel %vm88, %v122, 0.0
    %v127 = vsel %vm88, %v123, 0.0
    %v128 = vadd.f32 %v126, %v127
    %v129 = vsel %vm88, %v124, 0.0
    %v130 = vadd.f32 %v128, %v129
    %v131 = vsel %vm88, %v125, 0.0
    %v132 = vadd.f32 %v130, %v131
    %v133 = vrot.slane %v132, 4
    %v134 = vadd.f32 %v132, %v133
    %v135 = vrot.slane %v134, 2
    %v136 = vadd.f32 %v134, %v135
    %v137 = vrot.slane %v136, 1
    %v138 = vadd.f32 %v136, %v137
    %139 = vst.msk [vmem:[%s3] sm:$0xff] %vm88, %v121
    %140 = vst.msk [vmem:[%s4] sm:$0xff] %vm88, %v138
  $region17: #{resnet_generator_forward.54} parent=0 // pred_fallthru
    _
  // Predicated region
  $region18: #{resnet_generator_forward.54} parent=0 // pred_check
    _
  $region19: #{resnet_generator_forward.54} parent=0 // pred_check_branch
    %142 = sbr.rel (0) target = $region21
  $region20: #{resnet_generator_forward.54} parent=0 // pred_region
    _
  $region21: #{resnet_generator_forward.54} parent=0 // pred_fallthru
    _
  // Predicated region
  $region22: #{resnet_generator_forward.54} parent=0 // pred_check
    _
  $region23: #{resnet_generator_forward.54} parent=0 // pred_check_branch
    %144 = sbr.rel (0) target = $region25
  $region24: #{resnet_generator_forward.54} parent=0 // pred_region
    _
  $region25: #{resnet_generator_forward.54} parent=0 // pred_fallthru
    _
  // Predicated region
  $region26: #{resnet_generator_forward.54} parent=0 // pred_check
    _
  $region27: #{resnet_generator_forward.54} parent=0 // pred_check_branch
    %146 = sbr.rel (0) target = $region29
  $region28: #{resnet_generator_forward.54} parent=0 // pred_region
    _
  $region29: #{resnet_generator_forward.54} parent=0 // pred_fallthru
    _
  // Predicated region
  $region30: #{resnet_generator_forward.54} parent=0 // pred_check
    _
  $region31: #{resnet_generator_forward.54} parent=0 // pred_check_branch
    %148 = sbr.rel (0) target = $region33
  $region32: #{resnet_generator_forward.54} parent=0 // pred_region
    _
  $region33: #{resnet_generator_forward.54} parent=0 // pred_fallthru
    _
  // Predicated region
  $region34: #{resnet_generator_forward.54} parent=0 // pred_check
    _
  $region35: #{resnet_generator_forward.54} parent=0 // pred_check_branch
    %150 = sbr.rel (0) target = $region37
  $region36: #{resnet_generator_forward.54} parent=0 // pred_region
    _
  $region37: #{resnet_generator_forward.54} parent=0 // pred_fallthru
    _
  // Predicated region
  $region38: #{resnet_generator_forward.54} parent=0 // pred_check
    _
  $region39: #{resnet_generator_forward.54} parent=0 // pred_check_branch
    %152 = sbr.rel (0) target = $region41
  $region40: #{resnet_generator_forward.54} parent=0 // pred_region
    _
  $region41: #{resnet_generator_forward.54} parent=0 // pred_fallthru
    _

// kernel: resnet_generator_forward.63
$region0: #{resnet_generator_forward.63}
  #allocation0 [shape = 'u32[]', space=smem, size = 0x4, offset = 0x4, fixed_abs, tag = 'smem constant byte address 0x4 - core index']
  #allocation1 [shape = 'u32[72,128]{1,0:T(1,128)}', space=vmem, size = 0x9000, scoped, tag = 'internal scratch']
  #allocation2 [shape = 'f32[128,8]{1,0:T(8,128)}', space=vmem, size = 0x10000, scoped, tag = 'scratch operand']
  %s0 = inlined_call_operand.vmem [shape: bf16[128,32], index: 0, kind: input, shape index: {}]
  %s1 = inlined_call_operand.vmem [shape: bf16[32,8], index: 1, kind: input, shape index: {}]
  %s2 = inlined_call_operand.vmem [shape: bf16[128,8], index: 2, kind: output, shape index: {0}]
  %s3 = inlined_call_operand.vmem [shape: f32[1,8,8], index: 3, kind: output, shape index: {1}]
  %s4 = inlined_call_operand.vmem [shape: f32[1,8,8], index: 4, kind: output, shape index: {2}]
  %5 = xla_tuple %s2, %s3, %s4
  %s6 = sld [smem:[#allocation0]]
  $region42: #{resnet_generator_forward.63} parent=0
    _
  %s8 = ssub.s32 1, %s6
  %s9 = scalar_select 0, %s8, %s6
  // Predicated region
  $region2: #{resnet_generator_forward.63} parent=0 // pred_check
    _
  $region3: #{resnet_generator_forward.63} parent=0 // pred_check_branch
    %11 = sbr.rel (0) target = $region5
  $region4: #{resnet_generator_forward.63} parent=0 // pred_region
    _
  $region5: #{resnet_generator_forward.63} parent=0 // pred_fallthru
    _
  // Predicated region
  $region6: #{resnet_generator_forward.63} parent=0 // pred_check
    _
  $region7: #{resnet_generator_forward.63} parent=0 // pred_check_branch
    %13 = sbr.rel (0) target = $region9
  $region8: #{resnet_generator_forward.63} parent=0 // pred_region
    _
  $region9: #{resnet_generator_forward.63} parent=0 // pred_fallthru
    _
  %p15 = scmp.eq.s32.totalorder 0, 0
  // Predicated region
  $region10: #{resnet_generator_forward.63} parent=0 // pred_check
    %p16 = pneg %p15
  $region11: #{resnet_generator_forward.63} parent=0 // pred_check_branch
    %18 = sbr.rel (%p16) target = $region13
  $region12: #{resnet_generator_forward.63} parent=0 // pred_region
    %vm19 = vcmask 64512
    %20 = vst.msk [vmem:[#allocation2] sm:$0xff] %vm19, 0.0
    %21 = vst.msk [vmem:[#allocation2 + $0x8] sm:$0xff] %vm19, 0.0
    %22 = vst.msk [vmem:[#allocation2 + $0x10] sm:$0xff] %vm19, 0.0
    %23 = vst.msk [vmem:[#allocation2 + $0x18] sm:$0xff] %vm19, 0.0
    %24 = vst.msk [vmem:[#allocation2 + $0x20] sm:$0xff] %vm19, 0.0
    %25 = vst.msk [vmem:[#allocation2 + $0x28] sm:$0xff] %vm19, 0.0
    %26 = vst.msk [vmem:[#allocation2 + $0x30] sm:$0xff] %vm19, 0.0
    %27 = vst.msk [vmem:[#allocation2 + $0x38] sm:$0xff] %vm19, 0.0
    %28 = vst.msk [vmem:[#allocation2 + $0x40] sm:$0xff] %vm19, 0.0
    %29 = vst.msk [vmem:[#allocation2 + $0x48] sm:$0xff] %vm19, 0.0
    %30 = vst.msk [vmem:[#allocation2 + $0x50] sm:$0xff] %vm19, 0.0
    %31 = vst.msk [vmem:[#allocation2 + $0x58] sm:$0xff] %vm19, 0.0
    %32 = vst.msk [vmem:[#allocation2 + $0x60] sm:$0xff] %vm19, 0.0
    %33 = vst.msk [vmem:[#allocation2 + $0x68] sm:$0xff] %vm19, 0.0
    %34 = vst.msk [vmem:[#allocation2 + $0x70] sm:$0xff] %vm19, 0.0
    %35 = vst.msk [vmem:[#allocation2 + $0x78] sm:$0xff] %vm19, 0.0
  $region13: #{resnet_generator_forward.63} parent=0 // pred_fallthru
    _
  %v36 = vld [vmem:[#allocation2] sm:$0xff]
  %v37 = vld [vmem:[#allocation2 + $0x8] sm:$0xff]
  %v38 = vld [vmem:[#allocation2 + $0x10] sm:$0xff]
  %v39 = vld [vmem:[#allocation2 + $0x18] sm:$0xff]
  %v40 = vld [vmem:[#allocation2 + $0x20] sm:$0xff]
  %v41 = vld [vmem:[#allocation2 + $0x28] sm:$0xff]
  %v42 = vld [vmem:[#allocation2 + $0x30] sm:$0xff]
  %v43 = vld [vmem:[#allocation2 + $0x38] sm:$0xff]
  %v44 = vld [vmem:[#allocation2 + $0x40] sm:$0xff]
  %v45 = vld [vmem:[#allocation2 + $0x48] sm:$0xff]
  %v46 = vld [vmem:[#allocation2 + $0x50] sm:$0xff]
  %v47 = vld [vmem:[#allocation2 + $0x58] sm:$0xff]
  %v48 = vld [vmem:[#allocation2 + $0x60] sm:$0xff]
  %v49 = vld [vmem:[#allocation2 + $0x68] sm:$0xff]
  %v50 = vld [vmem:[#allocation2 + $0x70] sm:$0xff]
  %v51 = vld [vmem:[#allocation2 + $0x78] sm:$0xff]
  %v52 = vld [vmem:[%s0] sm:$0xf]
  %v53 = vld [vmem:[%s0 + $0x4] sm:$0xf]
  %v54 = vld [vmem:[%s0 + $0x8] sm:$0xf]
  %v55 = vld [vmem:[%s0 + $0xc] sm:$0xf]
  %v56 = vld [vmem:[%s0 + $0x10] sm:$0xf]
  %v57 = vld [vmem:[%s0 + $0x14] sm:$0xf]
  %v58 = vld [vmem:[%s0 + $0x18] sm:$0xf]
  %v59 = vld [vmem:[%s0 + $0x1c] sm:$0xf]
  %v60 = vld [vmem:[%s0 + $0x20] sm:$0xf]
  %v61 = vld [vmem:[%s0 + $0x24] sm:$0xf]
  %v62 = vld [vmem:[%s0 + $0x28] sm:$0xf]
  %v63 = vld [vmem:[%s0 + $0x2c] sm:$0xf]
  %v64 = vld [vmem:[%s0 + $0x30] sm:$0xf]
  %v65 = vld [vmem:[%s0 + $0x34] sm:$0xf]
  %v66 = vld [vmem:[%s0 + $0x38] sm:$0xf]
  %v67 = vld [vmem:[%s0 + $0x3c] sm:$0xf]
  %v68 = vld [vmem:[%s1] sm:$0xf]
  %v69 = vld [vmem:[%s1 + $0x4] sm:$0xf]
  %v70 = vld [vmem:[%s1 + $0x8] sm:$0xf]
  %v71 = vld [vmem:[%s1 + $0xc] sm:$0xf]
  %v88 = vunpack.c.l.b16 %v52
  %v89 = vunpack.c.l.b16 %v53
  %v90 = vunpack.c.l.b16 %v54
  %v91 = vunpack.c.l.b16 %v55
  %v92 = vunpack.c.l.b16 %v56
  %v93 = vunpack.c.l.b16 %v57
  %v94 = vunpack.c.l.b16 %v58
  %v95 = vunpack.c.l.b16 %v59
  %v96 = vunpack.c.l.b16 %v60
  %v97 = vunpack.c.l.b16 %v61
  %v98 = vunpack.c.l.b16 %v62
  %v99 = vunpack.c.l.b16 %v63
  %v100 = vunpack.c.l.b16 %v64
  %v101 = vunpack.c.l.b16 %v65
  %v102 = vunpack.c.l.b16 %v66
  %v103 = vunpack.c.l.b16 %v67
  %v104 = vpack.c.b16 %v89, %v88
  %v105 = vpack.c.b16 %v91, %v90
  %v106 = vpack.c.b16 %v93, %v92
  %v107 = vpack.c.b16 %v95, %v94
  %v108 = vpack.c.b16 %v97, %v96
  %v109 = vpack.c.b16 %v99, %v98
  %v110 = vpack.c.b16 %v101, %v100
  %v111 = vpack.c.b16 %v103, %v102
  %v116 = vunpack.c.l.b16 %v68
  %v117 = vunpack.c.l.b16 %v69
  %v118 = vunpack.c.l.b16 %v70
  %v119 = vunpack.c.l.b16 %v71
  %v120 = vpack.c.b16 %v117, %v116
  %v121 = vpack.c.b16 %v119, %v118
  %vm124 = vcmask 261120
  %v126 = vsel %vm124, %v104, 0
  %v129 = vsel %vm124, %v105, 0
  %v132 = vsel %vm124, %v106, 0
  %v135 = vsel %vm124, %v107, 0
  %v138 = vsel %vm124, %v108, 0
  %v141 = vsel %vm124, %v109, 0
  %v144 = vsel %vm124, %v110, 0
  %v147 = vsel %vm124, %v111, 0
  %149 = vmatpush.bf16.msra.mxu0 0
  %150 = vmatpush.bf16.msra.mxu0 0
  %151 = vmatpush.bf16.msra.mxu0 0
  %152 = vmatpush.bf16.msra.mxu0 0
  %153 = vmatpush.bf16.msra.mxu0 0
  %154 = vmatpush.bf16.msra.mxu0 0
  %155 = vmatpush.bf16.msra.mxu0 %v121
  %156 = vmatpush.bf16.msra.mxu0 %v120
  %157 = vmatmul.bf16.gmra.mxu0 %v126
  %v158 = vpop.f32.mrf.mxu0
  %v159 = vadd.f32 0.0, %v158
  %v160 = vpop.f32.mrf.mxu0
  %v161 = vadd.f32 0.0, %v160
  %162 = vmatmul.bf16.gmra.mxu0 %v129
  %v163 = vpop.f32.mrf.mxu0
  %v164 = vadd.f32 0.0, %v163
  %v165 = vpop.f32.mrf.mxu0
  %v166 = vadd.f32 0.0, %v165
  %167 = vmatmul.bf16.gmra.mxu0 %v132
  %v168 = vpop.f32.mrf.mxu0
  %v169 = vadd.f32 0.0, %v168
  %v170 = vpop.f32.mrf.mxu0
  %v171 = vadd.f32 0.0, %v170
  %172 = vmatmul.bf16.gmra.mxu0 %v135
  %v173 = vpop.f32.mrf.mxu0
  %v174 = vadd.f32 0.0, %v173
  %v175 = vpop.f32.mrf.mxu0
  %v176 = vadd.f32 0.0, %v175
  %177 = vmatmul.bf16.gmra.mxu0 %v138
  %v178 = vpop.f32.mrf.mxu0
  %v179 = vadd.f32 0.0, %v178
  %v180 = vpop.f32.mrf.mxu0
  %v181 = vadd.f32 0.0, %v180
  %182 = vmatmul.bf16.gmra.mxu0 %v141
  %v183 = vpop.f32.mrf.mxu0
  %v184 = vadd.f32 0.0, %v183
  %v185 = vpop.f32.mrf.mxu0
  %v186 = vadd.f32 0.0, %v185
  %187 = vmatmul.bf16.gmra.mxu0 %v144
  %v188 = vpop.f32.mrf.mxu0
  %v189 = vadd.f32 0.0, %v188
  %v190 = vpop.f32.mrf.mxu0
  %v191 = vadd.f32 0.0, %v190
  %192 = vmatmul.bf16.gmra.mxu0 %v147
  %v193 = vpop.f32.mrf.mxu0
  %v194 = vadd.f32 0.0, %v193
  %v195 = vpop.f32.mrf.mxu0
  %v196 = vadd.f32 0.0, %v195
  %197 = vdwg.mxu0
  %v198 = vadd.f32 %v36, %v159
  %v199 = vadd.f32 %v37, %v161
  %v200 = vadd.f32 %v38, %v164
  %v201 = vadd.f32 %v39, %v166
  %v202 = vadd.f32 %v40, %v169
  %v203 = vadd.f32 %v41, %v171
  %v204 = vadd.f32 %v42, %v174
  %v205 = vadd.f32 %v43, %v176
  %v206 = vadd.f32 %v44, %v179
  %v207 = vadd.f32 %v45, %v181
  %v208 = vadd.f32 %v46, %v184
  %v209 = vadd.f32 %v47, %v186
  %v210 = vadd.f32 %v48, %v189
  %v211 = vadd.f32 %v49, %v191
  %v212 = vadd.f32 %v50, %v194
  %v213 = vadd.f32 %v51, %v196
  %vm214 = vcmask 64512
  %215 = vst.msk [vmem:[#allocation2] sm:$0xff] %vm214, %v198
  %216 = vst.msk [vmem:[#allocation2 + $0x8] sm:$0xff] %vm214, %v199
  %217 = vst.msk [vmem:[#allocation2 + $0x10] sm:$0xff] %vm214, %v200
  %218 = vst.msk [vmem:[#allocation2 + $0x18] sm:$0xff] %vm214, %v201
  %219 = vst.msk [vmem:[#allocation2 + $0x20] sm:$0xff] %vm214, %v202
  %220 = vst.msk [vmem:[#allocation2 + $0x28] sm:$0xff] %vm214, %v203
  %221 = vst.msk [vmem:[#allocation2 + $0x30] sm:$0xff] %vm214, %v204
  %222 = vst.msk [vmem:[#allocation2 + $0x38] sm:$0xff] %vm214, %v205
  %223 = vst.msk [vmem:[#allocation2 + $0x40] sm:$0xff] %vm214, %v206
  %224 = vst.msk [vmem:[#allocation2 + $0x48] sm:$0xff] %vm214, %v207
  %225 = vst.msk [vmem:[#allocation2 + $0x50] sm:$0xff] %vm214, %v208
  %226 = vst.msk [vmem:[#allocation2 + $0x58] sm:$0xff] %vm214, %v209
  %227 = vst.msk [vmem:[#allocation2 + $0x60] sm:$0xff] %vm214, %v210
  %228 = vst.msk [vmem:[#allocation2 + $0x68] sm:$0xff] %vm214, %v211
  %229 = vst.msk [vmem:[#allocation2 + $0x70] sm:$0xff] %vm214, %v212
  %230 = vst.msk [vmem:[#allocation2 + $0x78] sm:$0xff] %vm214, %v213
  // Predicated region
  $region14: #{resnet_generator_forward.63} parent=0 // pred_check
    %p231 = pneg %p15
  $region15: #{resnet_generator_forward.63} parent=0 // pred_check_branch
    %233 = sbr.rel (%p231) target = $region17
  $region16: #{resnet_generator_forward.63} parent=0 // pred_region
    %v234 = vld [vmem:[#allocation2] sm:$0xff]
    %v235 = vld [vmem:[#allocation2 + $0x8] sm:$0xff]
    %v236 = vld [vmem:[#allocation2 + $0x10] sm:$0xff]
    %v237 = vld [vmem:[#allocation2 + $0x18] sm:$0xff]
    %v238 = vld [vmem:[#allocation2 + $0x20] sm:$0xff]
    %v239 = vld [vmem:[#allocation2 + $0x28] sm:$0xff]
    %v240 = vld [vmem:[#allocation2 + $0x30] sm:$0xff]
    %v241 = vld [vmem:[#allocation2 + $0x38] sm:$0xff]
    %v242 = vld [vmem:[#allocation2 + $0x40] sm:$0xff]
    %v243 = vld [vmem:[#allocation2 + $0x48] sm:$0xff]
    %v244 = vld [vmem:[#allocation2 + $0x50] sm:$0xff]
    %v245 = vld [vmem:[#allocation2 + $0x58] sm:$0xff]
    %v246 = vld [vmem:[#allocation2 + $0x60] sm:$0xff]
    %v247 = vld [vmem:[#allocation2 + $0x68] sm:$0xff]
    %v248 = vld [vmem:[#allocation2 + $0x70] sm:$0xff]
    %v249 = vld [vmem:[#allocation2 + $0x78] sm:$0xff]
    %v250 = vpack.c.bf16 %v234, %v234
    %v251 = vpack.c.bf16 %v235, %v235
    %v252 = vpack.c.bf16 %v236, %v236
    %v253 = vpack.c.bf16 %v237, %v237
    %v254 = vpack.c.bf16 %v238, %v238
    %v255 = vpack.c.bf16 %v239, %v239
    %v256 = vpack.c.bf16 %v240, %v240
    %v257 = vpack.c.bf16 %v241, %v241
    %v258 = vpack.c.bf16 %v242, %v242
    %v259 = vpack.c.bf16 %v243, %v243
    %v260 = vpack.c.bf16 %v244, %v244
    %v261 = vpack.c.bf16 %v245, %v245
    %v262 = vpack.c.bf16 %v246, %v246
    %v263 = vpack.c.bf16 %v247, %v247
    %v264 = vpack.c.bf16 %v248, %v248
    %v265 = vpack.c.bf16 %v249, %v249
    %vm266 = vcmask 60416
    %267 = vst.msk [vmem:[%s2] sm:$0xf] %vm266, %v250
    %268 = vst.msk [vmem:[%s2 + $0x4] sm:$0xf] %vm266, %v251
    %269 = vst.msk [vmem:[%s2 + $0x8] sm:$0xf] %vm266, %v252
    %270 = vst.msk [vmem:[%s2 + $0xc] sm:$0xf] %vm266, %v253
    %271 = vst.msk [vmem:[%s2 + $0x10] sm:$0xf] %vm266, %v254
    %272 = vst.msk [vmem:[%s2 + $0x14] sm:$0xf] %vm266, %v255
    %273 = vst.msk [vmem:[%s2 + $0x18] sm:$0xf] %vm266, %v256
    %274 = vst.msk [vmem:[%s2 + $0x1c] sm:$0xf] %vm266, %v257
    %275 = vst.msk [vmem:[%s2 + $0x20] sm:$0xf] %vm266, %v258
    %276 = vst.msk [vmem:[%s2 + $0x24] sm:$0xf] %vm266, %v259
    %277 = vst.msk [vmem:[%s2 + $0x28] sm:$0xf] %vm266, %v260
    %278 = vst.msk [vmem:[%s2 + $0x2c] sm:$0xf] %vm266, %v261
    %279 = vst.msk [vmem:[%s2 + $0x30] sm:$0xf] %vm266, %v262
    %280 = vst.msk [vmem:[%s2 + $0x34] sm:$0xf] %vm266, %v263
    %281 = vst.msk [vmem:[%s2 + $0x38] sm:$0xf] %vm266, %v264
    %282 = vst.msk [vmem:[%s2 + $0x3c] sm:$0xf] %vm266, %v265
    %v283 = vsel %vm214, %v234, 0.0
    %v284 = vsel %vm214, %v235, 0.0
    %v285 = vadd.f32 %v283, %v284
    %v286 = vsel %vm214, %v236, 0.0
    %v287 = vadd.f32 %v285, %v286
    %v288 = vsel %vm214, %v237, 0.0
    %v289 = vadd.f32 %v287, %v288
    %v290 = vsel %vm214, %v238, 0.0
    %v291 = vadd.f32 %v289, %v290
    %v292 = vsel %vm214, %v239, 0.0
    %v293 = vadd.f32 %v291, %v292
    %v294 = vsel %vm214, %v240, 0.0
    %v295 = vadd.f32 %v293, %v294
    %v296 = vsel %vm214, %v241, 0.0
    %v297 = vadd.f32 %v295, %v296
    %v298 = vsel %vm214, %v242, 0.0
    %v299 = vadd.f32 %v297, %v298
    %v300 = vsel %vm214, %v243, 0.0
    %v301 = vadd.f32 %v299, %v300
    %v302 = vsel %vm214, %v244, 0.0
    %v303 = vadd.f32 %v301, %v302
    %v304 = vsel %vm214, %v245, 0.0
    %v305 = vadd.f32 %v303, %v304
    %v306 = vsel %vm214, %v246, 0.0
    %v307 = vadd.f32 %v305, %v306
    %v308 = vsel %vm214, %v247, 0.0
    %v309 = vadd.f32 %v307, %v308
    %v310 = vsel %vm214, %v248, 0.0
    %v311 = vadd.f32 %v309, %v310
    %v312 = vsel %vm214, %v249, 0.0
    %v313 = vadd.f32 %v311, %v312
    %v314 = vrot.slane %v313, 4
    %v315 = vadd.f32 %v313, %v314
    %v316 = vrot.slane %v315, 2
    %v317 = vadd.f32 %v315, %v316
    %v318 = vrot.slane %v317, 1
    %v319 = vadd.f32 %v317, %v318
    %v320 = vmul.f32 %v234, %v234
    %v321 = vmul.f32 %v235, %v235
    %v322 = vmul.f32 %v236, %v236
    %v323 = vmul.f32 %v237, %v237
    %v324 = vmul.f32 %v238, %v238
    %v325 = vmul.f32 %v239, %v239
    %v326 = vmul.f32 %v240, %v240
    %v327 = vmul.f32 %v241, %v241
    %v328 = vmul.f32 %v242, %v242
    %v329 = vmul.f32 %v243, %v243
    %v330 = vmul.f32 %v244, %v244
    %v331 = vmul.f32 %v245, %v245
    %v332 = vmul.f32 %v246, %v246
    %v333 = vmul.f32 %v247, %v247
    %v334 = vmul.f32 %v248, %v248
    %v335 = vmul.f32 %v249, %v249
    %v336 = vsel %vm214, %v320, 0.0
    %v337 = vsel %vm214, %v321, 0.0
    %v338 = vadd.f32 %v336, %v337
    %v339 = vsel %vm214, %v322, 0.0
    %v340 = vadd.f32 %v338, %v339
    %v341 = vsel %vm214, %v323, 0.0
    %v342 = vadd.f32 %v340, %v341
    %v343 = vsel %vm214, %v324, 0.0
    %v344 = vadd.f32 %v342, %v343
    %v345 = vsel %vm214, %v325, 0.0
    %v346 = vadd.f32 %v344, %v345
    %v347 = vsel %vm214, %v326, 0.0
    %v348 = vadd.f32 %v346, %v347
    %v349 = vsel %vm214, %v327, 0.0
    %v350 = vadd.f32 %v348, %v349
    %v351 = vsel %vm214, %v328, 0.0
    %v352 = vadd.f32 %v350, %v351
    %v353 = vsel %vm214, %v329, 0.0
    %v354 = vadd.f32 %v352, %v353
    %v355 = vsel %vm214, %v330, 0.0
    %v356 = vadd.f32 %v354, %v355
    %v357 = vsel %vm214, %v331, 0.0
    %v358 = vadd.f32 %v356, %v357
    %v359 = vsel %vm214, %v332, 0.0
    %v360 = vadd.f32 %v358, %v359
    %v361 = vsel %vm214, %v333, 0.0
    %v362 = vadd.f32 %v360, %v361
    %v363 = vsel %vm214, %v334, 0.0
    %v364 = vadd.f32 %v362, %v363
    %v365 = vsel %vm214, %v335, 0.0
    %v366 = vadd.f32 %v364, %v365
    %v367 = vrot.slane %v366, 4
    %v368 = vadd.f32 %v366, %v367
    %v369 = vrot.slane %v368, 2
    %v370 = vadd.f32 %v368, %v369
    %v371 = vrot.slane %v370, 1
    %v372 = vadd.f32 %v370, %v371
    %373 = vst.msk [vmem:[%s3] sm:$0xff] %vm214, %v319
    %374 = vst.msk [vmem:[%s4] sm:$0xff] %vm214, %v372
  $region17: #{resnet_generator_forward.63} parent=0 // pred_fallthru
    _
  // Predicated region
  $region18: #{resnet_generator_forward.63} parent=0 // pred_check
    _
  $region19: #{resnet_generator_forward.63} parent=0 // pred_check_branch
    %376 = sbr.rel (0) target = $region21
  $region20: #{resnet_generator_forward.63} parent=0 // pred_region
    _
  $region21: #{resnet_generator_forward.63} parent=0 // pred_fallthru
    _
  // Predicated region
  $region22: #{resnet_generator_forward.63} parent=0 // pred_check
    _
  $region23: #{resnet_generator_forward.63} parent=0 // pred_check_branch
    %378 = sbr.rel (0) target = $region25
  $region24: #{resnet_generator_forward.63} parent=0 // pred_region
    _
  $region25: #{resnet_generator_forward.63} parent=0 // pred_fallthru
    _
  // Predicated region
  $region26: #{resnet_generator_forward.63} parent=0 // pred_check
    _
  $region27: #{resnet_generator_forward.63} parent=0 // pred_check_branch
    %380 = sbr.rel (0) target = $region29
  $region28: #{resnet_generator_forward.63} parent=0 // pred_region
    _
  $region29: #{resnet_generator_forward.63} parent=0 // pred_fallthru
    _
  // Predicated region
  $region30: #{resnet_generator_forward.63} parent=0 // pred_check
    _
  $region31: #{resnet_generator_forward.63} parent=0 // pred_check_branch
    %382 = sbr.rel (0) target = $region33
  $region32: #{resnet_generator_forward.63} parent=0 // pred_region
    _
  $region33: #{resnet_generator_forward.63} parent=0 // pred_fallthru
    _
  // Predicated region
  $region34: #{resnet_generator_forward.63} parent=0 // pred_check
    _
  $region35: #{resnet_generator_forward.63} parent=0 // pred_check_branch
    %384 = sbr.rel (0) target = $region37
  $region36: #{resnet_generator_forward.63} parent=0 // pred_region
    _
  $region37: #{resnet_generator_forward.63} parent=0 // pred_fallthru
    _
  // Predicated region
  $region38: #{resnet_generator_forward.63} parent=0 // pred_check
    _
  $region39: #{resnet_generator_forward.63} parent=0 // pred_check_branch
    %386 = sbr.rel (0) target = $region41
  $region40: #{resnet_generator_forward.63} parent=0 // pred_region
    _
  $region41: #{resnet_generator_forward.63} parent=0 // pred_fallthru
    _

// kernel: resnet_generator_forward.65
$region0: #{resnet_generator_forward.65}
  #allocation0 [shape = 'u32[]', space=smem, size = 0x4, offset = 0x4, fixed_abs, tag = 'smem constant byte address 0x4 - core index']
  #allocation1 [shape = 'u32[72,128]{1,0:T(1,128)}', space=vmem, size = 0x9000, scoped, tag = 'internal scratch']
  #allocation2 [shape = 'f32[128,8]{1,0:T(8,128)}', space=vmem, size = 0x10000, scoped, tag = 'scratch operand']
  %s0 = inlined_call_operand.vmem [shape: bf16[128,64], index: 0, kind: input, shape index: {}]
  %s1 = inlined_call_operand.vmem [shape: bf16[64,8], index: 1, kind: input, shape index: {}]
  %s2 = inlined_call_operand.vmem [shape: bf16[128,8], index: 2, kind: output, shape index: {0}]
  %s3 = inlined_call_operand.vmem [shape: f32[1,8,8], index: 3, kind: output, shape index: {1}]
  %s4 = inlined_call_operand.vmem [shape: f32[1,8,8], index: 4, kind: output, shape index: {2}]
  %5 = xla_tuple %s2, %s3, %s4
  %s6 = sld [smem:[#allocation0]]
  $region42: #{resnet_generator_forward.65} parent=0
    _
  %s8 = ssub.s32 1, %s6
  %s9 = scalar_select 0, %s8, %s6
  // Predicated region
  $region2: #{resnet_generator_forward.65} parent=0 // pred_check
    _
  $region3: #{resnet_generator_forward.65} parent=0 // pred_check_branch
    %11 = sbr.rel (0) target = $region5
  $region4: #{resnet_generator_forward.65} parent=0 // pred_region
    _
  $region5: #{resnet_generator_forward.65} parent=0 // pred_fallthru
    _
  // Predicated region
  $region6: #{resnet_generator_forward.65} parent=0 // pred_check
    _
  $region7: #{resnet_generator_forward.65} parent=0 // pred_check_branch
    %13 = sbr.rel (0) target = $region9
  $region8: #{resnet_generator_forward.65} parent=0 // pred_region
    _
  $region9: #{resnet_generator_forward.65} parent=0 // pred_fallthru
    _
  %p15 = scmp.eq.s32.totalorder 0, 0
  // Predicated region
  $region10: #{resnet_generator_forward.65} parent=0 // pred_check
    %p16 = pneg %p15
  $region11: #{resnet_generator_forward.65} parent=0 // pred_check_branch
    %18 = sbr.rel (%p16) target = $region13
  $region12: #{resnet_generator_forward.65} parent=0 // pred_region
    %vm19 = vcmask 64512
    %20 = vst.msk [vmem:[#allocation2] sm:$0xff] %vm19, 0.0
    %21 = vst.msk [vmem:[#allocation2 + $0x8] sm:$0xff] %vm19, 0.0
    %22 = vst.msk [vmem:[#allocation2 + $0x10] sm:$0xff] %vm19, 0.0
    %23 = vst.msk [vmem:[#allocation2 + $0x18] sm:$0xff] %vm19, 0.0
    %24 = vst.msk [vmem:[#allocation2 + $0x20] sm:$0xff] %vm19, 0.0
    %25 = vst.msk [vmem:[#allocation2 + $0x28] sm:$0xff] %vm19, 0.0
    %26 = vst.msk [vmem:[#allocation2 + $0x30] sm:$0xff] %vm19, 0.0
    %27 = vst.msk [vmem:[#allocation2 + $0x38] sm:$0xff] %vm19, 0.0
    %28 = vst.msk [vmem:[#allocation2 + $0x40] sm:$0xff] %vm19, 0.0
    %29 = vst.msk [vmem:[#allocation2 + $0x48] sm:$0xff] %vm19, 0.0
    %30 = vst.msk [vmem:[#allocation2 + $0x50] sm:$0xff] %vm19, 0.0
    %31 = vst.msk [vmem:[#allocation2 + $0x58] sm:$0xff] %vm19, 0.0
    %32 = vst.msk [vmem:[#allocation2 + $0x60] sm:$0xff] %vm19, 0.0
    %33 = vst.msk [vmem:[#allocation2 + $0x68] sm:$0xff] %vm19, 0.0
    %34 = vst.msk [vmem:[#allocation2 + $0x70] sm:$0xff] %vm19, 0.0
    %35 = vst.msk [vmem:[#allocation2 + $0x78] sm:$0xff] %vm19, 0.0
  $region13: #{resnet_generator_forward.65} parent=0 // pred_fallthru
    _
  %v36 = vld [vmem:[#allocation2] sm:$0xff]
  %v37 = vld [vmem:[#allocation2 + $0x8] sm:$0xff]
  %v38 = vld [vmem:[#allocation2 + $0x10] sm:$0xff]
  %v39 = vld [vmem:[#allocation2 + $0x18] sm:$0xff]
  %v40 = vld [vmem:[#allocation2 + $0x20] sm:$0xff]
  %v41 = vld [vmem:[#allocation2 + $0x28] sm:$0xff]
  %v42 = vld [vmem:[#allocation2 + $0x30] sm:$0xff]
  %v43 = vld [vmem:[#allocation2 + $0x38] sm:$0xff]
  %v44 = vld [vmem:[#allocation2 + $0x40] sm:$0xff]
  %v45 = vld [vmem:[#allocation2 + $0x48] sm:$0xff]
  %v46 = vld [vmem:[#allocation2 + $0x50] sm:$0xff]
  %v47 = vld [vmem:[#allocation2 + $0x58] sm:$0xff]
  %v48 = vld [vmem:[#allocation2 + $0x60] sm:$0xff]
  %v49 = vld [vmem:[#allocation2 + $0x68] sm:$0xff]
  %v50 = vld [vmem:[#allocation2 + $0x70] sm:$0xff]
  %v51 = vld [vmem:[#allocation2 + $0x78] sm:$0xff]
  %v52 = vld [vmem:[%s0] sm:$0xf]
  %v53 = vld [vmem:[%s0 + $0x4] sm:$0xf]
  %v54 = vld [vmem:[%s0 + $0x8] sm:$0xf]
  %v55 = vld [vmem:[%s0 + $0xc] sm:$0xf]
  %v56 = vld [vmem:[%s0 + $0x10] sm:$0xf]
  %v57 = vld [vmem:[%s0 + $0x14] sm:$0xf]
  %v58 = vld [vmem:[%s0 + $0x18] sm:$0xf]
  %v59 = vld [vmem:[%s0 + $0x1c] sm:$0xf]
  %v60 = vld [vmem:[%s0 + $0x20] sm:$0xf]
  %v61 = vld [vmem:[%s0 + $0x24] sm:$0xf]
  %v62 = vld [vmem:[%s0 + $0x28] sm:$0xf]
  %v63 = vld [vmem:[%s0 + $0x2c] sm:$0xf]
  %v64 = vld [vmem:[%s0 + $0x30] sm:$0xf]
  %v65 = vld [vmem:[%s0 + $0x34] sm:$0xf]
  %v66 = vld [vmem:[%s0 + $0x38] sm:$0xf]
  %v67 = vld [vmem:[%s0 + $0x3c] sm:$0xf]
  %v68 = vld [vmem:[%s1] sm:$0xf]
  %v69 = vld [vmem:[%s1 + $0x4] sm:$0xf]
  %v70 = vld [vmem:[%s1 + $0x8] sm:$0xf]
  %v71 = vld [vmem:[%s1 + $0xc] sm:$0xf]
  %v72 = vld [vmem:[%s1 + $0x10] sm:$0xf]
  %v73 = vld [vmem:[%s1 + $0x14] sm:$0xf]
  %v74 = vld [vmem:[%s1 + $0x18] sm:$0xf]
  %v75 = vld [vmem:[%s1 + $0x1c] sm:$0xf]
  %v92 = vunpack.c.l.b16 %v52
  %v93 = vunpack.c.l.b16 %v53
  %v94 = vunpack.c.l.b16 %v54
  %v95 = vunpack.c.l.b16 %v55
  %v96 = vunpack.c.l.b16 %v56
  %v97 = vunpack.c.l.b16 %v57
  %v98 = vunpack.c.l.b16 %v58
  %v99 = vunpack.c.l.b16 %v59
  %v100 = vunpack.c.l.b16 %v60
  %v101 = vunpack.c.l.b16 %v61
  %v102 = vunpack.c.l.b16 %v62
  %v103 = vunpack.c.l.b16 %v63
  %v104 = vunpack.c.l.b16 %v64
  %v105 = vunpack.c.l.b16 %v65
  %v106 = vunpack.c.l.b16 %v66
  %v107 = vunpack.c.l.b16 %v67
  %v108 = vpack.c.b16 %v93, %v92
  %v109 = vpack.c.b16 %v95, %v94
  %v110 = vpack.c.b16 %v97, %v96
  %v111 = vpack.c.b16 %v99, %v98
  %v112 = vpack.c.b16 %v101, %v100
  %v113 = vpack.c.b16 %v103, %v102
  %v114 = vpack.c.b16 %v105, %v104
  %v115 = vpack.c.b16 %v107, %v106
  %v124 = vunpack.c.l.b16 %v68
  %v125 = vunpack.c.l.b16 %v69
  %v126 = vunpack.c.l.b16 %v70
  %v127 = vunpack.c.l.b16 %v71
  %v128 = vunpack.c.l.b16 %v72
  %v129 = vunpack.c.l.b16 %v73
  %v130 = vunpack.c.l.b16 %v74
  %v131 = vunpack.c.l.b16 %v75
  %v132 = vpack.c.b16 %v125, %v124
  %v133 = vpack.c.b16 %v127, %v126
  %v134 = vpack.c.b16 %v129, %v128
  %v135 = vpack.c.b16 %v131, %v130
  %vm140 = vcmask 523264
  %v142 = vsel %vm140, %v108, 0
  %v145 = vsel %vm140, %v109, 0
  %v148 = vsel %vm140, %v110, 0
  %v151 = vsel %vm140, %v111, 0
  %v154 = vsel %vm140, %v112, 0
  %v157 = vsel %vm140, %v113, 0
  %v160 = vsel %vm140, %v114, 0
  %v163 = vsel %vm140, %v115, 0
  %165 = vmatpush.bf16.msra.mxu0 0
  %166 = vmatpush.bf16.msra.mxu0 0
  %167 = vmatpush.bf16.msra.mxu0 0
  %168 = vmatpush.bf16.msra.mxu0 0
  %169 = vmatpush.bf16.msra.mxu0 %v135
  %170 = vmatpush.bf16.msra.mxu0 %v134
  %171 = vmatpush.bf16.msra.mxu0 %v133
  %172 = vmatpush.bf16.msra.mxu0 %v132
  %173 = vmatmul.bf16.gmra.mxu0 %v142
  %v174 = vpop.f32.mrf.mxu0
  %v175 = vadd.f32 0.0, %v174
  %v176 = vpop.f32.mrf.mxu0
  %v177 = vadd.f32 0.0, %v176
  %178 = vmatmul.bf16.gmra.mxu0 %v145
  %v179 = vpop.f32.mrf.mxu0
  %v180 = vadd.f32 0.0, %v179
  %v181 = vpop.f32.mrf.mxu0
  %v182 = vadd.f32 0.0, %v181
  %183 = vmatmul.bf16.gmra.mxu0 %v148
  %v184 = vpop.f32.mrf.mxu0
  %v185 = vadd.f32 0.0, %v184
  %v186 = vpop.f32.mrf.mxu0
  %v187 = vadd.f32 0.0, %v186
  %188 = vmatmul.bf16.gmra.mxu0 %v151
  %v189 = vpop.f32.mrf.mxu0
  %v190 = vadd.f32 0.0, %v189
  %v191 = vpop.f32.mrf.mxu0
  %v192 = vadd.f32 0.0, %v191
  %193 = vmatmul.bf16.gmra.mxu0 %v154
  %v194 = vpop.f32.mrf.mxu0
  %v195 = vadd.f32 0.0, %v194
  %v196 = vpop.f32.mrf.mxu0
  %v197 = vadd.f32 0.0, %v196
  %198 = vmatmul.bf16.gmra.mxu0 %v157
  %v199 = vpop.f32.mrf.mxu0
  %v200 = vadd.f32 0.0, %v199
  %v201 = vpop.f32.mrf.mxu0
  %v202 = vadd.f32 0.0, %v201
  %203 = vmatmul.bf16.gmra.mxu0 %v160
  %v204 = vpop.f32.mrf.mxu0
  %v205 = vadd.f32 0.0, %v204
  %v206 = vpop.f32.mrf.mxu0
  %v207 = vadd.f32 0.0, %v206
  %208 = vmatmul.bf16.gmra.mxu0 %v163
  %v209 = vpop.f32.mrf.mxu0
  %v210 = vadd.f32 0.0, %v209
  %v211 = vpop.f32.mrf.mxu0
  %v212 = vadd.f32 0.0, %v211
  %213 = vdwg.mxu0
  %v214 = vadd.f32 %v36, %v175
  %v215 = vadd.f32 %v37, %v177
  %v216 = vadd.f32 %v38, %v180
  %v217 = vadd.f32 %v39, %v182
  %v218 = vadd.f32 %v40, %v185
  %v219 = vadd.f32 %v41, %v187
  %v220 = vadd.f32 %v42, %v190
  %v221 = vadd.f32 %v43, %v192
  %v222 = vadd.f32 %v44, %v195
  %v223 = vadd.f32 %v45, %v197
  %v224 = vadd.f32 %v46, %v200
  %v225 = vadd.f32 %v47, %v202
  %v226 = vadd.f32 %v48, %v205
  %v227 = vadd.f32 %v49, %v207
  %v228 = vadd.f32 %v50, %v210
  %v229 = vadd.f32 %v51, %v212
  %vm230 = vcmask 64512
  %231 = vst.msk [vmem:[#allocation2] sm:$0xff] %vm230, %v214
  %232 = vst.msk [vmem:[#allocation2 + $0x8] sm:$0xff] %vm230, %v215
  %233 = vst.msk [vmem:[#allocation2 + $0x10] sm:$0xff] %vm230, %v216
  %234 = vst.msk [vmem:[#allocation2 + $0x18] sm:$0xff] %vm230, %v217
  %235 = vst.msk [vmem:[#allocation2 + $0x20] sm:$0xff] %vm230, %v218
  %236 = vst.msk [vmem:[#allocation2 + $0x28] sm:$0xff] %vm230, %v219
  %237 = vst.msk [vmem:[#allocation2 + $0x30] sm:$0xff] %vm230, %v220
  %238 = vst.msk [vmem:[#allocation2 + $0x38] sm:$0xff] %vm230, %v221
  %239 = vst.msk [vmem:[#allocation2 + $0x40] sm:$0xff] %vm230, %v222
  %240 = vst.msk [vmem:[#allocation2 + $0x48] sm:$0xff] %vm230, %v223
  %241 = vst.msk [vmem:[#allocation2 + $0x50] sm:$0xff] %vm230, %v224
  %242 = vst.msk [vmem:[#allocation2 + $0x58] sm:$0xff] %vm230, %v225
  %243 = vst.msk [vmem:[#allocation2 + $0x60] sm:$0xff] %vm230, %v226
  %244 = vst.msk [vmem:[#allocation2 + $0x68] sm:$0xff] %vm230, %v227
  %245 = vst.msk [vmem:[#allocation2 + $0x70] sm:$0xff] %vm230, %v228
  %246 = vst.msk [vmem:[#allocation2 + $0x78] sm:$0xff] %vm230, %v229
  // Predicated region
  $region14: #{resnet_generator_forward.65} parent=0 // pred_check
    %p247 = pneg %p15
  $region15: #{resnet_generator_forward.65} parent=0 // pred_check_branch
    %249 = sbr.rel (%p247) target = $region17
  $region16: #{resnet_generator_forward.65} parent=0 // pred_region
    %v250 = vld [vmem:[#allocation2] sm:$0xff]
    %v251 = vld [vmem:[#allocation2 + $0x8] sm:$0xff]
    %v252 = vld [vmem:[#allocation2 + $0x10] sm:$0xff]
    %v253 = vld [vmem:[#allocation2 + $0x18] sm:$0xff]
    %v254 = vld [vmem:[#allocation2 + $0x20] sm:$0xff]
    %v255 = vld [vmem:[#allocation2 + $0x28] sm:$0xff]
    %v256 = vld [vmem:[#allocation2 + $0x30] sm:$0xff]
    %v257 = vld [vmem:[#allocation2 + $0x38] sm:$0xff]
    %v258 = vld [vmem:[#allocation2 + $0x40] sm:$0xff]
    %v259 = vld [vmem:[#allocation2 + $0x48] sm:$0xff]
    %v260 = vld [vmem:[#allocation2 + $0x50] sm:$0xff]
    %v261 = vld [vmem:[#allocation2 + $0x58] sm:$0xff]
    %v262 = vld [vmem:[#allocation2 + $0x60] sm:$0xff]
    %v263 = vld [vmem:[#allocation2 + $0x68] sm:$0xff]
    %v264 = vld [vmem:[#allocation2 + $0x70] sm:$0xff]
    %v265 = vld [vmem:[#allocation2 + $0x78] sm:$0xff]
    %v266 = vpack.c.bf16 %v250, %v250
    %v267 = vpack.c.bf16 %v251, %v251
    %v268 = vpack.c.bf16 %v252, %v252
    %v269 = vpack.c.bf16 %v253, %v253
    %v270 = vpack.c.bf16 %v254, %v254
    %v271 = vpack.c.bf16 %v255, %v255
    %v272 = vpack.c.bf16 %v256, %v256
    %v273 = vpack.c.bf16 %v257, %v257
    %v274 = vpack.c.bf16 %v258, %v258
    %v275 = vpack.c.bf16 %v259, %v259
    %v276 = vpack.c.bf16 %v260, %v260
    %v277 = vpack.c.bf16 %v261, %v261
    %v278 = vpack.c.bf16 %v262, %v262
    %v279 = vpack.c.bf16 %v263, %v263
    %v280 = vpack.c.bf16 %v264, %v264
    %v281 = vpack.c.bf16 %v265, %v265
    %vm282 = vcmask 60416
    %283 = vst.msk [vmem:[%s2] sm:$0xf] %vm282, %v266
    %284 = vst.msk [vmem:[%s2 + $0x4] sm:$0xf] %vm282, %v267
    %285 = vst.msk [vmem:[%s2 + $0x8] sm:$0xf] %vm282, %v268
    %286 = vst.msk [vmem:[%s2 + $0xc] sm:$0xf] %vm282, %v269
    %287 = vst.msk [vmem:[%s2 + $0x10] sm:$0xf] %vm282, %v270
    %288 = vst.msk [vmem:[%s2 + $0x14] sm:$0xf] %vm282, %v271
    %289 = vst.msk [vmem:[%s2 + $0x18] sm:$0xf] %vm282, %v272
    %290 = vst.msk [vmem:[%s2 + $0x1c] sm:$0xf] %vm282, %v273
    %291 = vst.msk [vmem:[%s2 + $0x20] sm:$0xf] %vm282, %v274
    %292 = vst.msk [vmem:[%s2 + $0x24] sm:$0xf] %vm282, %v275
    %293 = vst.msk [vmem:[%s2 + $0x28] sm:$0xf] %vm282, %v276
    %294 = vst.msk [vmem:[%s2 + $0x2c] sm:$0xf] %vm282, %v277
    %295 = vst.msk [vmem:[%s2 + $0x30] sm:$0xf] %vm282, %v278
    %296 = vst.msk [vmem:[%s2 + $0x34] sm:$0xf] %vm282, %v279
    %297 = vst.msk [vmem:[%s2 + $0x38] sm:$0xf] %vm282, %v280
    %298 = vst.msk [vmem:[%s2 + $0x3c] sm:$0xf] %vm282, %v281
    %v299 = vsel %vm230, %v250, 0.0
    %v300 = vsel %vm230, %v251, 0.0
    %v301 = vadd.f32 %v299, %v300
    %v302 = vsel %vm230, %v252, 0.0
    %v303 = vadd.f32 %v301, %v302
    %v304 = vsel %vm230, %v253, 0.0
    %v305 = vadd.f32 %v303, %v304
    %v306 = vsel %vm230, %v254, 0.0
    %v307 = vadd.f32 %v305, %v306
    %v308 = vsel %vm230, %v255, 0.0
    %v309 = vadd.f32 %v307, %v308
    %v310 = vsel %vm230, %v256, 0.0
    %v311 = vadd.f32 %v309, %v310
    %v312 = vsel %vm230, %v257, 0.0
    %v313 = vadd.f32 %v311, %v312
    %v314 = vsel %vm230, %v258, 0.0
    %v315 = vadd.f32 %v313, %v314
    %v316 = vsel %vm230, %v259, 0.0
    %v317 = vadd.f32 %v315, %v316
    %v318 = vsel %vm230, %v260, 0.0
    %v319 = vadd.f32 %v317, %v318
    %v320 = vsel %vm230, %v261, 0.0
    %v321 = vadd.f32 %v319, %v320
    %v322 = vsel %vm230, %v262, 0.0
    %v323 = vadd.f32 %v321, %v322
    %v324 = vsel %vm230, %v263, 0.0
    %v325 = vadd.f32 %v323, %v324
    %v326 = vsel %vm230, %v264, 0.0
    %v327 = vadd.f32 %v325, %v326
    %v328 = vsel %vm230, %v265, 0.0
    %v329 = vadd.f32 %v327, %v328
    %v330 = vrot.slane %v329, 4
    %v331 = vadd.f32 %v329, %v330
    %v332 = vrot.slane %v331, 2
    %v333 = vadd.f32 %v331, %v332
    %v334 = vrot.slane %v333, 1
    %v335 = vadd.f32 %v333, %v334
    %v336 = vmul.f32 %v250, %v250
    %v337 = vmul.f32 %v251, %v251
    %v338 = vmul.f32 %v252, %v252
    %v339 = vmul.f32 %v253, %v253
    %v340 = vmul.f32 %v254, %v254
    %v341 = vmul.f32 %v255, %v255
    %v342 = vmul.f32 %v256, %v256
    %v343 = vmul.f32 %v257, %v257
    %v344 = vmul.f32 %v258, %v258
    %v345 = vmul.f32 %v259, %v259
    %v346 = vmul.f32 %v260, %v260
    %v347 = vmul.f32 %v261, %v261
    %v348 = vmul.f32 %v262, %v262
    %v349 = vmul.f32 %v263, %v263
    %v350 = vmul.f32 %v264, %v264
    %v351 = vmul.f32 %v265, %v265
    %v352 = vsel %vm230, %v336, 0.0
    %v353 = vsel %vm230, %v337, 0.0
    %v354 = vadd.f32 %v352, %v353
    %v355 = vsel %vm230, %v338, 0.0
    %v356 = vadd.f32 %v354, %v355
    %v357 = vsel %vm230, %v339, 0.0
    %v358 = vadd.f32 %v356, %v357
    %v359 = vsel %vm230, %v340, 0.0
    %v360 = vadd.f32 %v358, %v359
    %v361 = vsel %vm230, %v341, 0.0
    %v362 = vadd.f32 %v360, %v361
    %v363 = vsel %vm230, %v342, 0.0
    %v364 = vadd.f32 %v362, %v363
    %v365 = vsel %vm230, %v343, 0.0
    %v366 = vadd.f32 %v364, %v365
    %v367 = vsel %vm230, %v344, 0.0
    %v368 = vadd.f32 %v366, %v367
    %v369 = vsel %vm230, %v345, 0.0
    %v370 = vadd.f32 %v368, %v369
    %v371 = vsel %vm230, %v346, 0.0
    %v372 = vadd.f32 %v370, %v371
    %v373 = vsel %vm230, %v347, 0.0
    %v374 = vadd.f32 %v372, %v373
    %v375 = vsel %vm230, %v348, 0.0
    %v376 = vadd.f32 %v374, %v375
    %v377 = vsel %vm230, %v349, 0.0
    %v378 = vadd.f32 %v376, %v377
    %v379 = vsel %vm230, %v350, 0.0
    %v380 = vadd.f32 %v378, %v379
    %v381 = vsel %vm230, %v351, 0.0
    %v382 = vadd.f32 %v380, %v381
    %v383 = vrot.slane %v382, 4
    %v384 = vadd.f32 %v382, %v383
    %v385 = vrot.slane %v384, 2
    %v386 = vadd.f32 %v384, %v385
    %v387 = vrot.slane %v386, 1
    %v388 = vadd.f32 %v386, %v387
    %389 = vst.msk [vmem:[%s3] sm:$0xff] %vm230, %v335
    %390 = vst.msk [vmem:[%s4] sm:$0xff] %vm230, %v388
  $region17: #{resnet_generator_forward.65} parent=0 // pred_fallthru
    _
  // Predicated region
  $region18: #{resnet_generator_forward.65} parent=0 // pred_check
    _
  $region19: #{resnet_generator_forward.65} parent=0 // pred_check_branch
    %392 = sbr.rel (0) target = $region21
  $region20: #{resnet_generator_forward.65} parent=0 // pred_region
    _
  $region21: #{resnet_generator_forward.65} parent=0 // pred_fallthru
    _
  // Predicated region
  $region22: #{resnet_generator_forward.65} parent=0 // pred_check
    _
  $region23: #{resnet_generator_forward.65} parent=0 // pred_check_branch
    %394 = sbr.rel (0) target = $region25
  $region24: #{resnet_generator_forward.65} parent=0 // pred_region
    _
  $region25: #{resnet_generator_forward.65} parent=0 // pred_fallthru
    _
  // Predicated region
  $region26: #{resnet_generator_forward.65} parent=0 // pred_check
    _
  $region27: #{resnet_generator_forward.65} parent=0 // pred_check_branch
    %396 = sbr.rel (0) target = $region29
  $region28: #{resnet_generator_forward.65} parent=0 // pred_region
    _
  $region29: #{resnet_generator_forward.65} parent=0 // pred_fallthru
    _
  // Predicated region
  $region30: #{resnet_generator_forward.65} parent=0 // pred_check
    _
  $region31: #{resnet_generator_forward.65} parent=0 // pred_check_branch
    %398 = sbr.rel (0) target = $region33
  $region32: #{resnet_generator_forward.65} parent=0 // pred_region
    _
  $region33: #{resnet_generator_forward.65} parent=0 // pred_fallthru
    _
  // Predicated region
  $region34: #{resnet_generator_forward.65} parent=0 // pred_check
    _
  $region35: #{resnet_generator_forward.65} parent=0 // pred_check_branch
    %400 = sbr.rel (0) target = $region37
  $region36: #{resnet_generator_forward.65} parent=0 // pred_region
    _
  $region37: #{resnet_generator_forward.65} parent=0 // pred_fallthru
    _
  // Predicated region
  $region38: #{resnet_generator_forward.65} parent=0 // pred_check
    _
  $region39: #{resnet_generator_forward.65} parent=0 // pred_check_branch
    %402 = sbr.rel (0) target = $region41
  $region40: #{resnet_generator_forward.65} parent=0 // pred_region
    _
  $region41: #{resnet_generator_forward.65} parent=0 // pred_fallthru
    _

// kernel: resnet_generator_forward.69
$region0: #{resnet_generator_forward.69}
  #allocation0 [shape = 'u32[]', space=smem, size = 0x4, offset = 0x4, fixed_abs, tag = 'smem constant byte address 0x4 - core index']
  #allocation1 [shape = 'u32[72,128]{1,0:T(1,128)}', space=vmem, size = 0x9000, scoped, tag = 'internal scratch']
  %s0 = inlined_call_operand.vmem [shape: bf16[128,8], index: 0, kind: input, shape index: {}]
  %s1 = inlined_call_operand.vmem [shape: f32[1,8], index: 1, kind: input, shape index: {}]
  %s2 = inlined_call_operand.vmem [shape: f32[1,8], index: 2, kind: input, shape index: {}]
  %s3 = inlined_call_operand.vmem [shape: bf16[128,8], index: 3, kind: output, shape index: {}]
  %s4 = sld [smem:[#allocation0]]
  $region22: #{resnet_generator_forward.69} parent=0
    _
  %s6 = ssub.s32 1, %s4
  %s7 = scalar_select 0, %s6, %s4
  // Predicated region
  $region2: #{resnet_generator_forward.69} parent=0 // pred_check
    _
  $region3: #{resnet_generator_forward.69} parent=0 // pred_check_branch
    %9 = sbr.rel (0) target = $region5
  $region4: #{resnet_generator_forward.69} parent=0 // pred_region
    _
  $region5: #{resnet_generator_forward.69} parent=0 // pred_fallthru
    _
  // Predicated region
  $region6: #{resnet_generator_forward.69} parent=0 // pred_check
    _
  $region7: #{resnet_generator_forward.69} parent=0 // pred_check_branch
    %11 = sbr.rel (0) target = $region9
  $region8: #{resnet_generator_forward.69} parent=0 // pred_region
    _
  $region9: #{resnet_generator_forward.69} parent=0 // pred_fallthru
    _
  // Predicated region
  $region10: #{resnet_generator_forward.69} parent=0 // pred_check
    _
  $region11: #{resnet_generator_forward.69} parent=0 // pred_check_branch
    %13 = sbr.rel (0) target = $region13
  $region12: #{resnet_generator_forward.69} parent=0 // pred_region
    _
  $region13: #{resnet_generator_forward.69} parent=0 // pred_fallthru
    _
  %v14 = vld [vmem:[%s0] sm:$0xf]
  %v15 = vld [vmem:[%s0 + $0x4] sm:$0xf]
  %v16 = vld [vmem:[%s0 + $0x8] sm:$0xf]
  %v17 = vld [vmem:[%s0 + $0xc] sm:$0xf]
  %v18 = vld [vmem:[%s0 + $0x10] sm:$0xf]
  %v19 = vld [vmem:[%s0 + $0x14] sm:$0xf]
  %v20 = vld [vmem:[%s0 + $0x18] sm:$0xf]
  %v21 = vld [vmem:[%s0 + $0x1c] sm:$0xf]
  %v22 = vld [vmem:[%s0 + $0x20] sm:$0xf]
  %v23 = vld [vmem:[%s0 + $0x24] sm:$0xf]
  %v24 = vld [vmem:[%s0 + $0x28] sm:$0xf]
  %v25 = vld [vmem:[%s0 + $0x2c] sm:$0xf]
  %v26 = vld [vmem:[%s0 + $0x30] sm:$0xf]
  %v27 = vld [vmem:[%s0 + $0x34] sm:$0xf]
  %v28 = vld [vmem:[%s0 + $0x38] sm:$0xf]
  %v29 = vld [vmem:[%s0 + $0x3c] sm:$0xf]
  %v30 = vunpack.c.l.bf16 %v14
  %v31 = vunpack.c.l.bf16 %v15
  %v32 = vunpack.c.l.bf16 %v16
  %v33 = vunpack.c.l.bf16 %v17
  %v34 = vunpack.c.l.bf16 %v18
  %v35 = vunpack.c.l.bf16 %v19
  %v36 = vunpack.c.l.bf16 %v20
  %v37 = vunpack.c.l.bf16 %v21
  %v38 = vunpack.c.l.bf16 %v22
  %v39 = vunpack.c.l.bf16 %v23
  %v40 = vunpack.c.l.bf16 %v24
  %v41 = vunpack.c.l.bf16 %v25
  %v42 = vunpack.c.l.bf16 %v26
  %v43 = vunpack.c.l.bf16 %v27
  %v44 = vunpack.c.l.bf16 %v28
  %v45 = vunpack.c.l.bf16 %v29
  %v46 = vld [vmem:[%s1] sm:$0x1]
  %v48 = vperm.slane %v46, 0
  %v50 = vmul.f32 %v30, %v48
  %v51 = vmul.f32 %v31, %v48
  %v52 = vmul.f32 %v32, %v48
  %v53 = vmul.f32 %v33, %v48
  %v54 = vmul.f32 %v34, %v48
  %v55 = vmul.f32 %v35, %v48
  %v56 = vmul.f32 %v36, %v48
  %v57 = vmul.f32 %v37, %v48
  %v58 = vmul.f32 %v38, %v48
  %v59 = vmul.f32 %v39, %v48
  %v60 = vmul.f32 %v40, %v48
  %v61 = vmul.f32 %v41, %v48
  %v62 = vmul.f32 %v42, %v48
  %v63 = vmul.f32 %v43, %v48
  %v64 = vmul.f32 %v44, %v48
  %v65 = vmul.f32 %v45, %v48
  %v66 = vld [vmem:[%s2] sm:$0x1]
  %v68 = vperm.slane %v66, 0
  %v70 = vadd.f32 %v50, %v68
  %v71 = vadd.f32 %v51, %v68
  %v72 = vadd.f32 %v52, %v68
  %v73 = vadd.f32 %v53, %v68
  %v74 = vadd.f32 %v54, %v68
  %v75 = vadd.f32 %v55, %v68
  %v76 = vadd.f32 %v56, %v68
  %v77 = vadd.f32 %v57, %v68
  %v78 = vadd.f32 %v58, %v68
  %v79 = vadd.f32 %v59, %v68
  %v80 = vadd.f32 %v60, %v68
  %v81 = vadd.f32 %v61, %v68
  %v82 = vadd.f32 %v62, %v68
  %v83 = vadd.f32 %v63, %v68
  %v84 = vadd.f32 %v64, %v68
  %v85 = vadd.f32 %v65, %v68
  %v86 = vmax.f32 %v70, 0.0
  %v87 = vmax.f32 %v71, 0.0
  %v88 = vmax.f32 %v72, 0.0
  %v89 = vmax.f32 %v73, 0.0
  %v90 = vmax.f32 %v74, 0.0
  %v91 = vmax.f32 %v75, 0.0
  %v92 = vmax.f32 %v76, 0.0
  %v93 = vmax.f32 %v77, 0.0
  %v94 = vmax.f32 %v78, 0.0
  %v95 = vmax.f32 %v79, 0.0
  %v96 = vmax.f32 %v80, 0.0
  %v97 = vmax.f32 %v81, 0.0
  %v98 = vmax.f32 %v82, 0.0
  %v99 = vmax.f32 %v83, 0.0
  %v100 = vmax.f32 %v84, 0.0
  %v101 = vmax.f32 %v85, 0.0
  %v102 = vpack.c.bf16 %v86, %v86
  %v103 = vpack.c.bf16 %v87, %v87
  %v104 = vpack.c.bf16 %v88, %v88
  %v105 = vpack.c.bf16 %v89, %v89
  %v106 = vpack.c.bf16 %v90, %v90
  %v107 = vpack.c.bf16 %v91, %v91
  %v108 = vpack.c.bf16 %v92, %v92
  %v109 = vpack.c.bf16 %v93, %v93
  %v110 = vpack.c.bf16 %v94, %v94
  %v111 = vpack.c.bf16 %v95, %v95
  %v112 = vpack.c.bf16 %v96, %v96
  %v113 = vpack.c.bf16 %v97, %v97
  %v114 = vpack.c.bf16 %v98, %v98
  %v115 = vpack.c.bf16 %v99, %v99
  %v116 = vpack.c.bf16 %v100, %v100
  %v117 = vpack.c.bf16 %v101, %v101
  %vm118 = vcmask 60416
  %119 = vst.msk [vmem:[%s3] sm:$0xf] %vm118, %v102
  %120 = vst.msk [vmem:[%s3 + $0x4] sm:$0xf] %vm118, %v103
  %121 = vst.msk [vmem:[%s3 + $0x8] sm:$0xf] %vm118, %v104
  %122 = vst.msk [vmem:[%s3 + $0xc] sm:$0xf] %vm118, %v105
  %123 = vst.msk [vmem:[%s3 + $0x10] sm:$0xf] %vm118, %v106
  %124 = vst.msk [vmem:[%s3 + $0x14] sm:$0xf] %vm118, %v107
  %125 = vst.msk [vmem:[%s3 + $0x18] sm:$0xf] %vm118, %v108
  %126 = vst.msk [vmem:[%s3 + $0x1c] sm:$0xf] %vm118, %v109
  %127 = vst.msk [vmem:[%s3 + $0x20] sm:$0xf] %vm118, %v110
  %128 = vst.msk [vmem:[%s3 + $0x24] sm:$0xf] %vm118, %v111
  %129 = vst.msk [vmem:[%s3 + $0x28] sm:$0xf] %vm118, %v112
  %130 = vst.msk [vmem:[%s3 + $0x2c] sm:$0xf] %vm118, %v113
  %131 = vst.msk [vmem:[%s3 + $0x30] sm:$0xf] %vm118, %v114
  %132 = vst.msk [vmem:[%s3 + $0x34] sm:$0xf] %vm118, %v115
  %133 = vst.msk [vmem:[%s3 + $0x38] sm:$0xf] %vm118, %v116
  %134 = vst.msk [vmem:[%s3 + $0x3c] sm:$0xf] %vm118, %v117
  // Predicated region
  $region14: #{resnet_generator_forward.69} parent=0 // pred_check
    _
  $region15: #{resnet_generator_forward.69} parent=0 // pred_check_branch
    %136 = sbr.rel (0) target = $region17
  $region16: #{resnet_generator_forward.69} parent=0 // pred_region
    _
  $region17: #{resnet_generator_forward.69} parent=0 // pred_fallthru
    _
  // Predicated region
  $region18: #{resnet_generator_forward.69} parent=0 // pred_check
    _
  $region19: #{resnet_generator_forward.69} parent=0 // pred_check_branch
    %138 = sbr.rel (0) target = $region21
  $region20: #{resnet_generator_forward.69} parent=0 // pred_region
    _
  $region21: #{resnet_generator_forward.69} parent=0 // pred_fallthru
    _

// kernel: resnet_generator_forward.62
$region0: #{resnet_generator_forward.62}
  #allocation0 [shape = 'u32[]', space=smem, size = 0x4, offset = 0x4, fixed_abs, tag = 'smem constant byte address 0x4 - core index']
  #allocation1 [shape = 'u32[72,128]{1,0:T(1,128)}', space=vmem, size = 0x9000, scoped, tag = 'internal scratch']
  #allocation2 [shape = 'f32[128,8]{1,0:T(8,128)}', space=vmem, size = 0x10000, scoped, tag = 'scratch operand']
  %s0 = inlined_call_operand.vmem [shape: bf16[128,16], index: 0, kind: input, shape index: {}]
  %s1 = inlined_call_operand.vmem [shape: bf16[16,8], index: 1, kind: input, shape index: {}]
  %s2 = inlined_call_operand.vmem [shape: bf16[128,8], index: 2, kind: output, shape index: {0}]
  %s3 = inlined_call_operand.vmem [shape: f32[1,8,8], index: 3, kind: output, shape index: {1}]
  %s4 = inlined_call_operand.vmem [shape: f32[1,8,8], index: 4, kind: output, shape index: {2}]
  %5 = xla_tuple %s2, %s3, %s4
  %s6 = sld [smem:[#allocation0]]
  $region42: #{resnet_generator_forward.62} parent=0
    _
  %s8 = ssub.s32 1, %s6
  %s9 = scalar_select 0, %s8, %s6
  // Predicated region
  $region2: #{resnet_generator_forward.62} parent=0 // pred_check
    _
  $region3: #{resnet_generator_forward.62} parent=0 // pred_check_branch
    %11 = sbr.rel (0) target = $region5
  $region4: #{resnet_generator_forward.62} parent=0 // pred_region
    _
  $region5: #{resnet_generator_forward.62} parent=0 // pred_fallthru
    _
  // Predicated region
  $region6: #{resnet_generator_forward.62} parent=0 // pred_check
    _
  $region7: #{resnet_generator_forward.62} parent=0 // pred_check_branch
    %13 = sbr.rel (0) target = $region9
  $region8: #{resnet_generator_forward.62} parent=0 // pred_region
    _
  $region9: #{resnet_generator_forward.62} parent=0 // pred_fallthru
    _
  %p15 = scmp.eq.s32.totalorder 0, 0
  // Predicated region
  $region10: #{resnet_generator_forward.62} parent=0 // pred_check
    %p16 = pneg %p15
  $region11: #{resnet_generator_forward.62} parent=0 // pred_check_branch
    %18 = sbr.rel (%p16) target = $region13
  $region12: #{resnet_generator_forward.62} parent=0 // pred_region
    %vm19 = vcmask 64512
    %20 = vst.msk [vmem:[#allocation2] sm:$0xff] %vm19, 0.0
    %21 = vst.msk [vmem:[#allocation2 + $0x8] sm:$0xff] %vm19, 0.0
    %22 = vst.msk [vmem:[#allocation2 + $0x10] sm:$0xff] %vm19, 0.0
    %23 = vst.msk [vmem:[#allocation2 + $0x18] sm:$0xff] %vm19, 0.0
    %24 = vst.msk [vmem:[#allocation2 + $0x20] sm:$0xff] %vm19, 0.0
    %25 = vst.msk [vmem:[#allocation2 + $0x28] sm:$0xff] %vm19, 0.0
    %26 = vst.msk [vmem:[#allocation2 + $0x30] sm:$0xff] %vm19, 0.0
    %27 = vst.msk [vmem:[#allocation2 + $0x38] sm:$0xff] %vm19, 0.0
    %28 = vst.msk [vmem:[#allocation2 + $0x40] sm:$0xff] %vm19, 0.0
    %29 = vst.msk [vmem:[#allocation2 + $0x48] sm:$0xff] %vm19, 0.0
    %30 = vst.msk [vmem:[#allocation2 + $0x50] sm:$0xff] %vm19, 0.0
    %31 = vst.msk [vmem:[#allocation2 + $0x58] sm:$0xff] %vm19, 0.0
    %32 = vst.msk [vmem:[#allocation2 + $0x60] sm:$0xff] %vm19, 0.0
    %33 = vst.msk [vmem:[#allocation2 + $0x68] sm:$0xff] %vm19, 0.0
    %34 = vst.msk [vmem:[#allocation2 + $0x70] sm:$0xff] %vm19, 0.0
    %35 = vst.msk [vmem:[#allocation2 + $0x78] sm:$0xff] %vm19, 0.0
  $region13: #{resnet_generator_forward.62} parent=0 // pred_fallthru
    _
  %v36 = vld [vmem:[#allocation2] sm:$0xff]
  %v37 = vld [vmem:[#allocation2 + $0x8] sm:$0xff]
  %v38 = vld [vmem:[#allocation2 + $0x10] sm:$0xff]
  %v39 = vld [vmem:[#allocation2 + $0x18] sm:$0xff]
  %v40 = vld [vmem:[#allocation2 + $0x20] sm:$0xff]
  %v41 = vld [vmem:[#allocation2 + $0x28] sm:$0xff]
  %v42 = vld [vmem:[#allocation2 + $0x30] sm:$0xff]
  %v43 = vld [vmem:[#allocation2 + $0x38] sm:$0xff]
  %v44 = vld [vmem:[#allocation2 + $0x40] sm:$0xff]
  %v45 = vld [vmem:[#allocation2 + $0x48] sm:$0xff]
  %v46 = vld [vmem:[#allocation2 + $0x50] sm:$0xff]
  %v47 = vld [vmem:[#allocation2 + $0x58] sm:$0xff]
  %v48 = vld [vmem:[#allocation2 + $0x60] sm:$0xff]
  %v49 = vld [vmem:[#allocation2 + $0x68] sm:$0xff]
  %v50 = vld [vmem:[#allocation2 + $0x70] sm:$0xff]
  %v51 = vld [vmem:[#allocation2 + $0x78] sm:$0xff]
  %v52 = vld [vmem:[%s0] sm:$0xf]
  %v53 = vld [vmem:[%s0 + $0x4] sm:$0xf]
  %v54 = vld [vmem:[%s0 + $0x8] sm:$0xf]
  %v55 = vld [vmem:[%s0 + $0xc] sm:$0xf]
  %v56 = vld [vmem:[%s0 + $0x10] sm:$0xf]
  %v57 = vld [vmem:[%s0 + $0x14] sm:$0xf]
  %v58 = vld [vmem:[%s0 + $0x18] sm:$0xf]
  %v59 = vld [vmem:[%s0 + $0x1c] sm:$0xf]
  %v60 = vld [vmem:[%s0 + $0x20] sm:$0xf]
  %v61 = vld [vmem:[%s0 + $0x24] sm:$0xf]
  %v62 = vld [vmem:[%s0 + $0x28] sm:$0xf]
  %v63 = vld [vmem:[%s0 + $0x2c] sm:$0xf]
  %v64 = vld [vmem:[%s0 + $0x30] sm:$0xf]
  %v65 = vld [vmem:[%s0 + $0x34] sm:$0xf]
  %v66 = vld [vmem:[%s0 + $0x38] sm:$0xf]
  %v67 = vld [vmem:[%s0 + $0x3c] sm:$0xf]
  %v68 = vld [vmem:[%s1] sm:$0xf]
  %v69 = vld [vmem:[%s1 + $0x4] sm:$0xf]
  %v86 = vunpack.c.l.b16 %v52
  %v87 = vunpack.c.l.b16 %v53
  %v88 = vunpack.c.l.b16 %v54
  %v89 = vunpack.c.l.b16 %v55
  %v90 = vunpack.c.l.b16 %v56
  %v91 = vunpack.c.l.b16 %v57
  %v92 = vunpack.c.l.b16 %v58
  %v93 = vunpack.c.l.b16 %v59
  %v94 = vunpack.c.l.b16 %v60
  %v95 = vunpack.c.l.b16 %v61
  %v96 = vunpack.c.l.b16 %v62
  %v97 = vunpack.c.l.b16 %v63
  %v98 = vunpack.c.l.b16 %v64
  %v99 = vunpack.c.l.b16 %v65
  %v100 = vunpack.c.l.b16 %v66
  %v101 = vunpack.c.l.b16 %v67
  %v102 = vpack.c.b16 %v87, %v86
  %v103 = vpack.c.b16 %v89, %v88
  %v104 = vpack.c.b16 %v91, %v90
  %v105 = vpack.c.b16 %v93, %v92
  %v106 = vpack.c.b16 %v95, %v94
  %v107 = vpack.c.b16 %v97, %v96
  %v108 = vpack.c.b16 %v99, %v98
  %v109 = vpack.c.b16 %v101, %v100
  %v112 = vunpack.c.l.b16 %v68
  %v113 = vunpack.c.l.b16 %v69
  %v114 = vpack.c.b16 %v113, %v112
  %vm116 = vcmask 130048
  %v118 = vsel %vm116, %v102, 0
  %v121 = vsel %vm116, %v103, 0
  %v124 = vsel %vm116, %v104, 0
  %v127 = vsel %vm116, %v105, 0
  %v130 = vsel %vm116, %v106, 0
  %v133 = vsel %vm116, %v107, 0
  %v136 = vsel %vm116, %v108, 0
  %v139 = vsel %vm116, %v109, 0
  %141 = vmatpush.bf16.msra.mxu0 0
  %142 = vmatpush.bf16.msra.mxu0 0
  %143 = vmatpush.bf16.msra.mxu0 0
  %144 = vmatpush.bf16.msra.mxu0 0
  %145 = vmatpush.bf16.msra.mxu0 0
  %146 = vmatpush.bf16.msra.mxu0 0
  %147 = vmatpush.bf16.msra.mxu0 0
  %148 = vmatpush.bf16.msra.mxu0 %v114
  %149 = vmatmul.bf16.gmra.mxu0 %v118
  %v150 = vpop.f32.mrf.mxu0
  %v151 = vadd.f32 0.0, %v150
  %v152 = vpop.f32.mrf.mxu0
  %v153 = vadd.f32 0.0, %v152
  %154 = vmatmul.bf16.gmra.mxu0 %v121
  %v155 = vpop.f32.mrf.mxu0
  %v156 = vadd.f32 0.0, %v155
  %v157 = vpop.f32.mrf.mxu0
  %v158 = vadd.f32 0.0, %v157
  %159 = vmatmul.bf16.gmra.mxu0 %v124
  %v160 = vpop.f32.mrf.mxu0
  %v161 = vadd.f32 0.0, %v160
  %v162 = vpop.f32.mrf.mxu0
  %v163 = vadd.f32 0.0, %v162
  %164 = vmatmul.bf16.gmra.mxu0 %v127
  %v165 = vpop.f32.mrf.mxu0
  %v166 = vadd.f32 0.0, %v165
  %v167 = vpop.f32.mrf.mxu0
  %v168 = vadd.f32 0.0, %v167
  %169 = vmatmul.bf16.gmra.mxu0 %v130
  %v170 = vpop.f32.mrf.mxu0
  %v171 = vadd.f32 0.0, %v170
  %v172 = vpop.f32.mrf.mxu0
  %v173 = vadd.f32 0.0, %v172
  %174 = vmatmul.bf16.gmra.mxu0 %v133
  %v175 = vpop.f32.mrf.mxu0
  %v176 = vadd.f32 0.0, %v175
  %v177 = vpop.f32.mrf.mxu0
  %v178 = vadd.f32 0.0, %v177
  %179 = vmatmul.bf16.gmra.mxu0 %v136
  %v180 = vpop.f32.mrf.mxu0
  %v181 = vadd.f32 0.0, %v180
  %v182 = vpop.f32.mrf.mxu0
  %v183 = vadd.f32 0.0, %v182
  %184 = vmatmul.bf16.gmra.mxu0 %v139
  %v185 = vpop.f32.mrf.mxu0
  %v186 = vadd.f32 0.0, %v185
  %v187 = vpop.f32.mrf.mxu0
  %v188 = vadd.f32 0.0, %v187
  %189 = vdwg.mxu0
  %v190 = vadd.f32 %v36, %v151
  %v191 = vadd.f32 %v37, %v153
  %v192 = vadd.f32 %v38, %v156
  %v193 = vadd.f32 %v39, %v158
  %v194 = vadd.f32 %v40, %v161
  %v195 = vadd.f32 %v41, %v163
  %v196 = vadd.f32 %v42, %v166
  %v197 = vadd.f32 %v43, %v168
  %v198 = vadd.f32 %v44, %v171
  %v199 = vadd.f32 %v45, %v173
  %v200 = vadd.f32 %v46, %v176
  %v201 = vadd.f32 %v47, %v178
  %v202 = vadd.f32 %v48, %v181
  %v203 = vadd.f32 %v49, %v183
  %v204 = vadd.f32 %v50, %v186
  %v205 = vadd.f32 %v51, %v188
  %vm206 = vcmask 64512
  %207 = vst.msk [vmem:[#allocation2] sm:$0xff] %vm206, %v190
  %208 = vst.msk [vmem:[#allocation2 + $0x8] sm:$0xff] %vm206, %v191
  %209 = vst.msk [vmem:[#allocation2 + $0x10] sm:$0xff] %vm206, %v192
  %210 = vst.msk [vmem:[#allocation2 + $0x18] sm:$0xff] %vm206, %v193
  %211 = vst.msk [vmem:[#allocation2 + $0x20] sm:$0xff] %vm206, %v194
  %212 = vst.msk [vmem:[#allocation2 + $0x28] sm:$0xff] %vm206, %v195
  %213 = vst.msk [vmem:[#allocation2 + $0x30] sm:$0xff] %vm206, %v196
  %214 = vst.msk [vmem:[#allocation2 + $0x38] sm:$0xff] %vm206, %v197
  %215 = vst.msk [vmem:[#allocation2 + $0x40] sm:$0xff] %vm206, %v198
  %216 = vst.msk [vmem:[#allocation2 + $0x48] sm:$0xff] %vm206, %v199
  %217 = vst.msk [vmem:[#allocation2 + $0x50] sm:$0xff] %vm206, %v200
  %218 = vst.msk [vmem:[#allocation2 + $0x58] sm:$0xff] %vm206, %v201
  %219 = vst.msk [vmem:[#allocation2 + $0x60] sm:$0xff] %vm206, %v202
  %220 = vst.msk [vmem:[#allocation2 + $0x68] sm:$0xff] %vm206, %v203
  %221 = vst.msk [vmem:[#allocation2 + $0x70] sm:$0xff] %vm206, %v204
  %222 = vst.msk [vmem:[#allocation2 + $0x78] sm:$0xff] %vm206, %v205
  // Predicated region
  $region14: #{resnet_generator_forward.62} parent=0 // pred_check
    %p223 = pneg %p15
  $region15: #{resnet_generator_forward.62} parent=0 // pred_check_branch
    %225 = sbr.rel (%p223) target = $region17
  $region16: #{resnet_generator_forward.62} parent=0 // pred_region
    %v226 = vld [vmem:[#allocation2] sm:$0xff]
    %v227 = vld [vmem:[#allocation2 + $0x8] sm:$0xff]
    %v228 = vld [vmem:[#allocation2 + $0x10] sm:$0xff]
    %v229 = vld [vmem:[#allocation2 + $0x18] sm:$0xff]
    %v230 = vld [vmem:[#allocation2 + $0x20] sm:$0xff]
    %v231 = vld [vmem:[#allocation2 + $0x28] sm:$0xff]
    %v232 = vld [vmem:[#allocation2 + $0x30] sm:$0xff]
    %v233 = vld [vmem:[#allocation2 + $0x38] sm:$0xff]
    %v234 = vld [vmem:[#allocation2 + $0x40] sm:$0xff]
    %v235 = vld [vmem:[#allocation2 + $0x48] sm:$0xff]
    %v236 = vld [vmem:[#allocation2 + $0x50] sm:$0xff]
    %v237 = vld [vmem:[#allocation2 + $0x58] sm:$0xff]
    %v238 = vld [vmem:[#allocation2 + $0x60] sm:$0xff]
    %v239 = vld [vmem:[#allocation2 + $0x68] sm:$0xff]
    %v240 = vld [vmem:[#allocation2 + $0x70] sm:$0xff]
    %v241 = vld [vmem:[#allocation2 + $0x78] sm:$0xff]
    %v242 = vpack.c.bf16 %v226, %v226
    %v243 = vpack.c.bf16 %v227, %v227
    %v244 = vpack.c.bf16 %v228, %v228
    %v245 = vpack.c.bf16 %v229, %v229
    %v246 = vpack.c.bf16 %v230, %v230
    %v247 = vpack.c.bf16 %v231, %v231
    %v248 = vpack.c.bf16 %v232, %v232
    %v249 = vpack.c.bf16 %v233, %v233
    %v250 = vpack.c.bf16 %v234, %v234
    %v251 = vpack.c.bf16 %v235, %v235
    %v252 = vpack.c.bf16 %v236, %v236
    %v253 = vpack.c.bf16 %v237, %v237
    %v254 = vpack.c.bf16 %v238, %v238
    %v255 = vpack.c.bf16 %v239, %v239
    %v256 = vpack.c.bf16 %v240, %v240
    %v257 = vpack.c.bf16 %v241, %v241
    %vm258 = vcmask 60416
    %259 = vst.msk [vmem:[%s2] sm:$0xf] %vm258, %v242
    %260 = vst.msk [vmem:[%s2 + $0x4] sm:$0xf] %vm258, %v243
    %261 = vst.msk [vmem:[%s2 + $0x8] sm:$0xf] %vm258, %v244
    %262 = vst.msk [vmem:[%s2 + $0xc] sm:$0xf] %vm258, %v245
    %263 = vst.msk [vmem:[%s2 + $0x10] sm:$0xf] %vm258, %v246
    %264 = vst.msk [vmem:[%s2 + $0x14] sm:$0xf] %vm258, %v247
    %265 = vst.msk [vmem:[%s2 + $0x18] sm:$0xf] %vm258, %v248
    %266 = vst.msk [vmem:[%s2 + $0x1c] sm:$0xf] %vm258, %v249
    %267 = vst.msk [vmem:[%s2 + $0x20] sm:$0xf] %vm258, %v250
    %268 = vst.msk [vmem:[%s2 + $0x24] sm:$0xf] %vm258, %v251
    %269 = vst.msk [vmem:[%s2 + $0x28] sm:$0xf] %vm258, %v252
    %270 = vst.msk [vmem:[%s2 + $0x2c] sm:$0xf] %vm258, %v253
    %271 = vst.msk [vmem:[%s2 + $0x30] sm:$0xf] %vm258, %v254
    %272 = vst.msk [vmem:[%s2 + $0x34] sm:$0xf] %vm258, %v255
    %273 = vst.msk [vmem:[%s2 + $0x38] sm:$0xf] %vm258, %v256
    %274 = vst.msk [vmem:[%s2 + $0x3c] sm:$0xf] %vm258, %v257
    %v275 = vsel %vm206, %v226, 0.0
    %v276 = vsel %vm206, %v227, 0.0
    %v277 = vadd.f32 %v275, %v276
    %v278 = vsel %vm206, %v228, 0.0
    %v279 = vadd.f32 %v277, %v278
    %v280 = vsel %vm206, %v229, 0.0
    %v281 = vadd.f32 %v279, %v280
    %v282 = vsel %vm206, %v230, 0.0
    %v283 = vadd.f32 %v281, %v282
    %v284 = vsel %vm206, %v231, 0.0
    %v285 = vadd.f32 %v283, %v284
    %v286 = vsel %vm206, %v232, 0.0
    %v287 = vadd.f32 %v285, %v286
    %v288 = vsel %vm206, %v233, 0.0
    %v289 = vadd.f32 %v287, %v288
    %v290 = vsel %vm206, %v234, 0.0
    %v291 = vadd.f32 %v289, %v290
    %v292 = vsel %vm206, %v235, 0.0
    %v293 = vadd.f32 %v291, %v292
    %v294 = vsel %vm206, %v236, 0.0
    %v295 = vadd.f32 %v293, %v294
    %v296 = vsel %vm206, %v237, 0.0
    %v297 = vadd.f32 %v295, %v296
    %v298 = vsel %vm206, %v238, 0.0
    %v299 = vadd.f32 %v297, %v298
    %v300 = vsel %vm206, %v239, 0.0
    %v301 = vadd.f32 %v299, %v300
    %v302 = vsel %vm206, %v240, 0.0
    %v303 = vadd.f32 %v301, %v302
    %v304 = vsel %vm206, %v241, 0.0
    %v305 = vadd.f32 %v303, %v304
    %v306 = vrot.slane %v305, 4
    %v307 = vadd.f32 %v305, %v306
    %v308 = vrot.slane %v307, 2
    %v309 = vadd.f32 %v307, %v308
    %v310 = vrot.slane %v309, 1
    %v311 = vadd.f32 %v309, %v310
    %v312 = vmul.f32 %v226, %v226
    %v313 = vmul.f32 %v227, %v227
    %v314 = vmul.f32 %v228, %v228
    %v315 = vmul.f32 %v229, %v229
    %v316 = vmul.f32 %v230, %v230
    %v317 = vmul.f32 %v231, %v231
    %v318 = vmul.f32 %v232, %v232
    %v319 = vmul.f32 %v233, %v233
    %v320 = vmul.f32 %v234, %v234
    %v321 = vmul.f32 %v235, %v235
    %v322 = vmul.f32 %v236, %v236
    %v323 = vmul.f32 %v237, %v237
    %v324 = vmul.f32 %v238, %v238
    %v325 = vmul.f32 %v239, %v239
    %v326 = vmul.f32 %v240, %v240
    %v327 = vmul.f32 %v241, %v241
    %v328 = vsel %vm206, %v312, 0.0
    %v329 = vsel %vm206, %v313, 0.0
    %v330 = vadd.f32 %v328, %v329
    %v331 = vsel %vm206, %v314, 0.0
    %v332 = vadd.f32 %v330, %v331
    %v333 = vsel %vm206, %v315, 0.0
    %v334 = vadd.f32 %v332, %v333
    %v335 = vsel %vm206, %v316, 0.0
    %v336 = vadd.f32 %v334, %v335
    %v337 = vsel %vm206, %v317, 0.0
    %v338 = vadd.f32 %v336, %v337
    %v339 = vsel %vm206, %v318, 0.0
    %v340 = vadd.f32 %v338, %v339
    %v341 = vsel %vm206, %v319, 0.0
    %v342 = vadd.f32 %v340, %v341
    %v343 = vsel %vm206, %v320, 0.0
    %v344 = vadd.f32 %v342, %v343
    %v345 = vsel %vm206, %v321, 0.0
    %v346 = vadd.f32 %v344, %v345
    %v347 = vsel %vm206, %v322, 0.0
    %v348 = vadd.f32 %v346, %v347
    %v349 = vsel %vm206, %v323, 0.0
    %v350 = vadd.f32 %v348, %v349
    %v351 = vsel %vm206, %v324, 0.0
    %v352 = vadd.f32 %v350, %v351
    %v353 = vsel %vm206, %v325, 0.0
    %v354 = vadd.f32 %v352, %v353
    %v355 = vsel %vm206, %v326, 0.0
    %v356 = vadd.f32 %v354, %v355
    %v357 = vsel %vm206, %v327, 0.0
    %v358 = vadd.f32 %v356, %v357
    %v359 = vrot.slane %v358, 4
    %v360 = vadd.f32 %v358, %v359
    %v361 = vrot.slane %v360, 2
    %v362 = vadd.f32 %v360, %v361
    %v363 = vrot.slane %v362, 1
    %v364 = vadd.f32 %v362, %v363
    %365 = vst.msk [vmem:[%s3] sm:$0xff] %vm206, %v311
    %366 = vst.msk [vmem:[%s4] sm:$0xff] %vm206, %v364
  $region17: #{resnet_generator_forward.62} parent=0 // pred_fallthru
    _
  // Predicated region
  $region18: #{resnet_generator_forward.62} parent=0 // pred_check
    _
  $region19: #{resnet_generator_forward.62} parent=0 // pred_check_branch
    %368 = sbr.rel (0) target = $region21
  $region20: #{resnet_generator_forward.62} parent=0 // pred_region
    _
  $region21: #{resnet_generator_forward.62} parent=0 // pred_fallthru
    _
  // Predicated region
  $region22: #{resnet_generator_forward.62} parent=0 // pred_check
    _
  $region23: #{resnet_generator_forward.62} parent=0 // pred_check_branch
    %370 = sbr.rel (0) target = $region25
  $region24: #{resnet_generator_forward.62} parent=0 // pred_region
    _
  $region25: #{resnet_generator_forward.62} parent=0 // pred_fallthru
    _
  // Predicated region
  $region26: #{resnet_generator_forward.62} parent=0 // pred_check
    _
  $region27: #{resnet_generator_forward.62} parent=0 // pred_check_branch
    %372 = sbr.rel (0) target = $region29
  $region28: #{resnet_generator_forward.62} parent=0 // pred_region
    _
  $region29: #{resnet_generator_forward.62} parent=0 // pred_fallthru
    _
  // Predicated region
  $region30: #{resnet_generator_forward.62} parent=0 // pred_check
    _
  $region31: #{resnet_generator_forward.62} parent=0 // pred_check_branch
    %374 = sbr.rel (0) target = $region33
  $region32: #{resnet_generator_forward.62} parent=0 // pred_region
    _
  $region33: #{resnet_generator_forward.62} parent=0 // pred_fallthru
    _
  // Predicated region
  $region34: #{resnet_generator_forward.62} parent=0 // pred_check
    _
  $region35: #{resnet_generator_forward.62} parent=0 // pred_check_branch
    %376 = sbr.rel (0) target = $region37
  $region36: #{resnet_generator_forward.62} parent=0 // pred_region
    _
  $region37: #{resnet_generator_forward.62} parent=0 // pred_fallthru
    _
  // Predicated region
  $region38: #{resnet_generator_forward.62} parent=0 // pred_check
    _
  $region39: #{resnet_generator_forward.62} parent=0 // pred_check_branch
    %378 = sbr.rel (0) target = $region41
  $region40: #{resnet_generator_forward.62} parent=0 // pred_region
    _
  $region41: #{resnet_generator_forward.62} parent=0 // pred_fallthru
    _

// kernel: resnet_generator_forward.71
$region0: #{resnet_generator_forward.71}
  #allocation0 [shape = 'u32[]', space=smem, size = 0x4, offset = 0x4, fixed_abs, tag = 'smem constant byte address 0x4 - core index']
  #allocation1 [shape = 'u32[72,128]{1,0:T(1,128)}', space=vmem, size = 0x9000, scoped, tag = 'internal scratch']
  %s0 = inlined_call_operand.vmem [shape: bf16[512,3], index: 0, kind: input, shape index: {}]
  %s1 = inlined_call_operand.vmem [shape: f32[1,3], index: 1, kind: input, shape index: {}]
  %s2 = inlined_call_operand.vmem [shape: f32[1,3], index: 2, kind: input, shape index: {}]
  %s3 = inlined_call_operand.vmem [shape: bf16[512,3], index: 3, kind: output, shape index: {}]
  %s4 = sld [smem:[#allocation0]]
  $region22: #{resnet_generator_forward.71} parent=0
    _
  %s6 = ssub.s32 1, %s4
  %s7 = scalar_select 0, %s6, %s4
  // Predicated region
  $region2: #{resnet_generator_forward.71} parent=0 // pred_check
    _
  $region3: #{resnet_generator_forward.71} parent=0 // pred_check_branch
    %9 = sbr.rel (0) target = $region5
  $region4: #{resnet_generator_forward.71} parent=0 // pred_region
    _
  $region5: #{resnet_generator_forward.71} parent=0 // pred_fallthru
    _
  // Predicated region
  $region6: #{resnet_generator_forward.71} parent=0 // pred_check
    _
  $region7: #{resnet_generator_forward.71} parent=0 // pred_check_branch
    %11 = sbr.rel (0) target = $region9
  $region8: #{resnet_generator_forward.71} parent=0 // pred_region
    _
  $region9: #{resnet_generator_forward.71} parent=0 // pred_fallthru
    _
  // Predicated region
  $region10: #{resnet_generator_forward.71} parent=0 // pred_check
    _
  $region11: #{resnet_generator_forward.71} parent=0 // pred_check_branch
    %13 = sbr.rel (0) target = $region13
  $region12: #{resnet_generator_forward.71} parent=0 // pred_region
    _
  $region13: #{resnet_generator_forward.71} parent=0 // pred_fallthru
    _
  %v14 = vld [vmem:[%s0] sm:$0xf]
  %v15 = vld [vmem:[%s0 + $0x4] sm:$0xf]
  %v16 = vld [vmem:[%s0 + $0x8] sm:$0xf]
  %v17 = vld [vmem:[%s0 + $0xc] sm:$0xf]
  %v18 = vld [vmem:[%s0 + $0x10] sm:$0xf]
  %v19 = vld [vmem:[%s0 + $0x14] sm:$0xf]
  %v20 = vld [vmem:[%s0 + $0x18] sm:$0xf]
  %v21 = vld [vmem:[%s0 + $0x1c] sm:$0xf]
  %v22 = vld [vmem:[%s0 + $0x20] sm:$0xf]
  %v23 = vld [vmem:[%s0 + $0x24] sm:$0xf]
  %v24 = vld [vmem:[%s0 + $0x28] sm:$0xf]
  %v25 = vld [vmem:[%s0 + $0x2c] sm:$0xf]
  %v26 = vld [vmem:[%s0 + $0x30] sm:$0xf]
  %v27 = vld [vmem:[%s0 + $0x34] sm:$0xf]
  %v28 = vld [vmem:[%s0 + $0x38] sm:$0xf]
  %v29 = vld [vmem:[%s0 + $0x3c] sm:$0xf]
  %v30 = vld [vmem:[%s0 + $0x40] sm:$0xf]
  %v31 = vld [vmem:[%s0 + $0x44] sm:$0xf]
  %v32 = vld [vmem:[%s0 + $0x48] sm:$0xf]
  %v33 = vld [vmem:[%s0 + $0x4c] sm:$0xf]
  %v34 = vld [vmem:[%s0 + $0x50] sm:$0xf]
  %v35 = vld [vmem:[%s0 + $0x54] sm:$0xf]
  %v36 = vld [vmem:[%s0 + $0x58] sm:$0xf]
  %v37 = vld [vmem:[%s0 + $0x5c] sm:$0xf]
  %v38 = vld [vmem:[%s0 + $0x60] sm:$0xf]
  %v39 = vld [vmem:[%s0 + $0x64] sm:$0xf]
  %v40 = vld [vmem:[%s0 + $0x68] sm:$0xf]
  %v41 = vld [vmem:[%s0 + $0x6c] sm:$0xf]
  %v42 = vld [vmem:[%s0 + $0x70] sm:$0xf]
  %v43 = vld [vmem:[%s0 + $0x74] sm:$0xf]
  %v44 = vld [vmem:[%s0 + $0x78] sm:$0xf]
  %v45 = vld [vmem:[%s0 + $0x7c] sm:$0xf]
  %v46 = vld [vmem:[%s0 + $0x80] sm:$0xf]
  %v47 = vld [vmem:[%s0 + $0x84] sm:$0xf]
  %v48 = vld [vmem:[%s0 + $0x88] sm:$0xf]
  %v49 = vld [vmem:[%s0 + $0x8c] sm:$0xf]
  %v50 = vld [vmem:[%s0 + $0x90] sm:$0xf]
  %v51 = vld [vmem:[%s0 + $0x94] sm:$0xf]
  %v52 = vld [vmem:[%s0 + $0x98] sm:$0xf]
  %v53 = vld [vmem:[%s0 + $0x9c] sm:$0xf]
  %v54 = vld [vmem:[%s0 + $0xa0] sm:$0xf]
  %v55 = vld [vmem:[%s0 + $0xa4] sm:$0xf]
  %v56 = vld [vmem:[%s0 + $0xa8] sm:$0xf]
  %v57 = vld [vmem:[%s0 + $0xac] sm:$0xf]
  %v58 = vld [vmem:[%s0 + $0xb0] sm:$0xf]
  %v59 = vld [vmem:[%s0 + $0xb4] sm:$0xf]
  %v60 = vld [vmem:[%s0 + $0xb8] sm:$0xf]
  %v61 = vld [vmem:[%s0 + $0xbc] sm:$0xf]
  %v62 = vld [vmem:[%s0 + $0xc0] sm:$0xf]
  %v63 = vld [vmem:[%s0 + $0xc4] sm:$0xf]
  %v64 = vld [vmem:[%s0 + $0xc8] sm:$0xf]
  %v65 = vld [vmem:[%s0 + $0xcc] sm:$0xf]
  %v66 = vld [vmem:[%s0 + $0xd0] sm:$0xf]
  %v67 = vld [vmem:[%s0 + $0xd4] sm:$0xf]
  %v68 = vld [vmem:[%s0 + $0xd8] sm:$0xf]
  %v69 = vld [vmem:[%s0 + $0xdc] sm:$0xf]
  %v70 = vld [vmem:[%s0 + $0xe0] sm:$0xf]
  %v71 = vld [vmem:[%s0 + $0xe4] sm:$0xf]
  %v72 = vld [vmem:[%s0 + $0xe8] sm:$0xf]
  %v73 = vld [vmem:[%s0 + $0xec] sm:$0xf]
  %v74 = vld [vmem:[%s0 + $0xf0] sm:$0xf]
  %v75 = vld [vmem:[%s0 + $0xf4] sm:$0xf]
  %v76 = vld [vmem:[%s0 + $0xf8] sm:$0xf]
  %v77 = vld [vmem:[%s0 + $0xfc] sm:$0xf]
  %v78 = vunpack.c.l.bf16 %v14
  %v79 = vunpack.c.l.bf16 %v15
  %v80 = vunpack.c.l.bf16 %v16
  %v81 = vunpack.c.l.bf16 %v17
  %v82 = vunpack.c.l.bf16 %v18
  %v83 = vunpack.c.l.bf16 %v19
  %v84 = vunpack.c.l.bf16 %v20
  %v85 = vunpack.c.l.bf16 %v21
  %v86 = vunpack.c.l.bf16 %v22
  %v87 = vunpack.c.l.bf16 %v23
  %v88 = vunpack.c.l.bf16 %v24
  %v89 = vunpack.c.l.bf16 %v25
  %v90 = vunpack.c.l.bf16 %v26
  %v91 = vunpack.c.l.bf16 %v27
  %v92 = vunpack.c.l.bf16 %v28
  %v93 = vunpack.c.l.bf16 %v29
  %v94 = vunpack.c.l.bf16 %v30
  %v95 = vunpack.c.l.bf16 %v31
  %v96 = vunpack.c.l.bf16 %v32
  %v97 = vunpack.c.l.bf16 %v33
  %v98 = vunpack.c.l.bf16 %v34
  %v99 = vunpack.c.l.bf16 %v35
  %v100 = vunpack.c.l.bf16 %v36
  %v101 = vunpack.c.l.bf16 %v37
  %v102 = vunpack.c.l.bf16 %v38
  %v103 = vunpack.c.l.bf16 %v39
  %v104 = vunpack.c.l.bf16 %v40
  %v105 = vunpack.c.l.bf16 %v41
  %v106 = vunpack.c.l.bf16 %v42
  %v107 = vunpack.c.l.bf16 %v43
  %v108 = vunpack.c.l.bf16 %v44
  %v109 = vunpack.c.l.bf16 %v45
  %v110 = vunpack.c.l.bf16 %v46
  %v111 = vunpack.c.l.bf16 %v47
  %v112 = vunpack.c.l.bf16 %v48
  %v113 = vunpack.c.l.bf16 %v49
  %v114 = vunpack.c.l.bf16 %v50
  %v115 = vunpack.c.l.bf16 %v51
  %v116 = vunpack.c.l.bf16 %v52
  %v117 = vunpack.c.l.bf16 %v53
  %v118 = vunpack.c.l.bf16 %v54
  %v119 = vunpack.c.l.bf16 %v55
  %v120 = vunpack.c.l.bf16 %v56
  %v121 = vunpack.c.l.bf16 %v57
  %v122 = vunpack.c.l.bf16 %v58
  %v123 = vunpack.c.l.bf16 %v59
  %v124 = vunpack.c.l.bf16 %v60
  %v125 = vunpack.c.l.bf16 %v61
  %v126 = vunpack.c.l.bf16 %v62
  %v127 = vunpack.c.l.bf16 %v63
  %v128 = vunpack.c.l.bf16 %v64
  %v129 = vunpack.c.l.bf16 %v65
  %v130 = vunpack.c.l.bf16 %v66
  %v131 = vunpack.c.l.bf16 %v67
  %v132 = vunpack.c.l.bf16 %v68
  %v133 = vunpack.c.l.bf16 %v69
  %v134 = vunpack.c.l.bf16 %v70
  %v135 = vunpack.c.l.bf16 %v71
  %v136 = vunpack.c.l.bf16 %v72
  %v137 = vunpack.c.l.bf16 %v73
  %v138 = vunpack.c.l.bf16 %v74
  %v139 = vunpack.c.l.bf16 %v75
  %v140 = vunpack.c.l.bf16 %v76
  %v141 = vunpack.c.l.bf16 %v77
  %v142 = vld [vmem:[%s1] sm:$0x1]
  %v144 = vperm.slane %v142, 0
  %v146 = vmul.f32 %v78, %v144
  %v147 = vmul.f32 %v79, %v144
  %v148 = vmul.f32 %v80, %v144
  %v149 = vmul.f32 %v81, %v144
  %v150 = vmul.f32 %v82, %v144
  %v151 = vmul.f32 %v83, %v144
  %v152 = vmul.f32 %v84, %v144
  %v153 = vmul.f32 %v85, %v144
  %v154 = vmul.f32 %v86, %v144
  %v155 = vmul.f32 %v87, %v144
  %v156 = vmul.f32 %v88, %v144
  %v157 = vmul.f32 %v89, %v144
  %v158 = vmul.f32 %v90, %v144
  %v159 = vmul.f32 %v91, %v144
  %v160 = vmul.f32 %v92, %v144
  %v161 = vmul.f32 %v93, %v144
  %v162 = vmul.f32 %v94, %v144
  %v163 = vmul.f32 %v95, %v144
  %v164 = vmul.f32 %v96, %v144
  %v165 = vmul.f32 %v97, %v144
  %v166 = vmul.f32 %v98, %v144
  %v167 = vmul.f32 %v99, %v144
  %v168 = vmul.f32 %v100, %v144
  %v169 = vmul.f32 %v101, %v144
  %v170 = vmul.f32 %v102, %v144
  %v171 = vmul.f32 %v103, %v144
  %v172 = vmul.f32 %v104, %v144
  %v173 = vmul.f32 %v105, %v144
  %v174 = vmul.f32 %v106, %v144
  %v175 = vmul.f32 %v107, %v144
  %v176 = vmul.f32 %v108, %v144
  %v177 = vmul.f32 %v109, %v144
  %v178 = vmul.f32 %v110, %v144
  %v179 = vmul.f32 %v111, %v144
  %v180 = vmul.f32 %v112, %v144
  %v181 = vmul.f32 %v113, %v144
  %v182 = vmul.f32 %v114, %v144
  %v183 = vmul.f32 %v115, %v144
  %v184 = vmul.f32 %v116, %v144
  %v185 = vmul.f32 %v117, %v144
  %v186 = vmul.f32 %v118, %v144
  %v187 = vmul.f32 %v119, %v144
  %v188 = vmul.f32 %v120, %v144
  %v189 = vmul.f32 %v121, %v144
  %v190 = vmul.f32 %v122, %v144
  %v191 = vmul.f32 %v123, %v144
  %v192 = vmul.f32 %v124, %v144
  %v193 = vmul.f32 %v125, %v144
  %v194 = vmul.f32 %v126, %v144
  %v195 = vmul.f32 %v127, %v144
  %v196 = vmul.f32 %v128, %v144
  %v197 = vmul.f32 %v129, %v144
  %v198 = vmul.f32 %v130, %v144
  %v199 = vmul.f32 %v131, %v144
  %v200 = vmul.f32 %v132, %v144
  %v201 = vmul.f32 %v133, %v144
  %v202 = vmul.f32 %v134, %v144
  %v203 = vmul.f32 %v135, %v144
  %v204 = vmul.f32 %v136, %v144
  %v205 = vmul.f32 %v137, %v144
  %v206 = vmul.f32 %v138, %v144
  %v207 = vmul.f32 %v139, %v144
  %v208 = vmul.f32 %v140, %v144
  %v209 = vmul.f32 %v141, %v144
  %v210 = vld [vmem:[%s2] sm:$0x1]
  %v212 = vperm.slane %v210, 0
  %v214 = vadd.f32 %v146, %v212
  %v215 = vadd.f32 %v147, %v212
  %v216 = vadd.f32 %v148, %v212
  %v217 = vadd.f32 %v149, %v212
  %v218 = vadd.f32 %v150, %v212
  %v219 = vadd.f32 %v151, %v212
  %v220 = vadd.f32 %v152, %v212
  %v221 = vadd.f32 %v153, %v212
  %v222 = vadd.f32 %v154, %v212
  %v223 = vadd.f32 %v155, %v212
  %v224 = vadd.f32 %v156, %v212
  %v225 = vadd.f32 %v157, %v212
  %v226 = vadd.f32 %v158, %v212
  %v227 = vadd.f32 %v159, %v212
  %v228 = vadd.f32 %v160, %v212
  %v229 = vadd.f32 %v161, %v212
  %v230 = vadd.f32 %v162, %v212
  %v231 = vadd.f32 %v163, %v212
  %v232 = vadd.f32 %v164, %v212
  %v233 = vadd.f32 %v165, %v212
  %v234 = vadd.f32 %v166, %v212
  %v235 = vadd.f32 %v167, %v212
  %v236 = vadd.f32 %v168, %v212
  %v237 = vadd.f32 %v169, %v212
  %v238 = vadd.f32 %v170, %v212
  %v239 = vadd.f32 %v171, %v212
  %v240 = vadd.f32 %v172, %v212
  %v241 = vadd.f32 %v173, %v212
  %v242 = vadd.f32 %v174, %v212
  %v243 = vadd.f32 %v175, %v212
  %v244 = vadd.f32 %v176, %v212
  %v245 = vadd.f32 %v177, %v212
  %v246 = vadd.f32 %v178, %v212
  %v247 = vadd.f32 %v179, %v212
  %v248 = vadd.f32 %v180, %v212
  %v249 = vadd.f32 %v181, %v212
  %v250 = vadd.f32 %v182, %v212
  %v251 = vadd.f32 %v183, %v212
  %v252 = vadd.f32 %v184, %v212
  %v253 = vadd.f32 %v185, %v212
  %v254 = vadd.f32 %v186, %v212
  %v255 = vadd.f32 %v187, %v212
  %v256 = vadd.f32 %v188, %v212
  %v257 = vadd.f32 %v189, %v212
  %v258 = vadd.f32 %v190, %v212
  %v259 = vadd.f32 %v191, %v212
  %v260 = vadd.f32 %v192, %v212
  %v261 = vadd.f32 %v193, %v212
  %v262 = vadd.f32 %v194, %v212
  %v263 = vadd.f32 %v195, %v212
  %v264 = vadd.f32 %v196, %v212
  %v265 = vadd.f32 %v197, %v212
  %v266 = vadd.f32 %v198, %v212
  %v267 = vadd.f32 %v199, %v212
  %v268 = vadd.f32 %v200, %v212
  %v269 = vadd.f32 %v201, %v212
  %v270 = vadd.f32 %v202, %v212
  %v271 = vadd.f32 %v203, %v212
  %v272 = vadd.f32 %v204, %v212
  %v273 = vadd.f32 %v205, %v212
  %v274 = vadd.f32 %v206, %v212
  %v275 = vadd.f32 %v207, %v212
  %v276 = vadd.f32 %v208, %v212
  %v277 = vadd.f32 %v209, %v212
  %v278 = vtanh.pop %v214
  %v279 = vtanh.pop %v215
  %v280 = vtanh.pop %v216
  %v281 = vtanh.pop %v217
  %v282 = vtanh.pop %v218
  %v283 = vtanh.pop %v219
  %v284 = vtanh.pop %v220
  %v285 = vtanh.pop %v221
  %v286 = vtanh.pop %v222
  %v287 = vtanh.pop %v223
  %v288 = vtanh.pop %v224
  %v289 = vtanh.pop %v225
  %v290 = vtanh.pop %v226
  %v291 = vtanh.pop %v227
  %v292 = vtanh.pop %v228
  %v293 = vtanh.pop %v229
  %v294 = vtanh.pop %v230
  %v295 = vtanh.pop %v231
  %v296 = vtanh.pop %v232
  %v297 = vtanh.pop %v233
  %v298 = vtanh.pop %v234
  %v299 = vtanh.pop %v235
  %v300 = vtanh.pop %v236
  %v301 = vtanh.pop %v237
  %v302 = vtanh.pop %v238
  %v303 = vtanh.pop %v239
  %v304 = vtanh.pop %v240
  %v305 = vtanh.pop %v241
  %v306 = vtanh.pop %v242
  %v307 = vtanh.pop %v243
  %v308 = vtanh.pop %v244
  %v309 = vtanh.pop %v245
  %v310 = vtanh.pop %v246
  %v311 = vtanh.pop %v247
  %v312 = vtanh.pop %v248
  %v313 = vtanh.pop %v249
  %v314 = vtanh.pop %v250
  %v315 = vtanh.pop %v251
  %v316 = vtanh.pop %v252
  %v317 = vtanh.pop %v253
  %v318 = vtanh.pop %v254
  %v319 = vtanh.pop %v255
  %v320 = vtanh.pop %v256
  %v321 = vtanh.pop %v257
  %v322 = vtanh.pop %v258
  %v323 = vtanh.pop %v259
  %v324 = vtanh.pop %v260
  %v325 = vtanh.pop %v261
  %v326 = vtanh.pop %v262
  %v327 = vtanh.pop %v263
  %v328 = vtanh.pop %v264
  %v329 = vtanh.pop %v265
  %v330 = vtanh.pop %v266
  %v331 = vtanh.pop %v267
  %v332 = vtanh.pop %v268
  %v333 = vtanh.pop %v269
  %v334 = vtanh.pop %v270
  %v335 = vtanh.pop %v271
  %v336 = vtanh.pop %v272
  %v337 = vtanh.pop %v273
  %v338 = vtanh.pop %v274
  %v339 = vtanh.pop %v275
  %v340 = vtanh.pop %v276
  %v341 = vtanh.pop %v277
  %v342 = vpack.c.bf16 %v278, %v278
  %v343 = vpack.c.bf16 %v279, %v279
  %v344 = vpack.c.bf16 %v280, %v280
  %v345 = vpack.c.bf16 %v281, %v281
  %v346 = vpack.c.bf16 %v282, %v282
  %v347 = vpack.c.bf16 %v283, %v283
  %v348 = vpack.c.bf16 %v284, %v284
  %v349 = vpack.c.bf16 %v285, %v285
  %v350 = vpack.c.bf16 %v286, %v286
  %v351 = vpack.c.bf16 %v287, %v287
  %v352 = vpack.c.bf16 %v288, %v288
  %v353 = vpack.c.bf16 %v289, %v289
  %v354 = vpack.c.bf16 %v290, %v290
  %v355 = vpack.c.bf16 %v291, %v291
  %v356 = vpack.c.bf16 %v292, %v292
  %v357 = vpack.c.bf16 %v293, %v293
  %v358 = vpack.c.bf16 %v294, %v294
  %v359 = vpack.c.bf16 %v295, %v295
  %v360 = vpack.c.bf16 %v296, %v296
  %v361 = vpack.c.bf16 %v297, %v297
  %v362 = vpack.c.bf16 %v298, %v298
  %v363 = vpack.c.bf16 %v299, %v299
  %v364 = vpack.c.bf16 %v300, %v300
  %v365 = vpack.c.bf16 %v301, %v301
  %v366 = vpack.c.bf16 %v302, %v302
  %v367 = vpack.c.bf16 %v303, %v303
  %v368 = vpack.c.bf16 %v304, %v304
  %v369 = vpack.c.bf16 %v305, %v305
  %v370 = vpack.c.bf16 %v306, %v306
  %v371 = vpack.c.bf16 %v307, %v307
  %v372 = vpack.c.bf16 %v308, %v308
  %v373 = vpack.c.bf16 %v309, %v309
  %v374 = vpack.c.bf16 %v310, %v310
  %v375 = vpack.c.bf16 %v311, %v311
  %v376 = vpack.c.bf16 %v312, %v312
  %v377 = vpack.c.bf16 %v313, %v313
  %v378 = vpack.c.bf16 %v314, %v314
  %v379 = vpack.c.bf16 %v315, %v315
  %v380 = vpack.c.bf16 %v316, %v316
  %v381 = vpack.c.bf16 %v317, %v317
  %v382 = vpack.c.bf16 %v318, %v318
  %v383 = vpack.c.bf16 %v319, %v319
  %v384 = vpack.c.bf16 %v320, %v320
  %v385 = vpack.c.bf16 %v321, %v321
  %v386 = vpack.c.bf16 %v322, %v322
  %v387 = vpack.c.bf16 %v323, %v323
  %v388 = vpack.c.bf16 %v324, %v324
  %v389 = vpack.c.bf16 %v325, %v325
  %v390 = vpack.c.bf16 %v326, %v326
  %v391 = vpack.c.bf16 %v327, %v327
  %v392 = vpack.c.bf16 %v328, %v328
  %v393 = vpack.c.bf16 %v329, %v329
  %v394 = vpack.c.bf16 %v330, %v330
  %v395 = vpack.c.bf16 %v331, %v331
  %v396 = vpack.c.bf16 %v332, %v332
  %v397 = vpack.c.bf16 %v333, %v333
  %v398 = vpack.c.bf16 %v334, %v334
  %v399 = vpack.c.bf16 %v335, %v335
  %v400 = vpack.c.bf16 %v336, %v336
  %v401 = vpack.c.bf16 %v337, %v337
  %v402 = vpack.c.bf16 %v338, %v338
  %v403 = vpack.c.bf16 %v339, %v339
  %v404 = vpack.c.bf16 %v340, %v340
  %v405 = vpack.c.bf16 %v341, %v341
  %vm406 = vcmask 19456
  %407 = vst.msk [vmem:[%s3] sm:$0xf] %vm406, %v342
  %408 = vst.msk [vmem:[%s3 + $0x4] sm:$0xf] %vm406, %v343
  %409 = vst.msk [vmem:[%s3 + $0x8] sm:$0xf] %vm406, %v344
  %410 = vst.msk [vmem:[%s3 + $0xc] sm:$0xf] %vm406, %v345
  %411 = vst.msk [vmem:[%s3 + $0x10] sm:$0xf] %vm406, %v346
  %412 = vst.msk [vmem:[%s3 + $0x14] sm:$0xf] %vm406, %v347
  %413 = vst.msk [vmem:[%s3 + $0x18] sm:$0xf] %vm406, %v348
  %414 = vst.msk [vmem:[%s3 + $0x1c] sm:$0xf] %vm406, %v349
  %415 = vst.msk [vmem:[%s3 + $0x20] sm:$0xf] %vm406, %v350
  %416 = vst.msk [vmem:[%s3 + $0x24] sm:$0xf] %vm406, %v351
  %417 = vst.msk [vmem:[%s3 + $0x28] sm:$0xf] %vm406, %v352
  %418 = vst.msk [vmem:[%s3 + $0x2c] sm:$0xf] %vm406, %v353
  %419 = vst.msk [vmem:[%s3 + $0x30] sm:$0xf] %vm406, %v354
  %420 = vst.msk [vmem:[%s3 + $0x34] sm:$0xf] %vm406, %v355
  %421 = vst.msk [vmem:[%s3 + $0x38] sm:$0xf] %vm406, %v356
  %422 = vst.msk [vmem:[%s3 + $0x3c] sm:$0xf] %vm406, %v357
  %423 = vst.msk [vmem:[%s3 + $0x40] sm:$0xf] %vm406, %v358
  %424 = vst.msk [vmem:[%s3 + $0x44] sm:$0xf] %vm406, %v359
  %425 = vst.msk [vmem:[%s3 + $0x48] sm:$0xf] %vm406, %v360
  %426 = vst.msk [vmem:[%s3 + $0x4c] sm:$0xf] %vm406, %v361
  %427 = vst.msk [vmem:[%s3 + $0x50] sm:$0xf] %vm406, %v362
  %428 = vst.msk [vmem:[%s3 + $0x54] sm:$0xf] %vm406, %v363
  %429 = vst.msk [vmem:[%s3 + $0x58] sm:$0xf] %vm406, %v364
  %430 = vst.msk [vmem:[%s3 + $0x5c] sm:$0xf] %vm406, %v365
  %431 = vst.msk [vmem:[%s3 + $0x60] sm:$0xf] %vm406, %v366
  %432 = vst.msk [vmem:[%s3 + $0x64] sm:$0xf] %vm406, %v367
  %433 = vst.msk [vmem:[%s3 + $0x68] sm:$0xf] %vm406, %v368
  %434 = vst.msk [vmem:[%s3 + $0x6c] sm:$0xf] %vm406, %v369
  %435 = vst.msk [vmem:[%s3 + $0x70] sm:$0xf] %vm406, %v370
  %436 = vst.msk [vmem:[%s3 + $0x74] sm:$0xf] %vm406, %v371
  %437 = vst.msk [vmem:[%s3 + $0x78] sm:$0xf] %vm406, %v372
  %438 = vst.msk [vmem:[%s3 + $0x7c] sm:$0xf] %vm406, %v373
  %439 = vst.msk [vmem:[%s3 + $0x80] sm:$0xf] %vm406, %v374
  %440 = vst.msk [vmem:[%s3 + $0x84] sm:$0xf] %vm406, %v375
  %441 = vst.msk [vmem:[%s3 + $0x88] sm:$0xf] %vm406, %v376
  %442 = vst.msk [vmem:[%s3 + $0x8c] sm:$0xf] %vm406, %v377
  %443 = vst.msk [vmem:[%s3 + $0x90] sm:$0xf] %vm406, %v378
  %444 = vst.msk [vmem:[%s3 + $0x94] sm:$0xf] %vm406, %v379
  %445 = vst.msk [vmem:[%s3 + $0x98] sm:$0xf] %vm406, %v380
  %446 = vst.msk [vmem:[%s3 + $0x9c] sm:$0xf] %vm406, %v381
  %447 = vst.msk [vmem:[%s3 + $0xa0] sm:$0xf] %vm406, %v382
  %448 = vst.msk [vmem:[%s3 + $0xa4] sm:$0xf] %vm406, %v383
  %449 = vst.msk [vmem:[%s3 + $0xa8] sm:$0xf] %vm406, %v384
  %450 = vst.msk [vmem:[%s3 + $0xac] sm:$0xf] %vm406, %v385
  %451 = vst.msk [vmem:[%s3 + $0xb0] sm:$0xf] %vm406, %v386
  %452 = vst.msk [vmem:[%s3 + $0xb4] sm:$0xf] %vm406, %v387
  %453 = vst.msk [vmem:[%s3 + $0xb8] sm:$0xf] %vm406, %v388
  %454 = vst.msk [vmem:[%s3 + $0xbc] sm:$0xf] %vm406, %v389
  %455 = vst.msk [vmem:[%s3 + $0xc0] sm:$0xf] %vm406, %v390
  %456 = vst.msk [vmem:[%s3 + $0xc4] sm:$0xf] %vm406, %v391
  %457 = vst.msk [vmem:[%s3 + $0xc8] sm:$0xf] %vm406, %v392
  %458 = vst.msk [vmem:[%s3 + $0xcc] sm:$0xf] %vm406, %v393
  %459 = vst.msk [vmem:[%s3 + $0xd0] sm:$0xf] %vm406, %v394
  %460 = vst.msk [vmem:[%s3 + $0xd4] sm:$0xf] %vm406, %v395
  %461 = vst.msk [vmem:[%s3 + $0xd8] sm:$0xf] %vm406, %v396
  %462 = vst.msk [vmem:[%s3 + $0xdc] sm:$0xf] %vm406, %v397
  %463 = vst.msk [vmem:[%s3 + $0xe0] sm:$0xf] %vm406, %v398
  %464 = vst.msk [vmem:[%s3 + $0xe4] sm:$0xf] %vm406, %v399
  %465 = vst.msk [vmem:[%s3 + $0xe8] sm:$0xf] %vm406, %v400
  %466 = vst.msk [vmem:[%s3 + $0xec] sm:$0xf] %vm406, %v401
  %467 = vst.msk [vmem:[%s3 + $0xf0] sm:$0xf] %vm406, %v402
  %468 = vst.msk [vmem:[%s3 + $0xf4] sm:$0xf] %vm406, %v403
  %469 = vst.msk [vmem:[%s3 + $0xf8] sm:$0xf] %vm406, %v404
  %470 = vst.msk [vmem:[%s3 + $0xfc] sm:$0xf] %vm406, %v405
  // Predicated region
  $region14: #{resnet_generator_forward.71} parent=0 // pred_check
    _
  $region15: #{resnet_generator_forward.71} parent=0 // pred_check_branch
    %472 = sbr.rel (0) target = $region17
  $region16: #{resnet_generator_forward.71} parent=0 // pred_region
    _
  $region17: #{resnet_generator_forward.71} parent=0 // pred_fallthru
    _
  // Predicated region
  $region18: #{resnet_generator_forward.71} parent=0 // pred_check
    _
  $region19: #{resnet_generator_forward.71} parent=0 // pred_check_branch
    %474 = sbr.rel (0) target = $region21
  $region20: #{resnet_generator_forward.71} parent=0 // pred_region
    _
  $region21: #{resnet_generator_forward.71} parent=0 // pred_fallthru
    _

// kernel: resnet_generator_forward.70
$region0: #{resnet_generator_forward.70}
  #allocation0 [shape = 'u32[]', space=smem, size = 0x4, offset = 0x4, fixed_abs, tag = 'smem constant byte address 0x4 - core index']
  #allocation1 [shape = 'u32[72,128]{1,0:T(1,128)}', space=vmem, size = 0x9000, scoped, tag = 'internal scratch']
  #allocation2 [shape = 'f32[512,3]{1,0:T(8,128)}', space=vmem, size = 0x40000, scoped, tag = 'scratch operand']
  %s0 = inlined_call_operand.vmem [shape: bf16[512,392], index: 0, kind: input, shape index: {}]
  %s1 = inlined_call_operand.vmem [shape: bf16[392,3], index: 1, kind: input, shape index: {}]
  %s2 = inlined_call_operand.vmem [shape: bf16[512,3], index: 2, kind: output, shape index: {0}]
  %s3 = inlined_call_operand.hbm [shape: f32[1,8,3], index: 3, kind: output, shape index: {1}]
  %s4 = inlined_call_operand.hbm [shape: f32[1,8,3], index: 4, kind: output, shape index: {2}]
  %5 = xla_tuple %s2, %s3, %s4
  %s6 = sld [smem:[#allocation0]]
  $region42: #{resnet_generator_forward.70} parent=0
    _
  %s8 = ssub.s32 1, %s6
  %s9 = scalar_select 0, %s8, %s6
  $region1: #{resnet_generator_forward.70} parent=0
    #allocation3 [shape = 'u8[4096]{0}', space=vmem, size = 0x1000, scoped, tag = 'output window, operand 1, single buffered']
    #allocation4 [shape = 's32[1]{0}', space=sflag, size = 0x4, scoped, tag = 'scoped memory for resnet_generator_forward.70']
    #allocation5 [shape = 'u8[4096]{0}', space=vmem, size = 0x1000, scoped, tag = 'output window, operand 2, single buffered']
    #allocation6 [shape = 's32[1]{0}', space=sflag, size = 0x4, scoped, tag = 'scoped memory for resnet_generator_forward.70']
    %10 = vsyncpa [#allocation4], 0
    %11 = vsyncpa [#allocation6], 0
    // Predicated region
    $region2: #{resnet_generator_forward.70} parent=1 // pred_check
      _
    $region3: #{resnet_generator_forward.70} parent=1 // pred_check_branch
      %13 = sbr.rel (0) target = $region5
    $region4: #{resnet_generator_forward.70} parent=1 // pred_region
      _
    $region5: #{resnet_generator_forward.70} parent=1 // pred_fallthru
      _
    // Predicated region
    $region6: #{resnet_generator_forward.70} parent=1 // pred_check
      _
    $region7: #{resnet_generator_forward.70} parent=1 // pred_check_branch
      %15 = sbr.rel (0) target = $region9
    $region8: #{resnet_generator_forward.70} parent=1 // pred_region
      _
    $region9: #{resnet_generator_forward.70} parent=1 // pred_fallthru
      _
    %p17 = scmp.eq.s32.totalorder 0, 0
    // Predicated region
    $region10: #{resnet_generator_forward.70} parent=1 // pred_check
      %p18 = pneg %p17
    $region11: #{resnet_generator_forward.70} parent=1 // pred_check_branch
      %20 = sbr.rel (%p18) target = $region13
    $region12: #{resnet_generator_forward.70} parent=1 // pred_region
      %vm21 = vcmask 23552
      %22 = vst.msk [vmem:[#allocation2] sm:$0xff] %vm21, 0.0
      %23 = vst.msk [vmem:[#allocation2 + $0x8] sm:$0xff] %vm21, 0.0
      %24 = vst.msk [vmem:[#allocation2 + $0x10] sm:$0xff] %vm21, 0.0
      %25 = vst.msk [vmem:[#allocation2 + $0x18] sm:$0xff] %vm21, 0.0
      %26 = vst.msk [vmem:[#allocation2 + $0x20] sm:$0xff] %vm21, 0.0
      %27 = vst.msk [vmem:[#allocation2 + $0x28] sm:$0xff] %vm21, 0.0
      %28 = vst.msk [vmem:[#allocation2 + $0x30] sm:$0xff] %vm21, 0.0
      %29 = vst.msk [vmem:[#allocation2 + $0x38] sm:$0xff] %vm21, 0.0
      %30 = vst.msk [vmem:[#allocation2 + $0x40] sm:$0xff] %vm21, 0.0
      %31 = vst.msk [vmem:[#allocation2 + $0x48] sm:$0xff] %vm21, 0.0
      %32 = vst.msk [vmem:[#allocation2 + $0x50] sm:$0xff] %vm21, 0.0
      %33 = vst.msk [vmem:[#allocation2 + $0x58] sm:$0xff] %vm21, 0.0
      %34 = vst.msk [vmem:[#allocation2 + $0x60] sm:$0xff] %vm21, 0.0
      %35 = vst.msk [vmem:[#allocation2 + $0x68] sm:$0xff] %vm21, 0.0
      %36 = vst.msk [vmem:[#allocation2 + $0x70] sm:$0xff] %vm21, 0.0
      %37 = vst.msk [vmem:[#allocation2 + $0x78] sm:$0xff] %vm21, 0.0
      %38 = vst.msk [vmem:[#allocation2 + $0x80] sm:$0xff] %vm21, 0.0
      %39 = vst.msk [vmem:[#allocation2 + $0x88] sm:$0xff] %vm21, 0.0
      %40 = vst.msk [vmem:[#allocation2 + $0x90] sm:$0xff] %vm21, 0.0
      %41 = vst.msk [vmem:[#allocation2 + $0x98] sm:$0xff] %vm21, 0.0
      %42 = vst.msk [vmem:[#allocation2 + $0xa0] sm:$0xff] %vm21, 0.0
      %43 = vst.msk [vmem:[#allocation2 + $0xa8] sm:$0xff] %vm21, 0.0
      %44 = vst.msk [vmem:[#allocation2 + $0xb0] sm:$0xff] %vm21, 0.0
      %45 = vst.msk [vmem:[#allocation2 + $0xb8] sm:$0xff] %vm21, 0.0
      %46 = vst.msk [vmem:[#allocation2 + $0xc0] sm:$0xff] %vm21, 0.0
      %47 = vst.msk [vmem:[#allocation2 + $0xc8] sm:$0xff] %vm21, 0.0
      %48 = vst.msk [vmem:[#allocation2 + $0xd0] sm:$0xff] %vm21, 0.0
      %49 = vst.msk [vmem:[#allocation2 + $0xd8] sm:$0xff] %vm21, 0.0
      %50 = vst.msk [vmem:[#allocation2 + $0xe0] sm:$0xff] %vm21, 0.0
      %51 = vst.msk [vmem:[#allocation2 + $0xe8] sm:$0xff] %vm21, 0.0
      %52 = vst.msk [vmem:[#allocation2 + $0xf0] sm:$0xff] %vm21, 0.0
      %53 = vst.msk [vmem:[#allocation2 + $0xf8] sm:$0xff] %vm21, 0.0
      %54 = vst.msk [vmem:[#allocation2 + $0x100] sm:$0xff] %vm21, 0.0
      %55 = vst.msk [vmem:[#allocation2 + $0x108] sm:$0xff] %vm21, 0.0
      %56 = vst.msk [vmem:[#allocation2 + $0x110] sm:$0xff] %vm21, 0.0
      %57 = vst.msk [vmem:[#allocation2 + $0x118] sm:$0xff] %vm21, 0.0
      %58 = vst.msk [vmem:[#allocation2 + $0x120] sm:$0xff] %vm21, 0.0
      %59 = vst.msk [vmem:[#allocation2 + $0x128] sm:$0xff] %vm21, 0.0
      %60 = vst.msk [vmem:[#allocation2 + $0x130] sm:$0xff] %vm21, 0.0
      %61 = vst.msk [vmem:[#allocation2 + $0x138] sm:$0xff] %vm21, 0.0
      %62 = vst.msk [vmem:[#allocation2 + $0x140] sm:$0xff] %vm21, 0.0
      %63 = vst.msk [vmem:[#allocation2 + $0x148] sm:$0xff] %vm21, 0.0
      %64 = vst.msk [vmem:[#allocation2 + $0x150] sm:$0xff] %vm21, 0.0
      %65 = vst.msk [vmem:[#allocation2 + $0x158] sm:$0xff] %vm21, 0.0
      %66 = vst.msk [vmem:[#allocation2 + $0x160] sm:$0xff] %vm21, 0.0
      %67 = vst.msk [vmem:[#allocation2 + $0x168] sm:$0xff] %vm21, 0.0
      %68 = vst.msk [vmem:[#allocation2 + $0x170] sm:$0xff] %vm21, 0.0
      %69 = vst.msk [vmem:[#allocation2 + $0x178] sm:$0xff] %vm21, 0.0
      %70 = vst.msk [vmem:[#allocation2 + $0x180] sm:$0xff] %vm21, 0.0
      %71 = vst.msk [vmem:[#allocation2 + $0x188] sm:$0xff] %vm21, 0.0
      %72 = vst.msk [vmem:[#allocation2 + $0x190] sm:$0xff] %vm21, 0.0
      %73 = vst.msk [vmem:[#allocation2 + $0x198] sm:$0xff] %vm21, 0.0
      %74 = vst.msk [vmem:[#allocation2 + $0x1a0] sm:$0xff] %vm21, 0.0
      %75 = vst.msk [vmem:[#allocation2 + $0x1a8] sm:$0xff] %vm21, 0.0
      %76 = vst.msk [vmem:[#allocation2 + $0x1b0] sm:$0xff] %vm21, 0.0
      %77 = vst.msk [vmem:[#allocation2 + $0x1b8] sm:$0xff] %vm21, 0.0
      %78 = vst.msk [vmem:[#allocation2 + $0x1c0] sm:$0xff] %vm21, 0.0
      %79 = vst.msk [vmem:[#allocation2 + $0x1c8] sm:$0xff] %vm21, 0.0
      %80 = vst.msk [vmem:[#allocation2 + $0x1d0] sm:$0xff] %vm21, 0.0
      %81 = vst.msk [vmem:[#allocation2 + $0x1d8] sm:$0xff] %vm21, 0.0
      %82 = vst.msk [vmem:[#allocation2 + $0x1e0] sm:$0xff] %vm21, 0.0
      %83 = vst.msk [vmem:[#allocation2 + $0x1e8] sm:$0xff] %vm21, 0.0
      %84 = vst.msk [vmem:[#allocation2 + $0x1f0] sm:$0xff] %vm21, 0.0
      %85 = vst.msk [vmem:[#allocation2 + $0x1f8] sm:$0xff] %vm21, 0.0
    $region13: #{resnet_generator_forward.70} parent=1 // pred_fallthru
      _
    %v86 = vld [vmem:[#allocation2] sm:$0xff]
    %v87 = vld [vmem:[#allocation2 + $0x8] sm:$0xff]
    %v88 = vld [vmem:[#allocation2 + $0x10] sm:$0xff]
    %v89 = vld [vmem:[#allocation2 + $0x18] sm:$0xff]
    %v90 = vld [vmem:[#allocation2 + $0x20] sm:$0xff]
    %v91 = vld [vmem:[#allocation2 + $0x28] sm:$0xff]
    %v92 = vld [vmem:[#allocation2 + $0x30] sm:$0xff]
    %v93 = vld [vmem:[#allocation2 + $0x38] sm:$0xff]
    %v94 = vld [vmem:[#allocation2 + $0x40] sm:$0xff]
    %v95 = vld [vmem:[#allocation2 + $0x48] sm:$0xff]
    %v96 = vld [vmem:[#allocation2 + $0x50] sm:$0xff]
    %v97 = vld [vmem:[#allocation2 + $0x58] sm:$0xff]
    %v98 = vld [vmem:[#allocation2 + $0x60] sm:$0xff]
    %v99 = vld [vmem:[#allocation2 + $0x68] sm:$0xff]
    %v100 = vld [vmem:[#allocation2 + $0x70] sm:$0xff]
    %v101 = vld [vmem:[#allocation2 + $0x78] sm:$0xff]
    %v102 = vld [vmem:[#allocation2 + $0x80] sm:$0xff]
    %v103 = vld [vmem:[#allocation2 + $0x88] sm:$0xff]
    %v104 = vld [vmem:[#allocation2 + $0x90] sm:$0xff]
    %v105 = vld [vmem:[#allocation2 + $0x98] sm:$0xff]
    %v106 = vld [vmem:[#allocation2 + $0xa0] sm:$0xff]
    %v107 = vld [vmem:[#allocation2 + $0xa8] sm:$0xff]
    %v108 = vld [vmem:[#allocation2 + $0xb0] sm:$0xff]
    %v109 = vld [vmem:[#allocation2 + $0xb8] sm:$0xff]
    %v110 = vld [vmem:[#allocation2 + $0xc0] sm:$0xff]
    %v111 = vld [vmem:[#allocation2 + $0xc8] sm:$0xff]
    %v112 = vld [vmem:[#allocation2 + $0xd0] sm:$0xff]
    %v113 = vld [vmem:[#allocation2 + $0xd8] sm:$0xff]
    %v114 = vld [vmem:[#allocation2 + $0xe0] sm:$0xff]
    %v115 = vld [vmem:[#allocation2 + $0xe8] sm:$0xff]
    %v116 = vld [vmem:[#allocation2 + $0xf0] sm:$0xff]
    %v117 = vld [vmem:[#allocation2 + $0xf8] sm:$0xff]
    %v118 = vld [vmem:[#allocation2 + $0x100] sm:$0xff]
    %v119 = vld [vmem:[#allocation2 + $0x108] sm:$0xff]
    %v120 = vld [vmem:[#allocation2 + $0x110] sm:$0xff]
    %v121 = vld [vmem:[#allocation2 + $0x118] sm:$0xff]
    %v122 = vld [vmem:[#allocation2 + $0x120] sm:$0xff]
    %v123 = vld [vmem:[#allocation2 + $0x128] sm:$0xff]
    %v124 = vld [vmem:[#allocation2 + $0x130] sm:$0xff]
    %v125 = vld [vmem:[#allocation2 + $0x138] sm:$0xff]
    %v126 = vld [vmem:[#allocation2 + $0x140] sm:$0xff]
    %v127 = vld [vmem:[#allocation2 + $0x148] sm:$0xff]
    %v128 = vld [vmem:[#allocation2 + $0x150] sm:$0xff]
    %v129 = vld [vmem:[#allocation2 + $0x158] sm:$0xff]
    %v130 = vld [vmem:[#allocation2 + $0x160] sm:$0xff]
    %v131 = vld [vmem:[#allocation2 + $0x168] sm:$0xff]
    %v132 = vld [vmem:[#allocation2 + $0x170] sm:$0xff]
    %v133 = vld [vmem:[#allocation2 + $0x178] sm:$0xff]
    %v134 = vld [vmem:[#allocation2 + $0x180] sm:$0xff]
    %v135 = vld [vmem:[#allocation2 + $0x188] sm:$0xff]
    %v136 = vld [vmem:[#allocation2 + $0x190] sm:$0xff]
    %v137 = vld [vmem:[#allocation2 + $0x198] sm:$0xff]
    %v138 = vld [vmem:[#allocation2 + $0x1a0] sm:$0xff]
    %v139 = vld [vmem:[#allocation2 + $0x1a8] sm:$0xff]
    %v140 = vld [vmem:[#allocation2 + $0x1b0] sm:$0xff]
    %v141 = vld [vmem:[#allocation2 + $0x1b8] sm:$0xff]
    %v142 = vld [vmem:[#allocation2 + $0x1c0] sm:$0xff]
    %v143 = vld [vmem:[#allocation2 + $0x1c8] sm:$0xff]
    %v144 = vld [vmem:[#allocation2 + $0x1d0] sm:$0xff]
    %v145 = vld [vmem:[#allocation2 + $0x1d8] sm:$0xff]
    %v146 = vld [vmem:[#allocation2 + $0x1e0] sm:$0xff]
    %v147 = vld [vmem:[#allocation2 + $0x1e8] sm:$0xff]
    %v148 = vld [vmem:[#allocation2 + $0x1f0] sm:$0xff]
    %v149 = vld [vmem:[#allocation2 + $0x1f8] sm:$0xff]
    %v150 = vld [vmem:[%s0] sm:$0xff]
    %v151 = vld [vmem:[%s0 + $0x8] sm:$0xff]
    %v152 = vld [vmem:[%s0 + $0x10] sm:$0xff]
    %v153 = vld [vmem:[%s0 + $0x18] sm:$0xff]
    %v154 = vld [vmem:[%s0 + $0x20] sm:$0xff]
    %v155 = vld [vmem:[%s0 + $0x28] sm:$0xff]
    %v156 = vld [vmem:[%s0 + $0x30] sm:$0xff]
    %v157 = vld [vmem:[%s0 + $0x38] sm:$0xff]
    %v158 = vld [vmem:[%s0 + $0x40] sm:$0xff]
    %v159 = vld [vmem:[%s0 + $0x48] sm:$0xff]
    %v160 = vld [vmem:[%s0 + $0x50] sm:$0xff]
    %v161 = vld [vmem:[%s0 + $0x58] sm:$0xff]
    %v162 = vld [vmem:[%s0 + $0x60] sm:$0xff]
    %v163 = vld [vmem:[%s0 + $0x68] sm:$0xff]
    %v164 = vld [vmem:[%s0 + $0x70] sm:$0xff]
    %v165 = vld [vmem:[%s0 + $0x78] sm:$0xff]
    %v166 = vld [vmem:[%s0 + $0x80] sm:$0xff]
    %v167 = vld [vmem:[%s0 + $0x88] sm:$0xff]
    %v168 = vld [vmem:[%s0 + $0x90] sm:$0xff]
    %v169 = vld [vmem:[%s0 + $0x98] sm:$0xff]
    %v170 = vld [vmem:[%s0 + $0xa0] sm:$0xff]
    %v171 = vld [vmem:[%s0 + $0xa8] sm:$0xff]
    %v172 = vld [vmem:[%s0 + $0xb0] sm:$0xff]
    %v173 = vld [vmem:[%s0 + $0xb8] sm:$0xff]
    %v174 = vld [vmem:[%s0 + $0xc0] sm:$0xff]
    %v175 = vld [vmem:[%s0 + $0xc8] sm:$0xff]
    %v176 = vld [vmem:[%s0 + $0xd0] sm:$0xff]
    %v177 = vld [vmem:[%s0 + $0xd8] sm:$0xff]
    %v178 = vld [vmem:[%s0 + $0xe0] sm:$0xff]
    %v179 = vld [vmem:[%s0 + $0xe8] sm:$0xff]
    %v180 = vld [vmem:[%s0 + $0xf0] sm:$0xff]
    %v181 = vld [vmem:[%s0 + $0xf8] sm:$0xff]
    %v182 = vld [vmem:[%s0 + $0x100] sm:$0xff]
    %v183 = vld [vmem:[%s0 + $0x108] sm:$0xff]
    %v184 = vld [vmem:[%s0 + $0x110] sm:$0xff]
    %v185 = vld [vmem:[%s0 + $0x118] sm:$0xff]
    %v186 = vld [vmem:[%s0 + $0x120] sm:$0xff]
    %v187 = vld [vmem:[%s0 + $0x128] sm:$0xff]
    %v188 = vld [vmem:[%s0 + $0x130] sm:$0xff]
    %v189 = vld [vmem:[%s0 + $0x138] sm:$0xff]
    %v190 = vld [vmem:[%s0 + $0x140] sm:$0xff]
    %v191 = vld [vmem:[%s0 + $0x148] sm:$0xff]
    %v192 = vld [vmem:[%s0 + $0x150] sm:$0xff]
    %v193 = vld [vmem:[%s0 + $0x158] sm:$0xff]
    %v194 = vld [vmem:[%s0 + $0x160] sm:$0xff]
    %v195 = vld [vmem:[%s0 + $0x168] sm:$0xff]
    %v196 = vld [vmem:[%s0 + $0x170] sm:$0xff]
    %v197 = vld [vmem:[%s0 + $0x178] sm:$0xff]
    %v198 = vld [vmem:[%s0 + $0x180] sm:$0xff]
    %v199 = vld [vmem:[%s0 + $0x188] sm:$0xff]
    %v200 = vld [vmem:[%s0 + $0x190] sm:$0xff]
    %v201 = vld [vmem:[%s0 + $0x198] sm:$0xff]
    %v202 = vld [vmem:[%s0 + $0x1a0] sm:$0xff]
    %v203 = vld [vmem:[%s0 + $0x1a8] sm:$0xff]
    %v204 = vld [vmem:[%s0 + $0x1b0] sm:$0xff]
    %v205 = vld [vmem:[%s0 + $0x1b8] sm:$0xff]
    %v206 = vld [vmem:[%s0 + $0x1c0] sm:$0xff]
    %v207 = vld [vmem:[%s0 + $0x1c8] sm:$0xff]
    %v208 = vld [vmem:[%s0 + $0x1d0] sm:$0xff]
    %v209 = vld [vmem:[%s0 + $0x1d8] sm:$0xff]
    %v210 = vld [vmem:[%s0 + $0x1e0] sm:$0xff]
    %v211 = vld [vmem:[%s0 + $0x1e8] sm:$0xff]
    %v212 = vld [vmem:[%s0 + $0x1f0] sm:$0xff]
    %v213 = vld [vmem:[%s0 + $0x1f8] sm:$0xff]
    %v214 = vld [vmem:[%s0 + $0x200] sm:$0xff]
    %v215 = vld [vmem:[%s0 + $0x208] sm:$0xff]
    %v216 = vld [vmem:[%s0 + $0x210] sm:$0xff]
    %v217 = vld [vmem:[%s0 + $0x218] sm:$0xff]
    %v218 = vld [vmem:[%s0 + $0x220] sm:$0xff]
    %v219 = vld [vmem:[%s0 + $0x228] sm:$0xff]
    %v220 = vld [vmem:[%s0 + $0x230] sm:$0xff]
    %v221 = vld [vmem:[%s0 + $0x238] sm:$0xff]
    %v222 = vld [vmem:[%s0 + $0x240] sm:$0xff]
    %v223 = vld [vmem:[%s0 + $0x248] sm:$0xff]
    %v224 = vld [vmem:[%s0 + $0x250] sm:$0xff]
    %v225 = vld [vmem:[%s0 + $0x258] sm:$0xff]
    %v226 = vld [vmem:[%s0 + $0x260] sm:$0xff]
    %v227 = vld [vmem:[%s0 + $0x268] sm:$0xff]
    %v228 = vld [vmem:[%s0 + $0x270] sm:$0xff]
    %v229 = vld [vmem:[%s0 + $0x278] sm:$0xff]
    %v230 = vld [vmem:[%s0 + $0x280] sm:$0xff]
    %v231 = vld [vmem:[%s0 + $0x288] sm:$0xff]
    %v232 = vld [vmem:[%s0 + $0x290] sm:$0xff]
    %v233 = vld [vmem:[%s0 + $0x298] sm:$0xff]
    %v234 = vld [vmem:[%s0 + $0x2a0] sm:$0xff]
    %v235 = vld [vmem:[%s0 + $0x2a8] sm:$0xff]
    %v236 = vld [vmem:[%s0 + $0x2b0] sm:$0xff]
    %v237 = vld [vmem:[%s0 + $0x2b8] sm:$0xff]
    %v238 = vld [vmem:[%s0 + $0x2c0] sm:$0xff]
    %v239 = vld [vmem:[%s0 + $0x2c8] sm:$0xff]
    %v240 = vld [vmem:[%s0 + $0x2d0] sm:$0xff]
    %v241 = vld [vmem:[%s0 + $0x2d8] sm:$0xff]
    %v242 = vld [vmem:[%s0 + $0x2e0] sm:$0xff]
    %v243 = vld [vmem:[%s0 + $0x2e8] sm:$0xff]
    %v244 = vld [vmem:[%s0 + $0x2f0] sm:$0xff]
    %v245 = vld [vmem:[%s0 + $0x2f8] sm:$0xff]
    %v246 = vld [vmem:[%s0 + $0x300] sm:$0xff]
    %v247 = vld [vmem:[%s0 + $0x308] sm:$0xff]
    %v248 = vld [vmem:[%s0 + $0x310] sm:$0xff]
    %v249 = vld [vmem:[%s0 + $0x318] sm:$0xff]
    %v250 = vld [vmem:[%s0 + $0x320] sm:$0xff]
    %v251 = vld [vmem:[%s0 + $0x328] sm:$0xff]
    %v252 = vld [vmem:[%s0 + $0x330] sm:$0xff]
    %v253 = vld [vmem:[%s0 + $0x338] sm:$0xff]
    %v254 = vld [vmem:[%s0 + $0x340] sm:$0xff]
    %v255 = vld [vmem:[%s0 + $0x348] sm:$0xff]
    %v256 = vld [vmem:[%s0 + $0x350] sm:$0xff]
    %v257 = vld [vmem:[%s0 + $0x358] sm:$0xff]
    %v258 = vld [vmem:[%s0 + $0x360] sm:$0xff]
    %v259 = vld [vmem:[%s0 + $0x368] sm:$0xff]
    %v260 = vld [vmem:[%s0 + $0x370] sm:$0xff]
    %v261 = vld [vmem:[%s0 + $0x378] sm:$0xff]
    %v262 = vld [vmem:[%s0 + $0x380] sm:$0xff]
    %v263 = vld [vmem:[%s0 + $0x388] sm:$0xff]
    %v264 = vld [vmem:[%s0 + $0x390] sm:$0xff]
    %v265 = vld [vmem:[%s0 + $0x398] sm:$0xff]
    %v266 = vld [vmem:[%s0 + $0x3a0] sm:$0xff]
    %v267 = vld [vmem:[%s0 + $0x3a8] sm:$0xff]
    %v268 = vld [vmem:[%s0 + $0x3b0] sm:$0xff]
    %v269 = vld [vmem:[%s0 + $0x3b8] sm:$0xff]
    %v270 = vld [vmem:[%s0 + $0x3c0] sm:$0xff]
    %v271 = vld [vmem:[%s0 + $0x3c8] sm:$0xff]
    %v272 = vld [vmem:[%s0 + $0x3d0] sm:$0xff]
    %v273 = vld [vmem:[%s0 + $0x3d8] sm:$0xff]
    %v274 = vld [vmem:[%s0 + $0x3e0] sm:$0xff]
    %v275 = vld [vmem:[%s0 + $0x3e8] sm:$0xff]
    %v276 = vld [vmem:[%s0 + $0x3f0] sm:$0xff]
    %v277 = vld [vmem:[%s0 + $0x3f8] sm:$0xff]
    %v278 = vld [vmem:[%s1] sm:$0xf]
    %v279 = vld [vmem:[%s1 + $0x4] sm:$0xf]
    %v280 = vld [vmem:[%s1 + $0x8] sm:$0xf]
    %v281 = vld [vmem:[%s1 + $0xc] sm:$0xf]
    %v282 = vld [vmem:[%s1 + $0x10] sm:$0xf]
    %v283 = vld [vmem:[%s1 + $0x14] sm:$0xf]
    %v284 = vld [vmem:[%s1 + $0x18] sm:$0xf]
    %v285 = vld [vmem:[%s1 + $0x1c] sm:$0xf]
    %v286 = vld [vmem:[%s1 + $0x20] sm:$0xf]
    %v287 = vld [vmem:[%s1 + $0x24] sm:$0xf]
    %v288 = vld [vmem:[%s1 + $0x28] sm:$0xf]
    %v289 = vld [vmem:[%s1 + $0x2c] sm:$0xf]
    %v290 = vld [vmem:[%s1 + $0x30] sm:$0xf]
    %v291 = vld [vmem:[%s1 + $0x34] sm:$0xf]
    %v292 = vld [vmem:[%s1 + $0x38] sm:$0xf]
    %v293 = vld [vmem:[%s1 + $0x3c] sm:$0xf]
    %v294 = vld [vmem:[%s1 + $0x40] sm:$0xf]
    %v295 = vld [vmem:[%s1 + $0x44] sm:$0xf]
    %v296 = vld [vmem:[%s1 + $0x48] sm:$0xf]
    %v297 = vld [vmem:[%s1 + $0x4c] sm:$0xf]
    %v298 = vld [vmem:[%s1 + $0x50] sm:$0xf]
    %v299 = vld [vmem:[%s1 + $0x54] sm:$0xf]
    %v300 = vld [vmem:[%s1 + $0x58] sm:$0xf]
    %v301 = vld [vmem:[%s1 + $0x5c] sm:$0xf]
    %v302 = vld [vmem:[%s1 + $0x60] sm:$0xf]
    %v303 = vld [vmem:[%s1 + $0x64] sm:$0xf]
    %v304 = vld [vmem:[%s1 + $0x68] sm:$0xf]
    %v305 = vld [vmem:[%s1 + $0x6c] sm:$0xf]
    %v306 = vld [vmem:[%s1 + $0x70] sm:$0xf]
    %v307 = vld [vmem:[%s1 + $0x74] sm:$0xf]
    %v308 = vld [vmem:[%s1 + $0x78] sm:$0xf]
    %v309 = vld [vmem:[%s1 + $0x7c] sm:$0xf]
    %v310 = vld [vmem:[%s1 + $0x80] sm:$0xf]
    %v311 = vld [vmem:[%s1 + $0x84] sm:$0xf]
    %v312 = vld [vmem:[%s1 + $0x88] sm:$0xf]
    %v313 = vld [vmem:[%s1 + $0x8c] sm:$0xf]
    %v314 = vld [vmem:[%s1 + $0x90] sm:$0xf]
    %v315 = vld [vmem:[%s1 + $0x94] sm:$0xf]
    %v316 = vld [vmem:[%s1 + $0x98] sm:$0xf]
    %v317 = vld [vmem:[%s1 + $0x9c] sm:$0xf]
    %v318 = vld [vmem:[%s1 + $0xa0] sm:$0xf]
    %v319 = vld [vmem:[%s1 + $0xa4] sm:$0xf]
    %v320 = vld [vmem:[%s1 + $0xa8] sm:$0xf]
    %v321 = vld [vmem:[%s1 + $0xac] sm:$0xf]
    %v322 = vld [vmem:[%s1 + $0xb0] sm:$0xf]
    %v323 = vld [vmem:[%s1 + $0xb4] sm:$0xf]
    %v324 = vld [vmem:[%s1 + $0xb8] sm:$0xf]
    %v325 = vld [vmem:[%s1 + $0xbc] sm:$0xf]
    %v326 = vld [vmem:[%s1 + $0xc0] sm:$0xf]
    %v455 = vunpack.c.l.b16 %v150
    %v456 = vunpack.c.h.b16 %v150
    %v457 = vunpack.c.l.b16 %v151
    %v458 = vunpack.c.h.b16 %v151
    %v459 = vunpack.c.l.b16 %v152
    %v460 = vunpack.c.h.b16 %v152
    %v461 = vunpack.c.l.b16 %v153
    %v462 = vunpack.c.h.b16 %v153
    %v463 = vunpack.c.l.b16 %v154
    %v464 = vunpack.c.h.b16 %v154
    %v465 = vunpack.c.l.b16 %v155
    %v466 = vunpack.c.h.b16 %v155
    %v467 = vunpack.c.l.b16 %v156
    %v468 = vunpack.c.h.b16 %v156
    %v469 = vunpack.c.l.b16 %v157
    %v470 = vunpack.c.h.b16 %v157
    %v471 = vunpack.c.l.b16 %v158
    %v472 = vunpack.c.h.b16 %v158
    %v473 = vunpack.c.l.b16 %v159
    %v474 = vunpack.c.h.b16 %v159
    %v475 = vunpack.c.l.b16 %v160
    %v476 = vunpack.c.h.b16 %v160
    %v477 = vunpack.c.l.b16 %v161
    %v478 = vunpack.c.h.b16 %v161
    %v479 = vunpack.c.l.b16 %v162
    %v480 = vunpack.c.h.b16 %v162
    %v481 = vunpack.c.l.b16 %v163
    %v482 = vunpack.c.h.b16 %v163
    %v483 = vunpack.c.l.b16 %v164
    %v484 = vunpack.c.h.b16 %v164
    %v485 = vunpack.c.l.b16 %v165
    %v486 = vunpack.c.h.b16 %v165
    %v487 = vunpack.c.l.b16 %v166
    %v488 = vunpack.c.h.b16 %v166
    %v489 = vunpack.c.l.b16 %v167
    %v490 = vunpack.c.h.b16 %v167
    %v491 = vunpack.c.l.b16 %v168
    %v492 = vunpack.c.h.b16 %v168
    %v493 = vunpack.c.l.b16 %v169
    %v494 = vunpack.c.h.b16 %v169
    %v495 = vunpack.c.l.b16 %v170
    %v496 = vunpack.c.h.b16 %v170
    %v497 = vunpack.c.l.b16 %v171
    %v498 = vunpack.c.h.b16 %v171
    %v499 = vunpack.c.l.b16 %v172
    %v500 = vunpack.c.h.b16 %v172
    %v501 = vunpack.c.l.b16 %v173
    %v502 = vunpack.c.h.b16 %v173
    %v503 = vunpack.c.l.b16 %v174
    %v504 = vunpack.c.h.b16 %v174
    %v505 = vunpack.c.l.b16 %v175
    %v506 = vunpack.c.h.b16 %v175
    %v507 = vunpack.c.l.b16 %v176
    %v508 = vunpack.c.h.b16 %v176
    %v509 = vunpack.c.l.b16 %v177
    %v510 = vunpack.c.h.b16 %v177
    %v511 = vunpack.c.l.b16 %v178
    %v512 = vunpack.c.h.b16 %v178
    %v513 = vunpack.c.l.b16 %v179
    %v514 = vunpack.c.h.b16 %v179
    %v515 = vunpack.c.l.b16 %v180
    %v516 = vunpack.c.h.b16 %v180
    %v517 = vunpack.c.l.b16 %v181
    %v518 = vunpack.c.h.b16 %v181
    %v519 = vunpack.c.l.b16 %v182
    %v520 = vunpack.c.h.b16 %v182
    %v521 = vunpack.c.l.b16 %v183
    %v522 = vunpack.c.h.b16 %v183
    %v523 = vunpack.c.l.b16 %v184
    %v524 = vunpack.c.h.b16 %v184
    %v525 = vunpack.c.l.b16 %v185
    %v526 = vunpack.c.h.b16 %v185
    %v527 = vunpack.c.l.b16 %v186
    %v528 = vunpack.c.h.b16 %v186
    %v529 = vunpack.c.l.b16 %v187
    %v530 = vunpack.c.h.b16 %v187
    %v531 = vunpack.c.l.b16 %v188
    %v532 = vunpack.c.h.b16 %v188
    %v533 = vunpack.c.l.b16 %v189
    %v534 = vunpack.c.h.b16 %v189
    %v535 = vunpack.c.l.b16 %v190
    %v536 = vunpack.c.h.b16 %v190
    %v537 = vunpack.c.l.b16 %v191
    %v538 = vunpack.c.h.b16 %v191
    %v539 = vunpack.c.l.b16 %v192
    %v540 = vunpack.c.h.b16 %v192
    %v541 = vunpack.c.l.b16 %v193
    %v542 = vunpack.c.h.b16 %v193
    %v543 = vunpack.c.l.b16 %v194
    %v544 = vunpack.c.h.b16 %v194
    %v545 = vunpack.c.l.b16 %v195
    %v546 = vunpack.c.h.b16 %v195
    %v547 = vunpack.c.l.b16 %v196
    %v548 = vunpack.c.h.b16 %v196
    %v549 = vunpack.c.l.b16 %v197
    %v550 = vunpack.c.h.b16 %v197
    %v551 = vunpack.c.l.b16 %v198
    %v552 = vunpack.c.h.b16 %v198
    %v553 = vunpack.c.l.b16 %v199
    %v554 = vunpack.c.h.b16 %v199
    %v555 = vunpack.c.l.b16 %v200
    %v556 = vunpack.c.h.b16 %v200
    %v557 = vunpack.c.l.b16 %v201
    %v558 = vunpack.c.h.b16 %v201
    %v559 = vunpack.c.l.b16 %v202
    %v560 = vunpack.c.h.b16 %v202
    %v561 = vunpack.c.l.b16 %v203
    %v562 = vunpack.c.h.b16 %v203
    %v563 = vunpack.c.l.b16 %v204
    %v564 = vunpack.c.h.b16 %v204
    %v565 = vunpack.c.l.b16 %v205
    %v566 = vunpack.c.h.b16 %v205
    %v567 = vunpack.c.l.b16 %v206
    %v568 = vunpack.c.h.b16 %v206
    %v569 = vunpack.c.l.b16 %v207
    %v570 = vunpack.c.h.b16 %v207
    %v571 = vunpack.c.l.b16 %v208
    %v572 = vunpack.c.h.b16 %v208
    %v573 = vunpack.c.l.b16 %v209
    %v574 = vunpack.c.h.b16 %v209
    %v575 = vunpack.c.l.b16 %v210
    %v576 = vunpack.c.h.b16 %v210
    %v577 = vunpack.c.l.b16 %v211
    %v578 = vunpack.c.h.b16 %v211
    %v579 = vunpack.c.l.b16 %v212
    %v580 = vunpack.c.h.b16 %v212
    %v581 = vunpack.c.l.b16 %v213
    %v582 = vunpack.c.h.b16 %v213
    %v583 = vunpack.c.l.b16 %v214
    %v584 = vunpack.c.h.b16 %v214
    %v585 = vunpack.c.l.b16 %v215
    %v586 = vunpack.c.h.b16 %v215
    %v587 = vunpack.c.l.b16 %v216
    %v588 = vunpack.c.h.b16 %v216
    %v589 = vunpack.c.l.b16 %v217
    %v590 = vunpack.c.h.b16 %v217
    %v591 = vunpack.c.l.b16 %v218
    %v592 = vunpack.c.h.b16 %v218
    %v593 = vunpack.c.l.b16 %v219
    %v594 = vunpack.c.h.b16 %v219
    %v595 = vunpack.c.l.b16 %v220
    %v596 = vunpack.c.h.b16 %v220
    %v597 = vunpack.c.l.b16 %v221
    %v598 = vunpack.c.h.b16 %v221
    %v599 = vunpack.c.l.b16 %v222
    %v600 = vunpack.c.h.b16 %v222
    %v601 = vunpack.c.l.b16 %v223
    %v602 = vunpack.c.h.b16 %v223
    %v603 = vunpack.c.l.b16 %v224
    %v604 = vunpack.c.h.b16 %v224
    %v605 = vunpack.c.l.b16 %v225
    %v606 = vunpack.c.h.b16 %v225
    %v607 = vunpack.c.l.b16 %v226
    %v608 = vunpack.c.h.b16 %v226
    %v609 = vunpack.c.l.b16 %v227
    %v610 = vunpack.c.h.b16 %v227
    %v611 = vunpack.c.l.b16 %v228
    %v612 = vunpack.c.h.b16 %v228
    %v613 = vunpack.c.l.b16 %v229
    %v614 = vunpack.c.h.b16 %v229
    %v615 = vunpack.c.l.b16 %v230
    %v616 = vunpack.c.h.b16 %v230
    %v617 = vunpack.c.l.b16 %v231
    %v618 = vunpack.c.h.b16 %v231
    %v619 = vunpack.c.l.b16 %v232
    %v620 = vunpack.c.h.b16 %v232
    %v621 = vunpack.c.l.b16 %v233
    %v622 = vunpack.c.h.b16 %v233
    %v623 = vunpack.c.l.b16 %v234
    %v624 = vunpack.c.h.b16 %v234
    %v625 = vunpack.c.l.b16 %v235
    %v626 = vunpack.c.h.b16 %v235
    %v627 = vunpack.c.l.b16 %v236
    %v628 = vunpack.c.h.b16 %v236
    %v629 = vunpack.c.l.b16 %v237
    %v630 = vunpack.c.h.b16 %v237
    %v631 = vunpack.c.l.b16 %v238
    %v632 = vunpack.c.h.b16 %v238
    %v633 = vunpack.c.l.b16 %v239
    %v634 = vunpack.c.h.b16 %v239
    %v635 = vunpack.c.l.b16 %v240
    %v636 = vunpack.c.h.b16 %v240
    %v637 = vunpack.c.l.b16 %v241
    %v638 = vunpack.c.h.b16 %v241
    %v639 = vunpack.c.l.b16 %v242
    %v640 = vunpack.c.h.b16 %v242
    %v641 = vunpack.c.l.b16 %v243
    %v642 = vunpack.c.h.b16 %v243
    %v643 = vunpack.c.l.b16 %v244
    %v644 = vunpack.c.h.b16 %v244
    %v645 = vunpack.c.l.b16 %v245
    %v646 = vunpack.c.h.b16 %v245
    %v647 = vunpack.c.l.b16 %v246
    %v648 = vunpack.c.h.b16 %v246
    %v649 = vunpack.c.l.b16 %v247
    %v650 = vunpack.c.h.b16 %v247
    %v651 = vunpack.c.l.b16 %v248
    %v652 = vunpack.c.h.b16 %v248
    %v653 = vunpack.c.l.b16 %v249
    %v654 = vunpack.c.h.b16 %v249
    %v655 = vunpack.c.l.b16 %v250
    %v656 = vunpack.c.h.b16 %v250
    %v657 = vunpack.c.l.b16 %v251
    %v658 = vunpack.c.h.b16 %v251
    %v659 = vunpack.c.l.b16 %v252
    %v660 = vunpack.c.h.b16 %v252
    %v661 = vunpack.c.l.b16 %v253
    %v662 = vunpack.c.h.b16 %v253
    %v663 = vunpack.c.l.b16 %v254
    %v664 = vunpack.c.h.b16 %v254
    %v665 = vunpack.c.l.b16 %v255
    %v666 = vunpack.c.h.b16 %v255
    %v667 = vunpack.c.l.b16 %v256
    %v668 = vunpack.c.h.b16 %v256
    %v669 = vunpack.c.l.b16 %v257
    %v670 = vunpack.c.h.b16 %v257
    %v671 = vunpack.c.l.b16 %v258
    %v672 = vunpack.c.h.b16 %v258
    %v673 = vunpack.c.l.b16 %v259
    %v674 = vunpack.c.h.b16 %v259
    %v675 = vunpack.c.l.b16 %v260
    %v676 = vunpack.c.h.b16 %v260
    %v677 = vunpack.c.l.b16 %v261
    %v678 = vunpack.c.h.b16 %v261
    %v679 = vunpack.c.l.b16 %v262
    %v680 = vunpack.c.h.b16 %v262
    %v681 = vunpack.c.l.b16 %v263
    %v682 = vunpack.c.h.b16 %v263
    %v683 = vunpack.c.l.b16 %v264
    %v684 = vunpack.c.h.b16 %v264
    %v685 = vunpack.c.l.b16 %v265
    %v686 = vunpack.c.h.b16 %v265
    %v687 = vunpack.c.l.b16 %v266
    %v688 = vunpack.c.h.b16 %v266
    %v689 = vunpack.c.l.b16 %v267
    %v690 = vunpack.c.h.b16 %v267
    %v691 = vunpack.c.l.b16 %v268
    %v692 = vunpack.c.h.b16 %v268
    %v693 = vunpack.c.l.b16 %v269
    %v694 = vunpack.c.h.b16 %v269
    %v695 = vunpack.c.l.b16 %v270
    %v696 = vunpack.c.h.b16 %v270
    %v697 = vunpack.c.l.b16 %v271
    %v698 = vunpack.c.h.b16 %v271
    %v699 = vunpack.c.l.b16 %v272
    %v700 = vunpack.c.h.b16 %v272
    %v701 = vunpack.c.l.b16 %v273
    %v702 = vunpack.c.h.b16 %v273
    %v703 = vunpack.c.l.b16 %v274
    %v704 = vunpack.c.h.b16 %v274
    %v705 = vunpack.c.l.b16 %v275
    %v706 = vunpack.c.h.b16 %v275
    %v707 = vunpack.c.l.b16 %v276
    %v708 = vunpack.c.h.b16 %v276
    %v709 = vunpack.c.l.b16 %v277
    %v710 = vunpack.c.h.b16 %v277
    %v711 = vpack.c.b16 %v459, %v455
    %v712 = vpack.c.b16 %v460, %v456
    %v713 = vpack.c.b16 %v461, %v457
    %v714 = vpack.c.b16 %v462, %v458
    %v715 = vpack.c.b16 %v467, %v463
    %v716 = vpack.c.b16 %v468, %v464
    %v717 = vpack.c.b16 %v469, %v465
    %v718 = vpack.c.b16 %v470, %v466
    %v719 = vpack.c.b16 %v475, %v471
    %v720 = vpack.c.b16 %v476, %v472
    %v721 = vpack.c.b16 %v477, %v473
    %v722 = vpack.c.b16 %v478, %v474
    %v723 = vpack.c.b16 %v483, %v479
    %v724 = vpack.c.b16 %v484, %v480
    %v725 = vpack.c.b16 %v485, %v481
    %v726 = vpack.c.b16 %v486, %v482
    %v727 = vpack.c.b16 %v491, %v487
    %v728 = vpack.c.b16 %v492, %v488
    %v729 = vpack.c.b16 %v493, %v489
    %v730 = vpack.c.b16 %v494, %v490
    %v731 = vpack.c.b16 %v499, %v495
    %v732 = vpack.c.b16 %v500, %v496
    %v733 = vpack.c.b16 %v501, %v497
    %v734 = vpack.c.b16 %v502, %v498
    %v735 = vpack.c.b16 %v507, %v503
    %v736 = vpack.c.b16 %v508, %v504
    %v737 = vpack.c.b16 %v509, %v505
    %v738 = vpack.c.b16 %v510, %v506
    %v739 = vpack.c.b16 %v515, %v511
    %v740 = vpack.c.b16 %v516, %v512
    %v741 = vpack.c.b16 %v517, %v513
    %v742 = vpack.c.b16 %v518, %v514
    %v743 = vpack.c.b16 %v523, %v519
    %v744 = vpack.c.b16 %v524, %v520
    %v745 = vpack.c.b16 %v525, %v521
    %v746 = vpack.c.b16 %v526, %v522
    %v747 = vpack.c.b16 %v531, %v527
    %v748 = vpack.c.b16 %v532, %v528
    %v749 = vpack.c.b16 %v533, %v529
    %v750 = vpack.c.b16 %v534, %v530
    %v751 = vpack.c.b16 %v539, %v535
    %v752 = vpack.c.b16 %v540, %v536
    %v753 = vpack.c.b16 %v541, %v537
    %v754 = vpack.c.b16 %v542, %v538
    %v755 = vpack.c.b16 %v547, %v543
    %v756 = vpack.c.b16 %v548, %v544
    %v757 = vpack.c.b16 %v549, %v545
    %v758 = vpack.c.b16 %v550, %v546
    %v759 = vpack.c.b16 %v555, %v551
    %v760 = vpack.c.b16 %v556, %v552
    %v761 = vpack.c.b16 %v557, %v553
    %v762 = vpack.c.b16 %v558, %v554
    %v763 = vpack.c.b16 %v563, %v559
    %v764 = vpack.c.b16 %v564, %v560
    %v765 = vpack.c.b16 %v565, %v561
    %v766 = vpack.c.b16 %v566, %v562
    %v767 = vpack.c.b16 %v571, %v567
    %v768 = vpack.c.b16 %v572, %v568
    %v769 = vpack.c.b16 %v573, %v569
    %v770 = vpack.c.b16 %v574, %v570
    %v771 = vpack.c.b16 %v579, %v575
    %v772 = vpack.c.b16 %v580, %v576
    %v773 = vpack.c.b16 %v581, %v577
    %v774 = vpack.c.b16 %v582, %v578
    %v775 = vpack.c.b16 %v587, %v583
    %v776 = vpack.c.b16 %v588, %v584
    %v777 = vpack.c.b16 %v589, %v585
    %v778 = vpack.c.b16 %v590, %v586
    %v779 = vpack.c.b16 %v595, %v591
    %v780 = vpack.c.b16 %v596, %v592
    %v781 = vpack.c.b16 %v597, %v593
    %v782 = vpack.c.b16 %v598, %v594
    %v783 = vpack.c.b16 %v603, %v599
    %v784 = vpack.c.b16 %v604, %v600
    %v785 = vpack.c.b16 %v605, %v601
    %v786 = vpack.c.b16 %v606, %v602
    %v787 = vpack.c.b16 %v611, %v607
    %v788 = vpack.c.b16 %v612, %v608
    %v789 = vpack.c.b16 %v613, %v609
    %v790 = vpack.c.b16 %v614, %v610
    %v791 = vpack.c.b16 %v619, %v615
    %v792 = vpack.c.b16 %v620, %v616
    %v793 = vpack.c.b16 %v621, %v617
    %v794 = vpack.c.b16 %v622, %v618
    %v795 = vpack.c.b16 %v627, %v623
    %v796 = vpack.c.b16 %v628, %v624
    %v797 = vpack.c.b16 %v629, %v625
    %v798 = vpack.c.b16 %v630, %v626
    %v799 = vpack.c.b16 %v635, %v631
    %v800 = vpack.c.b16 %v636, %v632
    %v801 = vpack.c.b16 %v637, %v633
    %v802 = vpack.c.b16 %v638, %v634
    %v803 = vpack.c.b16 %v643, %v639
    %v804 = vpack.c.b16 %v644, %v640
    %v805 = vpack.c.b16 %v645, %v641
    %v806 = vpack.c.b16 %v646, %v642
    %v807 = vpack.c.b16 %v651, %v647
    %v808 = vpack.c.b16 %v652, %v648
    %v809 = vpack.c.b16 %v653, %v649
    %v810 = vpack.c.b16 %v654, %v650
    %v811 = vpack.c.b16 %v659, %v655
    %v812 = vpack.c.b16 %v660, %v656
    %v813 = vpack.c.b16 %v661, %v657
    %v814 = vpack.c.b16 %v662, %v658
    %v815 = vpack.c.b16 %v667, %v663
    %v816 = vpack.c.b16 %v668, %v664
    %v817 = vpack.c.b16 %v669, %v665
    %v818 = vpack.c.b16 %v670, %v666
    %v819 = vpack.c.b16 %v675, %v671
    %v820 = vpack.c.b16 %v676, %v672
    %v821 = vpack.c.b16 %v677, %v673
    %v822 = vpack.c.b16 %v678, %v674
    %v823 = vpack.c.b16 %v683, %v679
    %v824 = vpack.c.b16 %v684, %v680
    %v825 = vpack.c.b16 %v685, %v681
    %v826 = vpack.c.b16 %v686, %v682
    %v827 = vpack.c.b16 %v691, %v687
    %v828 = vpack.c.b16 %v692, %v688
    %v829 = vpack.c.b16 %v693, %v689
    %v830 = vpack.c.b16 %v694, %v690
    %v831 = vpack.c.b16 %v699, %v695
    %v832 = vpack.c.b16 %v700, %v696
    %v833 = vpack.c.b16 %v701, %v697
    %v834 = vpack.c.b16 %v702, %v698
    %v835 = vpack.c.b16 %v707, %v703
    %v836 = vpack.c.b16 %v708, %v704
    %v837 = vpack.c.b16 %v709, %v705
    %v838 = vpack.c.b16 %v710, %v706
    %v984 = vunpack.c.l.b16 %v278
    %v985 = vunpack.c.l.b16 %v279
    %v986 = vunpack.c.l.b16 %v280
    %v987 = vunpack.c.l.b16 %v281
    %v988 = vunpack.c.l.b16 %v282
    %v989 = vunpack.c.l.b16 %v283
    %v990 = vunpack.c.l.b16 %v284
    %v991 = vunpack.c.l.b16 %v285
    %v992 = vunpack.c.l.b16 %v286
    %v993 = vunpack.c.l.b16 %v287
    %v994 = vunpack.c.l.b16 %v288
    %v995 = vunpack.c.l.b16 %v289
    %v996 = vunpack.c.l.b16 %v290
    %v997 = vunpack.c.l.b16 %v291
    %v998 = vunpack.c.l.b16 %v292
    %v999 = vunpack.c.l.b16 %v293
    %v1000 = vunpack.c.l.b16 %v294
    %v1001 = vunpack.c.l.b16 %v295
    %v1002 = vunpack.c.l.b16 %v296
    %v1003 = vunpack.c.l.b16 %v297
    %v1004 = vunpack.c.l.b16 %v298
    %v1005 = vunpack.c.l.b16 %v299
    %v1006 = vunpack.c.l.b16 %v300
    %v1007 = vunpack.c.l.b16 %v301
    %v1008 = vunpack.c.l.b16 %v302
    %v1009 = vunpack.c.l.b16 %v303
    %v1010 = vunpack.c.l.b16 %v304
    %v1011 = vunpack.c.l.b16 %v305
    %v1012 = vunpack.c.l.b16 %v306
    %v1013 = vunpack.c.l.b16 %v307
    %v1014 = vunpack.c.l.b16 %v308
    %v1015 = vunpack.c.l.b16 %v309
    %v1016 = vunpack.c.l.b16 %v310
    %v1017 = vunpack.c.l.b16 %v311
    %v1018 = vunpack.c.l.b16 %v312
    %v1019 = vunpack.c.l.b16 %v313
    %v1020 = vunpack.c.l.b16 %v314
    %v1021 = vunpack.c.l.b16 %v315
    %v1022 = vunpack.c.l.b16 %v316
    %v1023 = vunpack.c.l.b16 %v317
    %v1024 = vunpack.c.l.b16 %v318
    %v1025 = vunpack.c.l.b16 %v319
    %v1026 = vunpack.c.l.b16 %v320
    %v1027 = vunpack.c.l.b16 %v321
    %v1028 = vunpack.c.l.b16 %v322
    %v1029 = vunpack.c.l.b16 %v323
    %v1030 = vunpack.c.l.b16 %v324
    %v1031 = vunpack.c.l.b16 %v325
    %v1032 = vunpack.c.l.b16 %v326
    %v1033 = vpack.c.b16 %v985, %v984
    %v1034 = vpack.c.b16 %v987, %v986
    %v1035 = vpack.c.b16 %v989, %v988
    %v1036 = vpack.c.b16 %v991, %v990
    %v1037 = vpack.c.b16 %v993, %v992
    %v1038 = vpack.c.b16 %v995, %v994
    %v1039 = vpack.c.b16 %v997, %v996
    %v1040 = vpack.c.b16 %v999, %v998
    %v1041 = vpack.c.b16 %v1001, %v1000
    %v1042 = vpack.c.b16 %v1003, %v1002
    %v1043 = vpack.c.b16 %v1005, %v1004
    %v1044 = vpack.c.b16 %v1007, %v1006
    %v1045 = vpack.c.b16 %v1009, %v1008
    %v1046 = vpack.c.b16 %v1011, %v1010
    %v1047 = vpack.c.b16 %v1013, %v1012
    %v1048 = vpack.c.b16 %v1015, %v1014
    %v1049 = vpack.c.b16 %v1017, %v1016
    %v1050 = vpack.c.b16 %v1019, %v1018
    %v1051 = vpack.c.b16 %v1021, %v1020
    %v1052 = vpack.c.b16 %v1023, %v1022
    %v1053 = vpack.c.b16 %v1025, %v1024
    %v1054 = vpack.c.b16 %v1027, %v1026
    %v1055 = vpack.c.b16 %v1029, %v1028
    %v1056 = vpack.c.b16 %v1031, %v1030
    %v1057 = vpack.c.b16 %v1032, %v1032
    %vm1082 = vcmask 64512
    %v1084 = vsel %vm1082, %v714, 0
    %v1087 = vsel %vm1082, %v718, 0
    %v1090 = vsel %vm1082, %v722, 0
    %v1093 = vsel %vm1082, %v726, 0
    %v1096 = vsel %vm1082, %v730, 0
    %v1099 = vsel %vm1082, %v734, 0
    %v1102 = vsel %vm1082, %v738, 0
    %v1105 = vsel %vm1082, %v742, 0
    %v1108 = vsel %vm1082, %v746, 0
    %v1111 = vsel %vm1082, %v750, 0
    %v1114 = vsel %vm1082, %v754, 0
    %v1117 = vsel %vm1082, %v758, 0
    %v1120 = vsel %vm1082, %v762, 0
    %v1123 = vsel %vm1082, %v766, 0
    %v1126 = vsel %vm1082, %v770, 0
    %v1129 = vsel %vm1082, %v774, 0
    %v1132 = vsel %vm1082, %v778, 0
    %v1135 = vsel %vm1082, %v782, 0
    %v1138 = vsel %vm1082, %v786, 0
    %v1141 = vsel %vm1082, %v790, 0
    %v1144 = vsel %vm1082, %v794, 0
    %v1147 = vsel %vm1082, %v798, 0
    %v1150 = vsel %vm1082, %v802, 0
    %v1153 = vsel %vm1082, %v806, 0
    %v1156 = vsel %vm1082, %v810, 0
    %v1159 = vsel %vm1082, %v814, 0
    %v1162 = vsel %vm1082, %v818, 0
    %v1165 = vsel %vm1082, %v822, 0
    %v1168 = vsel %vm1082, %v826, 0
    %v1171 = vsel %vm1082, %v830, 0
    %v1174 = vsel %vm1082, %v834, 0
    %v1177 = vsel %vm1082, %v838, 0
    %vm1179 = vcmask 1043456
    %v1181 = vsel %vm1179, %v1057, 0
    %1183 = vmatpush.bf16.msra.mxu0 %v1040
    %1184 = vmatpush.bf16.msra.mxu0 %v1039
    %1185 = vmatpush.bf16.msra.mxu0 %v1038
    %1186 = vmatpush.bf16.msra.mxu0 %v1037
    %1187 = vmatpush.bf16.msra.mxu0 %v1036
    %1188 = vmatpush.bf16.msra.mxu0 %v1035
    %1189 = vmatpush.bf16.msra.mxu0 %v1034
    %1190 = vmatpush.bf16.msra.mxu0 %v1033
    %1191 = vmatmul.bf16.gmra.mxu0 %v711
    %v1192 = vpop.f32.mrf.mxu0
    %v1193 = vadd.f32 0.0, %v1192
    %v1194 = vpop.f32.mrf.mxu0
    %v1195 = vadd.f32 0.0, %v1194
    %1196 = vmatmul.bf16.gmra.mxu0 %v715
    %v1197 = vpop.f32.mrf.mxu0
    %v1198 = vadd.f32 0.0, %v1197
    %v1199 = vpop.f32.mrf.mxu0
    %v1200 = vadd.f32 0.0, %v1199
    %1201 = vmatmul.bf16.gmra.mxu0 %v719
    %v1202 = vpop.f32.mrf.mxu0
    %v1203 = vadd.f32 0.0, %v1202
    %v1204 = vpop.f32.mrf.mxu0
    %v1205 = vadd.f32 0.0, %v1204
    %1206 = vmatmul.bf16.gmra.mxu0 %v723
    %v1207 = vpop.f32.mrf.mxu0
    %v1208 = vadd.f32 0.0, %v1207
    %v1209 = vpop.f32.mrf.mxu0
    %v1210 = vadd.f32 0.0, %v1209
    %1211 = vmatmul.bf16.gmra.mxu0 %v727
    %v1212 = vpop.f32.mrf.mxu0
    %v1213 = vadd.f32 0.0, %v1212
    %v1214 = vpop.f32.mrf.mxu0
    %v1215 = vadd.f32 0.0, %v1214
    %1216 = vmatmul.bf16.gmra.mxu0 %v731
    %v1217 = vpop.f32.mrf.mxu0
    %v1218 = vadd.f32 0.0, %v1217
    %v1219 = vpop.f32.mrf.mxu0
    %v1220 = vadd.f32 0.0, %v1219
    %1221 = vmatmul.bf16.gmra.mxu0 %v735
    %v1222 = vpop.f32.mrf.mxu0
    %v1223 = vadd.f32 0.0, %v1222
    %v1224 = vpop.f32.mrf.mxu0
    %v1225 = vadd.f32 0.0, %v1224
    %1226 = vmatmul.bf16.gmra.mxu0 %v739
    %v1227 = vpop.f32.mrf.mxu0
    %v1228 = vadd.f32 0.0, %v1227
    %v1229 = vpop.f32.mrf.mxu0
    %v1230 = vadd.f32 0.0, %v1229
    %1231 = vmatmul.bf16.gmra.mxu0 %v743
    %v1232 = vpop.f32.mrf.mxu0
    %v1233 = vadd.f32 0.0, %v1232
    %v1234 = vpop.f32.mrf.mxu0
    %v1235 = vadd.f32 0.0, %v1234
    %1236 = vmatmul.bf16.gmra.mxu0 %v747
    %v1237 = vpop.f32.mrf.mxu0
    %v1238 = vadd.f32 0.0, %v1237
    %v1239 = vpop.f32.mrf.mxu0
    %v1240 = vadd.f32 0.0, %v1239
    %1241 = vmatmul.bf16.gmra.mxu0 %v751
    %v1242 = vpop.f32.mrf.mxu0
    %v1243 = vadd.f32 0.0, %v1242
    %v1244 = vpop.f32.mrf.mxu0
    %v1245 = vadd.f32 0.0, %v1244
    %1246 = vmatmul.bf16.gmra.mxu0 %v755
    %v1247 = vpop.f32.mrf.mxu0
    %v1248 = vadd.f32 0.0, %v1247
    %v1249 = vpop.f32.mrf.mxu0
    %v1250 = vadd.f32 0.0, %v1249
    %1251 = vmatmul.bf16.gmra.mxu0 %v759
    %v1252 = vpop.f32.mrf.mxu0
    %v1253 = vadd.f32 0.0, %v1252
    %v1254 = vpop.f32.mrf.mxu0
    %v1255 = vadd.f32 0.0, %v1254
    %1256 = vmatmul.bf16.gmra.mxu0 %v763
    %v1257 = vpop.f32.mrf.mxu0
    %v1258 = vadd.f32 0.0, %v1257
    %v1259 = vpop.f32.mrf.mxu0
    %v1260 = vadd.f32 0.0, %v1259
    %1261 = vmatmul.bf16.gmra.mxu0 %v767
    %v1262 = vpop.f32.mrf.mxu0
    %v1263 = vadd.f32 0.0, %v1262
    %v1264 = vpop.f32.mrf.mxu0
    %v1265 = vadd.f32 0.0, %v1264
    %1266 = vmatmul.bf16.gmra.mxu0 %v771
    %v1267 = vpop.f32.mrf.mxu0
    %v1268 = vadd.f32 0.0, %v1267
    %v1269 = vpop.f32.mrf.mxu0
    %v1270 = vadd.f32 0.0, %v1269
    %1271 = vmatmul.bf16.gmra.mxu0 %v775
    %v1272 = vpop.f32.mrf.mxu0
    %v1273 = vadd.f32 0.0, %v1272
    %v1274 = vpop.f32.mrf.mxu0
    %v1275 = vadd.f32 0.0, %v1274
    %1276 = vmatmul.bf16.gmra.mxu0 %v779
    %v1277 = vpop.f32.mrf.mxu0
    %v1278 = vadd.f32 0.0, %v1277
    %v1279 = vpop.f32.mrf.mxu0
    %v1280 = vadd.f32 0.0, %v1279
    %1281 = vmatmul.bf16.gmra.mxu0 %v783
    %v1282 = vpop.f32.mrf.mxu0
    %v1283 = vadd.f32 0.0, %v1282
    %v1284 = vpop.f32.mrf.mxu0
    %v1285 = vadd.f32 0.0, %v1284
    %1286 = vmatmul.bf16.gmra.mxu0 %v787
    %v1287 = vpop.f32.mrf.mxu0
    %v1288 = vadd.f32 0.0, %v1287
    %v1289 = vpop.f32.mrf.mxu0
    %v1290 = vadd.f32 0.0, %v1289
    %1291 = vmatmul.bf16.gmra.mxu0 %v791
    %v1292 = vpop.f32.mrf.mxu0
    %v1293 = vadd.f32 0.0, %v1292
    %v1294 = vpop.f32.mrf.mxu0
    %v1295 = vadd.f32 0.0, %v1294
    %1296 = vmatmul.bf16.gmra.mxu0 %v795
    %v1297 = vpop.f32.mrf.mxu0
    %v1298 = vadd.f32 0.0, %v1297
    %v1299 = vpop.f32.mrf.mxu0
    %v1300 = vadd.f32 0.0, %v1299
    %1301 = vmatmul.bf16.gmra.mxu0 %v799
    %v1302 = vpop.f32.mrf.mxu0
    %v1303 = vadd.f32 0.0, %v1302
    %v1304 = vpop.f32.mrf.mxu0
    %v1305 = vadd.f32 0.0, %v1304
    %1306 = vmatmul.bf16.gmra.mxu0 %v803
    %v1307 = vpop.f32.mrf.mxu0
    %v1308 = vadd.f32 0.0, %v1307
    %v1309 = vpop.f32.mrf.mxu0
    %v1310 = vadd.f32 0.0, %v1309
    %1311 = vmatmul.bf16.gmra.mxu0 %v807
    %v1312 = vpop.f32.mrf.mxu0
    %v1313 = vadd.f32 0.0, %v1312
    %v1314 = vpop.f32.mrf.mxu0
    %v1315 = vadd.f32 0.0, %v1314
    %1316 = vmatmul.bf16.gmra.mxu0 %v811
    %v1317 = vpop.f32.mrf.mxu0
    %v1318 = vadd.f32 0.0, %v1317
    %v1319 = vpop.f32.mrf.mxu0
    %v1320 = vadd.f32 0.0, %v1319
    %1321 = vmatmul.bf16.gmra.mxu0 %v815
    %v1322 = vpop.f32.mrf.mxu0
    %v1323 = vadd.f32 0.0, %v1322
    %v1324 = vpop.f32.mrf.mxu0
    %v1325 = vadd.f32 0.0, %v1324
    %1326 = vmatmul.bf16.gmra.mxu0 %v819
    %v1327 = vpop.f32.mrf.mxu0
    %v1328 = vadd.f32 0.0, %v1327
    %v1329 = vpop.f32.mrf.mxu0
    %v1330 = vadd.f32 0.0, %v1329
    %1331 = vmatmul.bf16.gmra.mxu0 %v823
    %v1332 = vpop.f32.mrf.mxu0
    %v1333 = vadd.f32 0.0, %v1332
    %v1334 = vpop.f32.mrf.mxu0
    %v1335 = vadd.f32 0.0, %v1334
    %1336 = vmatmul.bf16.gmra.mxu0 %v827
    %v1337 = vpop.f32.mrf.mxu0
    %v1338 = vadd.f32 0.0, %v1337
    %v1339 = vpop.f32.mrf.mxu0
    %v1340 = vadd.f32 0.0, %v1339
    %1341 = vmatmul.bf16.gmra.mxu0 %v831
    %v1342 = vpop.f32.mrf.mxu0
    %v1343 = vadd.f32 0.0, %v1342
    %v1344 = vpop.f32.mrf.mxu0
    %v1345 = vadd.f32 0.0, %v1344
    %1346 = vmatmul.bf16.gmra.mxu0 %v835
    %v1347 = vpop.f32.mrf.mxu0
    %v1348 = vadd.f32 0.0, %v1347
    %v1349 = vpop.f32.mrf.mxu0
    %v1350 = vadd.f32 0.0, %v1349
    %1351 = vdwg.mxu0
    %1352 = vmatpush.bf16.msra.mxu0 %v1048
    %1353 = vmatpush.bf16.msra.mxu0 %v1047
    %1354 = vmatpush.bf16.msra.mxu0 %v1046
    %1355 = vmatpush.bf16.msra.mxu0 %v1045
    %1356 = vmatpush.bf16.msra.mxu0 %v1044
    %1357 = vmatpush.bf16.msra.mxu0 %v1043
    %1358 = vmatpush.bf16.msra.mxu0 %v1042
    %1359 = vmatpush.bf16.msra.mxu0 %v1041
    %1360 = vmatmul.bf16.gmra.mxu0 %v712
    %v1361 = vpop.f32.mrf.mxu0
    %v1362 = vadd.f32 %v1193, %v1361
    %v1363 = vpop.f32.mrf.mxu0
    %v1364 = vadd.f32 %v1195, %v1363
    %1365 = vmatmul.bf16.gmra.mxu0 %v716
    %v1366 = vpop.f32.mrf.mxu0
    %v1367 = vadd.f32 %v1198, %v1366
    %v1368 = vpop.f32.mrf.mxu0
    %v1369 = vadd.f32 %v1200, %v1368
    %1370 = vmatmul.bf16.gmra.mxu0 %v720
    %v1371 = vpop.f32.mrf.mxu0
    %v1372 = vadd.f32 %v1203, %v1371
    %v1373 = vpop.f32.mrf.mxu0
    %v1374 = vadd.f32 %v1205, %v1373
    %1375 = vmatmul.bf16.gmra.mxu0 %v724
    %v1376 = vpop.f32.mrf.mxu0
    %v1377 = vadd.f32 %v1208, %v1376
    %v1378 = vpop.f32.mrf.mxu0
    %v1379 = vadd.f32 %v1210, %v1378
    %1380 = vmatmul.bf16.gmra.mxu0 %v728
    %v1381 = vpop.f32.mrf.mxu0
    %v1382 = vadd.f32 %v1213, %v1381
    %v1383 = vpop.f32.mrf.mxu0
    %v1384 = vadd.f32 %v1215, %v1383
    %1385 = vmatmul.bf16.gmra.mxu0 %v732
    %v1386 = vpop.f32.mrf.mxu0
    %v1387 = vadd.f32 %v1218, %v1386
    %v1388 = vpop.f32.mrf.mxu0
    %v1389 = vadd.f32 %v1220, %v1388
    %1390 = vmatmul.bf16.gmra.mxu0 %v736
    %v1391 = vpop.f32.mrf.mxu0
    %v1392 = vadd.f32 %v1223, %v1391
    %v1393 = vpop.f32.mrf.mxu0
    %v1394 = vadd.f32 %v1225, %v1393
    %1395 = vmatmul.bf16.gmra.mxu0 %v740
    %v1396 = vpop.f32.mrf.mxu0
    %v1397 = vadd.f32 %v1228, %v1396
    %v1398 = vpop.f32.mrf.mxu0
    %v1399 = vadd.f32 %v1230, %v1398
    %1400 = vmatmul.bf16.gmra.mxu0 %v744
    %v1401 = vpop.f32.mrf.mxu0
    %v1402 = vadd.f32 %v1233, %v1401
    %v1403 = vpop.f32.mrf.mxu0
    %v1404 = vadd.f32 %v1235, %v1403
    %1405 = vmatmul.bf16.gmra.mxu0 %v748
    %v1406 = vpop.f32.mrf.mxu0
    %v1407 = vadd.f32 %v1238, %v1406
    %v1408 = vpop.f32.mrf.mxu0
    %v1409 = vadd.f32 %v1240, %v1408
    %1410 = vmatmul.bf16.gmra.mxu0 %v752
    %v1411 = vpop.f32.mrf.mxu0
    %v1412 = vadd.f32 %v1243, %v1411
    %v1413 = vpop.f32.mrf.mxu0
    %v1414 = vadd.f32 %v1245, %v1413
    %1415 = vmatmul.bf16.gmra.mxu0 %v756
    %v1416 = vpop.f32.mrf.mxu0
    %v1417 = vadd.f32 %v1248, %v1416
    %v1418 = vpop.f32.mrf.mxu0
    %v1419 = vadd.f32 %v1250, %v1418
    %1420 = vmatmul.bf16.gmra.mxu0 %v760
    %v1421 = vpop.f32.mrf.mxu0
    %v1422 = vadd.f32 %v1253, %v1421
    %v1423 = vpop.f32.mrf.mxu0
    %v1424 = vadd.f32 %v1255, %v1423
    %1425 = vmatmul.bf16.gmra.mxu0 %v764
    %v1426 = vpop.f32.mrf.mxu0
    %v1427 = vadd.f32 %v1258, %v1426
    %v1428 = vpop.f32.mrf.mxu0
    %v1429 = vadd.f32 %v1260, %v1428
    %1430 = vmatmul.bf16.gmra.mxu0 %v768
    %v1431 = vpop.f32.mrf.mxu0
    %v1432 = vadd.f32 %v1263, %v1431
    %v1433 = vpop.f32.mrf.mxu0
    %v1434 = vadd.f32 %v1265, %v1433
    %1435 = vmatmul.bf16.gmra.mxu0 %v772
    %v1436 = vpop.f32.mrf.mxu0
    %v1437 = vadd.f32 %v1268, %v1436
    %v1438 = vpop.f32.mrf.mxu0
    %v1439 = vadd.f32 %v1270, %v1438
    %1440 = vmatmul.bf16.gmra.mxu0 %v776
    %v1441 = vpop.f32.mrf.mxu0
    %v1442 = vadd.f32 %v1273, %v1441
    %v1443 = vpop.f32.mrf.mxu0
    %v1444 = vadd.f32 %v1275, %v1443
    %1445 = vmatmul.bf16.gmra.mxu0 %v780
    %v1446 = vpop.f32.mrf.mxu0
    %v1447 = vadd.f32 %v1278, %v1446
    %v1448 = vpop.f32.mrf.mxu0
    %v1449 = vadd.f32 %v1280, %v1448
    %1450 = vmatmul.bf16.gmra.mxu0 %v784
    %v1451 = vpop.f32.mrf.mxu0
    %v1452 = vadd.f32 %v1283, %v1451
    %v1453 = vpop.f32.mrf.mxu0
    %v1454 = vadd.f32 %v1285, %v1453
    %1455 = vmatmul.bf16.gmra.mxu0 %v788
    %v1456 = vpop.f32.mrf.mxu0
    %v1457 = vadd.f32 %v1288, %v1456
    %v1458 = vpop.f32.mrf.mxu0
    %v1459 = vadd.f32 %v1290, %v1458
    %1460 = vmatmul.bf16.gmra.mxu0 %v792
    %v1461 = vpop.f32.mrf.mxu0
    %v1462 = vadd.f32 %v1293, %v1461
    %v1463 = vpop.f32.mrf.mxu0
    %v1464 = vadd.f32 %v1295, %v1463
    %1465 = vmatmul.bf16.gmra.mxu0 %v796
    %v1466 = vpop.f32.mrf.mxu0
    %v1467 = vadd.f32 %v1298, %v1466
    %v1468 = vpop.f32.mrf.mxu0
    %v1469 = vadd.f32 %v1300, %v1468
    %1470 = vmatmul.bf16.gmra.mxu0 %v800
    %v1471 = vpop.f32.mrf.mxu0
    %v1472 = vadd.f32 %v1303, %v1471
    %v1473 = vpop.f32.mrf.mxu0
    %v1474 = vadd.f32 %v1305, %v1473
    %1475 = vmatmul.bf16.gmra.mxu0 %v804
    %v1476 = vpop.f32.mrf.mxu0
    %v1477 = vadd.f32 %v1308, %v1476
    %v1478 = vpop.f32.mrf.mxu0
    %v1479 = vadd.f32 %v1310, %v1478
    %1480 = vmatmul.bf16.gmra.mxu0 %v808
    %v1481 = vpop.f32.mrf.mxu0
    %v1482 = vadd.f32 %v1313, %v1481
    %v1483 = vpop.f32.mrf.mxu0
    %v1484 = vadd.f32 %v1315, %v1483
    %1485 = vmatmul.bf16.gmra.mxu0 %v812
    %v1486 = vpop.f32.mrf.mxu0
    %v1487 = vadd.f32 %v1318, %v1486
    %v1488 = vpop.f32.mrf.mxu0
    %v1489 = vadd.f32 %v1320, %v1488
    %1490 = vmatmul.bf16.gmra.mxu0 %v816
    %v1491 = vpop.f32.mrf.mxu0
    %v1492 = vadd.f32 %v1323, %v1491
    %v1493 = vpop.f32.mrf.mxu0
    %v1494 = vadd.f32 %v1325, %v1493
    %1495 = vmatmul.bf16.gmra.mxu0 %v820
    %v1496 = vpop.f32.mrf.mxu0
    %v1497 = vadd.f32 %v1328, %v1496
    %v1498 = vpop.f32.mrf.mxu0
    %v1499 = vadd.f32 %v1330, %v1498
    %1500 = vmatmul.bf16.gmra.mxu0 %v824
    %v1501 = vpop.f32.mrf.mxu0
    %v1502 = vadd.f32 %v1333, %v1501
    %v1503 = vpop.f32.mrf.mxu0
    %v1504 = vadd.f32 %v1335, %v1503
    %1505 = vmatmul.bf16.gmra.mxu0 %v828
    %v1506 = vpop.f32.mrf.mxu0
    %v1507 = vadd.f32 %v1338, %v1506
    %v1508 = vpop.f32.mrf.mxu0
    %v1509 = vadd.f32 %v1340, %v1508
    %1510 = vmatmul.bf16.gmra.mxu0 %v832
    %v1511 = vpop.f32.mrf.mxu0
    %v1512 = vadd.f32 %v1343, %v1511
    %v1513 = vpop.f32.mrf.mxu0
    %v1514 = vadd.f32 %v1345, %v1513
    %1515 = vmatmul.bf16.gmra.mxu0 %v836
    %v1516 = vpop.f32.mrf.mxu0
    %v1517 = vadd.f32 %v1348, %v1516
    %v1518 = vpop.f32.mrf.mxu0
    %v1519 = vadd.f32 %v1350, %v1518
    %1520 = vdwg.mxu0
    %1521 = vmatpush.bf16.msra.mxu0 %v1056
    %1522 = vmatpush.bf16.msra.mxu0 %v1055
    %1523 = vmatpush.bf16.msra.mxu0 %v1054
    %1524 = vmatpush.bf16.msra.mxu0 %v1053
    %1525 = vmatpush.bf16.msra.mxu0 %v1052
    %1526 = vmatpush.bf16.msra.mxu0 %v1051
    %1527 = vmatpush.bf16.msra.mxu0 %v1050
    %1528 = vmatpush.bf16.msra.mxu0 %v1049
    %1529 = vmatmul.bf16.gmra.mxu0 %v713
    %v1530 = vpop.f32.mrf.mxu0
    %v1531 = vadd.f32 %v1362, %v1530
    %v1532 = vpop.f32.mrf.mxu0
    %v1533 = vadd.f32 %v1364, %v1532
    %1534 = vmatmul.bf16.gmra.mxu0 %v717
    %v1535 = vpop.f32.mrf.mxu0
    %v1536 = vadd.f32 %v1367, %v1535
    %v1537 = vpop.f32.mrf.mxu0
    %v1538 = vadd.f32 %v1369, %v1537
    %1539 = vmatmul.bf16.gmra.mxu0 %v721
    %v1540 = vpop.f32.mrf.mxu0
    %v1541 = vadd.f32 %v1372, %v1540
    %v1542 = vpop.f32.mrf.mxu0
    %v1543 = vadd.f32 %v1374, %v1542
    %1544 = vmatmul.bf16.gmra.mxu0 %v725
    %v1545 = vpop.f32.mrf.mxu0
    %v1546 = vadd.f32 %v1377, %v1545
    %v1547 = vpop.f32.mrf.mxu0
    %v1548 = vadd.f32 %v1379, %v1547
    %1549 = vmatmul.bf16.gmra.mxu0 %v729
    %v1550 = vpop.f32.mrf.mxu0
    %v1551 = vadd.f32 %v1382, %v1550
    %v1552 = vpop.f32.mrf.mxu0
    %v1553 = vadd.f32 %v1384, %v1552
    %1554 = vmatmul.bf16.gmra.mxu0 %v733
    %v1555 = vpop.f32.mrf.mxu0
    %v1556 = vadd.f32 %v1387, %v1555
    %v1557 = vpop.f32.mrf.mxu0
    %v1558 = vadd.f32 %v1389, %v1557
    %1559 = vmatmul.bf16.gmra.mxu0 %v737
    %v1560 = vpop.f32.mrf.mxu0
    %v1561 = vadd.f32 %v1392, %v1560
    %v1562 = vpop.f32.mrf.mxu0
    %v1563 = vadd.f32 %v1394, %v1562
    %1564 = vmatmul.bf16.gmra.mxu0 %v741
    %v1565 = vpop.f32.mrf.mxu0
    %v1566 = vadd.f32 %v1397, %v1565
    %v1567 = vpop.f32.mrf.mxu0
    %v1568 = vadd.f32 %v1399, %v1567
    %1569 = vmatmul.bf16.gmra.mxu0 %v745
    %v1570 = vpop.f32.mrf.mxu0
    %v1571 = vadd.f32 %v1402, %v1570
    %v1572 = vpop.f32.mrf.mxu0
    %v1573 = vadd.f32 %v1404, %v1572
    %1574 = vmatmul.bf16.gmra.mxu0 %v749
    %v1575 = vpop.f32.mrf.mxu0
    %v1576 = vadd.f32 %v1407, %v1575
    %v1577 = vpop.f32.mrf.mxu0
    %v1578 = vadd.f32 %v1409, %v1577
    %1579 = vmatmul.bf16.gmra.mxu0 %v753
    %v1580 = vpop.f32.mrf.mxu0
    %v1581 = vadd.f32 %v1412, %v1580
    %v1582 = vpop.f32.mrf.mxu0
    %v1583 = vadd.f32 %v1414, %v1582
    %1584 = vmatmul.bf16.gmra.mxu0 %v757
    %v1585 = vpop.f32.mrf.mxu0
    %v1586 = vadd.f32 %v1417, %v1585
    %v1587 = vpop.f32.mrf.mxu0
    %v1588 = vadd.f32 %v1419, %v1587
    %1589 = vmatmul.bf16.gmra.mxu0 %v761
    %v1590 = vpop.f32.mrf.mxu0
    %v1591 = vadd.f32 %v1422, %v1590
    %v1592 = vpop.f32.mrf.mxu0
    %v1593 = vadd.f32 %v1424, %v1592
    %1594 = vmatmul.bf16.gmra.mxu0 %v765
    %v1595 = vpop.f32.mrf.mxu0
    %v1596 = vadd.f32 %v1427, %v1595
    %v1597 = vpop.f32.mrf.mxu0
    %v1598 = vadd.f32 %v1429, %v1597
    %1599 = vmatmul.bf16.gmra.mxu0 %v769
    %v1600 = vpop.f32.mrf.mxu0
    %v1601 = vadd.f32 %v1432, %v1600
    %v1602 = vpop.f32.mrf.mxu0
    %v1603 = vadd.f32 %v1434, %v1602
    %1604 = vmatmul.bf16.gmra.mxu0 %v773
    %v1605 = vpop.f32.mrf.mxu0
    %v1606 = vadd.f32 %v1437, %v1605
    %v1607 = vpop.f32.mrf.mxu0
    %v1608 = vadd.f32 %v1439, %v1607
    %1609 = vmatmul.bf16.gmra.mxu0 %v777
    %v1610 = vpop.f32.mrf.mxu0
    %v1611 = vadd.f32 %v1442, %v1610
    %v1612 = vpop.f32.mrf.mxu0
    %v1613 = vadd.f32 %v1444, %v1612
    %1614 = vmatmul.bf16.gmra.mxu0 %v781
    %v1615 = vpop.f32.mrf.mxu0
    %v1616 = vadd.f32 %v1447, %v1615
    %v1617 = vpop.f32.mrf.mxu0
    %v1618 = vadd.f32 %v1449, %v1617
    %1619 = vmatmul.bf16.gmra.mxu0 %v785
    %v1620 = vpop.f32.mrf.mxu0
    %v1621 = vadd.f32 %v1452, %v1620
    %v1622 = vpop.f32.mrf.mxu0
    %v1623 = vadd.f32 %v1454, %v1622
    %1624 = vmatmul.bf16.gmra.mxu0 %v789
    %v1625 = vpop.f32.mrf.mxu0
    %v1626 = vadd.f32 %v1457, %v1625
    %v1627 = vpop.f32.mrf.mxu0
    %v1628 = vadd.f32 %v1459, %v1627
    %1629 = vmatmul.bf16.gmra.mxu0 %v793
    %v1630 = vpop.f32.mrf.mxu0
    %v1631 = vadd.f32 %v1462, %v1630
    %v1632 = vpop.f32.mrf.mxu0
    %v1633 = vadd.f32 %v1464, %v1632
    %1634 = vmatmul.bf16.gmra.mxu0 %v797
    %v1635 = vpop.f32.mrf.mxu0
    %v1636 = vadd.f32 %v1467, %v1635
    %v1637 = vpop.f32.mrf.mxu0
    %v1638 = vadd.f32 %v1469, %v1637
    %1639 = vmatmul.bf16.gmra.mxu0 %v801
    %v1640 = vpop.f32.mrf.mxu0
    %v1641 = vadd.f32 %v1472, %v1640
    %v1642 = vpop.f32.mrf.mxu0
    %v1643 = vadd.f32 %v1474, %v1642
    %1644 = vmatmul.bf16.gmra.mxu0 %v805
    %v1645 = vpop.f32.mrf.mxu0
    %v1646 = vadd.f32 %v1477, %v1645
    %v1647 = vpop.f32.mrf.mxu0
    %v1648 = vadd.f32 %v1479, %v1647
    %1649 = vmatmul.bf16.gmra.mxu0 %v809
    %v1650 = vpop.f32.mrf.mxu0
    %v1651 = vadd.f32 %v1482, %v1650
    %v1652 = vpop.f32.mrf.mxu0
    %v1653 = vadd.f32 %v1484, %v1652
    %1654 = vmatmul.bf16.gmra.mxu0 %v813
    %v1655 = vpop.f32.mrf.mxu0
    %v1656 = vadd.f32 %v1487, %v1655
    %v1657 = vpop.f32.mrf.mxu0
    %v1658 = vadd.f32 %v1489, %v1657
    %1659 = vmatmul.bf16.gmra.mxu0 %v817
    %v1660 = vpop.f32.mrf.mxu0
    %v1661 = vadd.f32 %v1492, %v1660
    %v1662 = vpop.f32.mrf.mxu0
    %v1663 = vadd.f32 %v1494, %v1662
    %1664 = vmatmul.bf16.gmra.mxu0 %v821
    %v1665 = vpop.f32.mrf.mxu0
    %v1666 = vadd.f32 %v1497, %v1665
    %v1667 = vpop.f32.mrf.mxu0
    %v1668 = vadd.f32 %v1499, %v1667
    %1669 = vmatmul.bf16.gmra.mxu0 %v825
    %v1670 = vpop.f32.mrf.mxu0
    %v1671 = vadd.f32 %v1502, %v1670
    %v1672 = vpop.f32.mrf.mxu0
    %v1673 = vadd.f32 %v1504, %v1672
    %1674 = vmatmul.bf16.gmra.mxu0 %v829
    %v1675 = vpop.f32.mrf.mxu0
    %v1676 = vadd.f32 %v1507, %v1675
    %v1677 = vpop.f32.mrf.mxu0
    %v1678 = vadd.f32 %v1509, %v1677
    %1679 = vmatmul.bf16.gmra.mxu0 %v833
    %v1680 = vpop.f32.mrf.mxu0
    %v1681 = vadd.f32 %v1512, %v1680
    %v1682 = vpop.f32.mrf.mxu0
    %v1683 = vadd.f32 %v1514, %v1682
    %1684 = vmatmul.bf16.gmra.mxu0 %v837
    %v1685 = vpop.f32.mrf.mxu0
    %v1686 = vadd.f32 %v1517, %v1685
    %v1687 = vpop.f32.mrf.mxu0
    %v1688 = vadd.f32 %v1519, %v1687
    %1689 = vdwg.mxu0
    %1690 = vmatpush.bf16.msra.mxu0 0
    %1691 = vmatpush.bf16.msra.mxu0 0
    %1692 = vmatpush.bf16.msra.mxu0 0
    %1693 = vmatpush.bf16.msra.mxu0 0
    %1694 = vmatpush.bf16.msra.mxu0 0
    %1695 = vmatpush.bf16.msra.mxu0 0
    %1696 = vmatpush.bf16.msra.mxu0 0
    %1697 = vmatpush.bf16.msra.mxu0 %v1181
    %1698 = vmatmul.bf16.gmra.mxu0 %v1084
    %v1699 = vpop.f32.mrf.mxu0
    %v1700 = vadd.f32 %v1531, %v1699
    %v1701 = vpop.f32.mrf.mxu0
    %v1702 = vadd.f32 %v1533, %v1701
    %1703 = vmatmul.bf16.gmra.mxu0 %v1087
    %v1704 = vpop.f32.mrf.mxu0
    %v1705 = vadd.f32 %v1536, %v1704
    %v1706 = vpop.f32.mrf.mxu0
    %v1707 = vadd.f32 %v1538, %v1706
    %1708 = vmatmul.bf16.gmra.mxu0 %v1090
    %v1709 = vpop.f32.mrf.mxu0
    %v1710 = vadd.f32 %v1541, %v1709
    %v1711 = vpop.f32.mrf.mxu0
    %v1712 = vadd.f32 %v1543, %v1711
    %1713 = vmatmul.bf16.gmra.mxu0 %v1093
    %v1714 = vpop.f32.mrf.mxu0
    %v1715 = vadd.f32 %v1546, %v1714
    %v1716 = vpop.f32.mrf.mxu0
    %v1717 = vadd.f32 %v1548, %v1716
    %1718 = vmatmul.bf16.gmra.mxu0 %v1096
    %v1719 = vpop.f32.mrf.mxu0
    %v1720 = vadd.f32 %v1551, %v1719
    %v1721 = vpop.f32.mrf.mxu0
    %v1722 = vadd.f32 %v1553, %v1721
    %1723 = vmatmul.bf16.gmra.mxu0 %v1099
    %v1724 = vpop.f32.mrf.mxu0
    %v1725 = vadd.f32 %v1556, %v1724
    %v1726 = vpop.f32.mrf.mxu0
    %v1727 = vadd.f32 %v1558, %v1726
    %1728 = vmatmul.bf16.gmra.mxu0 %v1102
    %v1729 = vpop.f32.mrf.mxu0
    %v1730 = vadd.f32 %v1561, %v1729
    %v1731 = vpop.f32.mrf.mxu0
    %v1732 = vadd.f32 %v1563, %v1731
    %1733 = vmatmul.bf16.gmra.mxu0 %v1105
    %v1734 = vpop.f32.mrf.mxu0
    %v1735 = vadd.f32 %v1566, %v1734
    %v1736 = vpop.f32.mrf.mxu0
    %v1737 = vadd.f32 %v1568, %v1736
    %1738 = vmatmul.bf16.gmra.mxu0 %v1108
    %v1739 = vpop.f32.mrf.mxu0
    %v1740 = vadd.f32 %v1571, %v1739
    %v1741 = vpop.f32.mrf.mxu0
    %v1742 = vadd.f32 %v1573, %v1741
    %1743 = vmatmul.bf16.gmra.mxu0 %v1111
    %v1744 = vpop.f32.mrf.mxu0
    %v1745 = vadd.f32 %v1576, %v1744
    %v1746 = vpop.f32.mrf.mxu0
    %v1747 = vadd.f32 %v1578, %v1746
    %1748 = vmatmul.bf16.gmra.mxu0 %v1114
    %v1749 = vpop.f32.mrf.mxu0
    %v1750 = vadd.f32 %v1581, %v1749
    %v1751 = vpop.f32.mrf.mxu0
    %v1752 = vadd.f32 %v1583, %v1751
    %1753 = vmatmul.bf16.gmra.mxu0 %v1117
    %v1754 = vpop.f32.mrf.mxu0
    %v1755 = vadd.f32 %v1586, %v1754
    %v1756 = vpop.f32.mrf.mxu0
    %v1757 = vadd.f32 %v1588, %v1756
    %1758 = vmatmul.bf16.gmra.mxu0 %v1120
    %v1759 = vpop.f32.mrf.mxu0
    %v1760 = vadd.f32 %v1591, %v1759
    %v1761 = vpop.f32.mrf.mxu0
    %v1762 = vadd.f32 %v1593, %v1761
    %1763 = vmatmul.bf16.gmra.mxu0 %v1123
    %v1764 = vpop.f32.mrf.mxu0
    %v1765 = vadd.f32 %v1596, %v1764
    %v1766 = vpop.f32.mrf.mxu0
    %v1767 = vadd.f32 %v1598, %v1766
    %1768 = vmatmul.bf16.gmra.mxu0 %v1126
    %v1769 = vpop.f32.mrf.mxu0
    %v1770 = vadd.f32 %v1601, %v1769
    %v1771 = vpop.f32.mrf.mxu0
    %v1772 = vadd.f32 %v1603, %v1771
    %1773 = vmatmul.bf16.gmra.mxu0 %v1129
    %v1774 = vpop.f32.mrf.mxu0
    %v1775 = vadd.f32 %v1606, %v1774
    %v1776 = vpop.f32.mrf.mxu0
    %v1777 = vadd.f32 %v1608, %v1776
    %1778 = vmatmul.bf16.gmra.mxu0 %v1132
    %v1779 = vpop.f32.mrf.mxu0
    %v1780 = vadd.f32 %v1611, %v1779
    %v1781 = vpop.f32.mrf.mxu0
    %v1782 = vadd.f32 %v1613, %v1781
    %1783 = vmatmul.bf16.gmra.mxu0 %v1135
    %v1784 = vpop.f32.mrf.mxu0
    %v1785 = vadd.f32 %v1616, %v1784
    %v1786 = vpop.f32.mrf.mxu0
    %v1787 = vadd.f32 %v1618, %v1786
    %1788 = vmatmul.bf16.gmra.mxu0 %v1138
    %v1789 = vpop.f32.mrf.mxu0
    %v1790 = vadd.f32 %v1621, %v1789
    %v1791 = vpop.f32.mrf.mxu0
    %v1792 = vadd.f32 %v1623, %v1791
    %1793 = vmatmul.bf16.gmra.mxu0 %v1141
    %v1794 = vpop.f32.mrf.mxu0
    %v1795 = vadd.f32 %v1626, %v1794
    %v1796 = vpop.f32.mrf.mxu0
    %v1797 = vadd.f32 %v1628, %v1796
    %1798 = vmatmul.bf16.gmra.mxu0 %v1144
    %v1799 = vpop.f32.mrf.mxu0
    %v1800 = vadd.f32 %v1631, %v1799
    %v1801 = vpop.f32.mrf.mxu0
    %v1802 = vadd.f32 %v1633, %v1801
    %1803 = vmatmul.bf16.gmra.mxu0 %v1147
    %v1804 = vpop.f32.mrf.mxu0
    %v1805 = vadd.f32 %v1636, %v1804
    %v1806 = vpop.f32.mrf.mxu0
    %v1807 = vadd.f32 %v1638, %v1806
    %1808 = vmatmul.bf16.gmra.mxu0 %v1150
    %v1809 = vpop.f32.mrf.mxu0
    %v1810 = vadd.f32 %v1641, %v1809
    %v1811 = vpop.f32.mrf.mxu0
    %v1812 = vadd.f32 %v1643, %v1811
    %1813 = vmatmul.bf16.gmra.mxu0 %v1153
    %v1814 = vpop.f32.mrf.mxu0
    %v1815 = vadd.f32 %v1646, %v1814
    %v1816 = vpop.f32.mrf.mxu0
    %v1817 = vadd.f32 %v1648, %v1816
    %1818 = vmatmul.bf16.gmra.mxu0 %v1156
    %v1819 = vpop.f32.mrf.mxu0
    %v1820 = vadd.f32 %v1651, %v1819
    %v1821 = vpop.f32.mrf.mxu0
    %v1822 = vadd.f32 %v1653, %v1821
    %1823 = vmatmul.bf16.gmra.mxu0 %v1159
    %v1824 = vpop.f32.mrf.mxu0
    %v1825 = vadd.f32 %v1656, %v1824
    %v1826 = vpop.f32.mrf.mxu0
    %v1827 = vadd.f32 %v1658, %v1826
    %1828 = vmatmul.bf16.gmra.mxu0 %v1162
    %v1829 = vpop.f32.mrf.mxu0
    %v1830 = vadd.f32 %v1661, %v1829
    %v1831 = vpop.f32.mrf.mxu0
    %v1832 = vadd.f32 %v1663, %v1831
    %1833 = vmatmul.bf16.gmra.mxu0 %v1165
    %v1834 = vpop.f32.mrf.mxu0
    %v1835 = vadd.f32 %v1666, %v1834
    %v1836 = vpop.f32.mrf.mxu0
    %v1837 = vadd.f32 %v1668, %v1836
    %1838 = vmatmul.bf16.gmra.mxu0 %v1168
    %v1839 = vpop.f32.mrf.mxu0
    %v1840 = vadd.f32 %v1671, %v1839
    %v1841 = vpop.f32.mrf.mxu0
    %v1842 = vadd.f32 %v1673, %v1841
    %1843 = vmatmul.bf16.gmra.mxu0 %v1171
    %v1844 = vpop.f32.mrf.mxu0
    %v1845 = vadd.f32 %v1676, %v1844
    %v1846 = vpop.f32.mrf.mxu0
    %v1847 = vadd.f32 %v1678, %v1846
    %1848 = vmatmul.bf16.gmra.mxu0 %v1174
    %v1849 = vpop.f32.mrf.mxu0
    %v1850 = vadd.f32 %v1681, %v1849
    %v1851 = vpop.f32.mrf.mxu0
    %v1852 = vadd.f32 %v1683, %v1851
    %1853 = vmatmul.bf16.gmra.mxu0 %v1177
    %v1854 = vpop.f32.mrf.mxu0
    %v1855 = vadd.f32 %v1686, %v1854
    %v1856 = vpop.f32.mrf.mxu0
    %v1857 = vadd.f32 %v1688, %v1856
    %1858 = vdwg.mxu0
    %v1859 = vadd.f32 %v86, %v1700
    %v1860 = vadd.f32 %v87, %v1702
    %v1861 = vadd.f32 %v88, %v1705
    %v1862 = vadd.f32 %v89, %v1707
    %v1863 = vadd.f32 %v90, %v1710
    %v1864 = vadd.f32 %v91, %v1712
    %v1865 = vadd.f32 %v92, %v1715
    %v1866 = vadd.f32 %v93, %v1717
    %v1867 = vadd.f32 %v94, %v1720
    %v1868 = vadd.f32 %v95, %v1722
    %v1869 = vadd.f32 %v96, %v1725
    %v1870 = vadd.f32 %v97, %v1727
    %v1871 = vadd.f32 %v98, %v1730
    %v1872 = vadd.f32 %v99, %v1732
    %v1873 = vadd.f32 %v100, %v1735
    %v1874 = vadd.f32 %v101, %v1737
    %v1875 = vadd.f32 %v102, %v1740
    %v1876 = vadd.f32 %v103, %v1742
    %v1877 = vadd.f32 %v104, %v1745
    %v1878 = vadd.f32 %v105, %v1747
    %v1879 = vadd.f32 %v106, %v1750
    %v1880 = vadd.f32 %v107, %v1752
    %v1881 = vadd.f32 %v108, %v1755
    %v1882 = vadd.f32 %v109, %v1757
    %v1883 = vadd.f32 %v110, %v1760
    %v1884 = vadd.f32 %v111, %v1762
    %v1885 = vadd.f32 %v112, %v1765
    %v1886 = vadd.f32 %v113, %v1767
    %v1887 = vadd.f32 %v114, %v1770
    %v1888 = vadd.f32 %v115, %v1772
    %v1889 = vadd.f32 %v116, %v1775
    %v1890 = vadd.f32 %v117, %v1777
    %v1891 = vadd.f32 %v118, %v1780
    %v1892 = vadd.f32 %v119, %v1782
    %v1893 = vadd.f32 %v120, %v1785
    %v1894 = vadd.f32 %v121, %v1787
    %v1895 = vadd.f32 %v122, %v1790
    %v1896 = vadd.f32 %v123, %v1792
    %v1897 = vadd.f32 %v124, %v1795
    %v1898 = vadd.f32 %v125, %v1797
    %v1899 = vadd.f32 %v126, %v1800
    %v1900 = vadd.f32 %v127, %v1802
    %v1901 = vadd.f32 %v128, %v1805
    %v1902 = vadd.f32 %v129, %v1807
    %v1903 = vadd.f32 %v130, %v1810
    %v1904 = vadd.f32 %v131, %v1812
    %v1905 = vadd.f32 %v132, %v1815
    %v1906 = vadd.f32 %v133, %v1817
    %v1907 = vadd.f32 %v134, %v1820
    %v1908 = vadd.f32 %v135, %v1822
    %v1909 = vadd.f32 %v136, %v1825
    %v1910 = vadd.f32 %v137, %v1827
    %v1911 = vadd.f32 %v138, %v1830
    %v1912 = vadd.f32 %v139, %v1832
    %v1913 = vadd.f32 %v140, %v1835
    %v1914 = vadd.f32 %v141, %v1837
    %v1915 = vadd.f32 %v142, %v1840
    %v1916 = vadd.f32 %v143, %v1842
    %v1917 = vadd.f32 %v144, %v1845
    %v1918 = vadd.f32 %v145, %v1847
    %v1919 = vadd.f32 %v146, %v1850
    %v1920 = vadd.f32 %v147, %v1852
    %v1921 = vadd.f32 %v148, %v1855
    %v1922 = vadd.f32 %v149, %v1857
    %vm1923 = vcmask 23552
    %1924 = vst.msk [vmem:[#allocation2] sm:$0xff] %vm1923, %v1859
    %1925 = vst.msk [vmem:[#allocation2 + $0x8] sm:$0xff] %vm1923, %v1860
    %1926 = vst.msk [vmem:[#allocation2 + $0x10] sm:$0xff] %vm1923, %v1861
    %1927 = vst.msk [vmem:[#allocation2 + $0x18] sm:$0xff] %vm1923, %v1862
    %1928 = vst.msk [vmem:[#allocation2 + $0x20] sm:$0xff] %vm1923, %v1863
    %1929 = vst.msk [vmem:[#allocation2 + $0x28] sm:$0xff] %vm1923, %v1864
    %1930 = vst.msk [vmem:[#allocation2 + $0x30] sm:$0xff] %vm1923, %v1865
    %1931 = vst.msk [vmem:[#allocation2 + $0x38] sm:$0xff] %vm1923, %v1866
    %1932 = vst.msk [vmem:[#allocation2 + $0x40] sm:$0xff] %vm1923, %v1867
    %1933 = vst.msk [vmem:[#allocation2 + $0x48] sm:$0xff] %vm1923, %v1868
    %1934 = vst.msk [vmem:[#allocation2 + $0x50] sm:$0xff] %vm1923, %v1869
    %1935 = vst.msk [vmem:[#allocation2 + $0x58] sm:$0xff] %vm1923, %v1870
    %1936 = vst.msk [vmem:[#allocation2 + $0x60] sm:$0xff] %vm1923, %v1871
    %1937 = vst.msk [vmem:[#allocation2 + $0x68] sm:$0xff] %vm1923, %v1872
    %1938 = vst.msk [vmem:[#allocation2 + $0x70] sm:$0xff] %vm1923, %v1873
    %1939 = vst.msk [vmem:[#allocation2 + $0x78] sm:$0xff] %vm1923, %v1874
    %1940 = vst.msk [vmem:[#allocation2 + $0x80] sm:$0xff] %vm1923, %v1875
    %1941 = vst.msk [vmem:[#allocation2 + $0x88] sm:$0xff] %vm1923, %v1876
    %1942 = vst.msk [vmem:[#allocation2 + $0x90] sm:$0xff] %vm1923, %v1877
    %1943 = vst.msk [vmem:[#allocation2 + $0x98] sm:$0xff] %vm1923, %v1878
    %1944 = vst.msk [vmem:[#allocation2 + $0xa0] sm:$0xff] %vm1923, %v1879
    %1945 = vst.msk [vmem:[#allocation2 + $0xa8] sm:$0xff] %vm1923, %v1880
    %1946 = vst.msk [vmem:[#allocation2 + $0xb0] sm:$0xff] %vm1923, %v1881
    %1947 = vst.msk [vmem:[#allocation2 + $0xb8] sm:$0xff] %vm1923, %v1882
    %1948 = vst.msk [vmem:[#allocation2 + $0xc0] sm:$0xff] %vm1923, %v1883
    %1949 = vst.msk [vmem:[#allocation2 + $0xc8] sm:$0xff] %vm1923, %v1884
    %1950 = vst.msk [vmem:[#allocation2 + $0xd0] sm:$0xff] %vm1923, %v1885
    %1951 = vst.msk [vmem:[#allocation2 + $0xd8] sm:$0xff] %vm1923, %v1886
    %1952 = vst.msk [vmem:[#allocation2 + $0xe0] sm:$0xff] %vm1923, %v1887
    %1953 = vst.msk [vmem:[#allocation2 + $0xe8] sm:$0xff] %vm1923, %v1888
    %1954 = vst.msk [vmem:[#allocation2 + $0xf0] sm:$0xff] %vm1923, %v1889
    %1955 = vst.msk [vmem:[#allocation2 + $0xf8] sm:$0xff] %vm1923, %v1890
    %1956 = vst.msk [vmem:[#allocation2 + $0x100] sm:$0xff] %vm1923, %v1891
    %1957 = vst.msk [vmem:[#allocation2 + $0x108] sm:$0xff] %vm1923, %v1892
    %1958 = vst.msk [vmem:[#allocation2 + $0x110] sm:$0xff] %vm1923, %v1893
    %1959 = vst.msk [vmem:[#allocation2 + $0x118] sm:$0xff] %vm1923, %v1894
    %1960 = vst.msk [vmem:[#allocation2 + $0x120] sm:$0xff] %vm1923, %v1895
    %1961 = vst.msk [vmem:[#allocation2 + $0x128] sm:$0xff] %vm1923, %v1896
    %1962 = vst.msk [vmem:[#allocation2 + $0x130] sm:$0xff] %vm1923, %v1897
    %1963 = vst.msk [vmem:[#allocation2 + $0x138] sm:$0xff] %vm1923, %v1898
    %1964 = vst.msk [vmem:[#allocation2 + $0x140] sm:$0xff] %vm1923, %v1899
    %1965 = vst.msk [vmem:[#allocation2 + $0x148] sm:$0xff] %vm1923, %v1900
    %1966 = vst.msk [vmem:[#allocation2 + $0x150] sm:$0xff] %vm1923, %v1901
    %1967 = vst.msk [vmem:[#allocation2 + $0x158] sm:$0xff] %vm1923, %v1902
    %1968 = vst.msk [vmem:[#allocation2 + $0x160] sm:$0xff] %vm1923, %v1903
    %1969 = vst.msk [vmem:[#allocation2 + $0x168] sm:$0xff] %vm1923, %v1904
    %1970 = vst.msk [vmem:[#allocation2 + $0x170] sm:$0xff] %vm1923, %v1905
    %1971 = vst.msk [vmem:[#allocation2 + $0x178] sm:$0xff] %vm1923, %v1906
    %1972 = vst.msk [vmem:[#allocation2 + $0x180] sm:$0xff] %vm1923, %v1907
    %1973 = vst.msk [vmem:[#allocation2 + $0x188] sm:$0xff] %vm1923, %v1908
    %1974 = vst.msk [vmem:[#allocation2 + $0x190] sm:$0xff] %vm1923, %v1909
    %1975 = vst.msk [vmem:[#allocation2 + $0x198] sm:$0xff] %vm1923, %v1910
    %1976 = vst.msk [vmem:[#allocation2 + $0x1a0] sm:$0xff] %vm1923, %v1911
    %1977 = vst.msk [vmem:[#allocation2 + $0x1a8] sm:$0xff] %vm1923, %v1912
    %1978 = vst.msk [vmem:[#allocation2 + $0x1b0] sm:$0xff] %vm1923, %v1913
    %1979 = vst.msk [vmem:[#allocation2 + $0x1b8] sm:$0xff] %vm1923, %v1914
    %1980 = vst.msk [vmem:[#allocation2 + $0x1c0] sm:$0xff] %vm1923, %v1915
    %1981 = vst.msk [vmem:[#allocation2 + $0x1c8] sm:$0xff] %vm1923, %v1916
    %1982 = vst.msk [vmem:[#allocation2 + $0x1d0] sm:$0xff] %vm1923, %v1917
    %1983 = vst.msk [vmem:[#allocation2 + $0x1d8] sm:$0xff] %vm1923, %v1918
    %1984 = vst.msk [vmem:[#allocation2 + $0x1e0] sm:$0xff] %vm1923, %v1919
    %1985 = vst.msk [vmem:[#allocation2 + $0x1e8] sm:$0xff] %vm1923, %v1920
    %1986 = vst.msk [vmem:[#allocation2 + $0x1f0] sm:$0xff] %vm1923, %v1921
    %1987 = vst.msk [vmem:[#allocation2 + $0x1f8] sm:$0xff] %vm1923, %v1922
    // Predicated region
    $region14: #{resnet_generator_forward.70} parent=1 // pred_check
      %p1988 = pneg %p17
    $region15: #{resnet_generator_forward.70} parent=1 // pred_check_branch
      %1990 = sbr.rel (%p1988) target = $region17
    $region16: #{resnet_generator_forward.70} parent=1 // pred_region
      %v1991 = vld [vmem:[#allocation2] sm:$0xff]
      %v1992 = vld [vmem:[#allocation2 + $0x8] sm:$0xff]
      %v1993 = vld [vmem:[#allocation2 + $0x10] sm:$0xff]
      %v1994 = vld [vmem:[#allocation2 + $0x18] sm:$0xff]
      %v1995 = vld [vmem:[#allocation2 + $0x20] sm:$0xff]
      %v1996 = vld [vmem:[#allocation2 + $0x28] sm:$0xff]
      %v1997 = vld [vmem:[#allocation2 + $0x30] sm:$0xff]
      %v1998 = vld [vmem:[#allocation2 + $0x38] sm:$0xff]
      %v1999 = vld [vmem:[#allocation2 + $0x40] sm:$0xff]
      %v2000 = vld [vmem:[#allocation2 + $0x48] sm:$0xff]
      %v2001 = vld [vmem:[#allocation2 + $0x50] sm:$0xff]
      %v2002 = vld [vmem:[#allocation2 + $0x58] sm:$0xff]
      %v2003 = vld [vmem:[#allocation2 + $0x60] sm:$0xff]
      %v2004 = vld [vmem:[#allocation2 + $0x68] sm:$0xff]
      %v2005 = vld [vmem:[#allocation2 + $0x70] sm:$0xff]
      %v2006 = vld [vmem:[#allocation2 + $0x78] sm:$0xff]
      %v2007 = vld [vmem:[#allocation2 + $0x80] sm:$0xff]
      %v2008 = vld [vmem:[#allocation2 + $0x88] sm:$0xff]
      %v2009 = vld [vmem:[#allocation2 + $0x90] sm:$0xff]
      %v2010 = vld [vmem:[#allocation2 + $0x98] sm:$0xff]
      %v2011 = vld [vmem:[#allocation2 + $0xa0] sm:$0xff]
      %v2012 = vld [vmem:[#allocation2 + $0xa8] sm:$0xff]
      %v2013 = vld [vmem:[#allocation2 + $0xb0] sm:$0xff]
      %v2014 = vld [vmem:[#allocation2 + $0xb8] sm:$0xff]
      %v2015 = vld [vmem:[#allocation2 + $0xc0] sm:$0xff]
      %v2016 = vld [vmem:[#allocation2 + $0xc8] sm:$0xff]
      %v2017 = vld [vmem:[#allocation2 + $0xd0] sm:$0xff]
      %v2018 = vld [vmem:[#allocation2 + $0xd8] sm:$0xff]
      %v2019 = vld [vmem:[#allocation2 + $0xe0] sm:$0xff]
      %v2020 = vld [vmem:[#allocation2 + $0xe8] sm:$0xff]
      %v2021 = vld [vmem:[#allocation2 + $0xf0] sm:$0xff]
      %v2022 = vld [vmem:[#allocation2 + $0xf8] sm:$0xff]
      %v2023 = vld [vmem:[#allocation2 + $0x100] sm:$0xff]
      %v2024 = vld [vmem:[#allocation2 + $0x108] sm:$0xff]
      %v2025 = vld [vmem:[#allocation2 + $0x110] sm:$0xff]
      %v2026 = vld [vmem:[#allocation2 + $0x118] sm:$0xff]
      %v2027 = vld [vmem:[#allocation2 + $0x120] sm:$0xff]
      %v2028 = vld [vmem:[#allocation2 + $0x128] sm:$0xff]
      %v2029 = vld [vmem:[#allocation2 + $0x130] sm:$0xff]
      %v2030 = vld [vmem:[#allocation2 + $0x138] sm:$0xff]
      %v2031 = vld [vmem:[#allocation2 + $0x140] sm:$0xff]
      %v2032 = vld [vmem:[#allocation2 + $0x148] sm:$0xff]
      %v2033 = vld [vmem:[#allocation2 + $0x150] sm:$0xff]
      %v2034 = vld [vmem:[#allocation2 + $0x158] sm:$0xff]
      %v2035 = vld [vmem:[#allocation2 + $0x160] sm:$0xff]
      %v2036 = vld [vmem:[#allocation2 + $0x168] sm:$0xff]
      %v2037 = vld [vmem:[#allocation2 + $0x170] sm:$0xff]
      %v2038 = vld [vmem:[#allocation2 + $0x178] sm:$0xff]
      %v2039 = vld [vmem:[#allocation2 + $0x180] sm:$0xff]
      %v2040 = vld [vmem:[#allocation2 + $0x188] sm:$0xff]
      %v2041 = vld [vmem:[#allocation2 + $0x190] sm:$0xff]
      %v2042 = vld [vmem:[#allocation2 + $0x198] sm:$0xff]
      %v2043 = vld [vmem:[#allocation2 + $0x1a0] sm:$0xff]
      %v2044 = vld [vmem:[#allocation2 + $0x1a8] sm:$0xff]
      %v2045 = vld [vmem:[#allocation2 + $0x1b0] sm:$0xff]
      %v2046 = vld [vmem:[#allocation2 + $0x1b8] sm:$0xff]
      %v2047 = vld [vmem:[#allocation2 + $0x1c0] sm:$0xff]
      %v2048 = vld [vmem:[#allocation2 + $0x1c8] sm:$0xff]
      %v2049 = vld [vmem:[#allocation2 + $0x1d0] sm:$0xff]
      %v2050 = vld [vmem:[#allocation2 + $0x1d8] sm:$0xff]
      %v2051 = vld [vmem:[#allocation2 + $0x1e0] sm:$0xff]
      %v2052 = vld [vmem:[#allocation2 + $0x1e8] sm:$0xff]
      %v2053 = vld [vmem:[#allocation2 + $0x1f0] sm:$0xff]
      %v2054 = vld [vmem:[#allocation2 + $0x1f8] sm:$0xff]
      %v2055 = vpack.c.bf16 %v1991, %v1991
      %v2056 = vpack.c.bf16 %v1992, %v1992
      %v2057 = vpack.c.bf16 %v1993, %v1993
      %v2058 = vpack.c.bf16 %v1994, %v1994
      %v2059 = vpack.c.bf16 %v1995, %v1995
      %v2060 = vpack.c.bf16 %v1996, %v1996
      %v2061 = vpack.c.bf16 %v1997, %v1997
      %v2062 = vpack.c.bf16 %v1998, %v1998
      %v2063 = vpack.c.bf16 %v1999, %v1999
      %v2064 = vpack.c.bf16 %v2000, %v2000
      %v2065 = vpack.c.bf16 %v2001, %v2001
      %v2066 = vpack.c.bf16 %v2002, %v2002
      %v2067 = vpack.c.bf16 %v2003, %v2003
      %v2068 = vpack.c.bf16 %v2004, %v2004
      %v2069 = vpack.c.bf16 %v2005, %v2005
      %v2070 = vpack.c.bf16 %v2006, %v2006
      %v2071 = vpack.c.bf16 %v2007, %v2007
      %v2072 = vpack.c.bf16 %v2008, %v2008
      %v2073 = vpack.c.bf16 %v2009, %v2009
      %v2074 = vpack.c.bf16 %v2010, %v2010
      %v2075 = vpack.c.bf16 %v2011, %v2011
      %v2076 = vpack.c.bf16 %v2012, %v2012
      %v2077 = vpack.c.bf16 %v2013, %v2013
      %v2078 = vpack.c.bf16 %v2014, %v2014
      %v2079 = vpack.c.bf16 %v2015, %v2015
      %v2080 = vpack.c.bf16 %v2016, %v2016
      %v2081 = vpack.c.bf16 %v2017, %v2017
      %v2082 = vpack.c.bf16 %v2018, %v2018
      %v2083 = vpack.c.bf16 %v2019, %v2019
      %v2084 = vpack.c.bf16 %v2020, %v2020
      %v2085 = vpack.c.bf16 %v2021, %v2021
      %v2086 = vpack.c.bf16 %v2022, %v2022
      %v2087 = vpack.c.bf16 %v2023, %v2023
      %v2088 = vpack.c.bf16 %v2024, %v2024
      %v2089 = vpack.c.bf16 %v2025, %v2025
      %v2090 = vpack.c.bf16 %v2026, %v2026
      %v2091 = vpack.c.bf16 %v2027, %v2027
      %v2092 = vpack.c.bf16 %v2028, %v2028
      %v2093 = vpack.c.bf16 %v2029, %v2029
      %v2094 = vpack.c.bf16 %v2030, %v2030
      %v2095 = vpack.c.bf16 %v2031, %v2031
      %v2096 = vpack.c.bf16 %v2032, %v2032
      %v2097 = vpack.c.bf16 %v2033, %v2033
      %v2098 = vpack.c.bf16 %v2034, %v2034
      %v2099 = vpack.c.bf16 %v2035, %v2035
      %v2100 = vpack.c.bf16 %v2036, %v2036
      %v2101 = vpack.c.bf16 %v2037, %v2037
      %v2102 = vpack.c.bf16 %v2038, %v2038
      %v2103 = vpack.c.bf16 %v2039, %v2039
      %v2104 = vpack.c.bf16 %v2040, %v2040
      %v2105 = vpack.c.bf16 %v2041, %v2041
      %v2106 = vpack.c.bf16 %v2042, %v2042
      %v2107 = vpack.c.bf16 %v2043, %v2043
      %v2108 = vpack.c.bf16 %v2044, %v2044
      %v2109 = vpack.c.bf16 %v2045, %v2045
      %v2110 = vpack.c.bf16 %v2046, %v2046
      %v2111 = vpack.c.bf16 %v2047, %v2047
      %v2112 = vpack.c.bf16 %v2048, %v2048
      %v2113 = vpack.c.bf16 %v2049, %v2049
      %v2114 = vpack.c.bf16 %v2050, %v2050
      %v2115 = vpack.c.bf16 %v2051, %v2051
      %v2116 = vpack.c.bf16 %v2052, %v2052
      %v2117 = vpack.c.bf16 %v2053, %v2053
      %v2118 = vpack.c.bf16 %v2054, %v2054
      %vm2119 = vcmask 19456
      %2120 = vst.msk [vmem:[%s2] sm:$0xf] %vm2119, %v2055
      %2121 = vst.msk [vmem:[%s2 + $0x4] sm:$0xf] %vm2119, %v2056
      %2122 = vst.msk [vmem:[%s2 + $0x8] sm:$0xf] %vm2119, %v2057
      %2123 = vst.msk [vmem:[%s2 + $0xc] sm:$0xf] %vm2119, %v2058
      %2124 = vst.msk [vmem:[%s2 + $0x10] sm:$0xf] %vm2119, %v2059
      %2125 = vst.msk [vmem:[%s2 + $0x14] sm:$0xf] %vm2119, %v2060
      %2126 = vst.msk [vmem:[%s2 + $0x18] sm:$0xf] %vm2119, %v2061
      %2127 = vst.msk [vmem:[%s2 + $0x1c] sm:$0xf] %vm2119, %v2062
      %2128 = vst.msk [vmem:[%s2 + $0x20] sm:$0xf] %vm2119, %v2063
      %2129 = vst.msk [vmem:[%s2 + $0x24] sm:$0xf] %vm2119, %v2064
      %2130 = vst.msk [vmem:[%s2 + $0x28] sm:$0xf] %vm2119, %v2065
      %2131 = vst.msk [vmem:[%s2 + $0x2c] sm:$0xf] %vm2119, %v2066
      %2132 = vst.msk [vmem:[%s2 + $0x30] sm:$0xf] %vm2119, %v2067
      %2133 = vst.msk [vmem:[%s2 + $0x34] sm:$0xf] %vm2119, %v2068
      %2134 = vst.msk [vmem:[%s2 + $0x38] sm:$0xf] %vm2119, %v2069
      %2135 = vst.msk [vmem:[%s2 + $0x3c] sm:$0xf] %vm2119, %v2070
      %2136 = vst.msk [vmem:[%s2 + $0x40] sm:$0xf] %vm2119, %v2071
      %2137 = vst.msk [vmem:[%s2 + $0x44] sm:$0xf] %vm2119, %v2072
      %2138 = vst.msk [vmem:[%s2 + $0x48] sm:$0xf] %vm2119, %v2073
      %2139 = vst.msk [vmem:[%s2 + $0x4c] sm:$0xf] %vm2119, %v2074
      %2140 = vst.msk [vmem:[%s2 + $0x50] sm:$0xf] %vm2119, %v2075
      %2141 = vst.msk [vmem:[%s2 + $0x54] sm:$0xf] %vm2119, %v2076
      %2142 = vst.msk [vmem:[%s2 + $0x58] sm:$0xf] %vm2119, %v2077
      %2143 = vst.msk [vmem:[%s2 + $0x5c] sm:$0xf] %vm2119, %v2078
      %2144 = vst.msk [vmem:[%s2 + $0x60] sm:$0xf] %vm2119, %v2079
      %2145 = vst.msk [vmem:[%s2 + $0x64] sm:$0xf] %vm2119, %v2080
      %2146 = vst.msk [vmem:[%s2 + $0x68] sm:$0xf] %vm2119, %v2081
      %2147 = vst.msk [vmem:[%s2 + $0x6c] sm:$0xf] %vm2119, %v2082
      %2148 = vst.msk [vmem:[%s2 + $0x70] sm:$0xf] %vm2119, %v2083
      %2149 = vst.msk [vmem:[%s2 + $0x74] sm:$0xf] %vm2119, %v2084
      %2150 = vst.msk [vmem:[%s2 + $0x78] sm:$0xf] %vm2119, %v2085
      %2151 = vst.msk [vmem:[%s2 + $0x7c] sm:$0xf] %vm2119, %v2086
      %2152 = vst.msk [vmem:[%s2 + $0x80] sm:$0xf] %vm2119, %v2087
      %2153 = vst.msk [vmem:[%s2 + $0x84] sm:$0xf] %vm2119, %v2088
      %2154 = vst.msk [vmem:[%s2 + $0x88] sm:$0xf] %vm2119, %v2089
      %2155 = vst.msk [vmem:[%s2 + $0x8c] sm:$0xf] %vm2119, %v2090
      %2156 = vst.msk [vmem:[%s2 + $0x90] sm:$0xf] %vm2119, %v2091
      %2157 = vst.msk [vmem:[%s2 + $0x94] sm:$0xf] %vm2119, %v2092
      %2158 = vst.msk [vmem:[%s2 + $0x98] sm:$0xf] %vm2119, %v2093
      %2159 = vst.msk [vmem:[%s2 + $0x9c] sm:$0xf] %vm2119, %v2094
      %2160 = vst.msk [vmem:[%s2 + $0xa0] sm:$0xf] %vm2119, %v2095
      %2161 = vst.msk [vmem:[%s2 + $0xa4] sm:$0xf] %vm2119, %v2096
      %2162 = vst.msk [vmem:[%s2 + $0xa8] sm:$0xf] %vm2119, %v2097
      %2163 = vst.msk [vmem:[%s2 + $0xac] sm:$0xf] %vm2119, %v2098
      %2164 = vst.msk [vmem:[%s2 + $0xb0] sm:$0xf] %vm2119, %v2099
      %2165 = vst.msk [vmem:[%s2 + $0xb4] sm:$0xf] %vm2119, %v2100
      %2166 = vst.msk [vmem:[%s2 + $0xb8] sm:$0xf] %vm2119, %v2101
      %2167 = vst.msk [vmem:[%s2 + $0xbc] sm:$0xf] %vm2119, %v2102
      %2168 = vst.msk [vmem:[%s2 + $0xc0] sm:$0xf] %vm2119, %v2103
      %2169 = vst.msk [vmem:[%s2 + $0xc4] sm:$0xf] %vm2119, %v2104
      %2170 = vst.msk [vmem:[%s2 + $0xc8] sm:$0xf] %vm2119, %v2105
      %2171 = vst.msk [vmem:[%s2 + $0xcc] sm:$0xf] %vm2119, %v2106
      %2172 = vst.msk [vmem:[%s2 + $0xd0] sm:$0xf] %vm2119, %v2107
      %2173 = vst.msk [vmem:[%s2 + $0xd4] sm:$0xf] %vm2119, %v2108
      %2174 = vst.msk [vmem:[%s2 + $0xd8] sm:$0xf] %vm2119, %v2109
      %2175 = vst.msk [vmem:[%s2 + $0xdc] sm:$0xf] %vm2119, %v2110
      %2176 = vst.msk [vmem:[%s2 + $0xe0] sm:$0xf] %vm2119, %v2111
      %2177 = vst.msk [vmem:[%s2 + $0xe4] sm:$0xf] %vm2119, %v2112
      %2178 = vst.msk [vmem:[%s2 + $0xe8] sm:$0xf] %vm2119, %v2113
      %2179 = vst.msk [vmem:[%s2 + $0xec] sm:$0xf] %vm2119, %v2114
      %2180 = vst.msk [vmem:[%s2 + $0xf0] sm:$0xf] %vm2119, %v2115
      %2181 = vst.msk [vmem:[%s2 + $0xf4] sm:$0xf] %vm2119, %v2116
      %2182 = vst.msk [vmem:[%s2 + $0xf8] sm:$0xf] %vm2119, %v2117
      %2183 = vst.msk [vmem:[%s2 + $0xfc] sm:$0xf] %vm2119, %v2118
      %v2184 = vsel %vm1923, %v1991, 0.0
      %v2185 = vsel %vm1923, %v1992, 0.0
      %v2186 = vadd.f32 %v2184, %v2185
      %v2187 = vsel %vm1923, %v1993, 0.0
      %v2188 = vadd.f32 %v2186, %v2187
      %v2189 = vsel %vm1923, %v1994, 0.0
      %v2190 = vadd.f32 %v2188, %v2189
      %v2191 = vsel %vm1923, %v1995, 0.0
      %v2192 = vadd.f32 %v2190, %v2191
      %v2193 = vsel %vm1923, %v1996, 0.0
      %v2194 = vadd.f32 %v2192, %v2193
      %v2195 = vsel %vm1923, %v1997, 0.0
      %v2196 = vadd.f32 %v2194, %v2195
      %v2197 = vsel %vm1923, %v1998, 0.0
      %v2198 = vadd.f32 %v2196, %v2197
      %v2199 = vsel %vm1923, %v1999, 0.0
      %v2200 = vadd.f32 %v2198, %v2199
      %v2201 = vsel %vm1923, %v2000, 0.0
      %v2202 = vadd.f32 %v2200, %v2201
      %v2203 = vsel %vm1923, %v2001, 0.0
      %v2204 = vadd.f32 %v2202, %v2203
      %v2205 = vsel %vm1923, %v2002, 0.0
      %v2206 = vadd.f32 %v2204, %v2205
      %v2207 = vsel %vm1923, %v2003, 0.0
      %v2208 = vadd.f32 %v2206, %v2207
      %v2209 = vsel %vm1923, %v2004, 0.0
      %v2210 = vadd.f32 %v2208, %v2209
      %v2211 = vsel %vm1923, %v2005, 0.0
      %v2212 = vadd.f32 %v2210, %v2211
      %v2213 = vsel %vm1923, %v2006, 0.0
      %v2214 = vadd.f32 %v2212, %v2213
      %v2215 = vsel %vm1923, %v2007, 0.0
      %v2216 = vadd.f32 %v2214, %v2215
      %v2217 = vsel %vm1923, %v2008, 0.0
      %v2218 = vadd.f32 %v2216, %v2217
      %v2219 = vsel %vm1923, %v2009, 0.0
      %v2220 = vadd.f32 %v2218, %v2219
      %v2221 = vsel %vm1923, %v2010, 0.0
      %v2222 = vadd.f32 %v2220, %v2221
      %v2223 = vsel %vm1923, %v2011, 0.0
      %v2224 = vadd.f32 %v2222, %v2223
      %v2225 = vsel %vm1923, %v2012, 0.0
      %v2226 = vadd.f32 %v2224, %v2225
      %v2227 = vsel %vm1923, %v2013, 0.0
      %v2228 = vadd.f32 %v2226, %v2227
      %v2229 = vsel %vm1923, %v2014, 0.0
      %v2230 = vadd.f32 %v2228, %v2229
      %v2231 = vsel %vm1923, %v2015, 0.0
      %v2232 = vadd.f32 %v2230, %v2231
      %v2233 = vsel %vm1923, %v2016, 0.0
      %v2234 = vadd.f32 %v2232, %v2233
      %v2235 = vsel %vm1923, %v2017, 0.0
      %v2236 = vadd.f32 %v2234, %v2235
      %v2237 = vsel %vm1923, %v2018, 0.0
      %v2238 = vadd.f32 %v2236, %v2237
      %v2239 = vsel %vm1923, %v2019, 0.0
      %v2240 = vadd.f32 %v2238, %v2239
      %v2241 = vsel %vm1923, %v2020, 0.0
      %v2242 = vadd.f32 %v2240, %v2241
      %v2243 = vsel %vm1923, %v2021, 0.0
      %v2244 = vadd.f32 %v2242, %v2243
      %v2245 = vsel %vm1923, %v2022, 0.0
      %v2246 = vadd.f32 %v2244, %v2245
      %v2247 = vsel %vm1923, %v2023, 0.0
      %v2248 = vadd.f32 %v2246, %v2247
      %v2249 = vsel %vm1923, %v2024, 0.0
      %v2250 = vadd.f32 %v2248, %v2249
      %v2251 = vsel %vm1923, %v2025, 0.0
      %v2252 = vadd.f32 %v2250, %v2251
      %v2253 = vsel %vm1923, %v2026, 0.0
      %v2254 = vadd.f32 %v2252, %v2253
      %v2255 = vsel %vm1923, %v2027, 0.0
      %v2256 = vadd.f32 %v2254, %v2255
      %v2257 = vsel %vm1923, %v2028, 0.0
      %v2258 = vadd.f32 %v2256, %v2257
      %v2259 = vsel %vm1923, %v2029, 0.0
      %v2260 = vadd.f32 %v2258, %v2259
      %v2261 = vsel %vm1923, %v2030, 0.0
      %v2262 = vadd.f32 %v2260, %v2261
      %v2263 = vsel %vm1923, %v2031, 0.0
      %v2264 = vadd.f32 %v2262, %v2263
      %v2265 = vsel %vm1923, %v2032, 0.0
      %v2266 = vadd.f32 %v2264, %v2265
      %v2267 = vsel %vm1923, %v2033, 0.0
      %v2268 = vadd.f32 %v2266, %v2267
      %v2269 = vsel %vm1923, %v2034, 0.0
      %v2270 = vadd.f32 %v2268, %v2269
      %v2271 = vsel %vm1923, %v2035, 0.0
      %v2272 = vadd.f32 %v2270, %v2271
      %v2273 = vsel %vm1923, %v2036, 0.0
      %v2274 = vadd.f32 %v2272, %v2273
      %v2275 = vsel %vm1923, %v2037, 0.0
      %v2276 = vadd.f32 %v2274, %v2275
      %v2277 = vsel %vm1923, %v2038, 0.0
      %v2278 = vadd.f32 %v2276, %v2277
      %v2279 = vsel %vm1923, %v2039, 0.0
      %v2280 = vadd.f32 %v2278, %v2279
      %v2281 = vsel %vm1923, %v2040, 0.0
      %v2282 = vadd.f32 %v2280, %v2281
      %v2283 = vsel %vm1923, %v2041, 0.0
      %v2284 = vadd.f32 %v2282, %v2283
      %v2285 = vsel %vm1923, %v2042, 0.0
      %v2286 = vadd.f32 %v2284, %v2285
      %v2287 = vsel %vm1923, %v2043, 0.0
      %v2288 = vadd.f32 %v2286, %v2287
      %v2289 = vsel %vm1923, %v2044, 0.0
      %v2290 = vadd.f32 %v2288, %v2289
      %v2291 = vsel %vm1923, %v2045, 0.0
      %v2292 = vadd.f32 %v2290, %v2291
      %v2293 = vsel %vm1923, %v2046, 0.0
      %v2294 = vadd.f32 %v2292, %v2293
      %v2295 = vsel %vm1923, %v2047, 0.0
      %v2296 = vadd.f32 %v2294, %v2295
      %v2297 = vsel %vm1923, %v2048, 0.0
      %v2298 = vadd.f32 %v2296, %v2297
      %v2299 = vsel %vm1923, %v2049, 0.0
      %v2300 = vadd.f32 %v2298, %v2299
      %v2301 = vsel %vm1923, %v2050, 0.0
      %v2302 = vadd.f32 %v2300, %v2301
      %v2303 = vsel %vm1923, %v2051, 0.0
      %v2304 = vadd.f32 %v2302, %v2303
      %v2305 = vsel %vm1923, %v2052, 0.0
      %v2306 = vadd.f32 %v2304, %v2305
      %v2307 = vsel %vm1923, %v2053, 0.0
      %v2308 = vadd.f32 %v2306, %v2307
      %v2309 = vsel %vm1923, %v2054, 0.0
      %v2310 = vadd.f32 %v2308, %v2309
      %v2311 = vrot.slane %v2310, 4
      %v2312 = vadd.f32 %v2310, %v2311
      %v2313 = vrot.slane %v2312, 2
      %v2314 = vadd.f32 %v2312, %v2313
      %v2315 = vrot.slane %v2314, 1
      %v2316 = vadd.f32 %v2314, %v2315
      %v2317 = vmul.f32 %v1991, %v1991
      %v2318 = vmul.f32 %v1992, %v1992
      %v2319 = vmul.f32 %v1993, %v1993
      %v2320 = vmul.f32 %v1994, %v1994
      %v2321 = vmul.f32 %v1995, %v1995
      %v2322 = vmul.f32 %v1996, %v1996
      %v2323 = vmul.f32 %v1997, %v1997
      %v2324 = vmul.f32 %v1998, %v1998
      %v2325 = vmul.f32 %v1999, %v1999
      %v2326 = vmul.f32 %v2000, %v2000
      %v2327 = vmul.f32 %v2001, %v2001
      %v2328 = vmul.f32 %v2002, %v2002
      %v2329 = vmul.f32 %v2003, %v2003
      %v2330 = vmul.f32 %v2004, %v2004
      %v2331 = vmul.f32 %v2005, %v2005
      %v2332 = vmul.f32 %v2006, %v2006
      %v2333 = vmul.f32 %v2007, %v2007
      %v2334 = vmul.f32 %v2008, %v2008
      %v2335 = vmul.f32 %v2009, %v2009
      %v2336 = vmul.f32 %v2010, %v2010
      %v2337 = vmul.f32 %v2011, %v2011
      %v2338 = vmul.f32 %v2012, %v2012
      %v2339 = vmul.f32 %v2013, %v2013
      %v2340 = vmul.f32 %v2014, %v2014
      %v2341 = vmul.f32 %v2015, %v2015
      %v2342 = vmul.f32 %v2016, %v2016
      %v2343 = vmul.f32 %v2017, %v2017
      %v2344 = vmul.f32 %v2018, %v2018
      %v2345 = vmul.f32 %v2019, %v2019
      %v2346 = vmul.f32 %v2020, %v2020
      %v2347 = vmul.f32 %v2021, %v2021
      %v2348 = vmul.f32 %v2022, %v2022
      %v2349 = vmul.f32 %v2023, %v2023
      %v2350 = vmul.f32 %v2024, %v2024
      %v2351 = vmul.f32 %v2025, %v2025
      %v2352 = vmul.f32 %v2026, %v2026
      %v2353 = vmul.f32 %v2027, %v2027
      %v2354 = vmul.f32 %v2028, %v2028
      %v2355 = vmul.f32 %v2029, %v2029
      %v2356 = vmul.f32 %v2030, %v2030
      %v2357 = vmul.f32 %v2031, %v2031
      %v2358 = vmul.f32 %v2032, %v2032
      %v2359 = vmul.f32 %v2033, %v2033
      %v2360 = vmul.f32 %v2034, %v2034
      %v2361 = vmul.f32 %v2035, %v2035
      %v2362 = vmul.f32 %v2036, %v2036
      %v2363 = vmul.f32 %v2037, %v2037
      %v2364 = vmul.f32 %v2038, %v2038
      %v2365 = vmul.f32 %v2039, %v2039
      %v2366 = vmul.f32 %v2040, %v2040
      %v2367 = vmul.f32 %v2041, %v2041
      %v2368 = vmul.f32 %v2042, %v2042
      %v2369 = vmul.f32 %v2043, %v2043
      %v2370 = vmul.f32 %v2044, %v2044
      %v2371 = vmul.f32 %v2045, %v2045
      %v2372 = vmul.f32 %v2046, %v2046
      %v2373 = vmul.f32 %v2047, %v2047
      %v2374 = vmul.f32 %v2048, %v2048
      %v2375 = vmul.f32 %v2049, %v2049
      %v2376 = vmul.f32 %v2050, %v2050
      %v2377 = vmul.f32 %v2051, %v2051
      %v2378 = vmul.f32 %v2052, %v2052
      %v2379 = vmul.f32 %v2053, %v2053
      %v2380 = vmul.f32 %v2054, %v2054
      %v2381 = vsel %vm1923, %v2317, 0.0
      %v2382 = vsel %vm1923, %v2318, 0.0
      %v2383 = vadd.f32 %v2381, %v2382
      %v2384 = vsel %vm1923, %v2319, 0.0
      %v2385 = vadd.f32 %v2383, %v2384
      %v2386 = vsel %vm1923, %v2320, 0.0
      %v2387 = vadd.f32 %v2385, %v2386
      %v2388 = vsel %vm1923, %v2321, 0.0
      %v2389 = vadd.f32 %v2387, %v2388
      %v2390 = vsel %vm1923, %v2322, 0.0
      %v2391 = vadd.f32 %v2389, %v2390
      %v2392 = vsel %vm1923, %v2323, 0.0
      %v2393 = vadd.f32 %v2391, %v2392
      %v2394 = vsel %vm1923, %v2324, 0.0
      %v2395 = vadd.f32 %v2393, %v2394
      %v2396 = vsel %vm1923, %v2325, 0.0
      %v2397 = vadd.f32 %v2395, %v2396
      %v2398 = vsel %vm1923, %v2326, 0.0
      %v2399 = vadd.f32 %v2397, %v2398
      %v2400 = vsel %vm1923, %v2327, 0.0
      %v2401 = vadd.f32 %v2399, %v2400
      %v2402 = vsel %vm1923, %v2328, 0.0
      %v2403 = vadd.f32 %v2401, %v2402
      %v2404 = vsel %vm1923, %v2329, 0.0
      %v2405 = vadd.f32 %v2403, %v2404
      %v2406 = vsel %vm1923, %v2330, 0.0
      %v2407 = vadd.f32 %v2405, %v2406
      %v2408 = vsel %vm1923, %v2331, 0.0
      %v2409 = vadd.f32 %v2407, %v2408
      %v2410 = vsel %vm1923, %v2332, 0.0
      %v2411 = vadd.f32 %v2409, %v2410
      %v2412 = vsel %vm1923, %v2333, 0.0
      %v2413 = vadd.f32 %v2411, %v2412
      %v2414 = vsel %vm1923, %v2334, 0.0
      %v2415 = vadd.f32 %v2413, %v2414
      %v2416 = vsel %vm1923, %v2335, 0.0
      %v2417 = vadd.f32 %v2415, %v2416
      %v2418 = vsel %vm1923, %v2336, 0.0
      %v2419 = vadd.f32 %v2417, %v2418
      %v2420 = vsel %vm1923, %v2337, 0.0
      %v2421 = vadd.f32 %v2419, %v2420
      %v2422 = vsel %vm1923, %v2338, 0.0
      %v2423 = vadd.f32 %v2421, %v2422
      %v2424 = vsel %vm1923, %v2339, 0.0
      %v2425 = vadd.f32 %v2423, %v2424
      %v2426 = vsel %vm1923, %v2340, 0.0
      %v2427 = vadd.f32 %v2425, %v2426
      %v2428 = vsel %vm1923, %v2341, 0.0
      %v2429 = vadd.f32 %v2427, %v2428
      %v2430 = vsel %vm1923, %v2342, 0.0
      %v2431 = vadd.f32 %v2429, %v2430
      %v2432 = vsel %vm1923, %v2343, 0.0
      %v2433 = vadd.f32 %v2431, %v2432
      %v2434 = vsel %vm1923, %v2344, 0.0
      %v2435 = vadd.f32 %v2433, %v2434
      %v2436 = vsel %vm1923, %v2345, 0.0
      %v2437 = vadd.f32 %v2435, %v2436
      %v2438 = vsel %vm1923, %v2346, 0.0
      %v2439 = vadd.f32 %v2437, %v2438
      %v2440 = vsel %vm1923, %v2347, 0.0
      %v2441 = vadd.f32 %v2439, %v2440
      %v2442 = vsel %vm1923, %v2348, 0.0
      %v2443 = vadd.f32 %v2441, %v2442
      %v2444 = vsel %vm1923, %v2349, 0.0
      %v2445 = vadd.f32 %v2443, %v2444
      %v2446 = vsel %vm1923, %v2350, 0.0
      %v2447 = vadd.f32 %v2445, %v2446
      %v2448 = vsel %vm1923, %v2351, 0.0
      %v2449 = vadd.f32 %v2447, %v2448
      %v2450 = vsel %vm1923, %v2352, 0.0
      %v2451 = vadd.f32 %v2449, %v2450
      %v2452 = vsel %vm1923, %v2353, 0.0
      %v2453 = vadd.f32 %v2451, %v2452
      %v2454 = vsel %vm1923, %v2354, 0.0
      %v2455 = vadd.f32 %v2453, %v2454
      %v2456 = vsel %vm1923, %v2355, 0.0
      %v2457 = vadd.f32 %v2455, %v2456
      %v2458 = vsel %vm1923, %v2356, 0.0
      %v2459 = vadd.f32 %v2457, %v2458
      %v2460 = vsel %vm1923, %v2357, 0.0
      %v2461 = vadd.f32 %v2459, %v2460
      %v2462 = vsel %vm1923, %v2358, 0.0
      %v2463 = vadd.f32 %v2461, %v2462
      %v2464 = vsel %vm1923, %v2359, 0.0
      %v2465 = vadd.f32 %v2463, %v2464
      %v2466 = vsel %vm1923, %v2360, 0.0
      %v2467 = vadd.f32 %v2465, %v2466
      %v2468 = vsel %vm1923, %v2361, 0.0
      %v2469 = vadd.f32 %v2467, %v2468
      %v2470 = vsel %vm1923, %v2362, 0.0
      %v2471 = vadd.f32 %v2469, %v2470
      %v2472 = vsel %vm1923, %v2363, 0.0
      %v2473 = vadd.f32 %v2471, %v2472
      %v2474 = vsel %vm1923, %v2364, 0.0
      %v2475 = vadd.f32 %v2473, %v2474
      %v2476 = vsel %vm1923, %v2365, 0.0
      %v2477 = vadd.f32 %v2475, %v2476
      %v2478 = vsel %vm1923, %v2366, 0.0
      %v2479 = vadd.f32 %v2477, %v2478
      %v2480 = vsel %vm1923, %v2367, 0.0
      %v2481 = vadd.f32 %v2479, %v2480
      %v2482 = vsel %vm1923, %v2368, 0.0
      %v2483 = vadd.f32 %v2481, %v2482
      %v2484 = vsel %vm1923, %v2369, 0.0
      %v2485 = vadd.f32 %v2483, %v2484
      %v2486 = vsel %vm1923, %v2370, 0.0
      %v2487 = vadd.f32 %v2485, %v2486
      %v2488 = vsel %vm1923, %v2371, 0.0
      %v2489 = vadd.f32 %v2487, %v2488
      %v2490 = vsel %vm1923, %v2372, 0.0
      %v2491 = vadd.f32 %v2489, %v2490
      %v2492 = vsel %vm1923, %v2373, 0.0
      %v2493 = vadd.f32 %v2491, %v2492
      %v2494 = vsel %vm1923, %v2374, 0.0
      %v2495 = vadd.f32 %v2493, %v2494
      %v2496 = vsel %vm1923, %v2375, 0.0
      %v2497 = vadd.f32 %v2495, %v2496
      %v2498 = vsel %vm1923, %v2376, 0.0
      %v2499 = vadd.f32 %v2497, %v2498
      %v2500 = vsel %vm1923, %v2377, 0.0
      %v2501 = vadd.f32 %v2499, %v2500
      %v2502 = vsel %vm1923, %v2378, 0.0
      %v2503 = vadd.f32 %v2501, %v2502
      %v2504 = vsel %vm1923, %v2379, 0.0
      %v2505 = vadd.f32 %v2503, %v2504
      %v2506 = vsel %vm1923, %v2380, 0.0
      %v2507 = vadd.f32 %v2505, %v2506
      %v2508 = vrot.slane %v2507, 4
      %v2509 = vadd.f32 %v2507, %v2508
      %v2510 = vrot.slane %v2509, 2
      %v2511 = vadd.f32 %v2509, %v2510
      %v2512 = vrot.slane %v2511, 1
      %v2513 = vadd.f32 %v2511, %v2512
      %2514 = vst.msk [vmem:[#allocation3] sm:$0xff] %vm1923, %v2316
      %2515 = vst.msk [vmem:[#allocation5] sm:$0xff] %vm1923, %v2513
    $region17: #{resnet_generator_forward.70} parent=1 // pred_fallthru
      _
    // Predicated region
    $region18: #{resnet_generator_forward.70} parent=1 // pred_check
      _
    $region19: #{resnet_generator_forward.70} parent=1 // pred_check_branch
      %2517 = sbr.rel (0) target = $region21
    $region20: #{resnet_generator_forward.70} parent=1 // pred_region
      _
    $region21: #{resnet_generator_forward.70} parent=1 // pred_fallthru
      _
    // Predicated region
    $region22: #{resnet_generator_forward.70} parent=1 // pred_check
      _
    $region23: #{resnet_generator_forward.70} parent=1 // pred_check_branch
      %2519 = sbr.rel (0) target = $region25
    $region24: #{resnet_generator_forward.70} parent=1 // pred_region
      %2521 = vsyncadd [#allocation4], 0
      %s2523 = sshll.u32 [#allocation3], 4
      %s2524 = int_to_ptr.vmem [resolvable:$true] %s2523
      %s2525 = sshll.u32 %s3, 4
      %s2526 = int_to_ptr.hbm [resolvable:$true] %s2525
      %2528 = dma.vmem_to_hbm [thread:$0]  %s2524, 128, %s2526, [#allocation4]
    $region25: #{resnet_generator_forward.70} parent=1 // pred_fallthru
      _
    // Predicated region
    $region26: #{resnet_generator_forward.70} parent=1 // pred_check
      _
    $region27: #{resnet_generator_forward.70} parent=1 // pred_check_branch
      %2530 = sbr.rel (0) target = $region29
    $region28: #{resnet_generator_forward.70} parent=1 // pred_region
      %2532 = vsyncadd [#allocation6], 0
      %s2534 = sshll.u32 [#allocation5], 4
      %s2535 = int_to_ptr.vmem [resolvable:$true] %s2534
      %s2536 = sshll.u32 %s4, 4
      %s2537 = int_to_ptr.hbm [resolvable:$true] %s2536
      %2539 = dma.vmem_to_hbm [thread:$0]  %s2535, 128, %s2537, [#allocation6]
    $region29: #{resnet_generator_forward.70} parent=1 // pred_fallthru
      _
    // Predicated region
    $region30: #{resnet_generator_forward.70} parent=1 // pred_check
      _
    $region31: #{resnet_generator_forward.70} parent=1 // pred_check_branch
      %2541 = sbr.rel (0) target = $region33
    $region32: #{resnet_generator_forward.70} parent=1 // pred_region
      _
    $region33: #{resnet_generator_forward.70} parent=1 // pred_fallthru
      _
    // Predicated region
    $region34: #{resnet_generator_forward.70} parent=1 // pred_check
      _
    $region35: #{resnet_generator_forward.70} parent=1 // pred_check_branch
      %2543 = sbr.rel (0) target = $region37
    $region36: #{resnet_generator_forward.70} parent=1 // pred_region
      %2545 = dma.done [#allocation4], 128
    $region37: #{resnet_generator_forward.70} parent=1 // pred_fallthru
      _
    // Predicated region
    $region38: #{resnet_generator_forward.70} parent=1 // pred_check
      _
    $region39: #{resnet_generator_forward.70} parent=1 // pred_check_branch
      %2547 = sbr.rel (0) target = $region41
    $region40: #{resnet_generator_forward.70} parent=1 // pred_region
      %2549 = dma.done [#allocation6], 128
    $region41: #{resnet_generator_forward.70} parent=1 // pred_fallthru
      _
    %2550 = vsyncpa [#allocation4], 1
    %2551 = vsyncpa [#allocation6], 1

</llo_original>
